<compile_context>
chip_gen: v7x
topology: tpu7x:2x2x1
jax: 0.10.0
libtpu: 0.0.40
codegen_flags: <defaults>
</compile_context>

<pallas_src>
import jax
import jax.numpy as jnp
from jax import lax
from jax.experimental import pallas as pl
from jax.experimental.pallas import tpu as pltpu

SZ = 1024          # number of points; must equal the MaxPool1d kernel size (sz)
EPS = 1e-5         # PyTorch BatchNorm1d default eps


def _vmem_limit_bytes():
    """Generation-aware VMEM limit (v5e/v6e: 128 MiB physical, v7x: 64 MiB)."""
    limit = 48 * 1024 * 1024
    try:
        cap = int(pltpu.get_tpu_info().vmem_capacity_bytes)
        limit = min((cap * 3) // 4, 100 * 1024 * 1024)
    except Exception:
        pass
    return limit


def _pick_ct(batch):
    """Stage-2 output-channel tile: keep the live (B*N, ct) f32 y2 temporary
    <= ~16 MiB so the same tiling also fits v7x's 64 MiB (48 MiB scoped) VMEM
    at larger batch sizes.  For very large B, chunk over N inside the tile
    instead (sum/ss/max/min accumulate cleanly over N-chunks)."""
    ct = 256
    if batch * SZ * ct * 4 > 16 * 1024 * 1024:
        ct = 128
    return ct


def _bn_train(y, gamma, beta):
    """Training-mode BatchNorm1d over axis 0 (biased variance, eps=1e-5).

    Single pass: sum + sum-of-squares, var = E[y^2]-E[y]^2 (clamped at 0), then
    one fused `scale*y + shift` sweep.  Statistics stay in f32.  (For these
    activations |mean| ~ std, so the single-pass form does not lose precision;
    use a shifted / two-pass form if that ever changes.)
    """
    n = y.shape[0]
    s = jnp.sum(y, axis=0, keepdims=True)
    ss = jnp.sum(y * y, axis=0, keepdims=True)
    mean = s * (1.0 / n)
    var = jnp.maximum(ss * (1.0 / n) - mean * mean, 0.0)
    scale = gamma * lax.rsqrt(var + EPS)
    shift = beta - scale * mean
    return scale * y + shift


# --------------------------------------------------------------------------- #
# Kernel A: stage 1 of the point-wise MLP (mlpl2: Conv1d(64->128,k=1) -> bn2   #
# -> relu).  Runs once; writes h1 in the matmul dtype plus its f32 column sum. #
# --------------------------------------------------------------------------- #
def _stage1_kernel(x_ref, w2_ref, g2_ref, be2_ref, h1_ref, colsum_ref):
    B, N, C = x_ref.shape
    md = w2_ref.dtype
    x = x_ref[...].reshape(B * N, C).astype(md)        # cast on the VPU (slack)
    # mlpl2; the conv bias is dropped (cancelled exactly by training-mode bn2).
    y1 = jnp.dot(x, w2_ref[...], preferred_element_type=jnp.float32)
    h1 = jnp.maximum(_bn_train(y1, g2_ref[...], be2_ref[...]), 0.0)
    h1_md = h1.astype(h1_ref.dtype)
    h1_ref[...] = h1_md
    # f32 per-input-channel sum of h1 *as stored* (i.e. after the matmul-dtype
    # rounding, so it is consistent with what the stage-2 MXU consumes).  The
    # stage-2 kernel turns this (1, 128) vector into the per-output-channel sum
    # of y2 with a tiny matmul instead of a (B*N, ct) VPU reduction per tile.
    colsum_ref[...] = jnp.sum(h1_md.astype(jnp.float32), axis=0, keepdims=True)


def _stage1(x, p):
    B, N, C = x.shape
    assert N == SZ, "MaxPool1d(sz) semantics require N == SZ points"
    md = p["w_mlp2"].dtype
    H1 = p["w_mlp2"].shape[1]                          # 128
    full3 = lambda i: (0, 0, 0)
    full2 = lambda i: (0, 0)
    return pl.pallas_call(
        _stage1_kernel,
        out_shape=(jax.ShapeDtypeStruct((B * N, H1), md),
                   jax.ShapeDtypeStruct((1, H1), jnp.float32)),
        grid=(1,),
        in_specs=[
            pl.BlockSpec((B, N, C), full3),            # x (f32; cast in-kernel)
            pl.BlockSpec((C, H1), full2),              # w_mlp2 (matmul dtype)
            pl.BlockSpec((1, H1), full2),              # g_bn2
            pl.BlockSpec((1, H1), full2),              # be_bn2
        ],
        out_specs=(pl.BlockSpec((B * N, H1), full2),   # h1
                   pl.BlockSpec((1, H1), full2)),      # colsum(h1), f32
        compiler_params=pltpu.CompilerParams(
            dimension_semantics=("arbitrary",),
            vmem_limit_bytes=_vmem_limit_bytes()),
    )(x, p["w_mlp2"], p["g_bn2"], p["be_bn2"])


# --------------------------------------------------------------------------- #
# Kernel B: stage 2 (mlpl3: Conv1d(128->1024,k=1) -> bn1 -> relu) fused with   #
# MaxPool1d(N), tiled over the 1024 output channels.  Tiles are independent    #
# ("parallel" grid axis -> megacore-sharded on v7x); the (B*N, 1024) post-BN   #
# activation is never materialized: BN is a per-channel affine map, so         #
#   max_n relu(a*y + c) == max(relu(a*max_n y + c), relu(a*min_n y + c), 0).   #
# --------------------------------------------------------------------------- #
def _stage2_pool_kernel(h1_ref, colsum_ref, w3_ref, g1_ref, be1_ref, out_ref):
    BN_, _ = h1_ref.shape
    B = out_ref.shape[0]
    N = BN_ // B
    inv_n = 1.0 / BN_

    # mlpl3 restricted to this tile's output channels.  The conv bias is
    # dropped (cancelled exactly by training-mode bn1).
    y2 = jnp.dot(h1_ref[...], w3_ref[...],
                 preferred_element_type=jnp.float32)           # (B*N, ct) f32

    # Per-channel sum via the matmul identity sum_n(h1 @ w3) = colsum(h1) @ w3
    # -- an essentially-free extra MXU row instead of ~B*N*ct VPU adds.  Kept in
    # f32 so the BN mean is not perturbed by rounding of a 2048-term sum.
    s = jnp.dot(colsum_ref[...], w3_ref[...].astype(jnp.float32),
                preferred_element_type=jnp.float32)            # (1, ct)
    ss = jnp.sum(y2 * y2, axis=0, keepdims=True)               # (1, ct)
    mean = s * inv_n
    var = jnp.maximum(ss * inv_n - mean * mean, 0.0)
    scale = g1_ref[...] * lax.rsqrt(var + EPS)                 # (1, ct)
    shift = be1_ref[...] - scale * mean                        # (1, ct)

    y2b = y2.reshape(B, N, y2.shape[-1])
    mx = jnp.max(y2b, axis=1)                                  # (B, ct)
    mn = jnp.min(y2b, axis=1)                                  # (B, ct)
    # max of the two candidates handles either sign of `scale` (i.e. of gamma).
    out_ref[...] = jnp.maximum(
        jnp.maximum(scale * mx + shift, scale * mn + shift), 0.0)


def _stage2_pool(h1, colsum, p, batch):
    BN_, H1 = h1.shape
    H2 = p["w_mlp3"].shape[1]                          # 1024
    ct = _pick_ct(batch)
    assert H2 % ct == 0
    whole = lambda j: (0, 0)
    tile = lambda j: (0, j)
    return pl.pallas_call(
        _stage2_pool_kernel,
        out_shape=jax.ShapeDtypeStruct((batch, H2), jnp.float32),
        grid=(H2 // ct,),
        in_specs=[
            pl.BlockSpec((BN_, H1), whole),            # h1 (resident)
            pl.BlockSpec((1, H1), whole),              # colsum(h1), f32
            pl.BlockSpec((H1, ct), tile),              # w_mlp3 column tile
            pl.BlockSpec((1, ct), tile),               # g_bn1 tile
            pl.BlockSpec((1, ct), tile),               # be_bn1 tile
        ],
        out_specs=pl.BlockSpec((batch, ct), tile),     # lane-dense output tile
        compiler_params=pltpu.CompilerParams(
            dimension_semantics=("parallel",),         # tiles fully independent
            vmem_limit_bytes=_vmem_limit_bytes()),
    )(h1, colsum, p["w_mlp3"], p["g_bn1"], p["be_bn1"])


# --------------------------------------------------------------------------- #
# Kernel C: FC head  fc1->bn4->relu  fc2->bn5->relu  fc3  + flattened identity #
# Single grid step: all weights (~3.4 MiB in bf16) are VMEM-resident, nothing  #
# is recomputed, and the kernel is purely weight-DMA bound.                    #
# --------------------------------------------------------------------------- #
def _fc_head_kernel(p_ref, wf1_ref, bf1_ref, g4_ref, be4_ref,
                    wf2_ref, bf2_ref, g5_ref, be5_ref,
                    wf3_ref, bf3_ref, iden_ref, out_ref):
    md = wf1_ref.dtype
    h = jnp.dot(p_ref[...].astype(md), wf1_ref[...],
                preferred_element_type=jnp.float32) + bf1_ref[...]     # (B, 512)
    h = jnp.maximum(_bn_train(h, g4_ref[...], be4_ref[...]), 0.0)
    h = jnp.dot(h.astype(md), wf2_ref[...],
                preferred_element_type=jnp.float32) + bf2_ref[...]     # (B, 256)
    h = jnp.maximum(_bn_train(h, g5_ref[...], be5_ref[...]), 0.0)
    y = jnp.dot(h.astype(md), wf3_ref[...],
                preferred_element_type=jnp.float32) + bf3_ref[...]     # (B, 4096)
    out_ref[...] = y + iden_ref[...]


def _fc_head(pooled, p):
    B, H2 = pooled.shape                               # (B, 1024)
    D1 = p["w_fc1"].shape[1]                           # 512
    D2 = p["w_fc2"].shape[1]                           # 256
    D3 = p["w_fc3"].shape[1]                           # 4096
    whole = lambda i: (0, 0)
    return pl.pallas_call(
        _fc_head_kernel,
        out_shape=jax.ShapeDtypeStruct((B, D3), jnp.float32),
        grid=(1,),
        in_specs=[
            pl.BlockSpec((B, H2), whole),              # pooled (f32; cast in-kernel)
            pl.BlockSpec((H2, D1), whole),             # w_fc1
            pl.BlockSpec((1, D1), whole),              # b_fc1
            pl.BlockSpec((1, D1), whole),              # g_bn4
            pl.BlockSpec((1, D1), whole),              # be_bn4
            pl.BlockSpec((D1, D2), whole),             # w_fc2
            pl.BlockSpec((1, D2), whole),              # b_fc2
            pl.BlockSpec((1, D2), whole),              # g_bn5
            pl.BlockSpec((1, D2), whole),              # be_bn5
            pl.BlockSpec((D2, D3), whole),             # w_fc3
            pl.BlockSpec((1, D3), whole),              # b_fc3
            pl.BlockSpec((1, D3), whole),              # iden
        ],
        out_specs=pl.BlockSpec((B, D3), whole),        # lane-dense (4096)
        compiler_params=pltpu.CompilerParams(
            dimension_semantics=("arbitrary",),
            vmem_limit_bytes=_vmem_limit_bytes()),
    )(pooled, p["w_fc1"], p["b_fc1"], p["g_bn4"], p["be_bn4"],
      p["w_fc2"], p["b_fc2"], p["g_bn5"], p["be_bn5"],
      p["w_fc3"], p["b_fc3"], p["iden"])


# ------------------------------ public entry points ------------------------- #
def prepare_params(params, matmul_dtype=jnp.bfloat16):
    """One-time cast of the matmul weights to the MXU dtype (hoisted out of the
    per-call forward).  Biases and BN parameters stay f32."""
    md = jnp.dtype(matmul_dtype)
    p = dict(params)
    for k in ("w_mlp2", "w_mlp3", "w_fc1", "w_fc2", "w_fc3"):
        p[k] = params[k].astype(md)
    return p


@jax.jit
def t_net_2_pooled(x, prepared):
    """Point-MLP + BN + ReLU + global max pool: (B, N=1024, 64) -> (B, 1024)."""
    h1, colsum = _stage1(x, prepared)
    return _stage2_pool(h1, colsum, prepared, x.shape[0])


@jax.jit
def t_net_2_forward(x, prepared):
    """Full forward: x (B, N=1024, 64) f32 -> (B, 4096) f32 (training-mode BN)."""
    h1, colsum = _stage1(x, prepared)
    pooled = _stage2_pool(h1, colsum, prepared, x.shape[0])
    return _fc_head(pooled, prepared)


# ------------------------- pure-JAX reference (glue) ------------------------ #
def reference_forward(x, p, matmul_dtype=jnp.float32):
    """Straightforward reference: keeps all biases, materializes h2, applies
    max AFTER BN+ReLU."""
    md = jnp.dtype(matmul_dtype)
    B, N, C = x.shape
    h1 = jnp.maximum(_bn_train(
        jnp.dot(x.astype(md).reshape(B * N, C), p["w_mlp2"].astype(md),
                preferred_element_type=jnp.float32) + p["b_mlp2"],
        p["g_bn2"], p["be_bn2"]), 0.0).astype(md)
    h2 = jnp.maximum(_bn_train(
        jnp.dot(h1, p["w_mlp3"].astype(md),
                preferred_element_type=jnp.float32) + p["b_mlp3"],
        p["g_bn1"], p["be_bn1"]), 0.0)
    pooled = jnp.max(h2.reshape(B, N, -1), axis=1)
    y = jnp.maximum(_bn_train(
        jnp.dot(pooled.astype(md), p["w_fc1"].astype(md),
                preferred_element_type=jnp.float32) + p["b_fc1"],
        p["g_bn4"], p["be_bn4"]), 0.0)
    y = jnp.maximum(_bn_train(
        jnp.dot(y.astype(md), p["w_fc2"].astype(md),
                preferred_element_type=jnp.float32) + p["b_fc2"],
        p["g_bn5"], p["be_bn5"]), 0.0)
    y = jnp.dot(y.astype(md), p["w_fc3"].astype(md),
                preferred_element_type=jnp.float32) + p["b_fc3"]
    return y + p["iden"], pooled


def init_params(key):
    ks = jax.random.split(key, 18)

    def lin(kw, kb, fan_in, fan_out):
        bound = 1.0 / float(fan_in) ** 0.5
        w = jax.random.uniform(kw, (fan_in, fan_out), jnp.float32, -bound, bound)
        b = jax.random.uniform(kb, (1, fan_out), jnp.float32, -bound, bound)
        return w, b

    def bn(kg, kb, c):
        g = 1.0 + 0.1 * jax.random.normal(kg, (1, c), jnp.float32)
        b = 0.1 * jax.random.normal(kb, (1, c), jnp.float32)
        return g, b

    p = {}
    p["w_mlp2"], p["b_mlp2"] = lin(ks[0], ks[1], 64, 128)      # Conv1d(64,128,1)
    p["g_bn2"], p["be_bn2"] = bn(ks[2], ks[3], 128)            # BatchNorm1d(128)
    p["w_mlp3"], p["b_mlp3"] = lin(ks[4], ks[5], 128, 1024)    # Conv1d(128,1024,1)
    p["g_bn1"], p["be_bn1"] = bn(ks[6], ks[7], 1024)           # BatchNorm1d(1024)
    p["w_fc1"], p["b_fc1"] = lin(ks[8], ks[9], 1024, 512)      # Linear(1024,512)
    p["g_bn4"], p["be_bn4"] = bn(ks[10], ks[11], 512)          # BatchNorm1d(512)
    p["w_fc2"], p["b_fc2"] = lin(ks[12], ks[13], 512, 256)     # Linear(512,256)
    p["g_bn5"], p["be_bn5"] = bn(ks[14], ks[15], 256)          # BatchNorm1d(256)
    p["w_fc3"], p["b_fc3"] = lin(ks[16], ks[17], 256, 4096)    # Linear(256,4096)
    p["iden"] = jnp.eye(64, dtype=jnp.float32).reshape(1, 4096)  # eye(64).flatten()
    # TODO(synk): mlpl1 / bn3 are defined in __init__ but never used by forward,
    # so they are intentionally not implemented.
    return p


if __name__ == "__main__":
    key = jax.random.PRNGKey(0)
    pkey, xkey = jax.random.split(key)
    params = init_params(pkey)

    B = 2
    # Input to the PyTorch forward (before its transpose(2,1)): (B, N=1024, 64)
    x = jax.random.normal(xkey, (B, SZ, 64), jnp.float32)

    ref_out, ref_pooled = reference_forward(x, params, jnp.float32)
    ref_out = jax.block_until_ready(ref_out)

    params_f32 = prepare_params(params, jnp.float32)    # exact-semantics path
    params_bf16 = prepare_params(params, jnp.bfloat16)  # production path

    # (1) Exact-semantics check of the stage-1/stage-2 kernels (f32 matmuls):
    #     validates the channel-tiled BN folding, the bias cancellation and the
    #     sum-via-colsum@w3 identity against the straightforward reference.
    pooled32 = jax.block_until_ready(t_net_2_pooled(x, params_f32))
    err = float(jnp.max(jnp.abs(pooled32 - ref_pooled)) /
                (jnp.max(jnp.abs(ref_pooled)) + 1e-6))
    assert err < 1e-3, f"pooled (f32) mismatch vs reference: rel_err={err}"

    # (2) Same kernels in the default bf16-matmul configuration vs the f32 ref.
    pooled_bf = jax.block_until_ready(t_net_2_pooled(x, params_bf16))
    err = float(jnp.max(jnp.abs(pooled_bf - ref_pooled)) /
                (jnp.max(jnp.abs(ref_pooled)) + 1e-6))
    assert err < 5e-2, f"pooled (bf16) mismatch vs reference: rel_err={err}"

    # (3) End-to-end f32 check against the pure-JAX reference.
    out32 = jax.block_until_ready(t_net_2_forward(x, params_f32))
    assert out32.shape == (B, 4096) and out32.dtype == jnp.float32
    err = float(jnp.max(jnp.abs(out32 - ref_out)) / (jnp.max(jnp.abs(ref_out)) + 1e-6))
    assert err < 5e-2, f"forward (f32) mismatch vs reference: rel_err={err}"

    # (4) Default (bf16-matmul) forward — the performance configuration.
    #     With B=2, training-mode BatchNorm in the FC head reduces every channel
    #     to the sign of a 2-sample difference, so a pointwise bf16-vs-f32 bound
    #     is not meaningful there (check (2) covers the bf16 numerics).
    out = jax.block_until_ready(t_net_2_forward(x, params_bf16))
    assert out.shape == (B, 4096) and out.dtype == jnp.float32
    assert bool(jnp.all(jnp.isfinite(out)))

    print("KERNEL_OK")
</pallas_src>

<mosaic_0001>
module attributes {stable_mosaic.version = 11 : i64} {
  func.func @_stage2_pool_kernel(%arg0: i32, %arg1: memref<2048x128xf32, #tpu.memory_space<vmem>>, %arg2: memref<1x128xf32, #tpu.memory_space<vmem>>, %arg3: memref<128x256xf32, #tpu.memory_space<vmem>>, %arg4: memref<1x256xf32, #tpu.memory_space<vmem>>, %arg5: memref<1x256xf32, #tpu.memory_space<vmem>>, %arg6: memref<2x256xf32, #tpu.memory_space<vmem>>) attributes {dimension_semantics = [#tpu.dimension_semantics<parallel>], iteration_bounds = array<i64: 4>, scalar_prefetch = 0 : i64, scratch_operands = 0 : i64, tpu.core_type = #tpu.core_type<tc>, window_params = [{pipeline_mode = #tpu.pipeline_mode<synchronous>, transform_indices = @transform_0, window_bounds = array<i64: 2048, 128>}, {pipeline_mode = #tpu.pipeline_mode<synchronous>, transform_indices = @transform_1, window_bounds = array<i64: 1, 128>}, {transform_indices = @transform_2, window_bounds = array<i64: 128, 256>}, {transform_indices = @transform_3, window_bounds = array<i64: 1, 256>}, {transform_indices = @transform_4, window_bounds = array<i64: 1, 256>}, {transform_indices = @transform_5, window_bounds = array<i64: 2, 256>}]} {
    %c0 = arith.constant 0 : index
    %c0_0 = arith.constant 0 : index
    %0 = vector.load %arg1[%c0, %c0_0] : memref<2048x128xf32, #tpu.memory_space<vmem>>, vector<2048x128xf32>
    %c0_1 = arith.constant 0 : index
    %c0_2 = arith.constant 0 : index
    %1 = vector.load %arg3[%c0_1, %c0_2] : memref<128x256xf32, #tpu.memory_space<vmem>>, vector<128x256xf32>
    %cst = arith.constant dense<0.000000e+00> : vector<2048x256xf32>
    %2 = tpu.matmul %0, %1, %cst {dimension_numbers = #tpu.dot_dimension_numbers<[1], [0], [0], [1], [0, 0, 1, 1], [], []>} : vector<2048x128xf32>, vector<128x256xf32>, vector<2048x256xf32> -> vector<2048x256xf32>
    %c0_3 = arith.constant 0 : index
    %c0_4 = arith.constant 0 : index
    %3 = vector.load %arg2[%c0_3, %c0_4] : memref<1x128xf32, #tpu.memory_space<vmem>>, vector<1x128xf32>
    %c0_5 = arith.constant 0 : index
    %c0_6 = arith.constant 0 : index
    %4 = vector.load %arg3[%c0_5, %c0_6] : memref<128x256xf32, #tpu.memory_space<vmem>>, vector<128x256xf32>
    %cst_7 = arith.constant dense<0.000000e+00> : vector<1x256xf32>
    %5 = tpu.matmul %3, %4, %cst_7 {dimension_numbers = #tpu.dot_dimension_numbers<[1], [0], [0], [1], [0, 0, 1, 1], [], []>} : vector<1x128xf32>, vector<128x256xf32>, vector<1x256xf32> -> vector<1x256xf32>
    %6 = arith.mulf %2, %2 : vector<2048x256xf32>
    %cst_8 = arith.constant dense<0.000000e+00> : vector<256xf32>
    %7 = vector.multi_reduction <add>, %6, %cst_8 [0] : vector<2048x256xf32> to vector<256xf32>
    %8 = vector.shape_cast %7 : vector<256xf32> to vector<1x256xf32>
    %cst_9 = arith.constant 4.8828125E-4 : f32
    %9 = vector.broadcast %cst_9 : f32 to vector<1x256xf32>
    %10 = arith.mulf %5, %9 : vector<1x256xf32>
    %cst_10 = arith.constant 4.8828125E-4 : f32
    %11 = vector.broadcast %cst_10 : f32 to vector<1x256xf32>
    %12 = arith.mulf %8, %11 : vector<1x256xf32>
    %13 = arith.mulf %10, %10 : vector<1x256xf32>
    %14 = arith.subf %12, %13 : vector<1x256xf32>
    %cst_11 = arith.constant 0.000000e+00 : f32
    %15 = vector.broadcast %cst_11 : f32 to vector<1x256xf32>
    %16 = arith.maximumf %14, %15 : vector<1x256xf32>
    %c0_12 = arith.constant 0 : index
    %c0_13 = arith.constant 0 : index
    %17 = vector.load %arg4[%c0_12, %c0_13] : memref<1x256xf32, #tpu.memory_space<vmem>>, vector<1x256xf32>
    %cst_14 = arith.constant 9.99999974E-6 : f32
    %18 = vector.broadcast %cst_14 : f32 to vector<1x256xf32>
    %19 = arith.addf %16, %18 : vector<1x256xf32>
    %20 = math.rsqrt %19 : vector<1x256xf32>
    %21 = arith.mulf %17, %20 : vector<1x256xf32>
    %c0_15 = arith.constant 0 : index
    %c0_16 = arith.constant 0 : index
    %22 = vector.load %arg5[%c0_15, %c0_16] : memref<1x256xf32, #tpu.memory_space<vmem>>, vector<1x256xf32>
    %23 = arith.mulf %21, %10 : vector<1x256xf32>
    %24 = arith.subf %22, %23 : vector<1x256xf32>
    %25 = vector.shape_cast %2 : vector<2048x256xf32> to vector<2x1024x256xf32>
    %cst_17 = arith.constant dense<0xFF800000> : vector<2x256xf32>
    %26 = vector.multi_reduction <maximumf>, %25, %cst_17 [1] : vector<2x1024x256xf32> to vector<2x256xf32>
    %cst_18 = arith.constant dense<0x7F800000> : vector<2x256xf32>
    %27 = vector.multi_reduction <minimumf>, %25, %cst_18 [1] : vector<2x1024x256xf32> to vector<2x256xf32>
    %28 = vector.broadcast %21 : vector<1x256xf32> to vector<2x256xf32>
    %29 = arith.mulf %28, %26 : vector<2x256xf32>
    %30 = vector.broadcast %24 : vector<1x256xf32> to vector<2x256xf32>
    %31 = arith.addf %29, %30 : vector<2x256xf32>
    %32 = vector.broadcast %21 : vector<1x256xf32> to vector<2x256xf32>
    %33 = arith.mulf %32, %27 : vector<2x256xf32>
    %34 = vector.broadcast %24 : vector<1x256xf32> to vector<2x256xf32>
    %35 = arith.addf %33, %34 : vector<2x256xf32>
    %36 = arith.maximumf %31, %35 : vector<2x256xf32>
    %cst_19 = arith.constant 0.000000e+00 : f32
    %37 = vector.broadcast %cst_19 : f32 to vector<2x256xf32>
    %38 = arith.maximumf %36, %37 : vector<2x256xf32>
    %c0_20 = arith.constant 0 : index
    %c0_21 = arith.constant 0 : index
    %39 = vector.load %arg6[%c0_20, %c0_21] : memref<2x256xf32, #tpu.memory_space<vmem>>, vector<2x256xf32>
    tpu.vector_store %arg6[%c0_20, %c0_21], %38 {strides = array<i32>} : memref<2x256xf32, #tpu.memory_space<vmem>>, vector<2x256xf32>,
    return
  }
  func.func @transform_0(%arg0: i32) -> (i32, i32) {
    %c0_i32 = arith.constant 0 : i32
    %c0_i32_0 = arith.constant 0 : i32
    %c0_i32_1 = arith.constant 0 : i32
    return %c0_i32, %c0_i32_0 : i32, i32
  }
  func.func @transform_1(%arg0: i32) -> (i32, i32) {
    %c0_i32 = arith.constant 0 : i32
    %c0_i32_0 = arith.constant 0 : i32
    %c0_i32_1 = arith.constant 0 : i32
    return %c0_i32, %c0_i32_0 : i32, i32
  }
  func.func @transform_2(%arg0: i32) -> (i32, i32) {
    %c0_i32 = arith.constant 0 : i32
    %c0_i32_0 = arith.constant 0 : i32
    return %c0_i32, %arg0 : i32, i32
  }
  func.func @transform_3(%arg0: i32) -> (i32, i32) {
    %c0_i32 = arith.constant 0 : i32
    %c0_i32_0 = arith.constant 0 : i32
    return %c0_i32, %arg0 : i32, i32
  }
  func.func @transform_4(%arg0: i32) -> (i32, i32) {
    %c0_i32 = arith.constant 0 : i32
    %c0_i32_0 = arith.constant 0 : i32
    return %c0_i32, %arg0 : i32, i32
  }
  func.func @transform_5(%arg0: i32) -> (i32, i32) {
    %c0_i32 = arith.constant 0 : i32
    %c0_i32_0 = arith.constant 0 : i32
    return %c0_i32, %arg0 : i32, i32
  }
}

module attributes {stable_mosaic.version = 11 : i64} {
  func.func @_stage1_kernel(%arg0: i32, %arg1: memref<2x1024x64xf32, #tpu.memory_space<vmem>>, %arg2: memref<64x128xf32, #tpu.memory_space<vmem>>, %arg3: memref<1x128xf32, #tpu.memory_space<vmem>>, %arg4: memref<1x128xf32, #tpu.memory_space<vmem>>, %arg5: memref<2048x128xf32, #tpu.memory_space<vmem>>, %arg6: memref<1x128xf32, #tpu.memory_space<vmem>>) attributes {dimension_semantics = [#tpu.dimension_semantics<arbitrary>], iteration_bounds = array<i64: 1>, scalar_prefetch = 0 : i64, scratch_operands = 0 : i64, tpu.core_type = #tpu.core_type<tc>, window_params = [{pipeline_mode = #tpu.pipeline_mode<synchronous>, transform_indices = @transform_0, window_bounds = array<i64: 2, 1024, 64>}, {pipeline_mode = #tpu.pipeline_mode<synchronous>, transform_indices = @transform_1, window_bounds = array<i64: 64, 128>}, {pipeline_mode = #tpu.pipeline_mode<synchronous>, transform_indices = @transform_2, window_bounds = array<i64: 1, 128>}, {pipeline_mode = #tpu.pipeline_mode<synchronous>, transform_indices = @transform_3, window_bounds = array<i64: 1, 128>}, {pipeline_mode = #tpu.pipeline_mode<synchronous>, transform_indices = @transform_4, window_bounds = array<i64: 2048, 128>}, {pipeline_mode = #tpu.pipeline_mode<synchronous>, transform_indices = @transform_5, window_bounds = array<i64: 1, 128>}]} {
    %c0 = arith.constant 0 : index
    %c0_0 = arith.constant 0 : index
    %c0_1 = arith.constant 0 : index
    %0 = vector.load %arg1[%c0, %c0_0, %c0_1] : memref<2x1024x64xf32, #tpu.memory_space<vmem>>, vector<2x1024x64xf32>
    %1 = vector.shape_cast %0 : vector<2x1024x64xf32> to vector<2048x64xf32>
    %c0_2 = arith.constant 0 : index
    %c0_3 = arith.constant 0 : index
    %2 = vector.load %arg2[%c0_2, %c0_3] : memref<64x128xf32, #tpu.memory_space<vmem>>, vector<64x128xf32>
    %cst = arith.constant dense<0.000000e+00> : vector<2048x128xf32>
    %3 = tpu.matmul %1, %2, %cst {dimension_numbers = #tpu.dot_dimension_numbers<[1], [0], [0], [1], [0, 0, 1, 1], [], []>} : vector<2048x64xf32>, vector<64x128xf32>, vector<2048x128xf32> -> vector<2048x128xf32>
    %c0_4 = arith.constant 0 : index
    %c0_5 = arith.constant 0 : index
    %4 = vector.load %arg3[%c0_4, %c0_5] : memref<1x128xf32, #tpu.memory_space<vmem>>, vector<1x128xf32>
    %c0_6 = arith.constant 0 : index
    %c0_7 = arith.constant 0 : index
    %5 = vector.load %arg4[%c0_6, %c0_7] : memref<1x128xf32, #tpu.memory_space<vmem>>, vector<1x128xf32>
    %cst_8 = arith.constant dense<0.000000e+00> : vector<128xf32>
    %6 = vector.multi_reduction <add>, %3, %cst_8 [0] : vector<2048x128xf32> to vector<128xf32>
    %7 = vector.shape_cast %6 : vector<128xf32> to vector<1x128xf32>
    %8 = arith.mulf %3, %3 : vector<2048x128xf32>
    %cst_9 = arith.constant dense<0.000000e+00> : vector<128xf32>
    %9 = vector.multi_reduction <add>, %8, %cst_9 [0] : vector<2048x128xf32> to vector<128xf32>
    %10 = vector.shape_cast %9 : vector<128xf32> to vector<1x128xf32>
    %cst_10 = arith.constant 4.8828125E-4 : f32
    %11 = vector.broadcast %cst_10 : f32 to vector<1x128xf32>
    %12 = arith.mulf %7, %11 : vector<1x128xf32>
    %cst_11 = arith.constant 4.8828125E-4 : f32
    %13 = vector.broadcast %cst_11 : f32 to vector<1x128xf32>
    %14 = arith.mulf %10, %13 : vector<1x128xf32>
    %15 = arith.mulf %12, %12 : vector<1x128xf32>
    %16 = arith.subf %14, %15 : vector<1x128xf32>
    %cst_12 = arith.constant 0.000000e+00 : f32
    %17 = vector.broadcast %cst_12 : f32 to vector<1x128xf32>
    %18 = arith.maximumf %16, %17 : vector<1x128xf32>
    %cst_13 = arith.constant 9.99999974E-6 : f32
    %19 = vector.broadcast %cst_13 : f32 to vector<1x128xf32>
    %20 = arith.addf %18, %19 : vector<1x128xf32>
    %21 = math.rsqrt %20 : vector<1x128xf32>
    %22 = arith.mulf %4, %21 : vector<1x128xf32>
    %23 = arith.mulf %22, %12 : vector<1x128xf32>
    %24 = arith.subf %5, %23 : vector<1x128xf32>
    %25 = vector.broadcast %22 : vector<1x128xf32> to vector<2048x128xf32>
    %26 = arith.mulf %25, %3 : vector<2048x128xf32>
    %27 = vector.broadcast %24 : vector<1x128xf32> to vector<2048x128xf32>
    %28 = arith.addf %26, %27 : vector<2048x128xf32>
    %cst_14 = arith.constant 0.000000e+00 : f32
    %29 = vector.broadcast %cst_14 : f32 to vector<2048x128xf32>
    %30 = arith.maximumf %28, %29 : vector<2048x128xf32>
    %c0_15 = arith.constant 0 : index
    %c0_16 = arith.constant 0 : index
    %31 = vector.load %arg5[%c0_15, %c0_16] : memref<2048x128xf32, #tpu.memory_space<vmem>>, vector<2048x128xf32>
    tpu.vector_store %arg5[%c0_15, %c0_16], %30 {strides = array<i32>} : memref<2048x128xf32, #tpu.memory_space<vmem>>, vector<2048x128xf32>,
    %cst_17 = arith.constant dense<0.000000e+00> : vector<128xf32>
    %32 = vector.multi_reduction <add>, %30, %cst_17 [0] : vector<2048x128xf32> to vector<128xf32>
    %33 = vector.shape_cast %32 : vector<128xf32> to vector<1x128xf32>
    %c0_18 = arith.constant 0 : index
    %c0_19 = arith.constant 0 : index
    %34 = vector.load %arg6[%c0_18, %c0_19] : memref<1x128xf32, #tpu.memory_space<vmem>>, vector<1x128xf32>
    tpu.vector_store %arg6[%c0_18, %c0_19], %33 {strides = array<i32>} : memref<1x128xf32, #tpu.memory_space<vmem>>, vector<1x128xf32>,
    return
  }
  func.func @transform_0(%arg0: i32) -> (i32, i32, i32) {
    %c0_i32 = arith.constant 0 : i32
    %c0_i32_0 = arith.constant 0 : i32
    %c0_i32_1 = arith.constant 0 : i32
    %c0_i32_2 = arith.constant 0 : i32
    return %c0_i32, %c0_i32_0, %c0_i32_1 : i32, i32, i32
  }
  func.func @transform_1(%arg0: i32) -> (i32, i32) {
    %c0_i32 = arith.constant 0 : i32
    %c0_i32_0 = arith.constant 0 : i32
    %c0_i32_1 = arith.constant 0 : i32
    return %c0_i32, %c0_i32_0 : i32, i32
  }
  func.func @transform_2(%arg0: i32) -> (i32, i32) {
    %c0_i32 = arith.constant 0 : i32
    %c0_i32_0 = arith.constant 0 : i32
    %c0_i32_1 = arith.constant 0 : i32
    return %c0_i32, %c0_i32_0 : i32, i32
  }
  func.func @transform_3(%arg0: i32) -> (i32, i32) {
    %c0_i32 = arith.constant 0 : i32
    %c0_i32_0 = arith.constant 0 : i32
    %c0_i32_1 = arith.constant 0 : i32
    return %c0_i32, %c0_i32_0 : i32, i32
  }
  func.func @transform_4(%arg0: i32) -> (i32, i32) {
    %c0_i32 = arith.constant 0 : i32
    %c0_i32_0 = arith.constant 0 : i32
    %c0_i32_1 = arith.constant 0 : i32
    return %c0_i32, %c0_i32_0 : i32, i32
  }
  func.func @transform_5(%arg0: i32) -> (i32, i32) {
    %c0_i32 = arith.constant 0 : i32
    %c0_i32_0 = arith.constant 0 : i32
    %c0_i32_1 = arith.constant 0 : i32
    return %c0_i32, %c0_i32_0 : i32, i32
  }
}

</mosaic_0001>

<llo_original>
// kernel: t_net_2_pooled.3
$region0: #{t_net_2_pooled.3}
  #allocation0 [shape = 'u32[]', space=smem, size = 0x4, offset = 0x4, fixed_abs, tag = 'smem constant byte address 0x4 - core index']
  #allocation1 [shape = 'u32[144,128]{1,0:T(1,128)}', space=vmem, size = 0x12000, scoped, tag = 'internal scratch']
  %s0 = inlined_call_operand.vmem [shape: f32[2048,128], index: 0, kind: input, shape index: {}]
  %s1 = inlined_call_operand.vmem [shape: f32[1,128], index: 1, kind: input, shape index: {}]
  %s2 = inlined_call_operand.vmem [shape: f32[128,1024], index: 2, kind: input, shape index: {}]
  %s3 = inlined_call_operand.vmem [shape: f32[1,1024], index: 3, kind: input, shape index: {}]
  %s4 = inlined_call_operand.vmem [shape: f32[1,1024], index: 4, kind: input, shape index: {}]
  %s5 = inlined_call_operand.hbm [shape: f32[2,1024], index: 5, kind: output, shape index: {}]
  %s6 = sld [smem:[#allocation0]]
  $region76: #{t_net_2_pooled.3} parent=0
    _
  %s8 = ssub.s32 1, %s6
  %s9 = scalar_select 0, %s8, %s6
  $region1: #{t_net_2_pooled.3} parent=0
    #allocation2 [shape = 'u8[262144]{0}', space=vmem, size = 0x40000, scoped, tag = 'input window, operand 2']
    #allocation3 [shape = 'u8[4096]{0}', space=vmem, size = 0x1000, scoped, tag = 'output window, operand 0']
    #allocation4 [shape = 's32[2]{0}', space=sflag, size = 0x8, scoped, tag = 'scoped memory for t_net_2_pooled.3']
    %10 = vsyncpa [#allocation4], 0
    %s11 = scalar_lea.sflag [#allocation4], 1
    %12 = vsyncpa %s11, 0
    loop: start=0, step=1, limit=6
    $region2: #{t_net_2_pooled.3} parent=1 // loop_pre_header
      _
    $region3: #{t_net_2_pooled.3} parent=1 // loop_header
      %s14 = sphi 0, %s18
      %p15 = scmp.ge.s32.totalorder %s14, 6
      %s22 = sphi 0, %s22
      %s24 = sphi 0, %s22
      %s25 = sphi 0, %s24
      %s39 = sphi 0, %s25
      %s43 = sphi 0, %s43
      %s45 = sphi 0, %s43
      %s46 = sphi 0, %s45
      %s60 = sphi 0, %s46
      %s66 = sphi 0, %s68
      %s69 = sphi 0, %s66
      %s70 = sphi 0, %s69
      %s86 = sphi 0, %s70
      %s92 = sphi 0, %s94
      %s95 = sphi 0, %s92
      %s96 = sphi 0, %s95
      %s112 = sphi 0, %s96
      %s118 = sphi 0, %s120
      %s121 = sphi 0, %s118
      %s122 = sphi 0, %s121
      %s138 = sphi 0, %s122
      %s144 = sphi 0, %s146
      %s147 = sphi 0, %s144
      %s148 = sphi 0, %s147
      %s164 = sphi 0, %s148
    $region4: #{t_net_2_pooled.3} parent=1 // loop_header_branch
      %17 = sbr.rel (%p15) target = $region8
    $region5: #{t_net_2_pooled.3} parent=1 // loop_body
      %s19 = ssub.s32 %s14, 1
      %s20 = ssub.s32 %s14, 2
      %s21 = sadd.s32 %s14, 1
      %s23 = sadd.s32 %s22, 1
      %p26 = scmp.eq.s32.totalorder %s14, 3
      %p27 = scmp.ne.s32.totalorder %s22, %s24
      %p28 = scmp.eq.s32.totalorder %s14, 0
      %p29 = por %p27, %p28
      %p30 = scmp.ne.s32.totalorder %s22, %s24
      %p31 = scmp.eq.s32.totalorder %s19, 3
      %p32 = por %p30, %p31
      %p33 = scmp.ne.s32.totalorder %s24, %s25
      %p34 = scmp.eq.s32.totalorder %s19, 0
      %p35 = por %p33, %p34
      %p36 = scmp.ne.s32.totalorder %s24, %s25
      %p37 = scmp.eq.s32.totalorder %s20, 3
      %p38 = por %p36, %p37
      %p40 = scmp.ne.s32.totalorder %s25, %s39
      %p41 = scmp.eq.s32.totalorder %s20, 0
      %p42 = por %p40, %p41
      %s44 = sadd.s32 %s43, 1
      %p47 = scmp.eq.s32.totalorder %s14, 3
      %p48 = scmp.ne.s32.totalorder %s43, %s45
      %p49 = scmp.eq.s32.totalorder %s14, 0
      %p50 = por %p48, %p49
      %p51 = scmp.ne.s32.totalorder %s43, %s45
      %p52 = scmp.eq.s32.totalorder %s19, 3
      %p53 = por %p51, %p52
      %p54 = scmp.ne.s32.totalorder %s45, %s46
      %p55 = scmp.eq.s32.totalorder %s19, 0
      %p56 = por %p54, %p55
      %p57 = scmp.ne.s32.totalorder %s45, %s46
      %p58 = scmp.eq.s32.totalorder %s20, 3
      %p59 = por %p57, %p58
      %p61 = scmp.ne.s32.totalorder %s46, %s60
      %p62 = scmp.eq.s32.totalorder %s20, 0
      %p63 = por %p61, %p62
      %s64 = ssub.s32 %s14, %s21
      %p65 = scmp.eq.s32.totalorder %s64, 0
      %s67 = sadd.s32 %s66, 1
      %s68 = scalar_select %p65, %s66, %s67
      %p71 = pneg %p65
      %p72 = scmp.eq.s32.totalorder %s14, 3
      %p73 = por %p71, %p72
      %p74 = scmp.ne.s32.totalorder %s66, %s69
      %p75 = scmp.eq.s32.totalorder %s14, 0
      %p76 = por %p74, %p75
      %p77 = scmp.ne.s32.totalorder %s66, %s69
      %p78 = scmp.eq.s32.totalorder %s19, 3
      %p79 = por %p77, %p78
      %p80 = scmp.ne.s32.totalorder %s69, %s70
      %p81 = scmp.eq.s32.totalorder %s19, 0
      %p82 = por %p80, %p81
      %p83 = scmp.ne.s32.totalorder %s69, %s70
      %p84 = scmp.eq.s32.totalorder %s20, 3
      %p85 = por %p83, %p84
      %p87 = scmp.ne.s32.totalorder %s70, %s86
      %p88 = scmp.eq.s32.totalorder %s20, 0
      %p89 = por %p87, %p88
      %s90 = ssub.s32 %s14, %s21
      %p91 = scmp.eq.s32.totalorder %s90, 0
      %s93 = sadd.s32 %s92, 1
      %s94 = scalar_select %p91, %s92, %s93
      %p97 = pneg %p91
      %p98 = scmp.eq.s32.totalorder %s14, 3
      %p99 = por %p97, %p98
      %p100 = scmp.ne.s32.totalorder %s92, %s95
      %p101 = scmp.eq.s32.totalorder %s14, 0
      %p102 = por %p100, %p101
      %p103 = scmp.ne.s32.totalorder %s92, %s95
      %p104 = scmp.eq.s32.totalorder %s19, 3
      %p105 = por %p103, %p104
      %p106 = scmp.ne.s32.totalorder %s95, %s96
      %p107 = scmp.eq.s32.totalorder %s19, 0
      %p108 = por %p106, %p107
      %p109 = scmp.ne.s32.totalorder %s95, %s96
      %p110 = scmp.eq.s32.totalorder %s20, 3
      %p111 = por %p109, %p110
      %p113 = scmp.ne.s32.totalorder %s96, %s112
      %p114 = scmp.eq.s32.totalorder %s20, 0
      %p115 = por %p113, %p114
      %s116 = ssub.s32 %s14, %s21
      %p117 = scmp.eq.s32.totalorder %s116, 0
      %s119 = sadd.s32 %s118, 1
      %s120 = scalar_select %p117, %s118, %s119
      %p123 = pneg %p117
      %p124 = scmp.eq.s32.totalorder %s14, 3
      %p125 = por %p123, %p124
      %p126 = scmp.ne.s32.totalorder %s118, %s121
      %p127 = scmp.eq.s32.totalorder %s14, 0
      %p128 = por %p126, %p127
      %p129 = scmp.ne.s32.totalorder %s118, %s121
      %p130 = scmp.eq.s32.totalorder %s19, 3
      %p131 = por %p129, %p130
      %p132 = scmp.ne.s32.totalorder %s121, %s122
      %p133 = scmp.eq.s32.totalorder %s19, 0
      %p134 = por %p132, %p133
      %p135 = scmp.ne.s32.totalorder %s121, %s122
      %p136 = scmp.eq.s32.totalorder %s20, 3
      %p137 = por %p135, %p136
      %p139 = scmp.ne.s32.totalorder %s122, %s138
      %p140 = scmp.eq.s32.totalorder %s20, 0
      %p141 = por %p139, %p140
      %s142 = ssub.s32 %s14, %s21
      %p143 = scmp.eq.s32.totalorder %s142, 0
      %s145 = sadd.s32 %s144, 1
      %s146 = scalar_select %p143, %s144, %s145
      %p149 = pneg %p143
      %p150 = scmp.eq.s32.totalorder %s14, 3
      %p151 = por %p149, %p150
      %p152 = scmp.ne.s32.totalorder %s144, %s147
      %p153 = scmp.eq.s32.totalorder %s14, 0
      %p154 = por %p152, %p153
      %p155 = scmp.ne.s32.totalorder %s144, %s147
      %p156 = scmp.eq.s32.totalorder %s19, 3
      %p157 = por %p155, %p156
      %p158 = scmp.ne.s32.totalorder %s147, %s148
      %p159 = scmp.eq.s32.totalorder %s19, 0
      %p160 = por %p158, %p159
      %p161 = scmp.ne.s32.totalorder %s147, %s148
      %p162 = scmp.eq.s32.totalorder %s20, 3
      %p163 = por %p161, %p162
      %p165 = scmp.ne.s32.totalorder %s148, %s164
      %p166 = scmp.eq.s32.totalorder %s20, 0
      %p167 = por %p165, %p166
      %p168 = scmp.le.s32.totalorder 1, %s14
      %p169 = scmp.lt.s32.totalorder %s14, 5
      %p170 = pnand %p168, %p169
      %p171 = pneg %p170
      // Predicated region
      $region9: #{t_net_2_pooled.3} parent=5 // pred_check
        _
      $region10: #{t_net_2_pooled.3} parent=5 // pred_check_branch
        %173 = sbr.rel (%p170) target = $region12
      $region11: #{t_net_2_pooled.3} parent=5 // pred_region
        %s174 = ssub.s32 %s14, 1
        // Predicated region
        $region13: #{t_net_2_pooled.3} parent=11 // pred_check
          %p175 = pneg %p35
        $region14: #{t_net_2_pooled.3} parent=11 // pred_check_branch
          %177 = sbr.rel (%p175) target = $region16
        $region15: #{t_net_2_pooled.3} parent=11 // pred_region
          _
        $region16: #{t_net_2_pooled.3} parent=11 // pred_fallthru
          _
        // Predicated region
        $region17: #{t_net_2_pooled.3} parent=11 // pred_check
          %p178 = pneg %p56
        $region18: #{t_net_2_pooled.3} parent=11 // pred_check_branch
          %180 = sbr.rel (%p178) target = $region20
        $region19: #{t_net_2_pooled.3} parent=11 // pred_region
          _
        $region20: #{t_net_2_pooled.3} parent=11 // pred_fallthru
          _
      $region12: #{t_net_2_pooled.3} parent=5 // pred_fallthru
        _
      %p181 = scmp.lt.s32.totalorder %s14, 4
      // Predicated region
      $region21: #{t_net_2_pooled.3} parent=5 // pred_check
        %p182 = pneg %p181
      $region22: #{t_net_2_pooled.3} parent=5 // pred_check_branch
        %184 = sbr.rel (%p182) target = $region24
      $region23: #{t_net_2_pooled.3} parent=5 // pred_region
        // Predicated region
        $region25: #{t_net_2_pooled.3} parent=23 // pred_check
          %p185 = pneg %p76
        $region26: #{t_net_2_pooled.3} parent=23 // pred_check_branch
          %187 = sbr.rel (%p185) target = $region28
        $region27: #{t_net_2_pooled.3} parent=23 // pred_region
          %s188 = sand.u32 %s66, 1
          %s189 = sand.u32 %s66, 1
          %s190 = smul.addr %s189, 256
          %s191 = scalar_lea.vmem [#allocation2], %s190
          %s192 = smul.u32 2, %s14
          %s193 = smul.addr %s192, 8
          %s194 = scalar_lea.vmem %s2, %s193
          // Predicated region
          $region29: #{t_net_2_pooled.3} parent=27 // pred_check
            _
          $region30: #{t_net_2_pooled.3} parent=27 // pred_check_branch
            %196 = sbr.rel (0) target = $region32
          $region31: #{t_net_2_pooled.3} parent=27 // pred_region
            // Predicated region
            $region33: #{t_net_2_pooled.3} parent=31 // pred_check
              _
            $region34: #{t_net_2_pooled.3} parent=31 // pred_check_branch
              %198 = sbr.rel (0) target = $region36
            $region35: #{t_net_2_pooled.3} parent=31 // pred_region
              loop: start=0, step=1, limit=1
              $region37: #{t_net_2_pooled.3} parent=35 // loop_pre_header
                _
              $region38: #{t_net_2_pooled.3} parent=35 // loop_header
                %s200 = sphi 0, %s204
                %p201 = scmp.ge.s32.totalorder %s200, 1
                %s205 = sphi %s194, %s194
                %s206 = sphi %s191, %s191
              $region39: #{t_net_2_pooled.3} parent=35 // loop_header_branch
                %203 = sbr.rel (%p201) target = $region43
              $region40: #{t_net_2_pooled.3} parent=35 // loop_body
                %v207 = vld [vmem:[%s205] sm:$0xff]
                %208 = vst [vmem:[%s206] sm:$0xff] %v207
                %v209 = vld [vmem:[%s205 + $0x8] sm:$0xff]
                %210 = vst [vmem:[%s206 + $0x8] sm:$0xff] %v209
                %v211 = vld [vmem:[%s205 + $0x40] sm:$0xff]
                %212 = vst [vmem:[%s206 + $0x10] sm:$0xff] %v211
                %v213 = vld [vmem:[%s205 + $0x48] sm:$0xff]
                %214 = vst [vmem:[%s206 + $0x18] sm:$0xff] %v213
                %v215 = vld [vmem:[%s205 + $0x80] sm:$0xff]
                %216 = vst [vmem:[%s206 + $0x20] sm:$0xff] %v215
                %v217 = vld [vmem:[%s205 + $0x88] sm:$0xff]
                %218 = vst [vmem:[%s206 + $0x28] sm:$0xff] %v217
                %v219 = vld [vmem:[%s205 + $0xc0] sm:$0xff]
                %220 = vst [vmem:[%s206 + $0x30] sm:$0xff] %v219
                %v221 = vld [vmem:[%s205 + $0xc8] sm:$0xff]
                %222 = vst [vmem:[%s206 + $0x38] sm:$0xff] %v221
                %v223 = vld [vmem:[%s205 + $0x100] sm:$0xff]
                %224 = vst [vmem:[%s206 + $0x40] sm:$0xff] %v223
                %v225 = vld [vmem:[%s205 + $0x108] sm:$0xff]
                %226 = vst [vmem:[%s206 + $0x48] sm:$0xff] %v225
                %v227 = vld [vmem:[%s205 + $0x140] sm:$0xff]
                %228 = vst [vmem:[%s206 + $0x50] sm:$0xff] %v227
                %v229 = vld [vmem:[%s205 + $0x148] sm:$0xff]
                %230 = vst [vmem:[%s206 + $0x58] sm:$0xff] %v229
                %v231 = vld [vmem:[%s205 + $0x180] sm:$0xff]
                %232 = vst [vmem:[%s206 + $0x60] sm:$0xff] %v231
                %v233 = vld [vmem:[%s205 + $0x188] sm:$0xff]
                %234 = vst [vmem:[%s206 + $0x68] sm:$0xff] %v233
                %v235 = vld [vmem:[%s205 + $0x1c0] sm:$0xff]
                %236 = vst [vmem:[%s206 + $0x70] sm:$0xff] %v235
                %v237 = vld [vmem:[%s205 + $0x1c8] sm:$0xff]
                %238 = vst [vmem:[%s206 + $0x78] sm:$0xff] %v237
                %v239 = vld [vmem:[%s205 + $0x200] sm:$0xff]
                %240 = vst [vmem:[%s206 + $0x80] sm:$0xff] %v239
                %v241 = vld [vmem:[%s205 + $0x208] sm:$0xff]
                %242 = vst [vmem:[%s206 + $0x88] sm:$0xff] %v241
                %v243 = vld [vmem:[%s205 + $0x240] sm:$0xff]
                %244 = vst [vmem:[%s206 + $0x90] sm:$0xff] %v243
                %v245 = vld [vmem:[%s205 + $0x248] sm:$0xff]
                %246 = vst [vmem:[%s206 + $0x98] sm:$0xff] %v245
                %v247 = vld [vmem:[%s205 + $0x280] sm:$0xff]
                %248 = vst [vmem:[%s206 + $0xa0] sm:$0xff] %v247
                %v249 = vld [vmem:[%s205 + $0x288] sm:$0xff]
                %250 = vst [vmem:[%s206 + $0xa8] sm:$0xff] %v249
                %v251 = vld [vmem:[%s205 + $0x2c0] sm:$0xff]
                %252 = vst [vmem:[%s206 + $0xb0] sm:$0xff] %v251
                %v253 = vld [vmem:[%s205 + $0x2c8] sm:$0xff]
                %254 = vst [vmem:[%s206 + $0xb8] sm:$0xff] %v253
                %v255 = vld [vmem:[%s205 + $0x300] sm:$0xff]
                %256 = vst [vmem:[%s206 + $0xc0] sm:$0xff] %v255
                %v257 = vld [vmem:[%s205 + $0x308] sm:$0xff]
                %258 = vst [vmem:[%s206 + $0xc8] sm:$0xff] %v257
                %v259 = vld [vmem:[%s205 + $0x340] sm:$0xff]
                %260 = vst [vmem:[%s206 + $0xd0] sm:$0xff] %v259
                %v261 = vld [vmem:[%s205 + $0x348] sm:$0xff]
                %262 = vst [vmem:[%s206 + $0xd8] sm:$0xff] %v261
                %v263 = vld [vmem:[%s205 + $0x380] sm:$0xff]
                %264 = vst [vmem:[%s206 + $0xe0] sm:$0xff] %v263
                %v265 = vld [vmem:[%s205 + $0x388] sm:$0xff]
                %266 = vst [vmem:[%s206 + $0xe8] sm:$0xff] %v265
                %v267 = vld [vmem:[%s205 + $0x3c0] sm:$0xff]
                %268 = vst [vmem:[%s206 + $0xf0] sm:$0xff] %v267
                %v269 = vld [vmem:[%s205 + $0x3c8] sm:$0xff]
                %270 = vst [vmem:[%s206 + $0xf8] sm:$0xff] %v269
              $region41: #{t_net_2_pooled.3} parent=35 // loop_footer
                %s204 = sadd.s32 1, %s200
              $region42: #{t_net_2_pooled.3} parent=35 // loop_footer_branch
                %199 = sbr.rel target = $region38
              $region43: #{t_net_2_pooled.3} parent=35 // loop_exit
                _
            $region36: #{t_net_2_pooled.3} parent=31 // pred_fallthru
              _
            // Predicated region
            $region44: #{t_net_2_pooled.3} parent=31 // pred_check
              _
            $region45: #{t_net_2_pooled.3} parent=31 // pred_check_branch
              %272 = sbr.rel target = $region47
            $region46: #{t_net_2_pooled.3} parent=31 // pred_region
              _
            $region47: #{t_net_2_pooled.3} parent=31 // pred_fallthru
              _
          $region32: #{t_net_2_pooled.3} parent=27 // pred_fallthru
            _
          %273 = vnop
        $region28: #{t_net_2_pooled.3} parent=23 // pred_fallthru
          _
        // Predicated region
        $region48: #{t_net_2_pooled.3} parent=23 // pred_check
          %p274 = pneg %p102
        $region49: #{t_net_2_pooled.3} parent=23 // pred_check_branch
          %276 = sbr.rel (%p274) target = $region51
        $region50: #{t_net_2_pooled.3} parent=23 // pred_region
          %s277 = smul.u32 2, %s14
          %p278 = scmp.lt.s32.totalorder %s277, 7
          %s279 = scalar_select %p278, %s277, 7
          %s280 = scalar_lea.vmem %s3, %s279
          %s281 = smul.u32 2, %s14
        $region51: #{t_net_2_pooled.3} parent=23 // pred_fallthru
          _
        // Predicated region
        $region52: #{t_net_2_pooled.3} parent=23 // pred_check
          %p282 = pneg %p128
        $region53: #{t_net_2_pooled.3} parent=23 // pred_check_branch
          %284 = sbr.rel (%p282) target = $region55
        $region54: #{t_net_2_pooled.3} parent=23 // pred_region
          %s285 = smul.u32 2, %s14
          %p286 = scmp.lt.s32.totalorder %s285, 7
          %s287 = scalar_select %p286, %s285, 7
          %s288 = scalar_lea.vmem %s4, %s287
          %s289 = smul.u32 2, %s14
        $region55: #{t_net_2_pooled.3} parent=23 // pred_fallthru
          _
      $region24: #{t_net_2_pooled.3} parent=5 // pred_fallthru
        _
      %p290 = scmp.le.s32.totalorder 1, %s14
      %p291 = scmp.lt.s32.totalorder %s14, 5
      %p292 = pnand %p290, %p291
      %p293 = pneg %p292
      // Predicated region
      $region56: #{t_net_2_pooled.3} parent=5 // pred_check
        _
      $region57: #{t_net_2_pooled.3} parent=5 // pred_check_branch
        %295 = sbr.rel (%p292) target = $region59
      $region58: #{t_net_2_pooled.3} parent=5 // pred_region
        %s296 = ssub.s32 %s14, 1
        %s297 = sand.u32 %s69, 1
        %s298 = sand.u32 %s69, 1
        %s299 = smul.addr %s298, 256
        %s300 = scalar_lea.vmem [#allocation2], %s299
        // Predicated region
        $region60: #{t_net_2_pooled.3} parent=58 // pred_check
          %p301 = pneg %p82
        $region61: #{t_net_2_pooled.3} parent=58 // pred_check_branch
          %303 = sbr.rel (%p301) target = $region63
        $region62: #{t_net_2_pooled.3} parent=58 // pred_region
          _
        $region63: #{t_net_2_pooled.3} parent=58 // pred_fallthru
          _
        %p304 = pneg %p35
        %p305 = pneg %p32
        %p306 = pneg %p56
        %p307 = pneg %p53
        %s308 = sand.u32 %s69, 1
        %s309 = sand.u32 %s69, 1
        %s310 = smul.addr %s309, 256
        %s311 = scalar_lea.vmem [#allocation2], %s310
        %p312 = pneg %p82
        %p313 = pneg %p79
        %s314 = smul.u32 2, %s19
        %p315 = scmp.lt.s32.totalorder %s314, 7
        %s316 = scalar_select %p315, %s314, 7
        %s317 = scalar_lea.vmem %s3, %s316
        %p318 = pneg %p108
        %p319 = pneg %p105
        %s320 = smul.u32 2, %s19
        %p321 = scmp.lt.s32.totalorder %s320, 7
        %s322 = scalar_select %p321, %s320, 7
        %s323 = scalar_lea.vmem %s4, %s322
        %p324 = pneg %p134
        %p325 = pneg %p131
        %p326 = pneg %p160
        %p327 = pneg %p157
        %s328 = sand.u32 %s147, 1
        %s329 = scalar_lea.sflag [#allocation4], %s328
        %s330 = sand.u32 %s147, 1
        %s331 = smul.addr %s330, 4
        %s332 = scalar_lea.vmem [#allocation3], %s331
        %s333 = smul.u32 2, %s19
        %s334 = smul.u32 2, %s19
        %p335 = scmp.lt.s32.totalorder %s334, 7
        %s336 = scalar_select %p335, %s334, 7
        %s337 = scalar_lea.vmem %s3, %s336
        %s338 = smul.u32 2, %s19
        %s339 = smul.u32 2, %s19
        %p340 = scmp.lt.s32.totalorder %s339, 7
        %s341 = scalar_select %p340, %s339, 7
        %s342 = scalar_lea.vmem %s4, %s341
        %s343 = smul.u32 2, %s19
        %s344 = smul.u32 2, %s19
        %v345 = vld [vmem:[%s0] sm:$0xff]
        %v346 = vld [vmem:[%s0 + $0x8] sm:$0xff]
        %v347 = vld [vmem:[%s0 + $0x10] sm:$0xff]
        %v348 = vld [vmem:[%s0 + $0x18] sm:$0xff]
        %v349 = vld [vmem:[%s0 + $0x20] sm:$0xff]
        %v350 = vld [vmem:[%s0 + $0x28] sm:$0xff]
        %v351 = vld [vmem:[%s0 + $0x30] sm:$0xff]
        %v352 = vld [vmem:[%s0 + $0x38] sm:$0xff]
        %v353 = vld [vmem:[%s0 + $0x40] sm:$0xff]
        %v354 = vld [vmem:[%s0 + $0x48] sm:$0xff]
        %v355 = vld [vmem:[%s0 + $0x50] sm:$0xff]
        %v356 = vld [vmem:[%s0 + $0x58] sm:$0xff]
        %v357 = vld [vmem:[%s0 + $0x60] sm:$0xff]
        %v358 = vld [vmem:[%s0 + $0x68] sm:$0xff]
        %v359 = vld [vmem:[%s0 + $0x70] sm:$0xff]
        %v360 = vld [vmem:[%s0 + $0x78] sm:$0xff]
        %v361 = vld [vmem:[%s0 + $0x80] sm:$0xff]
        %v362 = vld [vmem:[%s0 + $0x88] sm:$0xff]
        %v363 = vld [vmem:[%s0 + $0x90] sm:$0xff]
        %v364 = vld [vmem:[%s0 + $0x98] sm:$0xff]
        %v365 = vld [vmem:[%s0 + $0xa0] sm:$0xff]
        %v366 = vld [vmem:[%s0 + $0xa8] sm:$0xff]
        %v367 = vld [vmem:[%s0 + $0xb0] sm:$0xff]
        %v368 = vld [vmem:[%s0 + $0xb8] sm:$0xff]
        %v369 = vld [vmem:[%s0 + $0xc0] sm:$0xff]
        %v370 = vld [vmem:[%s0 + $0xc8] sm:$0xff]
        %v371 = vld [vmem:[%s0 + $0xd0] sm:$0xff]
        %v372 = vld [vmem:[%s0 + $0xd8] sm:$0xff]
        %v373 = vld [vmem:[%s0 + $0xe0] sm:$0xff]
        %v374 = vld [vmem:[%s0 + $0xe8] sm:$0xff]
        %v375 = vld [vmem:[%s0 + $0xf0] sm:$0xff]
        %v376 = vld [vmem:[%s0 + $0xf8] sm:$0xff]
        %v377 = vld [vmem:[%s0 + $0x100] sm:$0xff]
        %v378 = vld [vmem:[%s0 + $0x108] sm:$0xff]
        %v379 = vld [vmem:[%s0 + $0x110] sm:$0xff]
        %v380 = vld [vmem:[%s0 + $0x118] sm:$0xff]
        %v381 = vld [vmem:[%s0 + $0x120] sm:$0xff]
        %v382 = vld [vmem:[%s0 + $0x128] sm:$0xff]
        %v383 = vld [vmem:[%s0 + $0x130] sm:$0xff]
        %v384 = vld [vmem:[%s0 + $0x138] sm:$0xff]
        %v385 = vld [vmem:[%s0 + $0x140] sm:$0xff]
        %v386 = vld [vmem:[%s0 + $0x148] sm:$0xff]
        %v387 = vld [vmem:[%s0 + $0x150] sm:$0xff]
        %v388 = vld [vmem:[%s0 + $0x158] sm:$0xff]
        %v389 = vld [vmem:[%s0 + $0x160] sm:$0xff]
        %v390 = vld [vmem:[%s0 + $0x168] sm:$0xff]
        %v391 = vld [vmem:[%s0 + $0x170] sm:$0xff]
        %v392 = vld [vmem:[%s0 + $0x178] sm:$0xff]
        %v393 = vld [vmem:[%s0 + $0x180] sm:$0xff]
        %v394 = vld [vmem:[%s0 + $0x188] sm:$0xff]
        %v395 = vld [vmem:[%s0 + $0x190] sm:$0xff]
        %v396 = vld [vmem:[%s0 + $0x198] sm:$0xff]
        %v397 = vld [vmem:[%s0 + $0x1a0] sm:$0xff]
        %v398 = vld [vmem:[%s0 + $0x1a8] sm:$0xff]
        %v399 = vld [vmem:[%s0 + $0x1b0] sm:$0xff]
        %v400 = vld [vmem:[%s0 + $0x1b8] sm:$0xff]
        %v401 = vld [vmem:[%s0 + $0x1c0] sm:$0xff]
        %v402 = vld [vmem:[%s0 + $0x1c8] sm:$0xff]
        %v403 = vld [vmem:[%s0 + $0x1d0] sm:$0xff]
        %v404 = vld [vmem:[%s0 + $0x1d8] sm:$0xff]
        %v405 = vld [vmem:[%s0 + $0x1e0] sm:$0xff]
        %v406 = vld [vmem:[%s0 + $0x1e8] sm:$0xff]
        %v407 = vld [vmem:[%s0 + $0x1f0] sm:$0xff]
        %v408 = vld [vmem:[%s0 + $0x1f8] sm:$0xff]
        %v409 = vld [vmem:[%s0 + $0x200] sm:$0xff]
        %v410 = vld [vmem:[%s0 + $0x208] sm:$0xff]
        %v411 = vld [vmem:[%s0 + $0x210] sm:$0xff]
        %v412 = vld [vmem:[%s0 + $0x218] sm:$0xff]
        %v413 = vld [vmem:[%s0 + $0x220] sm:$0xff]
        %v414 = vld [vmem:[%s0 + $0x228] sm:$0xff]
        %v415 = vld [vmem:[%s0 + $0x230] sm:$0xff]
        %v416 = vld [vmem:[%s0 + $0x238] sm:$0xff]
        %v417 = vld [vmem:[%s0 + $0x240] sm:$0xff]
        %v418 = vld [vmem:[%s0 + $0x248] sm:$0xff]
        %v419 = vld [vmem:[%s0 + $0x250] sm:$0xff]
        %v420 = vld [vmem:[%s0 + $0x258] sm:$0xff]
        %v421 = vld [vmem:[%s0 + $0x260] sm:$0xff]
        %v422 = vld [vmem:[%s0 + $0x268] sm:$0xff]
        %v423 = vld [vmem:[%s0 + $0x270] sm:$0xff]
        %v424 = vld [vmem:[%s0 + $0x278] sm:$0xff]
        %v425 = vld [vmem:[%s0 + $0x280] sm:$0xff]
        %v426 = vld [vmem:[%s0 + $0x288] sm:$0xff]
        %v427 = vld [vmem:[%s0 + $0x290] sm:$0xff]
        %v428 = vld [vmem:[%s0 + $0x298] sm:$0xff]
        %v429 = vld [vmem:[%s0 + $0x2a0] sm:$0xff]
        %v430 = vld [vmem:[%s0 + $0x2a8] sm:$0xff]
        %v431 = vld [vmem:[%s0 + $0x2b0] sm:$0xff]
        %v432 = vld [vmem:[%s0 + $0x2b8] sm:$0xff]
        %v433 = vld [vmem:[%s0 + $0x2c0] sm:$0xff]
        %v434 = vld [vmem:[%s0 + $0x2c8] sm:$0xff]
        %v435 = vld [vmem:[%s0 + $0x2d0] sm:$0xff]
        %v436 = vld [vmem:[%s0 + $0x2d8] sm:$0xff]
        %v437 = vld [vmem:[%s0 + $0x2e0] sm:$0xff]
        %v438 = vld [vmem:[%s0 + $0x2e8] sm:$0xff]
        %v439 = vld [vmem:[%s0 + $0x2f0] sm:$0xff]
        %v440 = vld [vmem:[%s0 + $0x2f8] sm:$0xff]
        %v441 = vld [vmem:[%s0 + $0x300] sm:$0xff]
        %v442 = vld [vmem:[%s0 + $0x308] sm:$0xff]
        %v443 = vld [vmem:[%s0 + $0x310] sm:$0xff]
        %v444 = vld [vmem:[%s0 + $0x318] sm:$0xff]
        %v445 = vld [vmem:[%s0 + $0x320] sm:$0xff]
        %v446 = vld [vmem:[%s0 + $0x328] sm:$0xff]
        %v447 = vld [vmem:[%s0 + $0x330] sm:$0xff]
        %v448 = vld [vmem:[%s0 + $0x338] sm:$0xff]
        %v449 = vld [vmem:[%s0 + $0x340] sm:$0xff]
        %v450 = vld [vmem:[%s0 + $0x348] sm:$0xff]
        %v451 = vld [vmem:[%s0 + $0x350] sm:$0xff]
        %v452 = vld [vmem:[%s0 + $0x358] sm:$0xff]
        %v453 = vld [vmem:[%s0 + $0x360] sm:$0xff]
        %v454 = vld [vmem:[%s0 + $0x368] sm:$0xff]
        %v455 = vld [vmem:[%s0 + $0x370] sm:$0xff]
        %v456 = vld [vmem:[%s0 + $0x378] sm:$0xff]
        %v457 = vld [vmem:[%s0 + $0x380] sm:$0xff]
        %v458 = vld [vmem:[%s0 + $0x388] sm:$0xff]
        %v459 = vld [vmem:[%s0 + $0x390] sm:$0xff]
        %v460 = vld [vmem:[%s0 + $0x398] sm:$0xff]
        %v461 = vld [vmem:[%s0 + $0x3a0] sm:$0xff]
        %v462 = vld [vmem:[%s0 + $0x3a8] sm:$0xff]
        %v463 = vld [vmem:[%s0 + $0x3b0] sm:$0xff]
        %v464 = vld [vmem:[%s0 + $0x3b8] sm:$0xff]
        %v465 = vld [vmem:[%s0 + $0x3c0] sm:$0xff]
        %v466 = vld [vmem:[%s0 + $0x3c8] sm:$0xff]
        %v467 = vld [vmem:[%s0 + $0x3d0] sm:$0xff]
        %v468 = vld [vmem:[%s0 + $0x3d8] sm:$0xff]
        %v469 = vld [vmem:[%s0 + $0x3e0] sm:$0xff]
        %v470 = vld [vmem:[%s0 + $0x3e8] sm:$0xff]
        %v471 = vld [vmem:[%s0 + $0x3f0] sm:$0xff]
        %v472 = vld [vmem:[%s0 + $0x3f8] sm:$0xff]
        %v473 = vld [vmem:[%s0 + $0x400] sm:$0xff]
        %v474 = vld [vmem:[%s0 + $0x408] sm:$0xff]
        %v475 = vld [vmem:[%s0 + $0x410] sm:$0xff]
        %v476 = vld [vmem:[%s0 + $0x418] sm:$0xff]
        %v477 = vld [vmem:[%s0 + $0x420] sm:$0xff]
        %v478 = vld [vmem:[%s0 + $0x428] sm:$0xff]
        %v479 = vld [vmem:[%s0 + $0x430] sm:$0xff]
        %v480 = vld [vmem:[%s0 + $0x438] sm:$0xff]
        %v481 = vld [vmem:[%s0 + $0x440] sm:$0xff]
        %v482 = vld [vmem:[%s0 + $0x448] sm:$0xff]
        %v483 = vld [vmem:[%s0 + $0x450] sm:$0xff]
        %v484 = vld [vmem:[%s0 + $0x458] sm:$0xff]
        %v485 = vld [vmem:[%s0 + $0x460] sm:$0xff]
        %v486 = vld [vmem:[%s0 + $0x468] sm:$0xff]
        %v487 = vld [vmem:[%s0 + $0x470] sm:$0xff]
        %v488 = vld [vmem:[%s0 + $0x478] sm:$0xff]
        %v489 = vld [vmem:[%s0 + $0x480] sm:$0xff]
        %v490 = vld [vmem:[%s0 + $0x488] sm:$0xff]
        %v491 = vld [vmem:[%s0 + $0x490] sm:$0xff]
        %v492 = vld [vmem:[%s0 + $0x498] sm:$0xff]
        %v493 = vld [vmem:[%s0 + $0x4a0] sm:$0xff]
        %v494 = vld [vmem:[%s0 + $0x4a8] sm:$0xff]
        %v495 = vld [vmem:[%s0 + $0x4b0] sm:$0xff]
        %v496 = vld [vmem:[%s0 + $0x4b8] sm:$0xff]
        %v497 = vld [vmem:[%s0 + $0x4c0] sm:$0xff]
        %v498 = vld [vmem:[%s0 + $0x4c8] sm:$0xff]
        %v499 = vld [vmem:[%s0 + $0x4d0] sm:$0xff]
        %v500 = vld [vmem:[%s0 + $0x4d8] sm:$0xff]
        %v501 = vld [vmem:[%s0 + $0x4e0] sm:$0xff]
        %v502 = vld [vmem:[%s0 + $0x4e8] sm:$0xff]
        %v503 = vld [vmem:[%s0 + $0x4f0] sm:$0xff]
        %v504 = vld [vmem:[%s0 + $0x4f8] sm:$0xff]
        %v505 = vld [vmem:[%s0 + $0x500] sm:$0xff]
        %v506 = vld [vmem:[%s0 + $0x508] sm:$0xff]
        %v507 = vld [vmem:[%s0 + $0x510] sm:$0xff]
        %v508 = vld [vmem:[%s0 + $0x518] sm:$0xff]
        %v509 = vld [vmem:[%s0 + $0x520] sm:$0xff]
        %v510 = vld [vmem:[%s0 + $0x528] sm:$0xff]
        %v511 = vld [vmem:[%s0 + $0x530] sm:$0xff]
        %v512 = vld [vmem:[%s0 + $0x538] sm:$0xff]
        %v513 = vld [vmem:[%s0 + $0x540] sm:$0xff]
        %v514 = vld [vmem:[%s0 + $0x548] sm:$0xff]
        %v515 = vld [vmem:[%s0 + $0x550] sm:$0xff]
        %v516 = vld [vmem:[%s0 + $0x558] sm:$0xff]
        %v517 = vld [vmem:[%s0 + $0x560] sm:$0xff]
        %v518 = vld [vmem:[%s0 + $0x568] sm:$0xff]
        %v519 = vld [vmem:[%s0 + $0x570] sm:$0xff]
        %v520 = vld [vmem:[%s0 + $0x578] sm:$0xff]
        %v521 = vld [vmem:[%s0 + $0x580] sm:$0xff]
        %v522 = vld [vmem:[%s0 + $0x588] sm:$0xff]
        %v523 = vld [vmem:[%s0 + $0x590] sm:$0xff]
        %v524 = vld [vmem:[%s0 + $0x598] sm:$0xff]
        %v525 = vld [vmem:[%s0 + $0x5a0] sm:$0xff]
        %v526 = vld [vmem:[%s0 + $0x5a8] sm:$0xff]
        %v527 = vld [vmem:[%s0 + $0x5b0] sm:$0xff]
        %v528 = vld [vmem:[%s0 + $0x5b8] sm:$0xff]
        %v529 = vld [vmem:[%s0 + $0x5c0] sm:$0xff]
        %v530 = vld [vmem:[%s0 + $0x5c8] sm:$0xff]
        %v531 = vld [vmem:[%s0 + $0x5d0] sm:$0xff]
        %v532 = vld [vmem:[%s0 + $0x5d8] sm:$0xff]
        %v533 = vld [vmem:[%s0 + $0x5e0] sm:$0xff]
        %v534 = vld [vmem:[%s0 + $0x5e8] sm:$0xff]
        %v535 = vld [vmem:[%s0 + $0x5f0] sm:$0xff]
        %v536 = vld [vmem:[%s0 + $0x5f8] sm:$0xff]
        %v537 = vld [vmem:[%s0 + $0x600] sm:$0xff]
        %v538 = vld [vmem:[%s0 + $0x608] sm:$0xff]
        %v539 = vld [vmem:[%s0 + $0x610] sm:$0xff]
        %v540 = vld [vmem:[%s0 + $0x618] sm:$0xff]
        %v541 = vld [vmem:[%s0 + $0x620] sm:$0xff]
        %v542 = vld [vmem:[%s0 + $0x628] sm:$0xff]
        %v543 = vld [vmem:[%s0 + $0x630] sm:$0xff]
        %v544 = vld [vmem:[%s0 + $0x638] sm:$0xff]
        %v545 = vld [vmem:[%s0 + $0x640] sm:$0xff]
        %v546 = vld [vmem:[%s0 + $0x648] sm:$0xff]
        %v547 = vld [vmem:[%s0 + $0x650] sm:$0xff]
        %v548 = vld [vmem:[%s0 + $0x658] sm:$0xff]
        %v549 = vld [vmem:[%s0 + $0x660] sm:$0xff]
        %v550 = vld [vmem:[%s0 + $0x668] sm:$0xff]
        %v551 = vld [vmem:[%s0 + $0x670] sm:$0xff]
        %v552 = vld [vmem:[%s0 + $0x678] sm:$0xff]
        %v553 = vld [vmem:[%s0 + $0x680] sm:$0xff]
        %v554 = vld [vmem:[%s0 + $0x688] sm:$0xff]
        %v555 = vld [vmem:[%s0 + $0x690] sm:$0xff]
        %v556 = vld [vmem:[%s0 + $0x698] sm:$0xff]
        %v557 = vld [vmem:[%s0 + $0x6a0] sm:$0xff]
        %v558 = vld [vmem:[%s0 + $0x6a8] sm:$0xff]
        %v559 = vld [vmem:[%s0 + $0x6b0] sm:$0xff]
        %v560 = vld [vmem:[%s0 + $0x6b8] sm:$0xff]
        %v561 = vld [vmem:[%s0 + $0x6c0] sm:$0xff]
        %v562 = vld [vmem:[%s0 + $0x6c8] sm:$0xff]
        %v563 = vld [vmem:[%s0 + $0x6d0] sm:$0xff]
        %v564 = vld [vmem:[%s0 + $0x6d8] sm:$0xff]
        %v565 = vld [vmem:[%s0 + $0x6e0] sm:$0xff]
        %v566 = vld [vmem:[%s0 + $0x6e8] sm:$0xff]
        %v567 = vld [vmem:[%s0 + $0x6f0] sm:$0xff]
        %v568 = vld [vmem:[%s0 + $0x6f8] sm:$0xff]
        %v569 = vld [vmem:[%s0 + $0x700] sm:$0xff]
        %v570 = vld [vmem:[%s0 + $0x708] sm:$0xff]
        %v571 = vld [vmem:[%s0 + $0x710] sm:$0xff]
        %v572 = vld [vmem:[%s0 + $0x718] sm:$0xff]
        %v573 = vld [vmem:[%s0 + $0x720] sm:$0xff]
        %v574 = vld [vmem:[%s0 + $0x728] sm:$0xff]
        %v575 = vld [vmem:[%s0 + $0x730] sm:$0xff]
        %v576 = vld [vmem:[%s0 + $0x738] sm:$0xff]
        %v577 = vld [vmem:[%s0 + $0x740] sm:$0xff]
        %v578 = vld [vmem:[%s0 + $0x748] sm:$0xff]
        %v579 = vld [vmem:[%s0 + $0x750] sm:$0xff]
        %v580 = vld [vmem:[%s0 + $0x758] sm:$0xff]
        %v581 = vld [vmem:[%s0 + $0x760] sm:$0xff]
        %v582 = vld [vmem:[%s0 + $0x768] sm:$0xff]
        %v583 = vld [vmem:[%s0 + $0x770] sm:$0xff]
        %v584 = vld [vmem:[%s0 + $0x778] sm:$0xff]
        %v585 = vld [vmem:[%s0 + $0x780] sm:$0xff]
        %v586 = vld [vmem:[%s0 + $0x788] sm:$0xff]
        %v587 = vld [vmem:[%s0 + $0x790] sm:$0xff]
        %v588 = vld [vmem:[%s0 + $0x798] sm:$0xff]
        %v589 = vld [vmem:[%s0 + $0x7a0] sm:$0xff]
        %v590 = vld [vmem:[%s0 + $0x7a8] sm:$0xff]
        %v591 = vld [vmem:[%s0 + $0x7b0] sm:$0xff]
        %v592 = vld [vmem:[%s0 + $0x7b8] sm:$0xff]
        %v593 = vld [vmem:[%s0 + $0x7c0] sm:$0xff]
        %v594 = vld [vmem:[%s0 + $0x7c8] sm:$0xff]
        %v595 = vld [vmem:[%s0 + $0x7d0] sm:$0xff]
        %v596 = vld [vmem:[%s0 + $0x7d8] sm:$0xff]
        %v597 = vld [vmem:[%s0 + $0x7e0] sm:$0xff]
        %v598 = vld [vmem:[%s0 + $0x7e8] sm:$0xff]
        %v599 = vld [vmem:[%s0 + $0x7f0] sm:$0xff]
        %v600 = vld [vmem:[%s0 + $0x7f8] sm:$0xff]
        %v601 = vld [vmem:[%s300] sm:$0xff]
        %v602 = vld [vmem:[%s300 + $0x8] sm:$0xff]
        %v603 = vld [vmem:[%s300 + $0x10] sm:$0xff]
        %v604 = vld [vmem:[%s300 + $0x18] sm:$0xff]
        %v605 = vld [vmem:[%s300 + $0x20] sm:$0xff]
        %v606 = vld [vmem:[%s300 + $0x28] sm:$0xff]
        %v607 = vld [vmem:[%s300 + $0x30] sm:$0xff]
        %v608 = vld [vmem:[%s300 + $0x38] sm:$0xff]
        %v609 = vld [vmem:[%s300 + $0x40] sm:$0xff]
        %v610 = vld [vmem:[%s300 + $0x48] sm:$0xff]
        %v611 = vld [vmem:[%s300 + $0x50] sm:$0xff]
        %v612 = vld [vmem:[%s300 + $0x58] sm:$0xff]
        %v613 = vld [vmem:[%s300 + $0x60] sm:$0xff]
        %v614 = vld [vmem:[%s300 + $0x68] sm:$0xff]
        %v615 = vld [vmem:[%s300 + $0x70] sm:$0xff]
        %v616 = vld [vmem:[%s300 + $0x78] sm:$0xff]
        %v617 = vld [vmem:[%s300 + $0x80] sm:$0xff]
        %v618 = vld [vmem:[%s300 + $0x88] sm:$0xff]
        %v619 = vld [vmem:[%s300 + $0x90] sm:$0xff]
        %v620 = vld [vmem:[%s300 + $0x98] sm:$0xff]
        %v621 = vld [vmem:[%s300 + $0xa0] sm:$0xff]
        %v622 = vld [vmem:[%s300 + $0xa8] sm:$0xff]
        %v623 = vld [vmem:[%s300 + $0xb0] sm:$0xff]
        %v624 = vld [vmem:[%s300 + $0xb8] sm:$0xff]
        %v625 = vld [vmem:[%s300 + $0xc0] sm:$0xff]
        %v626 = vld [vmem:[%s300 + $0xc8] sm:$0xff]
        %v627 = vld [vmem:[%s300 + $0xd0] sm:$0xff]
        %v628 = vld [vmem:[%s300 + $0xd8] sm:$0xff]
        %v629 = vld [vmem:[%s300 + $0xe0] sm:$0xff]
        %v630 = vld [vmem:[%s300 + $0xe8] sm:$0xff]
        %v631 = vld [vmem:[%s300 + $0xf0] sm:$0xff]
        %v632 = vld [vmem:[%s300 + $0xf8] sm:$0xff]
        %633 = vmatprep.subr.mxu0 %v602
        %634 = vmatpush1.msra.mxu0 %v601
        %635 = vmatprep.subr.mxu0 %v604
        %636 = vmatpush1.msra.mxu0 %v603
        %637 = vmatprep.subr.mxu0 %v606
        %638 = vmatpush1.msra.mxu0 %v605
        %639 = vmatprep.subr.mxu0 %v608
        %640 = vmatpush1.msra.mxu0 %v607
        %641 = vmatprep.subr.mxu0 %v610
        %642 = vmatpush1.msra.mxu0 %v609
        %643 = vmatprep.subr.mxu0 %v612
        %644 = vmatpush1.msra.mxu0 %v611
        %645 = vmatprep.subr.mxu0 %v614
        %646 = vmatpush1.msra.mxu0 %v613
        %647 = vmatprep.subr.mxu0 %v616
        %648 = vmatpush1.msra.mxu0 %v615
        %649 = vmatprep.subr.mxu0 %v618
        %650 = vmatpush1.msra.mxu0 %v617
        %651 = vmatprep.subr.mxu0 %v620
        %652 = vmatpush1.msra.mxu0 %v619
        %653 = vmatprep.subr.mxu0 %v622
        %654 = vmatpush1.msra.mxu0 %v621
        %655 = vmatprep.subr.mxu0 %v624
        %656 = vmatpush1.msra.mxu0 %v623
        %657 = vmatprep.subr.mxu0 %v626
        %658 = vmatpush1.msra.mxu0 %v625
        %659 = vmatprep.subr.mxu0 %v628
        %660 = vmatpush1.msra.mxu0 %v627
        %661 = vmatprep.subr.mxu0 %v630
        %662 = vmatpush1.msra.mxu0 %v629
        %663 = vmatprep.subr.mxu0 %v632
        %664 = vmatpush1.msra.mxu0 %v631
        %665 = vmatprep.subr.mxu0 0.0
        %666 = vmatpush1.msra.mxu0 0.0
        %667 = vmatprep.subr.mxu0 0.0
        %668 = vmatpush1.msra.mxu0 0.0
        %669 = vmatprep.subr.mxu0 0.0
        %670 = vmatpush1.msra.mxu0 0.0
        %671 = vmatprep.subr.mxu0 0.0
        %672 = vmatpush1.msra.mxu0 0.0
        %673 = vmatprep.subr.mxu0 0.0
        %674 = vmatpush1.msra.mxu0 0.0
        %675 = vmatprep.subr.mxu0 0.0
        %676 = vmatpush1.msra.mxu0 0.0
        %677 = vmatprep.subr.mxu0 0.0
        %678 = vmatpush1.msra.mxu0 0.0
        %679 = vmatprep.subr.mxu0 0.0
        %680 = vmatpush1.msra.mxu0 0.0
        %681 = vmatprep.subr.mxu0 0.0
        %682 = vmatpush1.msra.mxu0 0.0
        %683 = vmatprep.subr.mxu0 0.0
        %684 = vmatpush1.msra.mxu0 0.0
        %685 = vmatprep.subr.mxu0 0.0
        %686 = vmatpush1.msra.mxu0 0.0
        %687 = vmatprep.subr.mxu0 0.0
        %688 = vmatpush1.msra.mxu0 0.0
        %689 = vmatprep.subr.mxu0 0.0
        %690 = vmatpush1.msra.mxu0 0.0
        %691 = vmatprep.subr.mxu0 0.0
        %692 = vmatpush1.msra.mxu0 0.0
        %693 = vmatprep.subr.mxu0 0.0
        %694 = vmatpush1.msra.mxu0 0.0
        %695 = vmatprep.subr.mxu0 0.0
        %696 = vmatpush1.msra.mxu0 0.0
        %697 = vmatprep.mubr.f32.mxu0 0.0
        %698 = vmatmul.mubr.f32.gmra.mrb[0].mxu0 %v345
        %v699 = vpop.f32.mrb[0].mxu0
        %v700 = vadd.f32 0.0, %v699
        %v701 = vpop.f32.mrb[0].mxu0
        %v702 = vadd.f32 0.0, %v701
        %703 = vmatprep.mubr.f32.mxu0 0.0
        %704 = vmatmul.mubr.f32.gmra.mrb[0].mxu0 %v346
        %v705 = vpop.f32.mrb[0].mxu0
        %v706 = vadd.f32 0.0, %v705
        %v707 = vpop.f32.mrb[0].mxu0
        %v708 = vadd.f32 0.0, %v707
        %709 = vmatprep.mubr.f32.mxu0 0.0
        %710 = vmatmul.mubr.f32.gmra.mrb[0].mxu0 %v347
        %v711 = vpop.f32.mrb[0].mxu0
        %v712 = vadd.f32 0.0, %v711
        %v713 = vpop.f32.mrb[0].mxu0
        %v714 = vadd.f32 0.0, %v713
        %715 = vmatprep.mubr.f32.mxu0 0.0
        %716 = vmatmul.mubr.f32.gmra.mrb[0].mxu0 %v348
        %v717 = vpop.f32.mrb[0].mxu0
        %v718 = vadd.f32 0.0, %v717
        %v719 = vpop.f32.mrb[0].mxu0
        %v720 = vadd.f32 0.0, %v719
        %721 = vmatprep.mubr.f32.mxu0 0.0
        %722 = vmatmul.mubr.f32.gmra.mrb[0].mxu0 %v349
        %v723 = vpop.f32.mrb[0].mxu0
        %v724 = vadd.f32 0.0, %v723
        %v725 = vpop.f32.mrb[0].mxu0
        %v726 = vadd.f32 0.0, %v725
        %727 = vmatprep.mubr.f32.mxu0 0.0
        %728 = vmatmul.mubr.f32.gmra.mrb[0].mxu0 %v350
        %v729 = vpop.f32.mrb[0].mxu0
        %v730 = vadd.f32 0.0, %v729
        %v731 = vpop.f32.mrb[0].mxu0
        %v732 = vadd.f32 0.0, %v731
        %733 = vmatprep.mubr.f32.mxu0 0.0
        %734 = vmatmul.mubr.f32.gmra.mrb[0].mxu0 %v351
        %v735 = vpop.f32.mrb[0].mxu0
        %v736 = vadd.f32 0.0, %v735
        %v737 = vpop.f32.mrb[0].mxu0
        %v738 = vadd.f32 0.0, %v737
        %739 = vmatprep.mubr.f32.mxu0 0.0
        %740 = vmatmul.mubr.f32.gmra.mrb[0].mxu0 %v352
        %v741 = vpop.f32.mrb[0].mxu0
        %v742 = vadd.f32 0.0, %v741
        %v743 = vpop.f32.mrb[0].mxu0
        %v744 = vadd.f32 0.0, %v743
        %745 = vmatprep.mubr.f32.mxu0 0.0
        %746 = vmatmul.mubr.f32.gmra.mrb[0].mxu0 %v353
        %v747 = vpop.f32.mrb[0].mxu0
        %v748 = vadd.f32 0.0, %v747
        %v749 = vpop.f32.mrb[0].mxu0
        %v750 = vadd.f32 0.0, %v749
        %751 = vmatprep.mubr.f32.mxu0 0.0
        %752 = vmatmul.mubr.f32.gmra.mrb[0].mxu0 %v354
        %v753 = vpop.f32.mrb[0].mxu0
        %v754 = vadd.f32 0.0, %v753
        %v755 = vpop.f32.mrb[0].mxu0
        %v756 = vadd.f32 0.0, %v755
        %757 = vmatprep.mubr.f32.mxu0 0.0
        %758 = vmatmul.mubr.f32.gmra.mrb[0].mxu0 %v355
        %v759 = vpop.f32.mrb[0].mxu0
        %v760 = vadd.f32 0.0, %v759
        %v761 = vpop.f32.mrb[0].mxu0
        %v762 = vadd.f32 0.0, %v761
        %763 = vmatprep.mubr.f32.mxu0 0.0
        %764 = vmatmul.mubr.f32.gmra.mrb[0].mxu0 %v356
        %v765 = vpop.f32.mrb[0].mxu0
        %v766 = vadd.f32 0.0, %v765
        %v767 = vpop.f32.mrb[0].mxu0
        %v768 = vadd.f32 0.0, %v767
        %769 = vmatprep.mubr.f32.mxu0 0.0
        %770 = vmatmul.mubr.f32.gmra.mrb[0].mxu0 %v357
        %v771 = vpop.f32.mrb[0].mxu0
        %v772 = vadd.f32 0.0, %v771
        %v773 = vpop.f32.mrb[0].mxu0
        %v774 = vadd.f32 0.0, %v773
        %775 = vmatprep.mubr.f32.mxu0 0.0
        %776 = vmatmul.mubr.f32.gmra.mrb[0].mxu0 %v358
        %v777 = vpop.f32.mrb[0].mxu0
        %v778 = vadd.f32 0.0, %v777
        %v779 = vpop.f32.mrb[0].mxu0
        %v780 = vadd.f32 0.0, %v779
        %781 = vmatprep.mubr.f32.mxu0 0.0
        %782 = vmatmul.mubr.f32.gmra.mrb[0].mxu0 %v359
        %v783 = vpop.f32.mrb[0].mxu0
        %v784 = vadd.f32 0.0, %v783
        %v785 = vpop.f32.mrb[0].mxu0
        %v786 = vadd.f32 0.0, %v785
        %787 = vmatprep.mubr.f32.mxu0 0.0
        %788 = vmatmul.mubr.f32.gmra.mrb[0].mxu0 %v360
        %v789 = vpop.f32.mrb[0].mxu0
        %v790 = vadd.f32 0.0, %v789
        %v791 = vpop.f32.mrb[0].mxu0
        %v792 = vadd.f32 0.0, %v791
        %793 = vmatprep.mubr.f32.mxu0 0.0
        %794 = vmatmul.mubr.f32.gmra.mrb[0].mxu0 %v361
        %v795 = vpop.f32.mrb[0].mxu0
        %v796 = vadd.f32 0.0, %v795
        %v797 = vpop.f32.mrb[0].mxu0
        %v798 = vadd.f32 0.0, %v797
        %799 = vmatprep.mubr.f32.mxu0 0.0
        %800 = vmatmul.mubr.f32.gmra.mrb[0].mxu0 %v362
        %v801 = vpop.f32.mrb[0].mxu0
        %v802 = vadd.f32 0.0, %v801
        %v803 = vpop.f32.mrb[0].mxu0
        %v804 = vadd.f32 0.0, %v803
        %805 = vmatprep.mubr.f32.mxu0 0.0
        %806 = vmatmul.mubr.f32.gmra.mrb[0].mxu0 %v363
        %v807 = vpop.f32.mrb[0].mxu0
        %v808 = vadd.f32 0.0, %v807
        %v809 = vpop.f32.mrb[0].mxu0
        %v810 = vadd.f32 0.0, %v809
        %811 = vmatprep.mubr.f32.mxu0 0.0
        %812 = vmatmul.mubr.f32.gmra.mrb[0].mxu0 %v364
        %v813 = vpop.f32.mrb[0].mxu0
        %v814 = vadd.f32 0.0, %v813
        %v815 = vpop.f32.mrb[0].mxu0
        %v816 = vadd.f32 0.0, %v815
        %817 = vmatprep.mubr.f32.mxu0 0.0
        %818 = vmatmul.mubr.f32.gmra.mrb[0].mxu0 %v365
        %v819 = vpop.f32.mrb[0].mxu0
        %v820 = vadd.f32 0.0, %v819
        %v821 = vpop.f32.mrb[0].mxu0
        %v822 = vadd.f32 0.0, %v821
        %823 = vmatprep.mubr.f32.mxu0 0.0
        %824 = vmatmul.mubr.f32.gmra.mrb[0].mxu0 %v366
        %v825 = vpop.f32.mrb[0].mxu0
        %v826 = vadd.f32 0.0, %v825
        %v827 = vpop.f32.mrb[0].mxu0
        %v828 = vadd.f32 0.0, %v827
        %829 = vmatprep.mubr.f32.mxu0 0.0
        %830 = vmatmul.mubr.f32.gmra.mrb[0].mxu0 %v367
        %v831 = vpop.f32.mrb[0].mxu0
        %v832 = vadd.f32 0.0, %v831
        %v833 = vpop.f32.mrb[0].mxu0
        %v834 = vadd.f32 0.0, %v833
        %835 = vmatprep.mubr.f32.mxu0 0.0
        %836 = vmatmul.mubr.f32.gmra.mrb[0].mxu0 %v368
        %v837 = vpop.f32.mrb[0].mxu0
        %v838 = vadd.f32 0.0, %v837
        %v839 = vpop.f32.mrb[0].mxu0
        %v840 = vadd.f32 0.0, %v839
        %841 = vmatprep.mubr.f32.mxu0 0.0
        %842 = vmatmul.mubr.f32.gmra.mrb[0].mxu0 %v369
        %v843 = vpop.f32.mrb[0].mxu0
        %v844 = vadd.f32 0.0, %v843
        %v845 = vpop.f32.mrb[0].mxu0
        %v846 = vadd.f32 0.0, %v845
        %847 = vmatprep.mubr.f32.mxu0 0.0
        %848 = vmatmul.mubr.f32.gmra.mrb[0].mxu0 %v370
        %v849 = vpop.f32.mrb[0].mxu0
        %v850 = vadd.f32 0.0, %v849
        %v851 = vpop.f32.mrb[0].mxu0
        %v852 = vadd.f32 0.0, %v851
        %853 = vmatprep.mubr.f32.mxu0 0.0
        %854 = vmatmul.mubr.f32.gmra.mrb[0].mxu0 %v371
        %v855 = vpop.f32.mrb[0].mxu0
        %v856 = vadd.f32 0.0, %v855
        %v857 = vpop.f32.mrb[0].mxu0
        %v858 = vadd.f32 0.0, %v857
        %859 = vmatprep.mubr.f32.mxu0 0.0
        %860 = vmatmul.mubr.f32.gmra.mrb[0].mxu0 %v372
        %v861 = vpop.f32.mrb[0].mxu0
        %v862 = vadd.f32 0.0, %v861
        %v863 = vpop.f32.mrb[0].mxu0
        %v864 = vadd.f32 0.0, %v863
        %865 = vmatprep.mubr.f32.mxu0 0.0
        %866 = vmatmul.mubr.f32.gmra.mrb[0].mxu0 %v373
        %v867 = vpop.f32.mrb[0].mxu0
        %v868 = vadd.f32 0.0, %v867
        %v869 = vpop.f32.mrb[0].mxu0
        %v870 = vadd.f32 0.0, %v869
        %871 = vmatprep.mubr.f32.mxu0 0.0
        %872 = vmatmul.mubr.f32.gmra.mrb[0].mxu0 %v374
        %v873 = vpop.f32.mrb[0].mxu0
        %v874 = vadd.f32 0.0, %v873
        %v875 = vpop.f32.mrb[0].mxu0
        %v876 = vadd.f32 0.0, %v875
        %877 = vmatprep.mubr.f32.mxu0 0.0
        %878 = vmatmul.mubr.f32.gmra.mrb[0].mxu0 %v375
        %v879 = vpop.f32.mrb[0].mxu0
        %v880 = vadd.f32 0.0, %v879
        %v881 = vpop.f32.mrb[0].mxu0
        %v882 = vadd.f32 0.0, %v881
        %883 = vmatprep.mubr.f32.mxu0 0.0
        %884 = vmatmul.mubr.f32.gmra.mrb[0].mxu0 %v376
        %v885 = vpop.f32.mrb[0].mxu0
        %v886 = vadd.f32 0.0, %v885
        %v887 = vpop.f32.mrb[0].mxu0
        %v888 = vadd.f32 0.0, %v887
        %889 = vmatprep.mubr.f32.mxu0 0.0
        %890 = vmatmul.mubr.f32.gmra.mrb[0].mxu0 %v377
        %v891 = vpop.f32.mrb[0].mxu0
        %v892 = vadd.f32 0.0, %v891
        %v893 = vpop.f32.mrb[0].mxu0
        %v894 = vadd.f32 0.0, %v893
        %895 = vmatprep.mubr.f32.mxu0 0.0
        %896 = vmatmul.mubr.f32.gmra.mrb[0].mxu0 %v378
        %v897 = vpop.f32.mrb[0].mxu0
        %v898 = vadd.f32 0.0, %v897
        %v899 = vpop.f32.mrb[0].mxu0
        %v900 = vadd.f32 0.0, %v899
        %901 = vmatprep.mubr.f32.mxu0 0.0
        %902 = vmatmul.mubr.f32.gmra.mrb[0].mxu0 %v379
        %v903 = vpop.f32.mrb[0].mxu0
        %v904 = vadd.f32 0.0, %v903
        %v905 = vpop.f32.mrb[0].mxu0
        %v906 = vadd.f32 0.0, %v905
        %907 = vmatprep.mubr.f32.mxu0 0.0
        %908 = vmatmul.mubr.f32.gmra.mrb[0].mxu0 %v380
        %v909 = vpop.f32.mrb[0].mxu0
        %v910 = vadd.f32 0.0, %v909
        %v911 = vpop.f32.mrb[0].mxu0
        %v912 = vadd.f32 0.0, %v911
        %913 = vmatprep.mubr.f32.mxu0 0.0
        %914 = vmatmul.mubr.f32.gmra.mrb[0].mxu0 %v381
        %v915 = vpop.f32.mrb[0].mxu0
        %v916 = vadd.f32 0.0, %v915
        %v917 = vpop.f32.mrb[0].mxu0
        %v918 = vadd.f32 0.0, %v917
        %919 = vmatprep.mubr.f32.mxu0 0.0
        %920 = vmatmul.mubr.f32.gmra.mrb[0].mxu0 %v382
        %v921 = vpop.f32.mrb[0].mxu0
        %v922 = vadd.f32 0.0, %v921
        %v923 = vpop.f32.mrb[0].mxu0
        %v924 = vadd.f32 0.0, %v923
        %925 = vmatprep.mubr.f32.mxu0 0.0
        %926 = vmatmul.mubr.f32.gmra.mrb[0].mxu0 %v383
        %v927 = vpop.f32.mrb[0].mxu0
        %v928 = vadd.f32 0.0, %v927
        %v929 = vpop.f32.mrb[0].mxu0
        %v930 = vadd.f32 0.0, %v929
        %931 = vmatprep.mubr.f32.mxu0 0.0
        %932 = vmatmul.mubr.f32.gmra.mrb[0].mxu0 %v384
        %v933 = vpop.f32.mrb[0].mxu0
        %v934 = vadd.f32 0.0, %v933
        %v935 = vpop.f32.mrb[0].mxu0
        %v936 = vadd.f32 0.0, %v935
        %937 = vmatprep.mubr.f32.mxu0 0.0
        %938 = vmatmul.mubr.f32.gmra.mrb[0].mxu0 %v385
        %v939 = vpop.f32.mrb[0].mxu0
        %v940 = vadd.f32 0.0, %v939
        %v941 = vpop.f32.mrb[0].mxu0
        %v942 = vadd.f32 0.0, %v941
        %943 = vmatprep.mubr.f32.mxu0 0.0
        %944 = vmatmul.mubr.f32.gmra.mrb[0].mxu0 %v386
        %v945 = vpop.f32.mrb[0].mxu0
        %v946 = vadd.f32 0.0, %v945
        %v947 = vpop.f32.mrb[0].mxu0
        %v948 = vadd.f32 0.0, %v947
        %949 = vmatprep.mubr.f32.mxu0 0.0
        %950 = vmatmul.mubr.f32.gmra.mrb[0].mxu0 %v387
        %v951 = vpop.f32.mrb[0].mxu0
        %v952 = vadd.f32 0.0, %v951
        %v953 = vpop.f32.mrb[0].mxu0
        %v954 = vadd.f32 0.0, %v953
        %955 = vmatprep.mubr.f32.mxu0 0.0
        %956 = vmatmul.mubr.f32.gmra.mrb[0].mxu0 %v388
        %v957 = vpop.f32.mrb[0].mxu0
        %v958 = vadd.f32 0.0, %v957
        %v959 = vpop.f32.mrb[0].mxu0
        %v960 = vadd.f32 0.0, %v959
        %961 = vmatprep.mubr.f32.mxu0 0.0
        %962 = vmatmul.mubr.f32.gmra.mrb[0].mxu0 %v389
        %v963 = vpop.f32.mrb[0].mxu0
        %v964 = vadd.f32 0.0, %v963
        %v965 = vpop.f32.mrb[0].mxu0
        %v966 = vadd.f32 0.0, %v965
        %967 = vmatprep.mubr.f32.mxu0 0.0
        %968 = vmatmul.mubr.f32.gmra.mrb[0].mxu0 %v390
        %v969 = vpop.f32.mrb[0].mxu0
        %v970 = vadd.f32 0.0, %v969
        %v971 = vpop.f32.mrb[0].mxu0
        %v972 = vadd.f32 0.0, %v971
        %973 = vmatprep.mubr.f32.mxu0 0.0
        %974 = vmatmul.mubr.f32.gmra.mrb[0].mxu0 %v391
        %v975 = vpop.f32.mrb[0].mxu0
        %v976 = vadd.f32 0.0, %v975
        %v977 = vpop.f32.mrb[0].mxu0
        %v978 = vadd.f32 0.0, %v977
        %979 = vmatprep.mubr.f32.mxu0 0.0
        %980 = vmatmul.mubr.f32.gmra.mrb[0].mxu0 %v392
        %v981 = vpop.f32.mrb[0].mxu0
        %v982 = vadd.f32 0.0, %v981
        %v983 = vpop.f32.mrb[0].mxu0
        %v984 = vadd.f32 0.0, %v983
        %985 = vmatprep.mubr.f32.mxu0 0.0
        %986 = vmatmul.mubr.f32.gmra.mrb[0].mxu0 %v393
        %v987 = vpop.f32.mrb[0].mxu0
        %v988 = vadd.f32 0.0, %v987
        %v989 = vpop.f32.mrb[0].mxu0
        %v990 = vadd.f32 0.0, %v989
        %991 = vmatprep.mubr.f32.mxu0 0.0
        %992 = vmatmul.mubr.f32.gmra.mrb[0].mxu0 %v394
        %v993 = vpop.f32.mrb[0].mxu0
        %v994 = vadd.f32 0.0, %v993
        %v995 = vpop.f32.mrb[0].mxu0
        %v996 = vadd.f32 0.0, %v995
        %997 = vmatprep.mubr.f32.mxu0 0.0
        %998 = vmatmul.mubr.f32.gmra.mrb[0].mxu0 %v395
        %v999 = vpop.f32.mrb[0].mxu0
        %v1000 = vadd.f32 0.0, %v999
        %v1001 = vpop.f32.mrb[0].mxu0
        %v1002 = vadd.f32 0.0, %v1001
        %1003 = vmatprep.mubr.f32.mxu0 0.0
        %1004 = vmatmul.mubr.f32.gmra.mrb[0].mxu0 %v396
        %v1005 = vpop.f32.mrb[0].mxu0
        %v1006 = vadd.f32 0.0, %v1005
        %v1007 = vpop.f32.mrb[0].mxu0
        %v1008 = vadd.f32 0.0, %v1007
        %1009 = vmatprep.mubr.f32.mxu0 0.0
        %1010 = vmatmul.mubr.f32.gmra.mrb[0].mxu0 %v397
        %v1011 = vpop.f32.mrb[0].mxu0
        %v1012 = vadd.f32 0.0, %v1011
        %v1013 = vpop.f32.mrb[0].mxu0
        %v1014 = vadd.f32 0.0, %v1013
        %1015 = vmatprep.mubr.f32.mxu0 0.0
        %1016 = vmatmul.mubr.f32.gmra.mrb[0].mxu0 %v398
        %v1017 = vpop.f32.mrb[0].mxu0
        %v1018 = vadd.f32 0.0, %v1017
        %v1019 = vpop.f32.mrb[0].mxu0
        %v1020 = vadd.f32 0.0, %v1019
        %1021 = vmatprep.mubr.f32.mxu0 0.0
        %1022 = vmatmul.mubr.f32.gmra.mrb[0].mxu0 %v399
        %v1023 = vpop.f32.mrb[0].mxu0
        %v1024 = vadd.f32 0.0, %v1023
        %v1025 = vpop.f32.mrb[0].mxu0
        %v1026 = vadd.f32 0.0, %v1025
        %1027 = vmatprep.mubr.f32.mxu0 0.0
        %1028 = vmatmul.mubr.f32.gmra.mrb[0].mxu0 %v400
        %v1029 = vpop.f32.mrb[0].mxu0
        %v1030 = vadd.f32 0.0, %v1029
        %v1031 = vpop.f32.mrb[0].mxu0
        %v1032 = vadd.f32 0.0, %v1031
        %1033 = vmatprep.mubr.f32.mxu0 0.0
        %1034 = vmatmul.mubr.f32.gmra.mrb[0].mxu0 %v401
        %v1035 = vpop.f32.mrb[0].mxu0
        %v1036 = vadd.f32 0.0, %v1035
        %v1037 = vpop.f32.mrb[0].mxu0
        %v1038 = vadd.f32 0.0, %v1037
        %1039 = vmatprep.mubr.f32.mxu0 0.0
        %1040 = vmatmul.mubr.f32.gmra.mrb[0].mxu0 %v402
        %v1041 = vpop.f32.mrb[0].mxu0
        %v1042 = vadd.f32 0.0, %v1041
        %v1043 = vpop.f32.mrb[0].mxu0
        %v1044 = vadd.f32 0.0, %v1043
        %1045 = vmatprep.mubr.f32.mxu0 0.0
        %1046 = vmatmul.mubr.f32.gmra.mrb[0].mxu0 %v403
        %v1047 = vpop.f32.mrb[0].mxu0
        %v1048 = vadd.f32 0.0, %v1047
        %v1049 = vpop.f32.mrb[0].mxu0
        %v1050 = vadd.f32 0.0, %v1049
        %1051 = vmatprep.mubr.f32.mxu0 0.0
        %1052 = vmatmul.mubr.f32.gmra.mrb[0].mxu0 %v404
        %v1053 = vpop.f32.mrb[0].mxu0
        %v1054 = vadd.f32 0.0, %v1053
        %v1055 = vpop.f32.mrb[0].mxu0
        %v1056 = vadd.f32 0.0, %v1055
        %1057 = vmatprep.mubr.f32.mxu0 0.0
        %1058 = vmatmul.mubr.f32.gmra.mrb[0].mxu0 %v405
        %v1059 = vpop.f32.mrb[0].mxu0
        %v1060 = vadd.f32 0.0, %v1059
        %v1061 = vpop.f32.mrb[0].mxu0
        %v1062 = vadd.f32 0.0, %v1061
        %1063 = vmatprep.mubr.f32.mxu0 0.0
        %1064 = vmatmul.mubr.f32.gmra.mrb[0].mxu0 %v406
        %v1065 = vpop.f32.mrb[0].mxu0
        %v1066 = vadd.f32 0.0, %v1065
        %v1067 = vpop.f32.mrb[0].mxu0
        %v1068 = vadd.f32 0.0, %v1067
        %1069 = vmatprep.mubr.f32.mxu0 0.0
        %1070 = vmatmul.mubr.f32.gmra.mrb[0].mxu0 %v407
        %v1071 = vpop.f32.mrb[0].mxu0
        %v1072 = vadd.f32 0.0, %v1071
        %v1073 = vpop.f32.mrb[0].mxu0
        %v1074 = vadd.f32 0.0, %v1073
        %1075 = vmatprep.mubr.f32.mxu0 0.0
        %1076 = vmatmul.mubr.f32.gmra.mrb[0].mxu0 %v408
        %v1077 = vpop.f32.mrb[0].mxu0
        %v1078 = vadd.f32 0.0, %v1077
        %v1079 = vpop.f32.mrb[0].mxu0
        %v1080 = vadd.f32 0.0, %v1079
        %1081 = vmatprep.mubr.f32.mxu0 0.0
        %1082 = vmatmul.mubr.f32.gmra.mrb[0].mxu0 %v409
        %v1083 = vpop.f32.mrb[0].mxu0
        %v1084 = vadd.f32 0.0, %v1083
        %v1085 = vpop.f32.mrb[0].mxu0
        %v1086 = vadd.f32 0.0, %v1085
        %1087 = vmatprep.mubr.f32.mxu0 0.0
        %1088 = vmatmul.mubr.f32.gmra.mrb[0].mxu0 %v410
        %v1089 = vpop.f32.mrb[0].mxu0
        %v1090 = vadd.f32 0.0, %v1089
        %v1091 = vpop.f32.mrb[0].mxu0
        %v1092 = vadd.f32 0.0, %v1091
        %1093 = vmatprep.mubr.f32.mxu0 0.0
        %1094 = vmatmul.mubr.f32.gmra.mrb[0].mxu0 %v411
        %v1095 = vpop.f32.mrb[0].mxu0
        %v1096 = vadd.f32 0.0, %v1095
        %v1097 = vpop.f32.mrb[0].mxu0
        %v1098 = vadd.f32 0.0, %v1097
        %1099 = vmatprep.mubr.f32.mxu0 0.0
        %1100 = vmatmul.mubr.f32.gmra.mrb[0].mxu0 %v412
        %v1101 = vpop.f32.mrb[0].mxu0
        %v1102 = vadd.f32 0.0, %v1101
        %v1103 = vpop.f32.mrb[0].mxu0
        %v1104 = vadd.f32 0.0, %v1103
        %1105 = vmatprep.mubr.f32.mxu0 0.0
        %1106 = vmatmul.mubr.f32.gmra.mrb[0].mxu0 %v413
        %v1107 = vpop.f32.mrb[0].mxu0
        %v1108 = vadd.f32 0.0, %v1107
        %v1109 = vpop.f32.mrb[0].mxu0
        %v1110 = vadd.f32 0.0, %v1109
        %1111 = vmatprep.mubr.f32.mxu0 0.0
        %1112 = vmatmul.mubr.f32.gmra.mrb[0].mxu0 %v414
        %v1113 = vpop.f32.mrb[0].mxu0
        %v1114 = vadd.f32 0.0, %v1113
        %v1115 = vpop.f32.mrb[0].mxu0
        %v1116 = vadd.f32 0.0, %v1115
        %1117 = vmatprep.mubr.f32.mxu0 0.0
        %1118 = vmatmul.mubr.f32.gmra.mrb[0].mxu0 %v415
        %v1119 = vpop.f32.mrb[0].mxu0
        %v1120 = vadd.f32 0.0, %v1119
        %v1121 = vpop.f32.mrb[0].mxu0
        %v1122 = vadd.f32 0.0, %v1121
        %1123 = vmatprep.mubr.f32.mxu0 0.0
        %1124 = vmatmul.mubr.f32.gmra.mrb[0].mxu0 %v416
        %v1125 = vpop.f32.mrb[0].mxu0
        %v1126 = vadd.f32 0.0, %v1125
        %v1127 = vpop.f32.mrb[0].mxu0
        %v1128 = vadd.f32 0.0, %v1127
        %1129 = vmatprep.mubr.f32.mxu0 0.0
        %1130 = vmatmul.mubr.f32.gmra.mrb[0].mxu0 %v417
        %v1131 = vpop.f32.mrb[0].mxu0
        %v1132 = vadd.f32 0.0, %v1131
        %v1133 = vpop.f32.mrb[0].mxu0
        %v1134 = vadd.f32 0.0, %v1133
        %1135 = vmatprep.mubr.f32.mxu0 0.0
        %1136 = vmatmul.mubr.f32.gmra.mrb[0].mxu0 %v418
        %v1137 = vpop.f32.mrb[0].mxu0
        %v1138 = vadd.f32 0.0, %v1137
        %v1139 = vpop.f32.mrb[0].mxu0
        %v1140 = vadd.f32 0.0, %v1139
        %1141 = vmatprep.mubr.f32.mxu0 0.0
        %1142 = vmatmul.mubr.f32.gmra.mrb[0].mxu0 %v419
        %v1143 = vpop.f32.mrb[0].mxu0
        %v1144 = vadd.f32 0.0, %v1143
        %v1145 = vpop.f32.mrb[0].mxu0
        %v1146 = vadd.f32 0.0, %v1145
        %1147 = vmatprep.mubr.f32.mxu0 0.0
        %1148 = vmatmul.mubr.f32.gmra.mrb[0].mxu0 %v420
        %v1149 = vpop.f32.mrb[0].mxu0
        %v1150 = vadd.f32 0.0, %v1149
        %v1151 = vpop.f32.mrb[0].mxu0
        %v1152 = vadd.f32 0.0, %v1151
        %1153 = vmatprep.mubr.f32.mxu0 0.0
        %1154 = vmatmul.mubr.f32.gmra.mrb[0].mxu0 %v421
        %v1155 = vpop.f32.mrb[0].mxu0
        %v1156 = vadd.f32 0.0, %v1155
        %v1157 = vpop.f32.mrb[0].mxu0
        %v1158 = vadd.f32 0.0, %v1157
        %1159 = vmatprep.mubr.f32.mxu0 0.0
        %1160 = vmatmul.mubr.f32.gmra.mrb[0].mxu0 %v422
        %v1161 = vpop.f32.mrb[0].mxu0
        %v1162 = vadd.f32 0.0, %v1161
        %v1163 = vpop.f32.mrb[0].mxu0
        %v1164 = vadd.f32 0.0, %v1163
        %1165 = vmatprep.mubr.f32.mxu0 0.0
        %1166 = vmatmul.mubr.f32.gmra.mrb[0].mxu0 %v423
        %v1167 = vpop.f32.mrb[0].mxu0
        %v1168 = vadd.f32 0.0, %v1167
        %v1169 = vpop.f32.mrb[0].mxu0
        %v1170 = vadd.f32 0.0, %v1169
        %1171 = vmatprep.mubr.f32.mxu0 0.0
        %1172 = vmatmul.mubr.f32.gmra.mrb[0].mxu0 %v424
        %v1173 = vpop.f32.mrb[0].mxu0
        %v1174 = vadd.f32 0.0, %v1173
        %v1175 = vpop.f32.mrb[0].mxu0
        %v1176 = vadd.f32 0.0, %v1175
        %1177 = vmatprep.mubr.f32.mxu0 0.0
        %1178 = vmatmul.mubr.f32.gmra.mrb[0].mxu0 %v425
        %v1179 = vpop.f32.mrb[0].mxu0
        %v1180 = vadd.f32 0.0, %v1179
        %v1181 = vpop.f32.mrb[0].mxu0
        %v1182 = vadd.f32 0.0, %v1181
        %1183 = vmatprep.mubr.f32.mxu0 0.0
        %1184 = vmatmul.mubr.f32.gmra.mrb[0].mxu0 %v426
        %v1185 = vpop.f32.mrb[0].mxu0
        %v1186 = vadd.f32 0.0, %v1185
        %v1187 = vpop.f32.mrb[0].mxu0
        %v1188 = vadd.f32 0.0, %v1187
        %1189 = vmatprep.mubr.f32.mxu0 0.0
        %1190 = vmatmul.mubr.f32.gmra.mrb[0].mxu0 %v427
        %v1191 = vpop.f32.mrb[0].mxu0
        %v1192 = vadd.f32 0.0, %v1191
        %v1193 = vpop.f32.mrb[0].mxu0
        %v1194 = vadd.f32 0.0, %v1193
        %1195 = vmatprep.mubr.f32.mxu0 0.0
        %1196 = vmatmul.mubr.f32.gmra.mrb[0].mxu0 %v428
        %v1197 = vpop.f32.mrb[0].mxu0
        %v1198 = vadd.f32 0.0, %v1197
        %v1199 = vpop.f32.mrb[0].mxu0
        %v1200 = vadd.f32 0.0, %v1199
        %1201 = vmatprep.mubr.f32.mxu0 0.0
        %1202 = vmatmul.mubr.f32.gmra.mrb[0].mxu0 %v429
        %v1203 = vpop.f32.mrb[0].mxu0
        %v1204 = vadd.f32 0.0, %v1203
        %v1205 = vpop.f32.mrb[0].mxu0
        %v1206 = vadd.f32 0.0, %v1205
        %1207 = vmatprep.mubr.f32.mxu0 0.0
        %1208 = vmatmul.mubr.f32.gmra.mrb[0].mxu0 %v430
        %v1209 = vpop.f32.mrb[0].mxu0
        %v1210 = vadd.f32 0.0, %v1209
        %v1211 = vpop.f32.mrb[0].mxu0
        %v1212 = vadd.f32 0.0, %v1211
        %1213 = vmatprep.mubr.f32.mxu0 0.0
        %1214 = vmatmul.mubr.f32.gmra.mrb[0].mxu0 %v431
        %v1215 = vpop.f32.mrb[0].mxu0
        %v1216 = vadd.f32 0.0, %v1215
        %v1217 = vpop.f32.mrb[0].mxu0
        %v1218 = vadd.f32 0.0, %v1217
        %1219 = vmatprep.mubr.f32.mxu0 0.0
        %1220 = vmatmul.mubr.f32.gmra.mrb[0].mxu0 %v432
        %v1221 = vpop.f32.mrb[0].mxu0
        %v1222 = vadd.f32 0.0, %v1221
        %v1223 = vpop.f32.mrb[0].mxu0
        %v1224 = vadd.f32 0.0, %v1223
        %1225 = vmatprep.mubr.f32.mxu0 0.0
        %1226 = vmatmul.mubr.f32.gmra.mrb[0].mxu0 %v433
        %v1227 = vpop.f32.mrb[0].mxu0
        %v1228 = vadd.f32 0.0, %v1227
        %v1229 = vpop.f32.mrb[0].mxu0
        %v1230 = vadd.f32 0.0, %v1229
        %1231 = vmatprep.mubr.f32.mxu0 0.0
        %1232 = vmatmul.mubr.f32.gmra.mrb[0].mxu0 %v434
        %v1233 = vpop.f32.mrb[0].mxu0
        %v1234 = vadd.f32 0.0, %v1233
        %v1235 = vpop.f32.mrb[0].mxu0
        %v1236 = vadd.f32 0.0, %v1235
        %1237 = vmatprep.mubr.f32.mxu0 0.0
        %1238 = vmatmul.mubr.f32.gmra.mrb[0].mxu0 %v435
        %v1239 = vpop.f32.mrb[0].mxu0
        %v1240 = vadd.f32 0.0, %v1239
        %v1241 = vpop.f32.mrb[0].mxu0
        %v1242 = vadd.f32 0.0, %v1241
        %1243 = vmatprep.mubr.f32.mxu0 0.0
        %1244 = vmatmul.mubr.f32.gmra.mrb[0].mxu0 %v436
        %v1245 = vpop.f32.mrb[0].mxu0
        %v1246 = vadd.f32 0.0, %v1245
        %v1247 = vpop.f32.mrb[0].mxu0
        %v1248 = vadd.f32 0.0, %v1247
        %1249 = vmatprep.mubr.f32.mxu0 0.0
        %1250 = vmatmul.mubr.f32.gmra.mrb[0].mxu0 %v437
        %v1251 = vpop.f32.mrb[0].mxu0
        %v1252 = vadd.f32 0.0, %v1251
        %v1253 = vpop.f32.mrb[0].mxu0
        %v1254 = vadd.f32 0.0, %v1253
        %1255 = vmatprep.mubr.f32.mxu0 0.0
        %1256 = vmatmul.mubr.f32.gmra.mrb[0].mxu0 %v438
        %v1257 = vpop.f32.mrb[0].mxu0
        %v1258 = vadd.f32 0.0, %v1257
        %v1259 = vpop.f32.mrb[0].mxu0
        %v1260 = vadd.f32 0.0, %v1259
        %1261 = vmatprep.mubr.f32.mxu0 0.0
        %1262 = vmatmul.mubr.f32.gmra.mrb[0].mxu0 %v439
        %v1263 = vpop.f32.mrb[0].mxu0
        %v1264 = vadd.f32 0.0, %v1263
        %v1265 = vpop.f32.mrb[0].mxu0
        %v1266 = vadd.f32 0.0, %v1265
        %1267 = vmatprep.mubr.f32.mxu0 0.0
        %1268 = vmatmul.mubr.f32.gmra.mrb[0].mxu0 %v440
        %v1269 = vpop.f32.mrb[0].mxu0
        %v1270 = vadd.f32 0.0, %v1269
        %v1271 = vpop.f32.mrb[0].mxu0
        %v1272 = vadd.f32 0.0, %v1271
        %1273 = vmatprep.mubr.f32.mxu0 0.0
        %1274 = vmatmul.mubr.f32.gmra.mrb[0].mxu0 %v441
        %v1275 = vpop.f32.mrb[0].mxu0
        %v1276 = vadd.f32 0.0, %v1275
        %v1277 = vpop.f32.mrb[0].mxu0
        %v1278 = vadd.f32 0.0, %v1277
        %1279 = vmatprep.mubr.f32.mxu0 0.0
        %1280 = vmatmul.mubr.f32.gmra.mrb[0].mxu0 %v442
        %v1281 = vpop.f32.mrb[0].mxu0
        %v1282 = vadd.f32 0.0, %v1281
        %v1283 = vpop.f32.mrb[0].mxu0
        %v1284 = vadd.f32 0.0, %v1283
        %1285 = vmatprep.mubr.f32.mxu0 0.0
        %1286 = vmatmul.mubr.f32.gmra.mrb[0].mxu0 %v443
        %v1287 = vpop.f32.mrb[0].mxu0
        %v1288 = vadd.f32 0.0, %v1287
        %v1289 = vpop.f32.mrb[0].mxu0
        %v1290 = vadd.f32 0.0, %v1289
        %1291 = vmatprep.mubr.f32.mxu0 0.0
        %1292 = vmatmul.mubr.f32.gmra.mrb[0].mxu0 %v444
        %v1293 = vpop.f32.mrb[0].mxu0
        %v1294 = vadd.f32 0.0, %v1293
        %v1295 = vpop.f32.mrb[0].mxu0
        %v1296 = vadd.f32 0.0, %v1295
        %1297 = vmatprep.mubr.f32.mxu0 0.0
        %1298 = vmatmul.mubr.f32.gmra.mrb[0].mxu0 %v445
        %v1299 = vpop.f32.mrb[0].mxu0
        %v1300 = vadd.f32 0.0, %v1299
        %v1301 = vpop.f32.mrb[0].mxu0
        %v1302 = vadd.f32 0.0, %v1301
        %1303 = vmatprep.mubr.f32.mxu0 0.0
        %1304 = vmatmul.mubr.f32.gmra.mrb[0].mxu0 %v446
        %v1305 = vpop.f32.mrb[0].mxu0
        %v1306 = vadd.f32 0.0, %v1305
        %v1307 = vpop.f32.mrb[0].mxu0
        %v1308 = vadd.f32 0.0, %v1307
        %1309 = vmatprep.mubr.f32.mxu0 0.0
        %1310 = vmatmul.mubr.f32.gmra.mrb[0].mxu0 %v447
        %v1311 = vpop.f32.mrb[0].mxu0
        %v1312 = vadd.f32 0.0, %v1311
        %v1313 = vpop.f32.mrb[0].mxu0
        %v1314 = vadd.f32 0.0, %v1313
        %1315 = vmatprep.mubr.f32.mxu0 0.0
        %1316 = vmatmul.mubr.f32.gmra.mrb[0].mxu0 %v448
        %v1317 = vpop.f32.mrb[0].mxu0
        %v1318 = vadd.f32 0.0, %v1317
        %v1319 = vpop.f32.mrb[0].mxu0
        %v1320 = vadd.f32 0.0, %v1319
        %1321 = vmatprep.mubr.f32.mxu0 0.0
        %1322 = vmatmul.mubr.f32.gmra.mrb[0].mxu0 %v449
        %v1323 = vpop.f32.mrb[0].mxu0
        %v1324 = vadd.f32 0.0, %v1323
        %v1325 = vpop.f32.mrb[0].mxu0
        %v1326 = vadd.f32 0.0, %v1325
        %1327 = vmatprep.mubr.f32.mxu0 0.0
        %1328 = vmatmul.mubr.f32.gmra.mrb[0].mxu0 %v450
        %v1329 = vpop.f32.mrb[0].mxu0
        %v1330 = vadd.f32 0.0, %v1329
        %v1331 = vpop.f32.mrb[0].mxu0
        %v1332 = vadd.f32 0.0, %v1331
        %1333 = vmatprep.mubr.f32.mxu0 0.0
        %1334 = vmatmul.mubr.f32.gmra.mrb[0].mxu0 %v451
        %v1335 = vpop.f32.mrb[0].mxu0
        %v1336 = vadd.f32 0.0, %v1335
        %v1337 = vpop.f32.mrb[0].mxu0
        %v1338 = vadd.f32 0.0, %v1337
        %1339 = vmatprep.mubr.f32.mxu0 0.0
        %1340 = vmatmul.mubr.f32.gmra.mrb[0].mxu0 %v452
        %v1341 = vpop.f32.mrb[0].mxu0
        %v1342 = vadd.f32 0.0, %v1341
        %v1343 = vpop.f32.mrb[0].mxu0
        %v1344 = vadd.f32 0.0, %v1343
        %1345 = vmatprep.mubr.f32.mxu0 0.0
        %1346 = vmatmul.mubr.f32.gmra.mrb[0].mxu0 %v453
        %v1347 = vpop.f32.mrb[0].mxu0
        %v1348 = vadd.f32 0.0, %v1347
        %v1349 = vpop.f32.mrb[0].mxu0
        %v1350 = vadd.f32 0.0, %v1349
        %1351 = vmatprep.mubr.f32.mxu0 0.0
        %1352 = vmatmul.mubr.f32.gmra.mrb[0].mxu0 %v454
        %v1353 = vpop.f32.mrb[0].mxu0
        %v1354 = vadd.f32 0.0, %v1353
        %v1355 = vpop.f32.mrb[0].mxu0
        %v1356 = vadd.f32 0.0, %v1355
        %1357 = vmatprep.mubr.f32.mxu0 0.0
        %1358 = vmatmul.mubr.f32.gmra.mrb[0].mxu0 %v455
        %v1359 = vpop.f32.mrb[0].mxu0
        %v1360 = vadd.f32 0.0, %v1359
        %v1361 = vpop.f32.mrb[0].mxu0
        %v1362 = vadd.f32 0.0, %v1361
        %1363 = vmatprep.mubr.f32.mxu0 0.0
        %1364 = vmatmul.mubr.f32.gmra.mrb[0].mxu0 %v456
        %v1365 = vpop.f32.mrb[0].mxu0
        %v1366 = vadd.f32 0.0, %v1365
        %v1367 = vpop.f32.mrb[0].mxu0
        %v1368 = vadd.f32 0.0, %v1367
        %1369 = vmatprep.mubr.f32.mxu0 0.0
        %1370 = vmatmul.mubr.f32.gmra.mrb[0].mxu0 %v457
        %v1371 = vpop.f32.mrb[0].mxu0
        %v1372 = vadd.f32 0.0, %v1371
        %v1373 = vpop.f32.mrb[0].mxu0
        %v1374 = vadd.f32 0.0, %v1373
        %1375 = vmatprep.mubr.f32.mxu0 0.0
        %1376 = vmatmul.mubr.f32.gmra.mrb[0].mxu0 %v458
        %v1377 = vpop.f32.mrb[0].mxu0
        %v1378 = vadd.f32 0.0, %v1377
        %v1379 = vpop.f32.mrb[0].mxu0
        %v1380 = vadd.f32 0.0, %v1379
        %1381 = vmatprep.mubr.f32.mxu0 0.0
        %1382 = vmatmul.mubr.f32.gmra.mrb[0].mxu0 %v459
        %v1383 = vpop.f32.mrb[0].mxu0
        %v1384 = vadd.f32 0.0, %v1383
        %v1385 = vpop.f32.mrb[0].mxu0
        %v1386 = vadd.f32 0.0, %v1385
        %1387 = vmatprep.mubr.f32.mxu0 0.0
        %1388 = vmatmul.mubr.f32.gmra.mrb[0].mxu0 %v460
        %v1389 = vpop.f32.mrb[0].mxu0
        %v1390 = vadd.f32 0.0, %v1389
        %v1391 = vpop.f32.mrb[0].mxu0
        %v1392 = vadd.f32 0.0, %v1391
        %1393 = vmatprep.mubr.f32.mxu0 0.0
        %1394 = vmatmul.mubr.f32.gmra.mrb[0].mxu0 %v461
        %v1395 = vpop.f32.mrb[0].mxu0
        %v1396 = vadd.f32 0.0, %v1395
        %v1397 = vpop.f32.mrb[0].mxu0
        %v1398 = vadd.f32 0.0, %v1397
        %1399 = vmatprep.mubr.f32.mxu0 0.0
        %1400 = vmatmul.mubr.f32.gmra.mrb[0].mxu0 %v462
        %v1401 = vpop.f32.mrb[0].mxu0
        %v1402 = vadd.f32 0.0, %v1401
        %v1403 = vpop.f32.mrb[0].mxu0
        %v1404 = vadd.f32 0.0, %v1403
        %1405 = vmatprep.mubr.f32.mxu0 0.0
        %1406 = vmatmul.mubr.f32.gmra.mrb[0].mxu0 %v463
        %v1407 = vpop.f32.mrb[0].mxu0
        %v1408 = vadd.f32 0.0, %v1407
        %v1409 = vpop.f32.mrb[0].mxu0
        %v1410 = vadd.f32 0.0, %v1409
        %1411 = vmatprep.mubr.f32.mxu0 0.0
        %1412 = vmatmul.mubr.f32.gmra.mrb[0].mxu0 %v464
        %v1413 = vpop.f32.mrb[0].mxu0
        %v1414 = vadd.f32 0.0, %v1413
        %v1415 = vpop.f32.mrb[0].mxu0
        %v1416 = vadd.f32 0.0, %v1415
        %1417 = vmatprep.mubr.f32.mxu0 0.0
        %1418 = vmatmul.mubr.f32.gmra.mrb[0].mxu0 %v465
        %v1419 = vpop.f32.mrb[0].mxu0
        %v1420 = vadd.f32 0.0, %v1419
        %v1421 = vpop.f32.mrb[0].mxu0
        %v1422 = vadd.f32 0.0, %v1421
        %1423 = vmatprep.mubr.f32.mxu0 0.0
        %1424 = vmatmul.mubr.f32.gmra.mrb[0].mxu0 %v466
        %v1425 = vpop.f32.mrb[0].mxu0
        %v1426 = vadd.f32 0.0, %v1425
        %v1427 = vpop.f32.mrb[0].mxu0
        %v1428 = vadd.f32 0.0, %v1427
        %1429 = vmatprep.mubr.f32.mxu0 0.0
        %1430 = vmatmul.mubr.f32.gmra.mrb[0].mxu0 %v467
        %v1431 = vpop.f32.mrb[0].mxu0
        %v1432 = vadd.f32 0.0, %v1431
        %v1433 = vpop.f32.mrb[0].mxu0
        %v1434 = vadd.f32 0.0, %v1433
        %1435 = vmatprep.mubr.f32.mxu0 0.0
        %1436 = vmatmul.mubr.f32.gmra.mrb[0].mxu0 %v468
        %v1437 = vpop.f32.mrb[0].mxu0
        %v1438 = vadd.f32 0.0, %v1437
        %v1439 = vpop.f32.mrb[0].mxu0
        %v1440 = vadd.f32 0.0, %v1439
        %1441 = vmatprep.mubr.f32.mxu0 0.0
        %1442 = vmatmul.mubr.f32.gmra.mrb[0].mxu0 %v469
        %v1443 = vpop.f32.mrb[0].mxu0
        %v1444 = vadd.f32 0.0, %v1443
        %v1445 = vpop.f32.mrb[0].mxu0
        %v1446 = vadd.f32 0.0, %v1445
        %1447 = vmatprep.mubr.f32.mxu0 0.0
        %1448 = vmatmul.mubr.f32.gmra.mrb[0].mxu0 %v470
        %v1449 = vpop.f32.mrb[0].mxu0
        %v1450 = vadd.f32 0.0, %v1449
        %v1451 = vpop.f32.mrb[0].mxu0
        %v1452 = vadd.f32 0.0, %v1451
        %1453 = vmatprep.mubr.f32.mxu0 0.0
        %1454 = vmatmul.mubr.f32.gmra.mrb[0].mxu0 %v471
        %v1455 = vpop.f32.mrb[0].mxu0
        %v1456 = vadd.f32 0.0, %v1455
        %v1457 = vpop.f32.mrb[0].mxu0
        %v1458 = vadd.f32 0.0, %v1457
        %1459 = vmatprep.mubr.f32.mxu0 0.0
        %1460 = vmatmul.mubr.f32.gmra.mrb[0].mxu0 %v472
        %v1461 = vpop.f32.mrb[0].mxu0
        %v1462 = vadd.f32 0.0, %v1461
        %v1463 = vpop.f32.mrb[0].mxu0
        %v1464 = vadd.f32 0.0, %v1463
        %1465 = vmatprep.mubr.f32.mxu0 0.0
        %1466 = vmatmul.mubr.f32.gmra.mrb[0].mxu0 %v473
        %v1467 = vpop.f32.mrb[0].mxu0
        %v1468 = vadd.f32 0.0, %v1467
        %v1469 = vpop.f32.mrb[0].mxu0
        %v1470 = vadd.f32 0.0, %v1469
        %1471 = vmatprep.mubr.f32.mxu0 0.0
        %1472 = vmatmul.mubr.f32.gmra.mrb[0].mxu0 %v474
        %v1473 = vpop.f32.mrb[0].mxu0
        %v1474 = vadd.f32 0.0, %v1473
        %v1475 = vpop.f32.mrb[0].mxu0
        %v1476 = vadd.f32 0.0, %v1475
        %1477 = vmatprep.mubr.f32.mxu0 0.0
        %1478 = vmatmul.mubr.f32.gmra.mrb[0].mxu0 %v475
        %v1479 = vpop.f32.mrb[0].mxu0
        %v1480 = vadd.f32 0.0, %v1479
        %v1481 = vpop.f32.mrb[0].mxu0
        %v1482 = vadd.f32 0.0, %v1481
        %1483 = vmatprep.mubr.f32.mxu0 0.0
        %1484 = vmatmul.mubr.f32.gmra.mrb[0].mxu0 %v476
        %v1485 = vpop.f32.mrb[0].mxu0
        %v1486 = vadd.f32 0.0, %v1485
        %v1487 = vpop.f32.mrb[0].mxu0
        %v1488 = vadd.f32 0.0, %v1487
        %1489 = vmatprep.mubr.f32.mxu0 0.0
        %1490 = vmatmul.mubr.f32.gmra.mrb[0].mxu0 %v477
        %v1491 = vpop.f32.mrb[0].mxu0
        %v1492 = vadd.f32 0.0, %v1491
        %v1493 = vpop.f32.mrb[0].mxu0
        %v1494 = vadd.f32 0.0, %v1493
        %1495 = vmatprep.mubr.f32.mxu0 0.0
        %1496 = vmatmul.mubr.f32.gmra.mrb[0].mxu0 %v478
        %v1497 = vpop.f32.mrb[0].mxu0
        %v1498 = vadd.f32 0.0, %v1497
        %v1499 = vpop.f32.mrb[0].mxu0
        %v1500 = vadd.f32 0.0, %v1499
        %1501 = vmatprep.mubr.f32.mxu0 0.0
        %1502 = vmatmul.mubr.f32.gmra.mrb[0].mxu0 %v479
        %v1503 = vpop.f32.mrb[0].mxu0
        %v1504 = vadd.f32 0.0, %v1503
        %v1505 = vpop.f32.mrb[0].mxu0
        %v1506 = vadd.f32 0.0, %v1505
        %1507 = vmatprep.mubr.f32.mxu0 0.0
        %1508 = vmatmul.mubr.f32.gmra.mrb[0].mxu0 %v480
        %v1509 = vpop.f32.mrb[0].mxu0
        %v1510 = vadd.f32 0.0, %v1509
        %v1511 = vpop.f32.mrb[0].mxu0
        %v1512 = vadd.f32 0.0, %v1511
        %1513 = vmatprep.mubr.f32.mxu0 0.0
        %1514 = vmatmul.mubr.f32.gmra.mrb[0].mxu0 %v481
        %v1515 = vpop.f32.mrb[0].mxu0
        %v1516 = vadd.f32 0.0, %v1515
        %v1517 = vpop.f32.mrb[0].mxu0
        %v1518 = vadd.f32 0.0, %v1517
        %1519 = vmatprep.mubr.f32.mxu0 0.0
        %1520 = vmatmul.mubr.f32.gmra.mrb[0].mxu0 %v482
        %v1521 = vpop.f32.mrb[0].mxu0
        %v1522 = vadd.f32 0.0, %v1521
        %v1523 = vpop.f32.mrb[0].mxu0
        %v1524 = vadd.f32 0.0, %v1523
        %1525 = vmatprep.mubr.f32.mxu0 0.0
        %1526 = vmatmul.mubr.f32.gmra.mrb[0].mxu0 %v483
        %v1527 = vpop.f32.mrb[0].mxu0
        %v1528 = vadd.f32 0.0, %v1527
        %v1529 = vpop.f32.mrb[0].mxu0
        %v1530 = vadd.f32 0.0, %v1529
        %1531 = vmatprep.mubr.f32.mxu0 0.0
        %1532 = vmatmul.mubr.f32.gmra.mrb[0].mxu0 %v484
        %v1533 = vpop.f32.mrb[0].mxu0
        %v1534 = vadd.f32 0.0, %v1533
        %v1535 = vpop.f32.mrb[0].mxu0
        %v1536 = vadd.f32 0.0, %v1535
        %1537 = vmatprep.mubr.f32.mxu0 0.0
        %1538 = vmatmul.mubr.f32.gmra.mrb[0].mxu0 %v485
        %v1539 = vpop.f32.mrb[0].mxu0
        %v1540 = vadd.f32 0.0, %v1539
        %v1541 = vpop.f32.mrb[0].mxu0
        %v1542 = vadd.f32 0.0, %v1541
        %1543 = vmatprep.mubr.f32.mxu0 0.0
        %1544 = vmatmul.mubr.f32.gmra.mrb[0].mxu0 %v486
        %v1545 = vpop.f32.mrb[0].mxu0
        %v1546 = vadd.f32 0.0, %v1545
        %v1547 = vpop.f32.mrb[0].mxu0
        %v1548 = vadd.f32 0.0, %v1547
        %1549 = vmatprep.mubr.f32.mxu0 0.0
        %1550 = vmatmul.mubr.f32.gmra.mrb[0].mxu0 %v487
        %v1551 = vpop.f32.mrb[0].mxu0
        %v1552 = vadd.f32 0.0, %v1551
        %v1553 = vpop.f32.mrb[0].mxu0
        %v1554 = vadd.f32 0.0, %v1553
        %1555 = vmatprep.mubr.f32.mxu0 0.0
        %1556 = vmatmul.mubr.f32.gmra.mrb[0].mxu0 %v488
        %v1557 = vpop.f32.mrb[0].mxu0
        %v1558 = vadd.f32 0.0, %v1557
        %v1559 = vpop.f32.mrb[0].mxu0
        %v1560 = vadd.f32 0.0, %v1559
        %1561 = vmatprep.mubr.f32.mxu0 0.0
        %1562 = vmatmul.mubr.f32.gmra.mrb[0].mxu0 %v489
        %v1563 = vpop.f32.mrb[0].mxu0
        %v1564 = vadd.f32 0.0, %v1563
        %v1565 = vpop.f32.mrb[0].mxu0
        %v1566 = vadd.f32 0.0, %v1565
        %1567 = vmatprep.mubr.f32.mxu0 0.0
        %1568 = vmatmul.mubr.f32.gmra.mrb[0].mxu0 %v490
        %v1569 = vpop.f32.mrb[0].mxu0
        %v1570 = vadd.f32 0.0, %v1569
        %v1571 = vpop.f32.mrb[0].mxu0
        %v1572 = vadd.f32 0.0, %v1571
        %1573 = vmatprep.mubr.f32.mxu0 0.0
        %1574 = vmatmul.mubr.f32.gmra.mrb[0].mxu0 %v491
        %v1575 = vpop.f32.mrb[0].mxu0
        %v1576 = vadd.f32 0.0, %v1575
        %v1577 = vpop.f32.mrb[0].mxu0
        %v1578 = vadd.f32 0.0, %v1577
        %1579 = vmatprep.mubr.f32.mxu0 0.0
        %1580 = vmatmul.mubr.f32.gmra.mrb[0].mxu0 %v492
        %v1581 = vpop.f32.mrb[0].mxu0
        %v1582 = vadd.f32 0.0, %v1581
        %v1583 = vpop.f32.mrb[0].mxu0
        %v1584 = vadd.f32 0.0, %v1583
        %1585 = vmatprep.mubr.f32.mxu0 0.0
        %1586 = vmatmul.mubr.f32.gmra.mrb[0].mxu0 %v493
        %v1587 = vpop.f32.mrb[0].mxu0
        %v1588 = vadd.f32 0.0, %v1587
        %v1589 = vpop.f32.mrb[0].mxu0
        %v1590 = vadd.f32 0.0, %v1589
        %1591 = vmatprep.mubr.f32.mxu0 0.0
        %1592 = vmatmul.mubr.f32.gmra.mrb[0].mxu0 %v494
        %v1593 = vpop.f32.mrb[0].mxu0
        %v1594 = vadd.f32 0.0, %v1593
        %v1595 = vpop.f32.mrb[0].mxu0
        %v1596 = vadd.f32 0.0, %v1595
        %1597 = vmatprep.mubr.f32.mxu0 0.0
        %1598 = vmatmul.mubr.f32.gmra.mrb[0].mxu0 %v495
        %v1599 = vpop.f32.mrb[0].mxu0
        %v1600 = vadd.f32 0.0, %v1599
        %v1601 = vpop.f32.mrb[0].mxu0
        %v1602 = vadd.f32 0.0, %v1601
        %1603 = vmatprep.mubr.f32.mxu0 0.0
        %1604 = vmatmul.mubr.f32.gmra.mrb[0].mxu0 %v496
        %v1605 = vpop.f32.mrb[0].mxu0
        %v1606 = vadd.f32 0.0, %v1605
        %v1607 = vpop.f32.mrb[0].mxu0
        %v1608 = vadd.f32 0.0, %v1607
        %1609 = vmatprep.mubr.f32.mxu0 0.0
        %1610 = vmatmul.mubr.f32.gmra.mrb[0].mxu0 %v497
        %v1611 = vpop.f32.mrb[0].mxu0
        %v1612 = vadd.f32 0.0, %v1611
        %v1613 = vpop.f32.mrb[0].mxu0
        %v1614 = vadd.f32 0.0, %v1613
        %1615 = vmatprep.mubr.f32.mxu0 0.0
        %1616 = vmatmul.mubr.f32.gmra.mrb[0].mxu0 %v498
        %v1617 = vpop.f32.mrb[0].mxu0
        %v1618 = vadd.f32 0.0, %v1617
        %v1619 = vpop.f32.mrb[0].mxu0
        %v1620 = vadd.f32 0.0, %v1619
        %1621 = vmatprep.mubr.f32.mxu0 0.0
        %1622 = vmatmul.mubr.f32.gmra.mrb[0].mxu0 %v499
        %v1623 = vpop.f32.mrb[0].mxu0
        %v1624 = vadd.f32 0.0, %v1623
        %v1625 = vpop.f32.mrb[0].mxu0
        %v1626 = vadd.f32 0.0, %v1625
        %1627 = vmatprep.mubr.f32.mxu0 0.0
        %1628 = vmatmul.mubr.f32.gmra.mrb[0].mxu0 %v500
        %v1629 = vpop.f32.mrb[0].mxu0
        %v1630 = vadd.f32 0.0, %v1629
        %v1631 = vpop.f32.mrb[0].mxu0
        %v1632 = vadd.f32 0.0, %v1631
        %1633 = vmatprep.mubr.f32.mxu0 0.0
        %1634 = vmatmul.mubr.f32.gmra.mrb[0].mxu0 %v501
        %v1635 = vpop.f32.mrb[0].mxu0
        %v1636 = vadd.f32 0.0, %v1635
        %v1637 = vpop.f32.mrb[0].mxu0
        %v1638 = vadd.f32 0.0, %v1637
        %1639 = vmatprep.mubr.f32.mxu0 0.0
        %1640 = vmatmul.mubr.f32.gmra.mrb[0].mxu0 %v502
        %v1641 = vpop.f32.mrb[0].mxu0
        %v1642 = vadd.f32 0.0, %v1641
        %v1643 = vpop.f32.mrb[0].mxu0
        %v1644 = vadd.f32 0.0, %v1643
        %1645 = vmatprep.mubr.f32.mxu0 0.0
        %1646 = vmatmul.mubr.f32.gmra.mrb[0].mxu0 %v503
        %v1647 = vpop.f32.mrb[0].mxu0
        %v1648 = vadd.f32 0.0, %v1647
        %v1649 = vpop.f32.mrb[0].mxu0
        %v1650 = vadd.f32 0.0, %v1649
        %1651 = vmatprep.mubr.f32.mxu0 0.0
        %1652 = vmatmul.mubr.f32.gmra.mrb[0].mxu0 %v504
        %v1653 = vpop.f32.mrb[0].mxu0
        %v1654 = vadd.f32 0.0, %v1653
        %v1655 = vpop.f32.mrb[0].mxu0
        %v1656 = vadd.f32 0.0, %v1655
        %1657 = vmatprep.mubr.f32.mxu0 0.0
        %1658 = vmatmul.mubr.f32.gmra.mrb[0].mxu0 %v505
        %v1659 = vpop.f32.mrb[0].mxu0
        %v1660 = vadd.f32 0.0, %v1659
        %v1661 = vpop.f32.mrb[0].mxu0
        %v1662 = vadd.f32 0.0, %v1661
        %1663 = vmatprep.mubr.f32.mxu0 0.0
        %1664 = vmatmul.mubr.f32.gmra.mrb[0].mxu0 %v506
        %v1665 = vpop.f32.mrb[0].mxu0
        %v1666 = vadd.f32 0.0, %v1665
        %v1667 = vpop.f32.mrb[0].mxu0
        %v1668 = vadd.f32 0.0, %v1667
        %1669 = vmatprep.mubr.f32.mxu0 0.0
        %1670 = vmatmul.mubr.f32.gmra.mrb[0].mxu0 %v507
        %v1671 = vpop.f32.mrb[0].mxu0
        %v1672 = vadd.f32 0.0, %v1671
        %v1673 = vpop.f32.mrb[0].mxu0
        %v1674 = vadd.f32 0.0, %v1673
        %1675 = vmatprep.mubr.f32.mxu0 0.0
        %1676 = vmatmul.mubr.f32.gmra.mrb[0].mxu0 %v508
        %v1677 = vpop.f32.mrb[0].mxu0
        %v1678 = vadd.f32 0.0, %v1677
        %v1679 = vpop.f32.mrb[0].mxu0
        %v1680 = vadd.f32 0.0, %v1679
        %1681 = vmatprep.mubr.f32.mxu0 0.0
        %1682 = vmatmul.mubr.f32.gmra.mrb[0].mxu0 %v509
        %v1683 = vpop.f32.mrb[0].mxu0
        %v1684 = vadd.f32 0.0, %v1683
        %v1685 = vpop.f32.mrb[0].mxu0
        %v1686 = vadd.f32 0.0, %v1685
        %1687 = vmatprep.mubr.f32.mxu0 0.0
        %1688 = vmatmul.mubr.f32.gmra.mrb[0].mxu0 %v510
        %v1689 = vpop.f32.mrb[0].mxu0
        %v1690 = vadd.f32 0.0, %v1689
        %v1691 = vpop.f32.mrb[0].mxu0
        %v1692 = vadd.f32 0.0, %v1691
        %1693 = vmatprep.mubr.f32.mxu0 0.0
        %1694 = vmatmul.mubr.f32.gmra.mrb[0].mxu0 %v511
        %v1695 = vpop.f32.mrb[0].mxu0
        %v1696 = vadd.f32 0.0, %v1695
        %v1697 = vpop.f32.mrb[0].mxu0
        %v1698 = vadd.f32 0.0, %v1697
        %1699 = vmatprep.mubr.f32.mxu0 0.0
        %1700 = vmatmul.mubr.f32.gmra.mrb[0].mxu0 %v512
        %v1701 = vpop.f32.mrb[0].mxu0
        %v1702 = vadd.f32 0.0, %v1701
        %v1703 = vpop.f32.mrb[0].mxu0
        %v1704 = vadd.f32 0.0, %v1703
        %1705 = vmatprep.mubr.f32.mxu0 0.0
        %1706 = vmatmul.mubr.f32.gmra.mrb[0].mxu0 %v513
        %v1707 = vpop.f32.mrb[0].mxu0
        %v1708 = vadd.f32 0.0, %v1707
        %v1709 = vpop.f32.mrb[0].mxu0
        %v1710 = vadd.f32 0.0, %v1709
        %1711 = vmatprep.mubr.f32.mxu0 0.0
        %1712 = vmatmul.mubr.f32.gmra.mrb[0].mxu0 %v514
        %v1713 = vpop.f32.mrb[0].mxu0
        %v1714 = vadd.f32 0.0, %v1713
        %v1715 = vpop.f32.mrb[0].mxu0
        %v1716 = vadd.f32 0.0, %v1715
        %1717 = vmatprep.mubr.f32.mxu0 0.0
        %1718 = vmatmul.mubr.f32.gmra.mrb[0].mxu0 %v515
        %v1719 = vpop.f32.mrb[0].mxu0
        %v1720 = vadd.f32 0.0, %v1719
        %v1721 = vpop.f32.mrb[0].mxu0
        %v1722 = vadd.f32 0.0, %v1721
        %1723 = vmatprep.mubr.f32.mxu0 0.0
        %1724 = vmatmul.mubr.f32.gmra.mrb[0].mxu0 %v516
        %v1725 = vpop.f32.mrb[0].mxu0
        %v1726 = vadd.f32 0.0, %v1725
        %v1727 = vpop.f32.mrb[0].mxu0
        %v1728 = vadd.f32 0.0, %v1727
        %1729 = vmatprep.mubr.f32.mxu0 0.0
        %1730 = vmatmul.mubr.f32.gmra.mrb[0].mxu0 %v517
        %v1731 = vpop.f32.mrb[0].mxu0
        %v1732 = vadd.f32 0.0, %v1731
        %v1733 = vpop.f32.mrb[0].mxu0
        %v1734 = vadd.f32 0.0, %v1733
        %1735 = vmatprep.mubr.f32.mxu0 0.0
        %1736 = vmatmul.mubr.f32.gmra.mrb[0].mxu0 %v518
        %v1737 = vpop.f32.mrb[0].mxu0
        %v1738 = vadd.f32 0.0, %v1737
        %v1739 = vpop.f32.mrb[0].mxu0
        %v1740 = vadd.f32 0.0, %v1739
        %1741 = vmatprep.mubr.f32.mxu0 0.0
        %1742 = vmatmul.mubr.f32.gmra.mrb[0].mxu0 %v519
        %v1743 = vpop.f32.mrb[0].mxu0
        %v1744 = vadd.f32 0.0, %v1743
        %v1745 = vpop.f32.mrb[0].mxu0
        %v1746 = vadd.f32 0.0, %v1745
        %1747 = vmatprep.mubr.f32.mxu0 0.0
        %1748 = vmatmul.mubr.f32.gmra.mrb[0].mxu0 %v520
        %v1749 = vpop.f32.mrb[0].mxu0
        %v1750 = vadd.f32 0.0, %v1749
        %v1751 = vpop.f32.mrb[0].mxu0
        %v1752 = vadd.f32 0.0, %v1751
        %1753 = vmatprep.mubr.f32.mxu0 0.0
        %1754 = vmatmul.mubr.f32.gmra.mrb[0].mxu0 %v521
        %v1755 = vpop.f32.mrb[0].mxu0
        %v1756 = vadd.f32 0.0, %v1755
        %v1757 = vpop.f32.mrb[0].mxu0
        %v1758 = vadd.f32 0.0, %v1757
        %1759 = vmatprep.mubr.f32.mxu0 0.0
        %1760 = vmatmul.mubr.f32.gmra.mrb[0].mxu0 %v522
        %v1761 = vpop.f32.mrb[0].mxu0
        %v1762 = vadd.f32 0.0, %v1761
        %v1763 = vpop.f32.mrb[0].mxu0
        %v1764 = vadd.f32 0.0, %v1763
        %1765 = vmatprep.mubr.f32.mxu0 0.0
        %1766 = vmatmul.mubr.f32.gmra.mrb[0].mxu0 %v523
        %v1767 = vpop.f32.mrb[0].mxu0
        %v1768 = vadd.f32 0.0, %v1767
        %v1769 = vpop.f32.mrb[0].mxu0
        %v1770 = vadd.f32 0.0, %v1769
        %1771 = vmatprep.mubr.f32.mxu0 0.0
        %1772 = vmatmul.mubr.f32.gmra.mrb[0].mxu0 %v524
        %v1773 = vpop.f32.mrb[0].mxu0
        %v1774 = vadd.f32 0.0, %v1773
        %v1775 = vpop.f32.mrb[0].mxu0
        %v1776 = vadd.f32 0.0, %v1775
        %1777 = vmatprep.mubr.f32.mxu0 0.0
        %1778 = vmatmul.mubr.f32.gmra.mrb[0].mxu0 %v525
        %v1779 = vpop.f32.mrb[0].mxu0
        %v1780 = vadd.f32 0.0, %v1779
        %v1781 = vpop.f32.mrb[0].mxu0
        %v1782 = vadd.f32 0.0, %v1781
        %1783 = vmatprep.mubr.f32.mxu0 0.0
        %1784 = vmatmul.mubr.f32.gmra.mrb[0].mxu0 %v526
        %v1785 = vpop.f32.mrb[0].mxu0
        %v1786 = vadd.f32 0.0, %v1785
        %v1787 = vpop.f32.mrb[0].mxu0
        %v1788 = vadd.f32 0.0, %v1787
        %1789 = vmatprep.mubr.f32.mxu0 0.0
        %1790 = vmatmul.mubr.f32.gmra.mrb[0].mxu0 %v527
        %v1791 = vpop.f32.mrb[0].mxu0
        %v1792 = vadd.f32 0.0, %v1791
        %v1793 = vpop.f32.mrb[0].mxu0
        %v1794 = vadd.f32 0.0, %v1793
        %1795 = vmatprep.mubr.f32.mxu0 0.0
        %1796 = vmatmul.mubr.f32.gmra.mrb[0].mxu0 %v528
        %v1797 = vpop.f32.mrb[0].mxu0
        %v1798 = vadd.f32 0.0, %v1797
        %v1799 = vpop.f32.mrb[0].mxu0
        %v1800 = vadd.f32 0.0, %v1799
        %1801 = vmatprep.mubr.f32.mxu0 0.0
        %1802 = vmatmul.mubr.f32.gmra.mrb[0].mxu0 %v529
        %v1803 = vpop.f32.mrb[0].mxu0
        %v1804 = vadd.f32 0.0, %v1803
        %v1805 = vpop.f32.mrb[0].mxu0
        %v1806 = vadd.f32 0.0, %v1805
        %1807 = vmatprep.mubr.f32.mxu0 0.0
        %1808 = vmatmul.mubr.f32.gmra.mrb[0].mxu0 %v530
        %v1809 = vpop.f32.mrb[0].mxu0
        %v1810 = vadd.f32 0.0, %v1809
        %v1811 = vpop.f32.mrb[0].mxu0
        %v1812 = vadd.f32 0.0, %v1811
        %1813 = vmatprep.mubr.f32.mxu0 0.0
        %1814 = vmatmul.mubr.f32.gmra.mrb[0].mxu0 %v531
        %v1815 = vpop.f32.mrb[0].mxu0
        %v1816 = vadd.f32 0.0, %v1815
        %v1817 = vpop.f32.mrb[0].mxu0
        %v1818 = vadd.f32 0.0, %v1817
        %1819 = vmatprep.mubr.f32.mxu0 0.0
        %1820 = vmatmul.mubr.f32.gmra.mrb[0].mxu0 %v532
        %v1821 = vpop.f32.mrb[0].mxu0
        %v1822 = vadd.f32 0.0, %v1821
        %v1823 = vpop.f32.mrb[0].mxu0
        %v1824 = vadd.f32 0.0, %v1823
        %1825 = vmatprep.mubr.f32.mxu0 0.0
        %1826 = vmatmul.mubr.f32.gmra.mrb[0].mxu0 %v533
        %v1827 = vpop.f32.mrb[0].mxu0
        %v1828 = vadd.f32 0.0, %v1827
        %v1829 = vpop.f32.mrb[0].mxu0
        %v1830 = vadd.f32 0.0, %v1829
        %1831 = vmatprep.mubr.f32.mxu0 0.0
        %1832 = vmatmul.mubr.f32.gmra.mrb[0].mxu0 %v534
        %v1833 = vpop.f32.mrb[0].mxu0
        %v1834 = vadd.f32 0.0, %v1833
        %v1835 = vpop.f32.mrb[0].mxu0
        %v1836 = vadd.f32 0.0, %v1835
        %1837 = vmatprep.mubr.f32.mxu0 0.0
        %1838 = vmatmul.mubr.f32.gmra.mrb[0].mxu0 %v535
        %v1839 = vpop.f32.mrb[0].mxu0
        %v1840 = vadd.f32 0.0, %v1839
        %v1841 = vpop.f32.mrb[0].mxu0
        %v1842 = vadd.f32 0.0, %v1841
        %1843 = vmatprep.mubr.f32.mxu0 0.0
        %1844 = vmatmul.mubr.f32.gmra.mrb[0].mxu0 %v536
        %v1845 = vpop.f32.mrb[0].mxu0
        %v1846 = vadd.f32 0.0, %v1845
        %v1847 = vpop.f32.mrb[0].mxu0
        %v1848 = vadd.f32 0.0, %v1847
        %1849 = vmatprep.mubr.f32.mxu0 0.0
        %1850 = vmatmul.mubr.f32.gmra.mrb[0].mxu0 %v537
        %v1851 = vpop.f32.mrb[0].mxu0
        %v1852 = vadd.f32 0.0, %v1851
        %v1853 = vpop.f32.mrb[0].mxu0
        %v1854 = vadd.f32 0.0, %v1853
        %1855 = vmatprep.mubr.f32.mxu0 0.0
        %1856 = vmatmul.mubr.f32.gmra.mrb[0].mxu0 %v538
        %v1857 = vpop.f32.mrb[0].mxu0
        %v1858 = vadd.f32 0.0, %v1857
        %v1859 = vpop.f32.mrb[0].mxu0
        %v1860 = vadd.f32 0.0, %v1859
        %1861 = vmatprep.mubr.f32.mxu0 0.0
        %1862 = vmatmul.mubr.f32.gmra.mrb[0].mxu0 %v539
        %v1863 = vpop.f32.mrb[0].mxu0
        %v1864 = vadd.f32 0.0, %v1863
        %v1865 = vpop.f32.mrb[0].mxu0
        %v1866 = vadd.f32 0.0, %v1865
        %1867 = vmatprep.mubr.f32.mxu0 0.0
        %1868 = vmatmul.mubr.f32.gmra.mrb[0].mxu0 %v540
        %v1869 = vpop.f32.mrb[0].mxu0
        %v1870 = vadd.f32 0.0, %v1869
        %v1871 = vpop.f32.mrb[0].mxu0
        %v1872 = vadd.f32 0.0, %v1871
        %1873 = vmatprep.mubr.f32.mxu0 0.0
        %1874 = vmatmul.mubr.f32.gmra.mrb[0].mxu0 %v541
        %v1875 = vpop.f32.mrb[0].mxu0
        %v1876 = vadd.f32 0.0, %v1875
        %v1877 = vpop.f32.mrb[0].mxu0
        %v1878 = vadd.f32 0.0, %v1877
        %1879 = vmatprep.mubr.f32.mxu0 0.0
        %1880 = vmatmul.mubr.f32.gmra.mrb[0].mxu0 %v542
        %v1881 = vpop.f32.mrb[0].mxu0
        %v1882 = vadd.f32 0.0, %v1881
        %v1883 = vpop.f32.mrb[0].mxu0
        %v1884 = vadd.f32 0.0, %v1883
        %1885 = vmatprep.mubr.f32.mxu0 0.0
        %1886 = vmatmul.mubr.f32.gmra.mrb[0].mxu0 %v543
        %v1887 = vpop.f32.mrb[0].mxu0
        %v1888 = vadd.f32 0.0, %v1887
        %v1889 = vpop.f32.mrb[0].mxu0
        %v1890 = vadd.f32 0.0, %v1889
        %1891 = vmatprep.mubr.f32.mxu0 0.0
        %1892 = vmatmul.mubr.f32.gmra.mrb[0].mxu0 %v544
        %v1893 = vpop.f32.mrb[0].mxu0
        %v1894 = vadd.f32 0.0, %v1893
        %v1895 = vpop.f32.mrb[0].mxu0
        %v1896 = vadd.f32 0.0, %v1895
        %1897 = vmatprep.mubr.f32.mxu0 0.0
        %1898 = vmatmul.mubr.f32.gmra.mrb[0].mxu0 %v545
        %v1899 = vpop.f32.mrb[0].mxu0
        %v1900 = vadd.f32 0.0, %v1899
        %v1901 = vpop.f32.mrb[0].mxu0
        %v1902 = vadd.f32 0.0, %v1901
        %1903 = vmatprep.mubr.f32.mxu0 0.0
        %1904 = vmatmul.mubr.f32.gmra.mrb[0].mxu0 %v546
        %v1905 = vpop.f32.mrb[0].mxu0
        %v1906 = vadd.f32 0.0, %v1905
        %v1907 = vpop.f32.mrb[0].mxu0
        %v1908 = vadd.f32 0.0, %v1907
        %1909 = vmatprep.mubr.f32.mxu0 0.0
        %1910 = vmatmul.mubr.f32.gmra.mrb[0].mxu0 %v547
        %v1911 = vpop.f32.mrb[0].mxu0
        %v1912 = vadd.f32 0.0, %v1911
        %v1913 = vpop.f32.mrb[0].mxu0
        %v1914 = vadd.f32 0.0, %v1913
        %1915 = vmatprep.mubr.f32.mxu0 0.0
        %1916 = vmatmul.mubr.f32.gmra.mrb[0].mxu0 %v548
        %v1917 = vpop.f32.mrb[0].mxu0
        %v1918 = vadd.f32 0.0, %v1917
        %v1919 = vpop.f32.mrb[0].mxu0
        %v1920 = vadd.f32 0.0, %v1919
        %1921 = vmatprep.mubr.f32.mxu0 0.0
        %1922 = vmatmul.mubr.f32.gmra.mrb[0].mxu0 %v549
        %v1923 = vpop.f32.mrb[0].mxu0
        %v1924 = vadd.f32 0.0, %v1923
        %v1925 = vpop.f32.mrb[0].mxu0
        %v1926 = vadd.f32 0.0, %v1925
        %1927 = vmatprep.mubr.f32.mxu0 0.0
        %1928 = vmatmul.mubr.f32.gmra.mrb[0].mxu0 %v550
        %v1929 = vpop.f32.mrb[0].mxu0
        %v1930 = vadd.f32 0.0, %v1929
        %v1931 = vpop.f32.mrb[0].mxu0
        %v1932 = vadd.f32 0.0, %v1931
        %1933 = vmatprep.mubr.f32.mxu0 0.0
        %1934 = vmatmul.mubr.f32.gmra.mrb[0].mxu0 %v551
        %v1935 = vpop.f32.mrb[0].mxu0
        %v1936 = vadd.f32 0.0, %v1935
        %v1937 = vpop.f32.mrb[0].mxu0
        %v1938 = vadd.f32 0.0, %v1937
        %1939 = vmatprep.mubr.f32.mxu0 0.0
        %1940 = vmatmul.mubr.f32.gmra.mrb[0].mxu0 %v552
        %v1941 = vpop.f32.mrb[0].mxu0
        %v1942 = vadd.f32 0.0, %v1941
        %v1943 = vpop.f32.mrb[0].mxu0
        %v1944 = vadd.f32 0.0, %v1943
        %1945 = vmatprep.mubr.f32.mxu0 0.0
        %1946 = vmatmul.mubr.f32.gmra.mrb[0].mxu0 %v553
        %v1947 = vpop.f32.mrb[0].mxu0
        %v1948 = vadd.f32 0.0, %v1947
        %v1949 = vpop.f32.mrb[0].mxu0
        %v1950 = vadd.f32 0.0, %v1949
        %1951 = vmatprep.mubr.f32.mxu0 0.0
        %1952 = vmatmul.mubr.f32.gmra.mrb[0].mxu0 %v554
        %v1953 = vpop.f32.mrb[0].mxu0
        %v1954 = vadd.f32 0.0, %v1953
        %v1955 = vpop.f32.mrb[0].mxu0
        %v1956 = vadd.f32 0.0, %v1955
        %1957 = vmatprep.mubr.f32.mxu0 0.0
        %1958 = vmatmul.mubr.f32.gmra.mrb[0].mxu0 %v555
        %v1959 = vpop.f32.mrb[0].mxu0
        %v1960 = vadd.f32 0.0, %v1959
        %v1961 = vpop.f32.mrb[0].mxu0
        %v1962 = vadd.f32 0.0, %v1961
        %1963 = vmatprep.mubr.f32.mxu0 0.0
        %1964 = vmatmul.mubr.f32.gmra.mrb[0].mxu0 %v556
        %v1965 = vpop.f32.mrb[0].mxu0
        %v1966 = vadd.f32 0.0, %v1965
        %v1967 = vpop.f32.mrb[0].mxu0
        %v1968 = vadd.f32 0.0, %v1967
        %1969 = vmatprep.mubr.f32.mxu0 0.0
        %1970 = vmatmul.mubr.f32.gmra.mrb[0].mxu0 %v557
        %v1971 = vpop.f32.mrb[0].mxu0
        %v1972 = vadd.f32 0.0, %v1971
        %v1973 = vpop.f32.mrb[0].mxu0
        %v1974 = vadd.f32 0.0, %v1973
        %1975 = vmatprep.mubr.f32.mxu0 0.0
        %1976 = vmatmul.mubr.f32.gmra.mrb[0].mxu0 %v558
        %v1977 = vpop.f32.mrb[0].mxu0
        %v1978 = vadd.f32 0.0, %v1977
        %v1979 = vpop.f32.mrb[0].mxu0
        %v1980 = vadd.f32 0.0, %v1979
        %1981 = vmatprep.mubr.f32.mxu0 0.0
        %1982 = vmatmul.mubr.f32.gmra.mrb[0].mxu0 %v559
        %v1983 = vpop.f32.mrb[0].mxu0
        %v1984 = vadd.f32 0.0, %v1983
        %v1985 = vpop.f32.mrb[0].mxu0
        %v1986 = vadd.f32 0.0, %v1985
        %1987 = vmatprep.mubr.f32.mxu0 0.0
        %1988 = vmatmul.mubr.f32.gmra.mrb[0].mxu0 %v560
        %v1989 = vpop.f32.mrb[0].mxu0
        %v1990 = vadd.f32 0.0, %v1989
        %v1991 = vpop.f32.mrb[0].mxu0
        %v1992 = vadd.f32 0.0, %v1991
        %1993 = vmatprep.mubr.f32.mxu0 0.0
        %1994 = vmatmul.mubr.f32.gmra.mrb[0].mxu0 %v561
        %v1995 = vpop.f32.mrb[0].mxu0
        %v1996 = vadd.f32 0.0, %v1995
        %v1997 = vpop.f32.mrb[0].mxu0
        %v1998 = vadd.f32 0.0, %v1997
        %1999 = vmatprep.mubr.f32.mxu0 0.0
        %2000 = vmatmul.mubr.f32.gmra.mrb[0].mxu0 %v562
        %v2001 = vpop.f32.mrb[0].mxu0
        %v2002 = vadd.f32 0.0, %v2001
        %v2003 = vpop.f32.mrb[0].mxu0
        %v2004 = vadd.f32 0.0, %v2003
        %2005 = vmatprep.mubr.f32.mxu0 0.0
        %2006 = vmatmul.mubr.f32.gmra.mrb[0].mxu0 %v563
        %v2007 = vpop.f32.mrb[0].mxu0
        %v2008 = vadd.f32 0.0, %v2007
        %v2009 = vpop.f32.mrb[0].mxu0
        %v2010 = vadd.f32 0.0, %v2009
        %2011 = vmatprep.mubr.f32.mxu0 0.0
        %2012 = vmatmul.mubr.f32.gmra.mrb[0].mxu0 %v564
        %v2013 = vpop.f32.mrb[0].mxu0
        %v2014 = vadd.f32 0.0, %v2013
        %v2015 = vpop.f32.mrb[0].mxu0
        %v2016 = vadd.f32 0.0, %v2015
        %2017 = vmatprep.mubr.f32.mxu0 0.0
        %2018 = vmatmul.mubr.f32.gmra.mrb[0].mxu0 %v565
        %v2019 = vpop.f32.mrb[0].mxu0
        %v2020 = vadd.f32 0.0, %v2019
        %v2021 = vpop.f32.mrb[0].mxu0
        %v2022 = vadd.f32 0.0, %v2021
        %2023 = vmatprep.mubr.f32.mxu0 0.0
        %2024 = vmatmul.mubr.f32.gmra.mrb[0].mxu0 %v566
        %v2025 = vpop.f32.mrb[0].mxu0
        %v2026 = vadd.f32 0.0, %v2025
        %v2027 = vpop.f32.mrb[0].mxu0
        %v2028 = vadd.f32 0.0, %v2027
        %2029 = vmatprep.mubr.f32.mxu0 0.0
        %2030 = vmatmul.mubr.f32.gmra.mrb[0].mxu0 %v567
        %v2031 = vpop.f32.mrb[0].mxu0
        %v2032 = vadd.f32 0.0, %v2031
        %v2033 = vpop.f32.mrb[0].mxu0
        %v2034 = vadd.f32 0.0, %v2033
        %2035 = vmatprep.mubr.f32.mxu0 0.0
        %2036 = vmatmul.mubr.f32.gmra.mrb[0].mxu0 %v568
        %v2037 = vpop.f32.mrb[0].mxu0
        %v2038 = vadd.f32 0.0, %v2037
        %v2039 = vpop.f32.mrb[0].mxu0
        %v2040 = vadd.f32 0.0, %v2039
        %2041 = vmatprep.mubr.f32.mxu0 0.0
        %2042 = vmatmul.mubr.f32.gmra.mrb[0].mxu0 %v569
        %v2043 = vpop.f32.mrb[0].mxu0
        %v2044 = vadd.f32 0.0, %v2043
        %v2045 = vpop.f32.mrb[0].mxu0
        %v2046 = vadd.f32 0.0, %v2045
        %2047 = vmatprep.mubr.f32.mxu0 0.0
        %2048 = vmatmul.mubr.f32.gmra.mrb[0].mxu0 %v570
        %v2049 = vpop.f32.mrb[0].mxu0
        %v2050 = vadd.f32 0.0, %v2049
        %v2051 = vpop.f32.mrb[0].mxu0
        %v2052 = vadd.f32 0.0, %v2051
        %2053 = vmatprep.mubr.f32.mxu0 0.0
        %2054 = vmatmul.mubr.f32.gmra.mrb[0].mxu0 %v571
        %v2055 = vpop.f32.mrb[0].mxu0
        %v2056 = vadd.f32 0.0, %v2055
        %v2057 = vpop.f32.mrb[0].mxu0
        %v2058 = vadd.f32 0.0, %v2057
        %2059 = vmatprep.mubr.f32.mxu0 0.0
        %2060 = vmatmul.mubr.f32.gmra.mrb[0].mxu0 %v572
        %v2061 = vpop.f32.mrb[0].mxu0
        %v2062 = vadd.f32 0.0, %v2061
        %v2063 = vpop.f32.mrb[0].mxu0
        %v2064 = vadd.f32 0.0, %v2063
        %2065 = vmatprep.mubr.f32.mxu0 0.0
        %2066 = vmatmul.mubr.f32.gmra.mrb[0].mxu0 %v573
        %v2067 = vpop.f32.mrb[0].mxu0
        %v2068 = vadd.f32 0.0, %v2067
        %v2069 = vpop.f32.mrb[0].mxu0
        %v2070 = vadd.f32 0.0, %v2069
        %2071 = vmatprep.mubr.f32.mxu0 0.0
        %2072 = vmatmul.mubr.f32.gmra.mrb[0].mxu0 %v574
        %v2073 = vpop.f32.mrb[0].mxu0
        %v2074 = vadd.f32 0.0, %v2073
        %v2075 = vpop.f32.mrb[0].mxu0
        %v2076 = vadd.f32 0.0, %v2075
        %2077 = vmatprep.mubr.f32.mxu0 0.0
        %2078 = vmatmul.mubr.f32.gmra.mrb[0].mxu0 %v575
        %v2079 = vpop.f32.mrb[0].mxu0
        %v2080 = vadd.f32 0.0, %v2079
        %v2081 = vpop.f32.mrb[0].mxu0
        %v2082 = vadd.f32 0.0, %v2081
        %2083 = vmatprep.mubr.f32.mxu0 0.0
        %2084 = vmatmul.mubr.f32.gmra.mrb[0].mxu0 %v576
        %v2085 = vpop.f32.mrb[0].mxu0
        %v2086 = vadd.f32 0.0, %v2085
        %v2087 = vpop.f32.mrb[0].mxu0
        %v2088 = vadd.f32 0.0, %v2087
        %2089 = vmatprep.mubr.f32.mxu0 0.0
        %2090 = vmatmul.mubr.f32.gmra.mrb[0].mxu0 %v577
        %v2091 = vpop.f32.mrb[0].mxu0
        %v2092 = vadd.f32 0.0, %v2091
        %v2093 = vpop.f32.mrb[0].mxu0
        %v2094 = vadd.f32 0.0, %v2093
        %2095 = vmatprep.mubr.f32.mxu0 0.0
        %2096 = vmatmul.mubr.f32.gmra.mrb[0].mxu0 %v578
        %v2097 = vpop.f32.mrb[0].mxu0
        %v2098 = vadd.f32 0.0, %v2097
        %v2099 = vpop.f32.mrb[0].mxu0
        %v2100 = vadd.f32 0.0, %v2099
        %2101 = vmatprep.mubr.f32.mxu0 0.0
        %2102 = vmatmul.mubr.f32.gmra.mrb[0].mxu0 %v579
        %v2103 = vpop.f32.mrb[0].mxu0
        %v2104 = vadd.f32 0.0, %v2103
        %v2105 = vpop.f32.mrb[0].mxu0
        %v2106 = vadd.f32 0.0, %v2105
        %2107 = vmatprep.mubr.f32.mxu0 0.0
        %2108 = vmatmul.mubr.f32.gmra.mrb[0].mxu0 %v580
        %v2109 = vpop.f32.mrb[0].mxu0
        %v2110 = vadd.f32 0.0, %v2109
        %v2111 = vpop.f32.mrb[0].mxu0
        %v2112 = vadd.f32 0.0, %v2111
        %2113 = vmatprep.mubr.f32.mxu0 0.0
        %2114 = vmatmul.mubr.f32.gmra.mrb[0].mxu0 %v581
        %v2115 = vpop.f32.mrb[0].mxu0
        %v2116 = vadd.f32 0.0, %v2115
        %v2117 = vpop.f32.mrb[0].mxu0
        %v2118 = vadd.f32 0.0, %v2117
        %2119 = vmatprep.mubr.f32.mxu0 0.0
        %2120 = vmatmul.mubr.f32.gmra.mrb[0].mxu0 %v582
        %v2121 = vpop.f32.mrb[0].mxu0
        %v2122 = vadd.f32 0.0, %v2121
        %v2123 = vpop.f32.mrb[0].mxu0
        %v2124 = vadd.f32 0.0, %v2123
        %2125 = vmatprep.mubr.f32.mxu0 0.0
        %2126 = vmatmul.mubr.f32.gmra.mrb[0].mxu0 %v583
        %v2127 = vpop.f32.mrb[0].mxu0
        %v2128 = vadd.f32 0.0, %v2127
        %v2129 = vpop.f32.mrb[0].mxu0
        %v2130 = vadd.f32 0.0, %v2129
        %2131 = vmatprep.mubr.f32.mxu0 0.0
        %2132 = vmatmul.mubr.f32.gmra.mrb[0].mxu0 %v584
        %v2133 = vpop.f32.mrb[0].mxu0
        %v2134 = vadd.f32 0.0, %v2133
        %v2135 = vpop.f32.mrb[0].mxu0
        %v2136 = vadd.f32 0.0, %v2135
        %2137 = vmatprep.mubr.f32.mxu0 0.0
        %2138 = vmatmul.mubr.f32.gmra.mrb[0].mxu0 %v585
        %v2139 = vpop.f32.mrb[0].mxu0
        %v2140 = vadd.f32 0.0, %v2139
        %v2141 = vpop.f32.mrb[0].mxu0
        %v2142 = vadd.f32 0.0, %v2141
        %2143 = vmatprep.mubr.f32.mxu0 0.0
        %2144 = vmatmul.mubr.f32.gmra.mrb[0].mxu0 %v586
        %v2145 = vpop.f32.mrb[0].mxu0
        %v2146 = vadd.f32 0.0, %v2145
        %v2147 = vpop.f32.mrb[0].mxu0
        %v2148 = vadd.f32 0.0, %v2147
        %2149 = vmatprep.mubr.f32.mxu0 0.0
        %2150 = vmatmul.mubr.f32.gmra.mrb[0].mxu0 %v587
        %v2151 = vpop.f32.mrb[0].mxu0
        %v2152 = vadd.f32 0.0, %v2151
        %v2153 = vpop.f32.mrb[0].mxu0
        %v2154 = vadd.f32 0.0, %v2153
        %2155 = vmatprep.mubr.f32.mxu0 0.0
        %2156 = vmatmul.mubr.f32.gmra.mrb[0].mxu0 %v588
        %v2157 = vpop.f32.mrb[0].mxu0
        %v2158 = vadd.f32 0.0, %v2157
        %v2159 = vpop.f32.mrb[0].mxu0
        %v2160 = vadd.f32 0.0, %v2159
        %2161 = vmatprep.mubr.f32.mxu0 0.0
        %2162 = vmatmul.mubr.f32.gmra.mrb[0].mxu0 %v589
        %v2163 = vpop.f32.mrb[0].mxu0
        %v2164 = vadd.f32 0.0, %v2163
        %v2165 = vpop.f32.mrb[0].mxu0
        %v2166 = vadd.f32 0.0, %v2165
        %2167 = vmatprep.mubr.f32.mxu0 0.0
        %2168 = vmatmul.mubr.f32.gmra.mrb[0].mxu0 %v590
        %v2169 = vpop.f32.mrb[0].mxu0
        %v2170 = vadd.f32 0.0, %v2169
        %v2171 = vpop.f32.mrb[0].mxu0
        %v2172 = vadd.f32 0.0, %v2171
        %2173 = vmatprep.mubr.f32.mxu0 0.0
        %2174 = vmatmul.mubr.f32.gmra.mrb[0].mxu0 %v591
        %v2175 = vpop.f32.mrb[0].mxu0
        %v2176 = vadd.f32 0.0, %v2175
        %v2177 = vpop.f32.mrb[0].mxu0
        %v2178 = vadd.f32 0.0, %v2177
        %2179 = vmatprep.mubr.f32.mxu0 0.0
        %2180 = vmatmul.mubr.f32.gmra.mrb[0].mxu0 %v592
        %v2181 = vpop.f32.mrb[0].mxu0
        %v2182 = vadd.f32 0.0, %v2181
        %v2183 = vpop.f32.mrb[0].mxu0
        %v2184 = vadd.f32 0.0, %v2183
        %2185 = vmatprep.mubr.f32.mxu0 0.0
        %2186 = vmatmul.mubr.f32.gmra.mrb[0].mxu0 %v593
        %v2187 = vpop.f32.mrb[0].mxu0
        %v2188 = vadd.f32 0.0, %v2187
        %v2189 = vpop.f32.mrb[0].mxu0
        %v2190 = vadd.f32 0.0, %v2189
        %2191 = vmatprep.mubr.f32.mxu0 0.0
        %2192 = vmatmul.mubr.f32.gmra.mrb[0].mxu0 %v594
        %v2193 = vpop.f32.mrb[0].mxu0
        %v2194 = vadd.f32 0.0, %v2193
        %v2195 = vpop.f32.mrb[0].mxu0
        %v2196 = vadd.f32 0.0, %v2195
        %2197 = vmatprep.mubr.f32.mxu0 0.0
        %2198 = vmatmul.mubr.f32.gmra.mrb[0].mxu0 %v595
        %v2199 = vpop.f32.mrb[0].mxu0
        %v2200 = vadd.f32 0.0, %v2199
        %v2201 = vpop.f32.mrb[0].mxu0
        %v2202 = vadd.f32 0.0, %v2201
        %2203 = vmatprep.mubr.f32.mxu0 0.0
        %2204 = vmatmul.mubr.f32.gmra.mrb[0].mxu0 %v596
        %v2205 = vpop.f32.mrb[0].mxu0
        %v2206 = vadd.f32 0.0, %v2205
        %v2207 = vpop.f32.mrb[0].mxu0
        %v2208 = vadd.f32 0.0, %v2207
        %2209 = vmatprep.mubr.f32.mxu0 0.0
        %2210 = vmatmul.mubr.f32.gmra.mrb[0].mxu0 %v597
        %v2211 = vpop.f32.mrb[0].mxu0
        %v2212 = vadd.f32 0.0, %v2211
        %v2213 = vpop.f32.mrb[0].mxu0
        %v2214 = vadd.f32 0.0, %v2213
        %2215 = vmatprep.mubr.f32.mxu0 0.0
        %2216 = vmatmul.mubr.f32.gmra.mrb[0].mxu0 %v598
        %v2217 = vpop.f32.mrb[0].mxu0
        %v2218 = vadd.f32 0.0, %v2217
        %v2219 = vpop.f32.mrb[0].mxu0
        %v2220 = vadd.f32 0.0, %v2219
        %2221 = vmatprep.mubr.f32.mxu0 0.0
        %2222 = vmatmul.mubr.f32.gmra.mrb[0].mxu0 %v599
        %v2223 = vpop.f32.mrb[0].mxu0
        %v2224 = vadd.f32 0.0, %v2223
        %v2225 = vpop.f32.mrb[0].mxu0
        %v2226 = vadd.f32 0.0, %v2225
        %2227 = vmatprep.mubr.f32.mxu0 0.0
        %2228 = vmatmul.mubr.f32.gmra.mrb[0].mxu0 %v600
        %v2229 = vpop.f32.mrb[0].mxu0
        %v2230 = vadd.f32 0.0, %v2229
        %v2231 = vpop.f32.mrb[0].mxu0
        %v2232 = vadd.f32 0.0, %v2231
        %2233 = vdwg.mxu0
        %v2234 = vld [vmem:[%s1] sm:$0x1]
        %2235 = vmatprep.subr.mxu0 %v602
        %2236 = vmatpush1.msra.mxu0 %v601
        %2237 = vmatprep.subr.mxu0 %v604
        %2238 = vmatpush1.msra.mxu0 %v603
        %2239 = vmatprep.subr.mxu0 %v606
        %2240 = vmatpush1.msra.mxu0 %v605
        %2241 = vmatprep.subr.mxu0 %v608
        %2242 = vmatpush1.msra.mxu0 %v607
        %2243 = vmatprep.subr.mxu0 %v610
        %2244 = vmatpush1.msra.mxu0 %v609
        %2245 = vmatprep.subr.mxu0 %v612
        %2246 = vmatpush1.msra.mxu0 %v611
        %2247 = vmatprep.subr.mxu0 %v614
        %2248 = vmatpush1.msra.mxu0 %v613
        %2249 = vmatprep.subr.mxu0 %v616
        %2250 = vmatpush1.msra.mxu0 %v615
        %2251 = vmatprep.subr.mxu0 %v618
        %2252 = vmatpush1.msra.mxu0 %v617
        %2253 = vmatprep.subr.mxu0 %v620
        %2254 = vmatpush1.msra.mxu0 %v619
        %2255 = vmatprep.subr.mxu0 %v622
        %2256 = vmatpush1.msra.mxu0 %v621
        %2257 = vmatprep.subr.mxu0 %v624
        %2258 = vmatpush1.msra.mxu0 %v623
        %2259 = vmatprep.subr.mxu0 %v626
        %2260 = vmatpush1.msra.mxu0 %v625
        %2261 = vmatprep.subr.mxu0 %v628
        %2262 = vmatpush1.msra.mxu0 %v627
        %2263 = vmatprep.subr.mxu0 %v630
        %2264 = vmatpush1.msra.mxu0 %v629
        %2265 = vmatprep.subr.mxu0 %v632
        %2266 = vmatpush1.msra.mxu0 %v631
        %2267 = vmatprep.subr.mxu0 0.0
        %2268 = vmatpush1.msra.mxu0 0.0
        %2269 = vmatprep.subr.mxu0 0.0
        %2270 = vmatpush1.msra.mxu0 0.0
        %2271 = vmatprep.subr.mxu0 0.0
        %2272 = vmatpush1.msra.mxu0 0.0
        %2273 = vmatprep.subr.mxu0 0.0
        %2274 = vmatpush1.msra.mxu0 0.0
        %2275 = vmatprep.subr.mxu0 0.0
        %2276 = vmatpush1.msra.mxu0 0.0
        %2277 = vmatprep.subr.mxu0 0.0
        %2278 = vmatpush1.msra.mxu0 0.0
        %2279 = vmatprep.subr.mxu0 0.0
        %2280 = vmatpush1.msra.mxu0 0.0
        %2281 = vmatprep.subr.mxu0 0.0
        %2282 = vmatpush1.msra.mxu0 0.0
        %2283 = vmatprep.subr.mxu0 0.0
        %2284 = vmatpush1.msra.mxu0 0.0
        %2285 = vmatprep.subr.mxu0 0.0
        %2286 = vmatpush1.msra.mxu0 0.0
        %2287 = vmatprep.subr.mxu0 0.0
        %2288 = vmatpush1.msra.mxu0 0.0
        %2289 = vmatprep.subr.mxu0 0.0
        %2290 = vmatpush1.msra.mxu0 0.0
        %2291 = vmatprep.subr.mxu0 0.0
        %2292 = vmatpush1.msra.mxu0 0.0
        %2293 = vmatprep.subr.mxu0 0.0
        %2294 = vmatpush1.msra.mxu0 0.0
        %2295 = vmatprep.subr.mxu0 0.0
        %2296 = vmatpush1.msra.mxu0 0.0
        %2297 = vmatprep.subr.mxu0 0.0
        %2298 = vmatpush1.msra.mxu0 0.0
        %2299 = vmatprep.mubr.f32.mxu0 0.0
        %2300 = vmatmul.mubr.f32.gmra.mrb[0].mxu0 %v2234
        %v2301 = vpop.f32.mrb[0].mxu0
        %v2302 = vadd.f32 0.0, %v2301
        %v2303 = vpop.f32.mrb[0].mxu0
        %v2304 = vadd.f32 0.0, %v2303
        %2305 = vdwg.mxu0
        %v2306 = vmul.f32 %v700, %v700
        %v2307 = vmul.f32 %v702, %v702
        %v2308 = vmul.f32 %v706, %v706
        %v2309 = vmul.f32 %v708, %v708
        %v2310 = vmul.f32 %v712, %v712
        %v2311 = vmul.f32 %v714, %v714
        %v2312 = vmul.f32 %v718, %v718
        %v2313 = vmul.f32 %v720, %v720
        %v2314 = vmul.f32 %v724, %v724
        %v2315 = vmul.f32 %v726, %v726
        %v2316 = vmul.f32 %v730, %v730
        %v2317 = vmul.f32 %v732, %v732
        %v2318 = vmul.f32 %v736, %v736
        %v2319 = vmul.f32 %v738, %v738
        %v2320 = vmul.f32 %v742, %v742
        %v2321 = vmul.f32 %v744, %v744
        %v2322 = vmul.f32 %v748, %v748
        %v2323 = vmul.f32 %v750, %v750
        %v2324 = vmul.f32 %v754, %v754
        %v2325 = vmul.f32 %v756, %v756
        %v2326 = vmul.f32 %v760, %v760
        %v2327 = vmul.f32 %v762, %v762
        %v2328 = vmul.f32 %v766, %v766
        %v2329 = vmul.f32 %v768, %v768
        %v2330 = vmul.f32 %v772, %v772
        %v2331 = vmul.f32 %v774, %v774
        %v2332 = vmul.f32 %v778, %v778
        %v2333 = vmul.f32 %v780, %v780
        %v2334 = vmul.f32 %v784, %v784
        %v2335 = vmul.f32 %v786, %v786
        %v2336 = vmul.f32 %v790, %v790
        %v2337 = vmul.f32 %v792, %v792
        %v2338 = vmul.f32 %v796, %v796
        %v2339 = vmul.f32 %v798, %v798
        %v2340 = vmul.f32 %v802, %v802
        %v2341 = vmul.f32 %v804, %v804
        %v2342 = vmul.f32 %v808, %v808
        %v2343 = vmul.f32 %v810, %v810
        %v2344 = vmul.f32 %v814, %v814
        %v2345 = vmul.f32 %v816, %v816
        %v2346 = vmul.f32 %v820, %v820
        %v2347 = vmul.f32 %v822, %v822
        %v2348 = vmul.f32 %v826, %v826
        %v2349 = vmul.f32 %v828, %v828
        %v2350 = vmul.f32 %v832, %v832
        %v2351 = vmul.f32 %v834, %v834
        %v2352 = vmul.f32 %v838, %v838
        %v2353 = vmul.f32 %v840, %v840
        %v2354 = vmul.f32 %v844, %v844
        %v2355 = vmul.f32 %v846, %v846
        %v2356 = vmul.f32 %v850, %v850
        %v2357 = vmul.f32 %v852, %v852
        %v2358 = vmul.f32 %v856, %v856
        %v2359 = vmul.f32 %v858, %v858
        %v2360 = vmul.f32 %v862, %v862
        %v2361 = vmul.f32 %v864, %v864
        %v2362 = vmul.f32 %v868, %v868
        %v2363 = vmul.f32 %v870, %v870
        %v2364 = vmul.f32 %v874, %v874
        %v2365 = vmul.f32 %v876, %v876
        %v2366 = vmul.f32 %v880, %v880
        %v2367 = vmul.f32 %v882, %v882
        %v2368 = vmul.f32 %v886, %v886
        %v2369 = vmul.f32 %v888, %v888
        %v2370 = vmul.f32 %v892, %v892
        %v2371 = vmul.f32 %v894, %v894
        %v2372 = vmul.f32 %v898, %v898
        %v2373 = vmul.f32 %v900, %v900
        %v2374 = vmul.f32 %v904, %v904
        %v2375 = vmul.f32 %v906, %v906
        %v2376 = vmul.f32 %v910, %v910
        %v2377 = vmul.f32 %v912, %v912
        %v2378 = vmul.f32 %v916, %v916
        %v2379 = vmul.f32 %v918, %v918
        %v2380 = vmul.f32 %v922, %v922
        %v2381 = vmul.f32 %v924, %v924
        %v2382 = vmul.f32 %v928, %v928
        %v2383 = vmul.f32 %v930, %v930
        %v2384 = vmul.f32 %v934, %v934
        %v2385 = vmul.f32 %v936, %v936
        %v2386 = vmul.f32 %v940, %v940
        %v2387 = vmul.f32 %v942, %v942
        %v2388 = vmul.f32 %v946, %v946
        %v2389 = vmul.f32 %v948, %v948
        %v2390 = vmul.f32 %v952, %v952
        %v2391 = vmul.f32 %v954, %v954
        %v2392 = vmul.f32 %v958, %v958
        %v2393 = vmul.f32 %v960, %v960
        %v2394 = vmul.f32 %v964, %v964
        %v2395 = vmul.f32 %v966, %v966
        %v2396 = vmul.f32 %v970, %v970
        %v2397 = vmul.f32 %v972, %v972
        %v2398 = vmul.f32 %v976, %v976
        %v2399 = vmul.f32 %v978, %v978
        %v2400 = vmul.f32 %v982, %v982
        %v2401 = vmul.f32 %v984, %v984
        %v2402 = vmul.f32 %v988, %v988
        %v2403 = vmul.f32 %v990, %v990
        %v2404 = vmul.f32 %v994, %v994
        %v2405 = vmul.f32 %v996, %v996
        %v2406 = vmul.f32 %v1000, %v1000
        %v2407 = vmul.f32 %v1002, %v1002
        %v2408 = vmul.f32 %v1006, %v1006
        %v2409 = vmul.f32 %v1008, %v1008
        %v2410 = vmul.f32 %v1012, %v1012
        %v2411 = vmul.f32 %v1014, %v1014
        %v2412 = vmul.f32 %v1018, %v1018
        %v2413 = vmul.f32 %v1020, %v1020
        %v2414 = vmul.f32 %v1024, %v1024
        %v2415 = vmul.f32 %v1026, %v1026
        %v2416 = vmul.f32 %v1030, %v1030
        %v2417 = vmul.f32 %v1032, %v1032
        %v2418 = vmul.f32 %v1036, %v1036
        %v2419 = vmul.f32 %v1038, %v1038
        %v2420 = vmul.f32 %v1042, %v1042
        %v2421 = vmul.f32 %v1044, %v1044
        %v2422 = vmul.f32 %v1048, %v1048
        %v2423 = vmul.f32 %v1050, %v1050
        %v2424 = vmul.f32 %v1054, %v1054
        %v2425 = vmul.f32 %v1056, %v1056
        %v2426 = vmul.f32 %v1060, %v1060
        %v2427 = vmul.f32 %v1062, %v1062
        %v2428 = vmul.f32 %v1066, %v1066
        %v2429 = vmul.f32 %v1068, %v1068
        %v2430 = vmul.f32 %v1072, %v1072
        %v2431 = vmul.f32 %v1074, %v1074
        %v2432 = vmul.f32 %v1078, %v1078
        %v2433 = vmul.f32 %v1080, %v1080
        %v2434 = vmul.f32 %v1084, %v1084
        %v2435 = vmul.f32 %v1086, %v1086
        %v2436 = vmul.f32 %v1090, %v1090
        %v2437 = vmul.f32 %v1092, %v1092
        %v2438 = vmul.f32 %v1096, %v1096
        %v2439 = vmul.f32 %v1098, %v1098
        %v2440 = vmul.f32 %v1102, %v1102
        %v2441 = vmul.f32 %v1104, %v1104
        %v2442 = vmul.f32 %v1108, %v1108
        %v2443 = vmul.f32 %v1110, %v1110
        %v2444 = vmul.f32 %v1114, %v1114
        %v2445 = vmul.f32 %v1116, %v1116
        %v2446 = vmul.f32 %v1120, %v1120
        %v2447 = vmul.f32 %v1122, %v1122
        %v2448 = vmul.f32 %v1126, %v1126
        %v2449 = vmul.f32 %v1128, %v1128
        %v2450 = vmul.f32 %v1132, %v1132
        %v2451 = vmul.f32 %v1134, %v1134
        %v2452 = vmul.f32 %v1138, %v1138
        %v2453 = vmul.f32 %v1140, %v1140
        %v2454 = vmul.f32 %v1144, %v1144
        %v2455 = vmul.f32 %v1146, %v1146
        %v2456 = vmul.f32 %v1150, %v1150
        %v2457 = vmul.f32 %v1152, %v1152
        %v2458 = vmul.f32 %v1156, %v1156
        %v2459 = vmul.f32 %v1158, %v1158
        %v2460 = vmul.f32 %v1162, %v1162
        %v2461 = vmul.f32 %v1164, %v1164
        %v2462 = vmul.f32 %v1168, %v1168
        %v2463 = vmul.f32 %v1170, %v1170
        %v2464 = vmul.f32 %v1174, %v1174
        %v2465 = vmul.f32 %v1176, %v1176
        %v2466 = vmul.f32 %v1180, %v1180
        %v2467 = vmul.f32 %v1182, %v1182
        %v2468 = vmul.f32 %v1186, %v1186
        %v2469 = vmul.f32 %v1188, %v1188
        %v2470 = vmul.f32 %v1192, %v1192
        %v2471 = vmul.f32 %v1194, %v1194
        %v2472 = vmul.f32 %v1198, %v1198
        %v2473 = vmul.f32 %v1200, %v1200
        %v2474 = vmul.f32 %v1204, %v1204
        %v2475 = vmul.f32 %v1206, %v1206
        %v2476 = vmul.f32 %v1210, %v1210
        %v2477 = vmul.f32 %v1212, %v1212
        %v2478 = vmul.f32 %v1216, %v1216
        %v2479 = vmul.f32 %v1218, %v1218
        %v2480 = vmul.f32 %v1222, %v1222
        %v2481 = vmul.f32 %v1224, %v1224
        %v2482 = vmul.f32 %v1228, %v1228
        %v2483 = vmul.f32 %v1230, %v1230
        %v2484 = vmul.f32 %v1234, %v1234
        %v2485 = vmul.f32 %v1236, %v1236
        %v2486 = vmul.f32 %v1240, %v1240
        %v2487 = vmul.f32 %v1242, %v1242
        %v2488 = vmul.f32 %v1246, %v1246
        %v2489 = vmul.f32 %v1248, %v1248
        %v2490 = vmul.f32 %v1252, %v1252
        %v2491 = vmul.f32 %v1254, %v1254
        %v2492 = vmul.f32 %v1258, %v1258
        %v2493 = vmul.f32 %v1260, %v1260
        %v2494 = vmul.f32 %v1264, %v1264
        %v2495 = vmul.f32 %v1266, %v1266
        %v2496 = vmul.f32 %v1270, %v1270
        %v2497 = vmul.f32 %v1272, %v1272
        %v2498 = vmul.f32 %v1276, %v1276
        %v2499 = vmul.f32 %v1278, %v1278
        %v2500 = vmul.f32 %v1282, %v1282
        %v2501 = vmul.f32 %v1284, %v1284
        %v2502 = vmul.f32 %v1288, %v1288
        %v2503 = vmul.f32 %v1290, %v1290
        %v2504 = vmul.f32 %v1294, %v1294
        %v2505 = vmul.f32 %v1296, %v1296
        %v2506 = vmul.f32 %v1300, %v1300
        %v2507 = vmul.f32 %v1302, %v1302
        %v2508 = vmul.f32 %v1306, %v1306
        %v2509 = vmul.f32 %v1308, %v1308
        %v2510 = vmul.f32 %v1312, %v1312
        %v2511 = vmul.f32 %v1314, %v1314
        %v2512 = vmul.f32 %v1318, %v1318
        %v2513 = vmul.f32 %v1320, %v1320
        %v2514 = vmul.f32 %v1324, %v1324
        %v2515 = vmul.f32 %v1326, %v1326
        %v2516 = vmul.f32 %v1330, %v1330
        %v2517 = vmul.f32 %v1332, %v1332
        %v2518 = vmul.f32 %v1336, %v1336
        %v2519 = vmul.f32 %v1338, %v1338
        %v2520 = vmul.f32 %v1342, %v1342
        %v2521 = vmul.f32 %v1344, %v1344
        %v2522 = vmul.f32 %v1348, %v1348
        %v2523 = vmul.f32 %v1350, %v1350
        %v2524 = vmul.f32 %v1354, %v1354
        %v2525 = vmul.f32 %v1356, %v1356
        %v2526 = vmul.f32 %v1360, %v1360
        %v2527 = vmul.f32 %v1362, %v1362
        %v2528 = vmul.f32 %v1366, %v1366
        %v2529 = vmul.f32 %v1368, %v1368
        %v2530 = vmul.f32 %v1372, %v1372
        %v2531 = vmul.f32 %v1374, %v1374
        %v2532 = vmul.f32 %v1378, %v1378
        %v2533 = vmul.f32 %v1380, %v1380
        %v2534 = vmul.f32 %v1384, %v1384
        %v2535 = vmul.f32 %v1386, %v1386
        %v2536 = vmul.f32 %v1390, %v1390
        %v2537 = vmul.f32 %v1392, %v1392
        %v2538 = vmul.f32 %v1396, %v1396
        %v2539 = vmul.f32 %v1398, %v1398
        %v2540 = vmul.f32 %v1402, %v1402
        %v2541 = vmul.f32 %v1404, %v1404
        %v2542 = vmul.f32 %v1408, %v1408
        %v2543 = vmul.f32 %v1410, %v1410
        %v2544 = vmul.f32 %v1414, %v1414
        %v2545 = vmul.f32 %v1416, %v1416
        %v2546 = vmul.f32 %v1420, %v1420
        %v2547 = vmul.f32 %v1422, %v1422
        %v2548 = vmul.f32 %v1426, %v1426
        %v2549 = vmul.f32 %v1428, %v1428
        %v2550 = vmul.f32 %v1432, %v1432
        %v2551 = vmul.f32 %v1434, %v1434
        %v2552 = vmul.f32 %v1438, %v1438
        %v2553 = vmul.f32 %v1440, %v1440
        %v2554 = vmul.f32 %v1444, %v1444
        %v2555 = vmul.f32 %v1446, %v1446
        %v2556 = vmul.f32 %v1450, %v1450
        %v2557 = vmul.f32 %v1452, %v1452
        %v2558 = vmul.f32 %v1456, %v1456
        %v2559 = vmul.f32 %v1458, %v1458
        %v2560 = vmul.f32 %v1462, %v1462
        %v2561 = vmul.f32 %v1464, %v1464
        %v2562 = vmul.f32 %v1468, %v1468
        %v2563 = vmul.f32 %v1470, %v1470
        %v2564 = vmul.f32 %v1474, %v1474
        %v2565 = vmul.f32 %v1476, %v1476
        %v2566 = vmul.f32 %v1480, %v1480
        %v2567 = vmul.f32 %v1482, %v1482
        %v2568 = vmul.f32 %v1486, %v1486
        %v2569 = vmul.f32 %v1488, %v1488
        %v2570 = vmul.f32 %v1492, %v1492
        %v2571 = vmul.f32 %v1494, %v1494
        %v2572 = vmul.f32 %v1498, %v1498
        %v2573 = vmul.f32 %v1500, %v1500
        %v2574 = vmul.f32 %v1504, %v1504
        %v2575 = vmul.f32 %v1506, %v1506
        %v2576 = vmul.f32 %v1510, %v1510
        %v2577 = vmul.f32 %v1512, %v1512
        %v2578 = vmul.f32 %v1516, %v1516
        %v2579 = vmul.f32 %v1518, %v1518
        %v2580 = vmul.f32 %v1522, %v1522
        %v2581 = vmul.f32 %v1524, %v1524
        %v2582 = vmul.f32 %v1528, %v1528
        %v2583 = vmul.f32 %v1530, %v1530
        %v2584 = vmul.f32 %v1534, %v1534
        %v2585 = vmul.f32 %v1536, %v1536
        %v2586 = vmul.f32 %v1540, %v1540
        %v2587 = vmul.f32 %v1542, %v1542
        %v2588 = vmul.f32 %v1546, %v1546
        %v2589 = vmul.f32 %v1548, %v1548
        %v2590 = vmul.f32 %v1552, %v1552
        %v2591 = vmul.f32 %v1554, %v1554
        %v2592 = vmul.f32 %v1558, %v1558
        %v2593 = vmul.f32 %v1560, %v1560
        %v2594 = vmul.f32 %v1564, %v1564
        %v2595 = vmul.f32 %v1566, %v1566
        %v2596 = vmul.f32 %v1570, %v1570
        %v2597 = vmul.f32 %v1572, %v1572
        %v2598 = vmul.f32 %v1576, %v1576
        %v2599 = vmul.f32 %v1578, %v1578
        %v2600 = vmul.f32 %v1582, %v1582
        %v2601 = vmul.f32 %v1584, %v1584
        %v2602 = vmul.f32 %v1588, %v1588
        %v2603 = vmul.f32 %v1590, %v1590
        %v2604 = vmul.f32 %v1594, %v1594
        %v2605 = vmul.f32 %v1596, %v1596
        %v2606 = vmul.f32 %v1600, %v1600
        %v2607 = vmul.f32 %v1602, %v1602
        %v2608 = vmul.f32 %v1606, %v1606
        %v2609 = vmul.f32 %v1608, %v1608
        %v2610 = vmul.f32 %v1612, %v1612
        %v2611 = vmul.f32 %v1614, %v1614
        %v2612 = vmul.f32 %v1618, %v1618
        %v2613 = vmul.f32 %v1620, %v1620
        %v2614 = vmul.f32 %v1624, %v1624
        %v2615 = vmul.f32 %v1626, %v1626
        %v2616 = vmul.f32 %v1630, %v1630
        %v2617 = vmul.f32 %v1632, %v1632
        %v2618 = vmul.f32 %v1636, %v1636
        %v2619 = vmul.f32 %v1638, %v1638
        %v2620 = vmul.f32 %v1642, %v1642
        %v2621 = vmul.f32 %v1644, %v1644
        %v2622 = vmul.f32 %v1648, %v1648
        %v2623 = vmul.f32 %v1650, %v1650
        %v2624 = vmul.f32 %v1654, %v1654
        %v2625 = vmul.f32 %v1656, %v1656
        %v2626 = vmul.f32 %v1660, %v1660
        %v2627 = vmul.f32 %v1662, %v1662
        %v2628 = vmul.f32 %v1666, %v1666
        %v2629 = vmul.f32 %v1668, %v1668
        %v2630 = vmul.f32 %v1672, %v1672
        %v2631 = vmul.f32 %v1674, %v1674
        %v2632 = vmul.f32 %v1678, %v1678
        %v2633 = vmul.f32 %v1680, %v1680
        %v2634 = vmul.f32 %v1684, %v1684
        %v2635 = vmul.f32 %v1686, %v1686
        %v2636 = vmul.f32 %v1690, %v1690
        %v2637 = vmul.f32 %v1692, %v1692
        %v2638 = vmul.f32 %v1696, %v1696
        %v2639 = vmul.f32 %v1698, %v1698
        %v2640 = vmul.f32 %v1702, %v1702
        %v2641 = vmul.f32 %v1704, %v1704
        %v2642 = vmul.f32 %v1708, %v1708
        %v2643 = vmul.f32 %v1710, %v1710
        %v2644 = vmul.f32 %v1714, %v1714
        %v2645 = vmul.f32 %v1716, %v1716
        %v2646 = vmul.f32 %v1720, %v1720
        %v2647 = vmul.f32 %v1722, %v1722
        %v2648 = vmul.f32 %v1726, %v1726
        %v2649 = vmul.f32 %v1728, %v1728
        %v2650 = vmul.f32 %v1732, %v1732
        %v2651 = vmul.f32 %v1734, %v1734
        %v2652 = vmul.f32 %v1738, %v1738
        %v2653 = vmul.f32 %v1740, %v1740
        %v2654 = vmul.f32 %v1744, %v1744
        %v2655 = vmul.f32 %v1746, %v1746
        %v2656 = vmul.f32 %v1750, %v1750
        %v2657 = vmul.f32 %v1752, %v1752
        %v2658 = vmul.f32 %v1756, %v1756
        %v2659 = vmul.f32 %v1758, %v1758
        %v2660 = vmul.f32 %v1762, %v1762
        %v2661 = vmul.f32 %v1764, %v1764
        %v2662 = vmul.f32 %v1768, %v1768
        %v2663 = vmul.f32 %v1770, %v1770
        %v2664 = vmul.f32 %v1774, %v1774
        %v2665 = vmul.f32 %v1776, %v1776
        %v2666 = vmul.f32 %v1780, %v1780
        %v2667 = vmul.f32 %v1782, %v1782
        %v2668 = vmul.f32 %v1786, %v1786
        %v2669 = vmul.f32 %v1788, %v1788
        %v2670 = vmul.f32 %v1792, %v1792
        %v2671 = vmul.f32 %v1794, %v1794
        %v2672 = vmul.f32 %v1798, %v1798
        %v2673 = vmul.f32 %v1800, %v1800
        %v2674 = vmul.f32 %v1804, %v1804
        %v2675 = vmul.f32 %v1806, %v1806
        %v2676 = vmul.f32 %v1810, %v1810
        %v2677 = vmul.f32 %v1812, %v1812
        %v2678 = vmul.f32 %v1816, %v1816
        %v2679 = vmul.f32 %v1818, %v1818
        %v2680 = vmul.f32 %v1822, %v1822
        %v2681 = vmul.f32 %v1824, %v1824
        %v2682 = vmul.f32 %v1828, %v1828
        %v2683 = vmul.f32 %v1830, %v1830
        %v2684 = vmul.f32 %v1834, %v1834
        %v2685 = vmul.f32 %v1836, %v1836
        %v2686 = vmul.f32 %v1840, %v1840
        %v2687 = vmul.f32 %v1842, %v1842
        %v2688 = vmul.f32 %v1846, %v1846
        %v2689 = vmul.f32 %v1848, %v1848
        %v2690 = vmul.f32 %v1852, %v1852
        %v2691 = vmul.f32 %v1854, %v1854
        %v2692 = vmul.f32 %v1858, %v1858
        %v2693 = vmul.f32 %v1860, %v1860
        %v2694 = vmul.f32 %v1864, %v1864
        %v2695 = vmul.f32 %v1866, %v1866
        %v2696 = vmul.f32 %v1870, %v1870
        %v2697 = vmul.f32 %v1872, %v1872
        %v2698 = vmul.f32 %v1876, %v1876
        %v2699 = vmul.f32 %v1878, %v1878
        %v2700 = vmul.f32 %v1882, %v1882
        %v2701 = vmul.f32 %v1884, %v1884
        %v2702 = vmul.f32 %v1888, %v1888
        %v2703 = vmul.f32 %v1890, %v1890
        %v2704 = vmul.f32 %v1894, %v1894
        %v2705 = vmul.f32 %v1896, %v1896
        %v2706 = vmul.f32 %v1900, %v1900
        %v2707 = vmul.f32 %v1902, %v1902
        %v2708 = vmul.f32 %v1906, %v1906
        %v2709 = vmul.f32 %v1908, %v1908
        %v2710 = vmul.f32 %v1912, %v1912
        %v2711 = vmul.f32 %v1914, %v1914
        %v2712 = vmul.f32 %v1918, %v1918
        %v2713 = vmul.f32 %v1920, %v1920
        %v2714 = vmul.f32 %v1924, %v1924
        %v2715 = vmul.f32 %v1926, %v1926
        %v2716 = vmul.f32 %v1930, %v1930
        %v2717 = vmul.f32 %v1932, %v1932
        %v2718 = vmul.f32 %v1936, %v1936
        %v2719 = vmul.f32 %v1938, %v1938
        %v2720 = vmul.f32 %v1942, %v1942
        %v2721 = vmul.f32 %v1944, %v1944
        %v2722 = vmul.f32 %v1948, %v1948
        %v2723 = vmul.f32 %v1950, %v1950
        %v2724 = vmul.f32 %v1954, %v1954
        %v2725 = vmul.f32 %v1956, %v1956
        %v2726 = vmul.f32 %v1960, %v1960
        %v2727 = vmul.f32 %v1962, %v1962
        %v2728 = vmul.f32 %v1966, %v1966
        %v2729 = vmul.f32 %v1968, %v1968
        %v2730 = vmul.f32 %v1972, %v1972
        %v2731 = vmul.f32 %v1974, %v1974
        %v2732 = vmul.f32 %v1978, %v1978
        %v2733 = vmul.f32 %v1980, %v1980
        %v2734 = vmul.f32 %v1984, %v1984
        %v2735 = vmul.f32 %v1986, %v1986
        %v2736 = vmul.f32 %v1990, %v1990
        %v2737 = vmul.f32 %v1992, %v1992
        %v2738 = vmul.f32 %v1996, %v1996
        %v2739 = vmul.f32 %v1998, %v1998
        %v2740 = vmul.f32 %v2002, %v2002
        %v2741 = vmul.f32 %v2004, %v2004
        %v2742 = vmul.f32 %v2008, %v2008
        %v2743 = vmul.f32 %v2010, %v2010
        %v2744 = vmul.f32 %v2014, %v2014
        %v2745 = vmul.f32 %v2016, %v2016
        %v2746 = vmul.f32 %v2020, %v2020
        %v2747 = vmul.f32 %v2022, %v2022
        %v2748 = vmul.f32 %v2026, %v2026
        %v2749 = vmul.f32 %v2028, %v2028
        %v2750 = vmul.f32 %v2032, %v2032
        %v2751 = vmul.f32 %v2034, %v2034
        %v2752 = vmul.f32 %v2038, %v2038
        %v2753 = vmul.f32 %v2040, %v2040
        %v2754 = vmul.f32 %v2044, %v2044
        %v2755 = vmul.f32 %v2046, %v2046
        %v2756 = vmul.f32 %v2050, %v2050
        %v2757 = vmul.f32 %v2052, %v2052
        %v2758 = vmul.f32 %v2056, %v2056
        %v2759 = vmul.f32 %v2058, %v2058
        %v2760 = vmul.f32 %v2062, %v2062
        %v2761 = vmul.f32 %v2064, %v2064
        %v2762 = vmul.f32 %v2068, %v2068
        %v2763 = vmul.f32 %v2070, %v2070
        %v2764 = vmul.f32 %v2074, %v2074
        %v2765 = vmul.f32 %v2076, %v2076
        %v2766 = vmul.f32 %v2080, %v2080
        %v2767 = vmul.f32 %v2082, %v2082
        %v2768 = vmul.f32 %v2086, %v2086
        %v2769 = vmul.f32 %v2088, %v2088
        %v2770 = vmul.f32 %v2092, %v2092
        %v2771 = vmul.f32 %v2094, %v2094
        %v2772 = vmul.f32 %v2098, %v2098
        %v2773 = vmul.f32 %v2100, %v2100
        %v2774 = vmul.f32 %v2104, %v2104
        %v2775 = vmul.f32 %v2106, %v2106
        %v2776 = vmul.f32 %v2110, %v2110
        %v2777 = vmul.f32 %v2112, %v2112
        %v2778 = vmul.f32 %v2116, %v2116
        %v2779 = vmul.f32 %v2118, %v2118
        %v2780 = vmul.f32 %v2122, %v2122
        %v2781 = vmul.f32 %v2124, %v2124
        %v2782 = vmul.f32 %v2128, %v2128
        %v2783 = vmul.f32 %v2130, %v2130
        %v2784 = vmul.f32 %v2134, %v2134
        %v2785 = vmul.f32 %v2136, %v2136
        %v2786 = vmul.f32 %v2140, %v2140
        %v2787 = vmul.f32 %v2142, %v2142
        %v2788 = vmul.f32 %v2146, %v2146
        %v2789 = vmul.f32 %v2148, %v2148
        %v2790 = vmul.f32 %v2152, %v2152
        %v2791 = vmul.f32 %v2154, %v2154
        %v2792 = vmul.f32 %v2158, %v2158
        %v2793 = vmul.f32 %v2160, %v2160
        %v2794 = vmul.f32 %v2164, %v2164
        %v2795 = vmul.f32 %v2166, %v2166
        %v2796 = vmul.f32 %v2170, %v2170
        %v2797 = vmul.f32 %v2172, %v2172
        %v2798 = vmul.f32 %v2176, %v2176
        %v2799 = vmul.f32 %v2178, %v2178
        %v2800 = vmul.f32 %v2182, %v2182
        %v2801 = vmul.f32 %v2184, %v2184
        %v2802 = vmul.f32 %v2188, %v2188
        %v2803 = vmul.f32 %v2190, %v2190
        %v2804 = vmul.f32 %v2194, %v2194
        %v2805 = vmul.f32 %v2196, %v2196
        %v2806 = vmul.f32 %v2200, %v2200
        %v2807 = vmul.f32 %v2202, %v2202
        %v2808 = vmul.f32 %v2206, %v2206
        %v2809 = vmul.f32 %v2208, %v2208
        %v2810 = vmul.f32 %v2212, %v2212
        %v2811 = vmul.f32 %v2214, %v2214
        %v2812 = vmul.f32 %v2218, %v2218
        %v2813 = vmul.f32 %v2220, %v2220
        %v2814 = vmul.f32 %v2224, %v2224
        %v2815 = vmul.f32 %v2226, %v2226
        %v2816 = vmul.f32 %v2230, %v2230
        %v2817 = vmul.f32 %v2232, %v2232
        %v2818 = vadd.f32 %v2306, %v2308
        %v2819 = vadd.f32 %v2818, %v2310
        %v2820 = vadd.f32 %v2819, %v2312
        %v2821 = vadd.f32 %v2820, %v2314
        %v2822 = vadd.f32 %v2821, %v2316
        %v2823 = vadd.f32 %v2822, %v2318
        %v2824 = vadd.f32 %v2823, %v2320
        %v2825 = vadd.f32 %v2824, %v2322
        %v2826 = vadd.f32 %v2825, %v2324
        %v2827 = vadd.f32 %v2826, %v2326
        %v2828 = vadd.f32 %v2827, %v2328
        %v2829 = vadd.f32 %v2828, %v2330
        %v2830 = vadd.f32 %v2829, %v2332
        %v2831 = vadd.f32 %v2830, %v2334
        %v2832 = vadd.f32 %v2831, %v2336
        %v2833 = vadd.f32 %v2832, %v2338
        %v2834 = vadd.f32 %v2833, %v2340
        %v2835 = vadd.f32 %v2834, %v2342
        %v2836 = vadd.f32 %v2835, %v2344
        %v2837 = vadd.f32 %v2836, %v2346
        %v2838 = vadd.f32 %v2837, %v2348
        %v2839 = vadd.f32 %v2838, %v2350
        %v2840 = vadd.f32 %v2839, %v2352
        %v2841 = vadd.f32 %v2840, %v2354
        %v2842 = vadd.f32 %v2841, %v2356
        %v2843 = vadd.f32 %v2842, %v2358
        %v2844 = vadd.f32 %v2843, %v2360
        %v2845 = vadd.f32 %v2844, %v2362
        %v2846 = vadd.f32 %v2845, %v2364
        %v2847 = vadd.f32 %v2846, %v2366
        %v2848 = vadd.f32 %v2847, %v2368
        %v2849 = vadd.f32 %v2848, %v2370
        %v2850 = vadd.f32 %v2849, %v2372
        %v2851 = vadd.f32 %v2850, %v2374
        %v2852 = vadd.f32 %v2851, %v2376
        %v2853 = vadd.f32 %v2852, %v2378
        %v2854 = vadd.f32 %v2853, %v2380
        %v2855 = vadd.f32 %v2854, %v2382
        %v2856 = vadd.f32 %v2855, %v2384
        %v2857 = vadd.f32 %v2856, %v2386
        %v2858 = vadd.f32 %v2857, %v2388
        %v2859 = vadd.f32 %v2858, %v2390
        %v2860 = vadd.f32 %v2859, %v2392
        %v2861 = vadd.f32 %v2860, %v2394
        %v2862 = vadd.f32 %v2861, %v2396
        %v2863 = vadd.f32 %v2862, %v2398
        %v2864 = vadd.f32 %v2863, %v2400
        %v2865 = vadd.f32 %v2864, %v2402
        %v2866 = vadd.f32 %v2865, %v2404
        %v2867 = vadd.f32 %v2866, %v2406
        %v2868 = vadd.f32 %v2867, %v2408
        %v2869 = vadd.f32 %v2868, %v2410
        %v2870 = vadd.f32 %v2869, %v2412
        %v2871 = vadd.f32 %v2870, %v2414
        %v2872 = vadd.f32 %v2871, %v2416
        %v2873 = vadd.f32 %v2872, %v2418
        %v2874 = vadd.f32 %v2873, %v2420
        %v2875 = vadd.f32 %v2874, %v2422
        %v2876 = vadd.f32 %v2875, %v2424
        %v2877 = vadd.f32 %v2876, %v2426
        %v2878 = vadd.f32 %v2877, %v2428
        %v2879 = vadd.f32 %v2878, %v2430
        %v2880 = vadd.f32 %v2879, %v2432
        %v2881 = vadd.f32 %v2880, %v2434
        %v2882 = vadd.f32 %v2881, %v2436
        %v2883 = vadd.f32 %v2882, %v2438
        %v2884 = vadd.f32 %v2883, %v2440
        %v2885 = vadd.f32 %v2884, %v2442
        %v2886 = vadd.f32 %v2885, %v2444
        %v2887 = vadd.f32 %v2886, %v2446
        %v2888 = vadd.f32 %v2887, %v2448
        %v2889 = vadd.f32 %v2888, %v2450
        %v2890 = vadd.f32 %v2889, %v2452
        %v2891 = vadd.f32 %v2890, %v2454
        %v2892 = vadd.f32 %v2891, %v2456
        %v2893 = vadd.f32 %v2892, %v2458
        %v2894 = vadd.f32 %v2893, %v2460
        %v2895 = vadd.f32 %v2894, %v2462
        %v2896 = vadd.f32 %v2895, %v2464
        %v2897 = vadd.f32 %v2896, %v2466
        %v2898 = vadd.f32 %v2897, %v2468
        %v2899 = vadd.f32 %v2898, %v2470
        %v2900 = vadd.f32 %v2899, %v2472
        %v2901 = vadd.f32 %v2900, %v2474
        %v2902 = vadd.f32 %v2901, %v2476
        %v2903 = vadd.f32 %v2902, %v2478
        %v2904 = vadd.f32 %v2903, %v2480
        %v2905 = vadd.f32 %v2904, %v2482
        %v2906 = vadd.f32 %v2905, %v2484
        %v2907 = vadd.f32 %v2906, %v2486
        %v2908 = vadd.f32 %v2907, %v2488
        %v2909 = vadd.f32 %v2908, %v2490
        %v2910 = vadd.f32 %v2909, %v2492
        %v2911 = vadd.f32 %v2910, %v2494
        %v2912 = vadd.f32 %v2911, %v2496
        %v2913 = vadd.f32 %v2912, %v2498
        %v2914 = vadd.f32 %v2913, %v2500
        %v2915 = vadd.f32 %v2914, %v2502
        %v2916 = vadd.f32 %v2915, %v2504
        %v2917 = vadd.f32 %v2916, %v2506
        %v2918 = vadd.f32 %v2917, %v2508
        %v2919 = vadd.f32 %v2918, %v2510
        %v2920 = vadd.f32 %v2919, %v2512
        %v2921 = vadd.f32 %v2920, %v2514
        %v2922 = vadd.f32 %v2921, %v2516
        %v2923 = vadd.f32 %v2922, %v2518
        %v2924 = vadd.f32 %v2923, %v2520
        %v2925 = vadd.f32 %v2924, %v2522
        %v2926 = vadd.f32 %v2925, %v2524
        %v2927 = vadd.f32 %v2926, %v2526
        %v2928 = vadd.f32 %v2927, %v2528
        %v2929 = vadd.f32 %v2928, %v2530
        %v2930 = vadd.f32 %v2929, %v2532
        %v2931 = vadd.f32 %v2930, %v2534
        %v2932 = vadd.f32 %v2931, %v2536
        %v2933 = vadd.f32 %v2932, %v2538
        %v2934 = vadd.f32 %v2933, %v2540
        %v2935 = vadd.f32 %v2934, %v2542
        %v2936 = vadd.f32 %v2935, %v2544
        %v2937 = vadd.f32 %v2936, %v2546
        %v2938 = vadd.f32 %v2937, %v2548
        %v2939 = vadd.f32 %v2938, %v2550
        %v2940 = vadd.f32 %v2939, %v2552
        %v2941 = vadd.f32 %v2940, %v2554
        %v2942 = vadd.f32 %v2941, %v2556
        %v2943 = vadd.f32 %v2942, %v2558
        %v2944 = vadd.f32 %v2943, %v2560
        %v2945 = vadd.f32 %v2944, %v2562
        %v2946 = vadd.f32 %v2945, %v2564
        %v2947 = vadd.f32 %v2946, %v2566
        %v2948 = vadd.f32 %v2947, %v2568
        %v2949 = vadd.f32 %v2948, %v2570
        %v2950 = vadd.f32 %v2949, %v2572
        %v2951 = vadd.f32 %v2950, %v2574
        %v2952 = vadd.f32 %v2951, %v2576
        %v2953 = vadd.f32 %v2952, %v2578
        %v2954 = vadd.f32 %v2953, %v2580
        %v2955 = vadd.f32 %v2954, %v2582
        %v2956 = vadd.f32 %v2955, %v2584
        %v2957 = vadd.f32 %v2956, %v2586
        %v2958 = vadd.f32 %v2957, %v2588
        %v2959 = vadd.f32 %v2958, %v2590
        %v2960 = vadd.f32 %v2959, %v2592
        %v2961 = vadd.f32 %v2960, %v2594
        %v2962 = vadd.f32 %v2961, %v2596
        %v2963 = vadd.f32 %v2962, %v2598
        %v2964 = vadd.f32 %v2963, %v2600
        %v2965 = vadd.f32 %v2964, %v2602
        %v2966 = vadd.f32 %v2965, %v2604
        %v2967 = vadd.f32 %v2966, %v2606
        %v2968 = vadd.f32 %v2967, %v2608
        %v2969 = vadd.f32 %v2968, %v2610
        %v2970 = vadd.f32 %v2969, %v2612
        %v2971 = vadd.f32 %v2970, %v2614
        %v2972 = vadd.f32 %v2971, %v2616
        %v2973 = vadd.f32 %v2972, %v2618
        %v2974 = vadd.f32 %v2973, %v2620
        %v2975 = vadd.f32 %v2974, %v2622
        %v2976 = vadd.f32 %v2975, %v2624
        %v2977 = vadd.f32 %v2976, %v2626
        %v2978 = vadd.f32 %v2977, %v2628
        %v2979 = vadd.f32 %v2978, %v2630
        %v2980 = vadd.f32 %v2979, %v2632
        %v2981 = vadd.f32 %v2980, %v2634
        %v2982 = vadd.f32 %v2981, %v2636
        %v2983 = vadd.f32 %v2982, %v2638
        %v2984 = vadd.f32 %v2983, %v2640
        %v2985 = vadd.f32 %v2984, %v2642
        %v2986 = vadd.f32 %v2985, %v2644
        %v2987 = vadd.f32 %v2986, %v2646
        %v2988 = vadd.f32 %v2987, %v2648
        %v2989 = vadd.f32 %v2988, %v2650
        %v2990 = vadd.f32 %v2989, %v2652
        %v2991 = vadd.f32 %v2990, %v2654
        %v2992 = vadd.f32 %v2991, %v2656
        %v2993 = vadd.f32 %v2992, %v2658
        %v2994 = vadd.f32 %v2993, %v2660
        %v2995 = vadd.f32 %v2994, %v2662
        %v2996 = vadd.f32 %v2995, %v2664
        %v2997 = vadd.f32 %v2996, %v2666
        %v2998 = vadd.f32 %v2997, %v2668
        %v2999 = vadd.f32 %v2998, %v2670
        %v3000 = vadd.f32 %v2999, %v2672
        %v3001 = vadd.f32 %v3000, %v2674
        %v3002 = vadd.f32 %v3001, %v2676
        %v3003 = vadd.f32 %v3002, %v2678
        %v3004 = vadd.f32 %v3003, %v2680
        %v3005 = vadd.f32 %v3004, %v2682
        %v3006 = vadd.f32 %v3005, %v2684
        %v3007 = vadd.f32 %v3006, %v2686
        %v3008 = vadd.f32 %v3007, %v2688
        %v3009 = vadd.f32 %v3008, %v2690
        %v3010 = vadd.f32 %v3009, %v2692
        %v3011 = vadd.f32 %v3010, %v2694
        %v3012 = vadd.f32 %v3011, %v2696
        %v3013 = vadd.f32 %v3012, %v2698
        %v3014 = vadd.f32 %v3013, %v2700
        %v3015 = vadd.f32 %v3014, %v2702
        %v3016 = vadd.f32 %v3015, %v2704
        %v3017 = vadd.f32 %v3016, %v2706
        %v3018 = vadd.f32 %v3017, %v2708
        %v3019 = vadd.f32 %v3018, %v2710
        %v3020 = vadd.f32 %v3019, %v2712
        %v3021 = vadd.f32 %v3020, %v2714
        %v3022 = vadd.f32 %v3021, %v2716
        %v3023 = vadd.f32 %v3022, %v2718
        %v3024 = vadd.f32 %v3023, %v2720
        %v3025 = vadd.f32 %v3024, %v2722
        %v3026 = vadd.f32 %v3025, %v2724
        %v3027 = vadd.f32 %v3026, %v2726
        %v3028 = vadd.f32 %v3027, %v2728
        %v3029 = vadd.f32 %v3028, %v2730
        %v3030 = vadd.f32 %v3029, %v2732
        %v3031 = vadd.f32 %v3030, %v2734
        %v3032 = vadd.f32 %v3031, %v2736
        %v3033 = vadd.f32 %v3032, %v2738
        %v3034 = vadd.f32 %v3033, %v2740
        %v3035 = vadd.f32 %v3034, %v2742
        %v3036 = vadd.f32 %v3035, %v2744
        %v3037 = vadd.f32 %v3036, %v2746
        %v3038 = vadd.f32 %v3037, %v2748
        %v3039 = vadd.f32 %v3038, %v2750
        %v3040 = vadd.f32 %v3039, %v2752
        %v3041 = vadd.f32 %v3040, %v2754
        %v3042 = vadd.f32 %v3041, %v2756
        %v3043 = vadd.f32 %v3042, %v2758
        %v3044 = vadd.f32 %v3043, %v2760
        %v3045 = vadd.f32 %v3044, %v2762
        %v3046 = vadd.f32 %v3045, %v2764
        %v3047 = vadd.f32 %v3046, %v2766
        %v3048 = vadd.f32 %v3047, %v2768
        %v3049 = vadd.f32 %v3048, %v2770
        %v3050 = vadd.f32 %v3049, %v2772
        %v3051 = vadd.f32 %v3050, %v2774
        %v3052 = vadd.f32 %v3051, %v2776
        %v3053 = vadd.f32 %v3052, %v2778
        %v3054 = vadd.f32 %v3053, %v2780
        %v3055 = vadd.f32 %v3054, %v2782
        %v3056 = vadd.f32 %v3055, %v2784
        %v3057 = vadd.f32 %v3056, %v2786
        %v3058 = vadd.f32 %v3057, %v2788
        %v3059 = vadd.f32 %v3058, %v2790
        %v3060 = vadd.f32 %v3059, %v2792
        %v3061 = vadd.f32 %v3060, %v2794
        %v3062 = vadd.f32 %v3061, %v2796
        %v3063 = vadd.f32 %v3062, %v2798
        %v3064 = vadd.f32 %v3063, %v2800
        %v3065 = vadd.f32 %v3064, %v2802
        %v3066 = vadd.f32 %v3065, %v2804
        %v3067 = vadd.f32 %v3066, %v2806
        %v3068 = vadd.f32 %v3067, %v2808
        %v3069 = vadd.f32 %v3068, %v2810
        %v3070 = vadd.f32 %v3069, %v2812
        %v3071 = vadd.f32 %v3070, %v2814
        %v3072 = vadd.f32 %v3071, %v2816
        %v3073 = vrot.slane %v3072, 4
        %v3074 = vadd.f32 %v3072, %v3073
        %v3075 = vrot.slane %v3074, 2
        %v3076 = vadd.f32 %v3074, %v3075
        %v3077 = vrot.slane %v3076, 1
        %v3078 = vadd.f32 %v3076, %v3077
        %v3079 = vadd.f32 %v2307, %v2309
        %v3080 = vadd.f32 %v3079, %v2311
        %v3081 = vadd.f32 %v3080, %v2313
        %v3082 = vadd.f32 %v3081, %v2315
        %v3083 = vadd.f32 %v3082, %v2317
        %v3084 = vadd.f32 %v3083, %v2319
        %v3085 = vadd.f32 %v3084, %v2321
        %v3086 = vadd.f32 %v3085, %v2323
        %v3087 = vadd.f32 %v3086, %v2325
        %v3088 = vadd.f32 %v3087, %v2327
        %v3089 = vadd.f32 %v3088, %v2329
        %v3090 = vadd.f32 %v3089, %v2331
        %v3091 = vadd.f32 %v3090, %v2333
        %v3092 = vadd.f32 %v3091, %v2335
        %v3093 = vadd.f32 %v3092, %v2337
        %v3094 = vadd.f32 %v3093, %v2339
        %v3095 = vadd.f32 %v3094, %v2341
        %v3096 = vadd.f32 %v3095, %v2343
        %v3097 = vadd.f32 %v3096, %v2345
        %v3098 = vadd.f32 %v3097, %v2347
        %v3099 = vadd.f32 %v3098, %v2349
        %v3100 = vadd.f32 %v3099, %v2351
        %v3101 = vadd.f32 %v3100, %v2353
        %v3102 = vadd.f32 %v3101, %v2355
        %v3103 = vadd.f32 %v3102, %v2357
        %v3104 = vadd.f32 %v3103, %v2359
        %v3105 = vadd.f32 %v3104, %v2361
        %v3106 = vadd.f32 %v3105, %v2363
        %v3107 = vadd.f32 %v3106, %v2365
        %v3108 = vadd.f32 %v3107, %v2367
        %v3109 = vadd.f32 %v3108, %v2369
        %v3110 = vadd.f32 %v3109, %v2371
        %v3111 = vadd.f32 %v3110, %v2373
        %v3112 = vadd.f32 %v3111, %v2375
        %v3113 = vadd.f32 %v3112, %v2377
        %v3114 = vadd.f32 %v3113, %v2379
        %v3115 = vadd.f32 %v3114, %v2381
        %v3116 = vadd.f32 %v3115, %v2383
        %v3117 = vadd.f32 %v3116, %v2385
        %v3118 = vadd.f32 %v3117, %v2387
        %v3119 = vadd.f32 %v3118, %v2389
        %v3120 = vadd.f32 %v3119, %v2391
        %v3121 = vadd.f32 %v3120, %v2393
        %v3122 = vadd.f32 %v3121, %v2395
        %v3123 = vadd.f32 %v3122, %v2397
        %v3124 = vadd.f32 %v3123, %v2399
        %v3125 = vadd.f32 %v3124, %v2401
        %v3126 = vadd.f32 %v3125, %v2403
        %v3127 = vadd.f32 %v3126, %v2405
        %v3128 = vadd.f32 %v3127, %v2407
        %v3129 = vadd.f32 %v3128, %v2409
        %v3130 = vadd.f32 %v3129, %v2411
        %v3131 = vadd.f32 %v3130, %v2413
        %v3132 = vadd.f32 %v3131, %v2415
        %v3133 = vadd.f32 %v3132, %v2417
        %v3134 = vadd.f32 %v3133, %v2419
        %v3135 = vadd.f32 %v3134, %v2421
        %v3136 = vadd.f32 %v3135, %v2423
        %v3137 = vadd.f32 %v3136, %v2425
        %v3138 = vadd.f32 %v3137, %v2427
        %v3139 = vadd.f32 %v3138, %v2429
        %v3140 = vadd.f32 %v3139, %v2431
        %v3141 = vadd.f32 %v3140, %v2433
        %v3142 = vadd.f32 %v3141, %v2435
        %v3143 = vadd.f32 %v3142, %v2437
        %v3144 = vadd.f32 %v3143, %v2439
        %v3145 = vadd.f32 %v3144, %v2441
        %v3146 = vadd.f32 %v3145, %v2443
        %v3147 = vadd.f32 %v3146, %v2445
        %v3148 = vadd.f32 %v3147, %v2447
        %v3149 = vadd.f32 %v3148, %v2449
        %v3150 = vadd.f32 %v3149, %v2451
        %v3151 = vadd.f32 %v3150, %v2453
        %v3152 = vadd.f32 %v3151, %v2455
        %v3153 = vadd.f32 %v3152, %v2457
        %v3154 = vadd.f32 %v3153, %v2459
        %v3155 = vadd.f32 %v3154, %v2461
        %v3156 = vadd.f32 %v3155, %v2463
        %v3157 = vadd.f32 %v3156, %v2465
        %v3158 = vadd.f32 %v3157, %v2467
        %v3159 = vadd.f32 %v3158, %v2469
        %v3160 = vadd.f32 %v3159, %v2471
        %v3161 = vadd.f32 %v3160, %v2473
        %v3162 = vadd.f32 %v3161, %v2475
        %v3163 = vadd.f32 %v3162, %v2477
        %v3164 = vadd.f32 %v3163, %v2479
        %v3165 = vadd.f32 %v3164, %v2481
        %v3166 = vadd.f32 %v3165, %v2483
        %v3167 = vadd.f32 %v3166, %v2485
        %v3168 = vadd.f32 %v3167, %v2487
        %v3169 = vadd.f32 %v3168, %v2489
        %v3170 = vadd.f32 %v3169, %v2491
        %v3171 = vadd.f32 %v3170, %v2493
        %v3172 = vadd.f32 %v3171, %v2495
        %v3173 = vadd.f32 %v3172, %v2497
        %v3174 = vadd.f32 %v3173, %v2499
        %v3175 = vadd.f32 %v3174, %v2501
        %v3176 = vadd.f32 %v3175, %v2503
        %v3177 = vadd.f32 %v3176, %v2505
        %v3178 = vadd.f32 %v3177, %v2507
        %v3179 = vadd.f32 %v3178, %v2509
        %v3180 = vadd.f32 %v3179, %v2511
        %v3181 = vadd.f32 %v3180, %v2513
        %v3182 = vadd.f32 %v3181, %v2515
        %v3183 = vadd.f32 %v3182, %v2517
        %v3184 = vadd.f32 %v3183, %v2519
        %v3185 = vadd.f32 %v3184, %v2521
        %v3186 = vadd.f32 %v3185, %v2523
        %v3187 = vadd.f32 %v3186, %v2525
        %v3188 = vadd.f32 %v3187, %v2527
        %v3189 = vadd.f32 %v3188, %v2529
        %v3190 = vadd.f32 %v3189, %v2531
        %v3191 = vadd.f32 %v3190, %v2533
        %v3192 = vadd.f32 %v3191, %v2535
        %v3193 = vadd.f32 %v3192, %v2537
        %v3194 = vadd.f32 %v3193, %v2539
        %v3195 = vadd.f32 %v3194, %v2541
        %v3196 = vadd.f32 %v3195, %v2543
        %v3197 = vadd.f32 %v3196, %v2545
        %v3198 = vadd.f32 %v3197, %v2547
        %v3199 = vadd.f32 %v3198, %v2549
        %v3200 = vadd.f32 %v3199, %v2551
        %v3201 = vadd.f32 %v3200, %v2553
        %v3202 = vadd.f32 %v3201, %v2555
        %v3203 = vadd.f32 %v3202, %v2557
        %v3204 = vadd.f32 %v3203, %v2559
        %v3205 = vadd.f32 %v3204, %v2561
        %v3206 = vadd.f32 %v3205, %v2563
        %v3207 = vadd.f32 %v3206, %v2565
        %v3208 = vadd.f32 %v3207, %v2567
        %v3209 = vadd.f32 %v3208, %v2569
        %v3210 = vadd.f32 %v3209, %v2571
        %v3211 = vadd.f32 %v3210, %v2573
        %v3212 = vadd.f32 %v3211, %v2575
        %v3213 = vadd.f32 %v3212, %v2577
        %v3214 = vadd.f32 %v3213, %v2579
        %v3215 = vadd.f32 %v3214, %v2581
        %v3216 = vadd.f32 %v3215, %v2583
        %v3217 = vadd.f32 %v3216, %v2585
        %v3218 = vadd.f32 %v3217, %v2587
        %v3219 = vadd.f32 %v3218, %v2589
        %v3220 = vadd.f32 %v3219, %v2591
        %v3221 = vadd.f32 %v3220, %v2593
        %v3222 = vadd.f32 %v3221, %v2595
        %v3223 = vadd.f32 %v3222, %v2597
        %v3224 = vadd.f32 %v3223, %v2599
        %v3225 = vadd.f32 %v3224, %v2601
        %v3226 = vadd.f32 %v3225, %v2603
        %v3227 = vadd.f32 %v3226, %v2605
        %v3228 = vadd.f32 %v3227, %v2607
        %v3229 = vadd.f32 %v3228, %v2609
        %v3230 = vadd.f32 %v3229, %v2611
        %v3231 = vadd.f32 %v3230, %v2613
        %v3232 = vadd.f32 %v3231, %v2615
        %v3233 = vadd.f32 %v3232, %v2617
        %v3234 = vadd.f32 %v3233, %v2619
        %v3235 = vadd.f32 %v3234, %v2621
        %v3236 = vadd.f32 %v3235, %v2623
        %v3237 = vadd.f32 %v3236, %v2625
        %v3238 = vadd.f32 %v3237, %v2627
        %v3239 = vadd.f32 %v3238, %v2629
        %v3240 = vadd.f32 %v3239, %v2631
        %v3241 = vadd.f32 %v3240, %v2633
        %v3242 = vadd.f32 %v3241, %v2635
        %v3243 = vadd.f32 %v3242, %v2637
        %v3244 = vadd.f32 %v3243, %v2639
        %v3245 = vadd.f32 %v3244, %v2641
        %v3246 = vadd.f32 %v3245, %v2643
        %v3247 = vadd.f32 %v3246, %v2645
        %v3248 = vadd.f32 %v3247, %v2647
        %v3249 = vadd.f32 %v3248, %v2649
        %v3250 = vadd.f32 %v3249, %v2651
        %v3251 = vadd.f32 %v3250, %v2653
        %v3252 = vadd.f32 %v3251, %v2655
        %v3253 = vadd.f32 %v3252, %v2657
        %v3254 = vadd.f32 %v3253, %v2659
        %v3255 = vadd.f32 %v3254, %v2661
        %v3256 = vadd.f32 %v3255, %v2663
        %v3257 = vadd.f32 %v3256, %v2665
        %v3258 = vadd.f32 %v3257, %v2667
        %v3259 = vadd.f32 %v3258, %v2669
        %v3260 = vadd.f32 %v3259, %v2671
        %v3261 = vadd.f32 %v3260, %v2673
        %v3262 = vadd.f32 %v3261, %v2675
        %v3263 = vadd.f32 %v3262, %v2677
        %v3264 = vadd.f32 %v3263, %v2679
        %v3265 = vadd.f32 %v3264, %v2681
        %v3266 = vadd.f32 %v3265, %v2683
        %v3267 = vadd.f32 %v3266, %v2685
        %v3268 = vadd.f32 %v3267, %v2687
        %v3269 = vadd.f32 %v3268, %v2689
        %v3270 = vadd.f32 %v3269, %v2691
        %v3271 = vadd.f32 %v3270, %v2693
        %v3272 = vadd.f32 %v3271, %v2695
        %v3273 = vadd.f32 %v3272, %v2697
        %v3274 = vadd.f32 %v3273, %v2699
        %v3275 = vadd.f32 %v3274, %v2701
        %v3276 = vadd.f32 %v3275, %v2703
        %v3277 = vadd.f32 %v3276, %v2705
        %v3278 = vadd.f32 %v3277, %v2707
        %v3279 = vadd.f32 %v3278, %v2709
        %v3280 = vadd.f32 %v3279, %v2711
        %v3281 = vadd.f32 %v3280, %v2713
        %v3282 = vadd.f32 %v3281, %v2715
        %v3283 = vadd.f32 %v3282, %v2717
        %v3284 = vadd.f32 %v3283, %v2719
        %v3285 = vadd.f32 %v3284, %v2721
        %v3286 = vadd.f32 %v3285, %v2723
        %v3287 = vadd.f32 %v3286, %v2725
        %v3288 = vadd.f32 %v3287, %v2727
        %v3289 = vadd.f32 %v3288, %v2729
        %v3290 = vadd.f32 %v3289, %v2731
        %v3291 = vadd.f32 %v3290, %v2733
        %v3292 = vadd.f32 %v3291, %v2735
        %v3293 = vadd.f32 %v3292, %v2737
        %v3294 = vadd.f32 %v3293, %v2739
        %v3295 = vadd.f32 %v3294, %v2741
        %v3296 = vadd.f32 %v3295, %v2743
        %v3297 = vadd.f32 %v3296, %v2745
        %v3298 = vadd.f32 %v3297, %v2747
        %v3299 = vadd.f32 %v3298, %v2749
        %v3300 = vadd.f32 %v3299, %v2751
        %v3301 = vadd.f32 %v3300, %v2753
        %v3302 = vadd.f32 %v3301, %v2755
        %v3303 = vadd.f32 %v3302, %v2757
        %v3304 = vadd.f32 %v3303, %v2759
        %v3305 = vadd.f32 %v3304, %v2761
        %v3306 = vadd.f32 %v3305, %v2763
        %v3307 = vadd.f32 %v3306, %v2765
        %v3308 = vadd.f32 %v3307, %v2767
        %v3309 = vadd.f32 %v3308, %v2769
        %v3310 = vadd.f32 %v3309, %v2771
        %v3311 = vadd.f32 %v3310, %v2773
        %v3312 = vadd.f32 %v3311, %v2775
        %v3313 = vadd.f32 %v3312, %v2777
        %v3314 = vadd.f32 %v3313, %v2779
        %v3315 = vadd.f32 %v3314, %v2781
        %v3316 = vadd.f32 %v3315, %v2783
        %v3317 = vadd.f32 %v3316, %v2785
        %v3318 = vadd.f32 %v3317, %v2787
        %v3319 = vadd.f32 %v3318, %v2789
        %v3320 = vadd.f32 %v3319, %v2791
        %v3321 = vadd.f32 %v3320, %v2793
        %v3322 = vadd.f32 %v3321, %v2795
        %v3323 = vadd.f32 %v3322, %v2797
        %v3324 = vadd.f32 %v3323, %v2799
        %v3325 = vadd.f32 %v3324, %v2801
        %v3326 = vadd.f32 %v3325, %v2803
        %v3327 = vadd.f32 %v3326, %v2805
        %v3328 = vadd.f32 %v3327, %v2807
        %v3329 = vadd.f32 %v3328, %v2809
        %v3330 = vadd.f32 %v3329, %v2811
        %v3331 = vadd.f32 %v3330, %v2813
        %v3332 = vadd.f32 %v3331, %v2815
        %v3333 = vadd.f32 %v3332, %v2817
        %v3334 = vrot.slane %v3333, 4
        %v3335 = vadd.f32 %v3333, %v3334
        %v3336 = vrot.slane %v3335, 2
        %v3337 = vadd.f32 %v3335, %v3336
        %v3338 = vrot.slane %v3337, 1
        %v3339 = vadd.f32 %v3337, %v3338
        %v3340 = vmul.f32 %v2302, 0.00048828125
        %v3341 = vmul.f32 %v2304, 0.00048828125
        %v3342 = vmul.f32 %v3078, 0.00048828125
        %v3343 = vmul.f32 %v3339, 0.00048828125
        %v3344 = vmul.f32 %v3340, %v3340
        %v3345 = vmul.f32 %v3341, %v3341
        %v3346 = vsub.f32 %v3342, %v3344
        %v3347 = vsub.f32 %v3343, %v3345
        %v3348 = vmax.f32 %v3346, 0.0
        %v3349 = vmax.f32 %v3347, 0.0
        %v3350 = vld [vmem:[%s337] sm:$0x3]
        %v3351 = vadd.f32 %v3348, 1e-05
        %v3352 = vadd.f32 %v3349, 1e-05
        %v3353 = vrsqrt.pop %v3351
        %v3354 = vrsqrt.pop %v3352
        %v3357 = vcombine.low %v3353, %v3354
        %v3359 = vunpack.c.l.s4 1966171168
        %v3360 = vunpack.c.0.s8 %v3359
        %v3361 = vlaneseq
        %v3362 = vshrl.u32 %v3361, 7
        %v3363 = vsub.s32 %v3360, %v3362
        %v3364 = vrot.slane %v3357, %v3363
        %v3366 = vunpack.c.l.s4 1966171168
        %v3367 = vunpack.c.0.s8 %v3366
        %v3368 = vlaneseq
        %v3369 = vshrl.u32 %v3368, 7
        %v3370 = vsub.s32 %v3367, %v3369
        %v3371 = vrot.slane %v3364, %v3370
        %v3373 = vmul.f32 %v3350, %v3371
        %v3374 = vld [vmem:[%s342] sm:$0x3]
        %v3377 = vcombine.low %v3340, %v3341
        %v3379 = vunpack.c.l.s4 1966171168
        %v3380 = vunpack.c.0.s8 %v3379
        %v3381 = vlaneseq
        %v3382 = vshrl.u32 %v3381, 7
        %v3383 = vsub.s32 %v3380, %v3382
        %v3384 = vrot.slane %v3377, %v3383
        %v3386 = vunpack.c.l.s4 1966171168
        %v3387 = vunpack.c.0.s8 %v3386
        %v3388 = vlaneseq
        %v3389 = vshrl.u32 %v3388, 7
        %v3390 = vsub.s32 %v3387, %v3389
        %v3391 = vrot.slane %v3384, %v3390
        %v3393 = vmul.f32 %v3373, %v3391
        %v3394 = vsub.f32 %v3374, %v3393
        %v3395 = vmax.f32 %v700, %v706
        %v3396 = vmax.f32 %v3395, %v712
        %v3397 = vmax.f32 %v3396, %v718
        %v3398 = vmax.f32 %v3397, %v724
        %v3399 = vmax.f32 %v3398, %v730
        %v3400 = vmax.f32 %v3399, %v736
        %v3401 = vmax.f32 %v3400, %v742
        %v3402 = vmax.f32 %v3401, %v748
        %v3403 = vmax.f32 %v3402, %v754
        %v3404 = vmax.f32 %v3403, %v760
        %v3405 = vmax.f32 %v3404, %v766
        %v3406 = vmax.f32 %v3405, %v772
        %v3407 = vmax.f32 %v3406, %v778
        %v3408 = vmax.f32 %v3407, %v784
        %v3409 = vmax.f32 %v3408, %v790
        %v3410 = vmax.f32 %v3409, %v796
        %v3411 = vmax.f32 %v3410, %v802
        %v3412 = vmax.f32 %v3411, %v808
        %v3413 = vmax.f32 %v3412, %v814
        %v3414 = vmax.f32 %v3413, %v820
        %v3415 = vmax.f32 %v3414, %v826
        %v3416 = vmax.f32 %v3415, %v832
        %v3417 = vmax.f32 %v3416, %v838
        %v3418 = vmax.f32 %v3417, %v844
        %v3419 = vmax.f32 %v3418, %v850
        %v3420 = vmax.f32 %v3419, %v856
        %v3421 = vmax.f32 %v3420, %v862
        %v3422 = vmax.f32 %v3421, %v868
        %v3423 = vmax.f32 %v3422, %v874
        %v3424 = vmax.f32 %v3423, %v880
        %v3425 = vmax.f32 %v3424, %v886
        %v3426 = vmax.f32 %v3425, %v892
        %v3427 = vmax.f32 %v3426, %v898
        %v3428 = vmax.f32 %v3427, %v904
        %v3429 = vmax.f32 %v3428, %v910
        %v3430 = vmax.f32 %v3429, %v916
        %v3431 = vmax.f32 %v3430, %v922
        %v3432 = vmax.f32 %v3431, %v928
        %v3433 = vmax.f32 %v3432, %v934
        %v3434 = vmax.f32 %v3433, %v940
        %v3435 = vmax.f32 %v3434, %v946
        %v3436 = vmax.f32 %v3435, %v952
        %v3437 = vmax.f32 %v3436, %v958
        %v3438 = vmax.f32 %v3437, %v964
        %v3439 = vmax.f32 %v3438, %v970
        %v3440 = vmax.f32 %v3439, %v976
        %v3441 = vmax.f32 %v3440, %v982
        %v3442 = vmax.f32 %v3441, %v988
        %v3443 = vmax.f32 %v3442, %v994
        %v3444 = vmax.f32 %v3443, %v1000
        %v3445 = vmax.f32 %v3444, %v1006
        %v3446 = vmax.f32 %v3445, %v1012
        %v3447 = vmax.f32 %v3446, %v1018
        %v3448 = vmax.f32 %v3447, %v1024
        %v3449 = vmax.f32 %v3448, %v1030
        %v3450 = vmax.f32 %v3449, %v1036
        %v3451 = vmax.f32 %v3450, %v1042
        %v3452 = vmax.f32 %v3451, %v1048
        %v3453 = vmax.f32 %v3452, %v1054
        %v3454 = vmax.f32 %v3453, %v1060
        %v3455 = vmax.f32 %v3454, %v1066
        %v3456 = vmax.f32 %v3455, %v1072
        %v3457 = vmax.f32 %v3456, %v1078
        %v3458 = vmax.f32 %v3457, %v1084
        %v3459 = vmax.f32 %v3458, %v1090
        %v3460 = vmax.f32 %v3459, %v1096
        %v3461 = vmax.f32 %v3460, %v1102
        %v3462 = vmax.f32 %v3461, %v1108
        %v3463 = vmax.f32 %v3462, %v1114
        %v3464 = vmax.f32 %v3463, %v1120
        %v3465 = vmax.f32 %v3464, %v1126
        %v3466 = vmax.f32 %v3465, %v1132
        %v3467 = vmax.f32 %v3466, %v1138
        %v3468 = vmax.f32 %v3467, %v1144
        %v3469 = vmax.f32 %v3468, %v1150
        %v3470 = vmax.f32 %v3469, %v1156
        %v3471 = vmax.f32 %v3470, %v1162
        %v3472 = vmax.f32 %v3471, %v1168
        %v3473 = vmax.f32 %v3472, %v1174
        %v3474 = vmax.f32 %v3473, %v1180
        %v3475 = vmax.f32 %v3474, %v1186
        %v3476 = vmax.f32 %v3475, %v1192
        %v3477 = vmax.f32 %v3476, %v1198
        %v3478 = vmax.f32 %v3477, %v1204
        %v3479 = vmax.f32 %v3478, %v1210
        %v3480 = vmax.f32 %v3479, %v1216
        %v3481 = vmax.f32 %v3480, %v1222
        %v3482 = vmax.f32 %v3481, %v1228
        %v3483 = vmax.f32 %v3482, %v1234
        %v3484 = vmax.f32 %v3483, %v1240
        %v3485 = vmax.f32 %v3484, %v1246
        %v3486 = vmax.f32 %v3485, %v1252
        %v3487 = vmax.f32 %v3486, %v1258
        %v3488 = vmax.f32 %v3487, %v1264
        %v3489 = vmax.f32 %v3488, %v1270
        %v3490 = vmax.f32 %v3489, %v1276
        %v3491 = vmax.f32 %v3490, %v1282
        %v3492 = vmax.f32 %v3491, %v1288
        %v3493 = vmax.f32 %v3492, %v1294
        %v3494 = vmax.f32 %v3493, %v1300
        %v3495 = vmax.f32 %v3494, %v1306
        %v3496 = vmax.f32 %v3495, %v1312
        %v3497 = vmax.f32 %v3496, %v1318
        %v3498 = vmax.f32 %v3497, %v1324
        %v3499 = vmax.f32 %v3498, %v1330
        %v3500 = vmax.f32 %v3499, %v1336
        %v3501 = vmax.f32 %v3500, %v1342
        %v3502 = vmax.f32 %v3501, %v1348
        %v3503 = vmax.f32 %v3502, %v1354
        %v3504 = vmax.f32 %v3503, %v1360
        %v3505 = vmax.f32 %v3504, %v1366
        %v3506 = vmax.f32 %v3505, %v1372
        %v3507 = vmax.f32 %v3506, %v1378
        %v3508 = vmax.f32 %v3507, %v1384
        %v3509 = vmax.f32 %v3508, %v1390
        %v3510 = vmax.f32 %v3509, %v1396
        %v3511 = vmax.f32 %v3510, %v1402
        %v3512 = vmax.f32 %v3511, %v1408
        %v3513 = vmax.f32 %v3512, %v1414
        %v3514 = vmax.f32 %v3513, %v1420
        %v3515 = vmax.f32 %v3514, %v1426
        %v3516 = vmax.f32 %v3515, %v1432
        %v3517 = vmax.f32 %v3516, %v1438
        %v3518 = vmax.f32 %v3517, %v1444
        %v3519 = vmax.f32 %v3518, %v1450
        %v3520 = vmax.f32 %v3519, %v1456
        %v3521 = vmax.f32 %v3520, %v1462
        %v3522 = vrot.slane %v3521, 4
        %v3523 = vmax.f32 %v3521, %v3522
        %v3524 = vrot.slane %v3523, 2
        %v3525 = vmax.f32 %v3523, %v3524
        %v3526 = vrot.slane %v3525, 1
        %v3527 = vmax.f32 %v3525, %v3526
        %v3528 = vmax.f32 %v702, %v708
        %v3529 = vmax.f32 %v3528, %v714
        %v3530 = vmax.f32 %v3529, %v720
        %v3531 = vmax.f32 %v3530, %v726
        %v3532 = vmax.f32 %v3531, %v732
        %v3533 = vmax.f32 %v3532, %v738
        %v3534 = vmax.f32 %v3533, %v744
        %v3535 = vmax.f32 %v3534, %v750
        %v3536 = vmax.f32 %v3535, %v756
        %v3537 = vmax.f32 %v3536, %v762
        %v3538 = vmax.f32 %v3537, %v768
        %v3539 = vmax.f32 %v3538, %v774
        %v3540 = vmax.f32 %v3539, %v780
        %v3541 = vmax.f32 %v3540, %v786
        %v3542 = vmax.f32 %v3541, %v792
        %v3543 = vmax.f32 %v3542, %v798
        %v3544 = vmax.f32 %v3543, %v804
        %v3545 = vmax.f32 %v3544, %v810
        %v3546 = vmax.f32 %v3545, %v816
        %v3547 = vmax.f32 %v3546, %v822
        %v3548 = vmax.f32 %v3547, %v828
        %v3549 = vmax.f32 %v3548, %v834
        %v3550 = vmax.f32 %v3549, %v840
        %v3551 = vmax.f32 %v3550, %v846
        %v3552 = vmax.f32 %v3551, %v852
        %v3553 = vmax.f32 %v3552, %v858
        %v3554 = vmax.f32 %v3553, %v864
        %v3555 = vmax.f32 %v3554, %v870
        %v3556 = vmax.f32 %v3555, %v876
        %v3557 = vmax.f32 %v3556, %v882
        %v3558 = vmax.f32 %v3557, %v888
        %v3559 = vmax.f32 %v3558, %v894
        %v3560 = vmax.f32 %v3559, %v900
        %v3561 = vmax.f32 %v3560, %v906
        %v3562 = vmax.f32 %v3561, %v912
        %v3563 = vmax.f32 %v3562, %v918
        %v3564 = vmax.f32 %v3563, %v924
        %v3565 = vmax.f32 %v3564, %v930
        %v3566 = vmax.f32 %v3565, %v936
        %v3567 = vmax.f32 %v3566, %v942
        %v3568 = vmax.f32 %v3567, %v948
        %v3569 = vmax.f32 %v3568, %v954
        %v3570 = vmax.f32 %v3569, %v960
        %v3571 = vmax.f32 %v3570, %v966
        %v3572 = vmax.f32 %v3571, %v972
        %v3573 = vmax.f32 %v3572, %v978
        %v3574 = vmax.f32 %v3573, %v984
        %v3575 = vmax.f32 %v3574, %v990
        %v3576 = vmax.f32 %v3575, %v996
        %v3577 = vmax.f32 %v3576, %v1002
        %v3578 = vmax.f32 %v3577, %v1008
        %v3579 = vmax.f32 %v3578, %v1014
        %v3580 = vmax.f32 %v3579, %v1020
        %v3581 = vmax.f32 %v3580, %v1026
        %v3582 = vmax.f32 %v3581, %v1032
        %v3583 = vmax.f32 %v3582, %v1038
        %v3584 = vmax.f32 %v3583, %v1044
        %v3585 = vmax.f32 %v3584, %v1050
        %v3586 = vmax.f32 %v3585, %v1056
        %v3587 = vmax.f32 %v3586, %v1062
        %v3588 = vmax.f32 %v3587, %v1068
        %v3589 = vmax.f32 %v3588, %v1074
        %v3590 = vmax.f32 %v3589, %v1080
        %v3591 = vmax.f32 %v3590, %v1086
        %v3592 = vmax.f32 %v3591, %v1092
        %v3593 = vmax.f32 %v3592, %v1098
        %v3594 = vmax.f32 %v3593, %v1104
        %v3595 = vmax.f32 %v3594, %v1110
        %v3596 = vmax.f32 %v3595, %v1116
        %v3597 = vmax.f32 %v3596, %v1122
        %v3598 = vmax.f32 %v3597, %v1128
        %v3599 = vmax.f32 %v3598, %v1134
        %v3600 = vmax.f32 %v3599, %v1140
        %v3601 = vmax.f32 %v3600, %v1146
        %v3602 = vmax.f32 %v3601, %v1152
        %v3603 = vmax.f32 %v3602, %v1158
        %v3604 = vmax.f32 %v3603, %v1164
        %v3605 = vmax.f32 %v3604, %v1170
        %v3606 = vmax.f32 %v3605, %v1176
        %v3607 = vmax.f32 %v3606, %v1182
        %v3608 = vmax.f32 %v3607, %v1188
        %v3609 = vmax.f32 %v3608, %v1194
        %v3610 = vmax.f32 %v3609, %v1200
        %v3611 = vmax.f32 %v3610, %v1206
        %v3612 = vmax.f32 %v3611, %v1212
        %v3613 = vmax.f32 %v3612, %v1218
        %v3614 = vmax.f32 %v3613, %v1224
        %v3615 = vmax.f32 %v3614, %v1230
        %v3616 = vmax.f32 %v3615, %v1236
        %v3617 = vmax.f32 %v3616, %v1242
        %v3618 = vmax.f32 %v3617, %v1248
        %v3619 = vmax.f32 %v3618, %v1254
        %v3620 = vmax.f32 %v3619, %v1260
        %v3621 = vmax.f32 %v3620, %v1266
        %v3622 = vmax.f32 %v3621, %v1272
        %v3623 = vmax.f32 %v3622, %v1278
        %v3624 = vmax.f32 %v3623, %v1284
        %v3625 = vmax.f32 %v3624, %v1290
        %v3626 = vmax.f32 %v3625, %v1296
        %v3627 = vmax.f32 %v3626, %v1302
        %v3628 = vmax.f32 %v3627, %v1308
        %v3629 = vmax.f32 %v3628, %v1314
        %v3630 = vmax.f32 %v3629, %v1320
        %v3631 = vmax.f32 %v3630, %v1326
        %v3632 = vmax.f32 %v3631, %v1332
        %v3633 = vmax.f32 %v3632, %v1338
        %v3634 = vmax.f32 %v3633, %v1344
        %v3635 = vmax.f32 %v3634, %v1350
        %v3636 = vmax.f32 %v3635, %v1356
        %v3637 = vmax.f32 %v3636, %v1362
        %v3638 = vmax.f32 %v3637, %v1368
        %v3639 = vmax.f32 %v3638, %v1374
        %v3640 = vmax.f32 %v3639, %v1380
        %v3641 = vmax.f32 %v3640, %v1386
        %v3642 = vmax.f32 %v3641, %v1392
        %v3643 = vmax.f32 %v3642, %v1398
        %v3644 = vmax.f32 %v3643, %v1404
        %v3645 = vmax.f32 %v3644, %v1410
        %v3646 = vmax.f32 %v3645, %v1416
        %v3647 = vmax.f32 %v3646, %v1422
        %v3648 = vmax.f32 %v3647, %v1428
        %v3649 = vmax.f32 %v3648, %v1434
        %v3650 = vmax.f32 %v3649, %v1440
        %v3651 = vmax.f32 %v3650, %v1446
        %v3652 = vmax.f32 %v3651, %v1452
        %v3653 = vmax.f32 %v3652, %v1458
        %v3654 = vmax.f32 %v3653, %v1464
        %v3655 = vrot.slane %v3654, 4
        %v3656 = vmax.f32 %v3654, %v3655
        %v3657 = vrot.slane %v3656, 2
        %v3658 = vmax.f32 %v3656, %v3657
        %v3659 = vrot.slane %v3658, 1
        %v3660 = vmax.f32 %v3658, %v3659
        %v3661 = vmax.f32 %v1468, %v1474
        %v3662 = vmax.f32 %v3661, %v1480
        %v3663 = vmax.f32 %v3662, %v1486
        %v3664 = vmax.f32 %v3663, %v1492
        %v3665 = vmax.f32 %v3664, %v1498
        %v3666 = vmax.f32 %v3665, %v1504
        %v3667 = vmax.f32 %v3666, %v1510
        %v3668 = vmax.f32 %v3667, %v1516
        %v3669 = vmax.f32 %v3668, %v1522
        %v3670 = vmax.f32 %v3669, %v1528
        %v3671 = vmax.f32 %v3670, %v1534
        %v3672 = vmax.f32 %v3671, %v1540
        %v3673 = vmax.f32 %v3672, %v1546
        %v3674 = vmax.f32 %v3673, %v1552
        %v3675 = vmax.f32 %v3674, %v1558
        %v3676 = vmax.f32 %v3675, %v1564
        %v3677 = vmax.f32 %v3676, %v1570
        %v3678 = vmax.f32 %v3677, %v1576
        %v3679 = vmax.f32 %v3678, %v1582
        %v3680 = vmax.f32 %v3679, %v1588
        %v3681 = vmax.f32 %v3680, %v1594
        %v3682 = vmax.f32 %v3681, %v1600
        %v3683 = vmax.f32 %v3682, %v1606
        %v3684 = vmax.f32 %v3683, %v1612
        %v3685 = vmax.f32 %v3684, %v1618
        %v3686 = vmax.f32 %v3685, %v1624
        %v3687 = vmax.f32 %v3686, %v1630
        %v3688 = vmax.f32 %v3687, %v1636
        %v3689 = vmax.f32 %v3688, %v1642
        %v3690 = vmax.f32 %v3689, %v1648
        %v3691 = vmax.f32 %v3690, %v1654
        %v3692 = vmax.f32 %v3691, %v1660
        %v3693 = vmax.f32 %v3692, %v1666
        %v3694 = vmax.f32 %v3693, %v1672
        %v3695 = vmax.f32 %v3694, %v1678
        %v3696 = vmax.f32 %v3695, %v1684
        %v3697 = vmax.f32 %v3696, %v1690
        %v3698 = vmax.f32 %v3697, %v1696
        %v3699 = vmax.f32 %v3698, %v1702
        %v3700 = vmax.f32 %v3699, %v1708
        %v3701 = vmax.f32 %v3700, %v1714
        %v3702 = vmax.f32 %v3701, %v1720
        %v3703 = vmax.f32 %v3702, %v1726
        %v3704 = vmax.f32 %v3703, %v1732
        %v3705 = vmax.f32 %v3704, %v1738
        %v3706 = vmax.f32 %v3705, %v1744
        %v3707 = vmax.f32 %v3706, %v1750
        %v3708 = vmax.f32 %v3707, %v1756
        %v3709 = vmax.f32 %v3708, %v1762
        %v3710 = vmax.f32 %v3709, %v1768
        %v3711 = vmax.f32 %v3710, %v1774
        %v3712 = vmax.f32 %v3711, %v1780
        %v3713 = vmax.f32 %v3712, %v1786
        %v3714 = vmax.f32 %v3713, %v1792
        %v3715 = vmax.f32 %v3714, %v1798
        %v3716 = vmax.f32 %v3715, %v1804
        %v3717 = vmax.f32 %v3716, %v1810
        %v3718 = vmax.f32 %v3717, %v1816
        %v3719 = vmax.f32 %v3718, %v1822
        %v3720 = vmax.f32 %v3719, %v1828
        %v3721 = vmax.f32 %v3720, %v1834
        %v3722 = vmax.f32 %v3721, %v1840
        %v3723 = vmax.f32 %v3722, %v1846
        %v3724 = vmax.f32 %v3723, %v1852
        %v3725 = vmax.f32 %v3724, %v1858
        %v3726 = vmax.f32 %v3725, %v1864
        %v3727 = vmax.f32 %v3726, %v1870
        %v3728 = vmax.f32 %v3727, %v1876
        %v3729 = vmax.f32 %v3728, %v1882
        %v3730 = vmax.f32 %v3729, %v1888
        %v3731 = vmax.f32 %v3730, %v1894
        %v3732 = vmax.f32 %v3731, %v1900
        %v3733 = vmax.f32 %v3732, %v1906
        %v3734 = vmax.f32 %v3733, %v1912
        %v3735 = vmax.f32 %v3734, %v1918
        %v3736 = vmax.f32 %v3735, %v1924
        %v3737 = vmax.f32 %v3736, %v1930
        %v3738 = vmax.f32 %v3737, %v1936
        %v3739 = vmax.f32 %v3738, %v1942
        %v3740 = vmax.f32 %v3739, %v1948
        %v3741 = vmax.f32 %v3740, %v1954
        %v3742 = vmax.f32 %v3741, %v1960
        %v3743 = vmax.f32 %v3742, %v1966
        %v3744 = vmax.f32 %v3743, %v1972
        %v3745 = vmax.f32 %v3744, %v1978
        %v3746 = vmax.f32 %v3745, %v1984
        %v3747 = vmax.f32 %v3746, %v1990
        %v3748 = vmax.f32 %v3747, %v1996
        %v3749 = vmax.f32 %v3748, %v2002
        %v3750 = vmax.f32 %v3749, %v2008
        %v3751 = vmax.f32 %v3750, %v2014
        %v3752 = vmax.f32 %v3751, %v2020
        %v3753 = vmax.f32 %v3752, %v2026
        %v3754 = vmax.f32 %v3753, %v2032
        %v3755 = vmax.f32 %v3754, %v2038
        %v3756 = vmax.f32 %v3755, %v2044
        %v3757 = vmax.f32 %v3756, %v2050
        %v3758 = vmax.f32 %v3757, %v2056
        %v3759 = vmax.f32 %v3758, %v2062
        %v3760 = vmax.f32 %v3759, %v2068
        %v3761 = vmax.f32 %v3760, %v2074
        %v3762 = vmax.f32 %v3761, %v2080
        %v3763 = vmax.f32 %v3762, %v2086
        %v3764 = vmax.f32 %v3763, %v2092
        %v3765 = vmax.f32 %v3764, %v2098
        %v3766 = vmax.f32 %v3765, %v2104
        %v3767 = vmax.f32 %v3766, %v2110
        %v3768 = vmax.f32 %v3767, %v2116
        %v3769 = vmax.f32 %v3768, %v2122
        %v3770 = vmax.f32 %v3769, %v2128
        %v3771 = vmax.f32 %v3770, %v2134
        %v3772 = vmax.f32 %v3771, %v2140
        %v3773 = vmax.f32 %v3772, %v2146
        %v3774 = vmax.f32 %v3773, %v2152
        %v3775 = vmax.f32 %v3774, %v2158
        %v3776 = vmax.f32 %v3775, %v2164
        %v3777 = vmax.f32 %v3776, %v2170
        %v3778 = vmax.f32 %v3777, %v2176
        %v3779 = vmax.f32 %v3778, %v2182
        %v3780 = vmax.f32 %v3779, %v2188
        %v3781 = vmax.f32 %v3780, %v2194
        %v3782 = vmax.f32 %v3781, %v2200
        %v3783 = vmax.f32 %v3782, %v2206
        %v3784 = vmax.f32 %v3783, %v2212
        %v3785 = vmax.f32 %v3784, %v2218
        %v3786 = vmax.f32 %v3785, %v2224
        %v3787 = vmax.f32 %v3786, %v2230
        %v3788 = vrot.slane %v3787, 4
        %v3789 = vmax.f32 %v3787, %v3788
        %v3790 = vrot.slane %v3789, 2
        %v3791 = vmax.f32 %v3789, %v3790
        %v3792 = vrot.slane %v3791, 1
        %v3793 = vmax.f32 %v3791, %v3792
        %v3794 = vmax.f32 %v1470, %v1476
        %v3795 = vmax.f32 %v3794, %v1482
        %v3796 = vmax.f32 %v3795, %v1488
        %v3797 = vmax.f32 %v3796, %v1494
        %v3798 = vmax.f32 %v3797, %v1500
        %v3799 = vmax.f32 %v3798, %v1506
        %v3800 = vmax.f32 %v3799, %v1512
        %v3801 = vmax.f32 %v3800, %v1518
        %v3802 = vmax.f32 %v3801, %v1524
        %v3803 = vmax.f32 %v3802, %v1530
        %v3804 = vmax.f32 %v3803, %v1536
        %v3805 = vmax.f32 %v3804, %v1542
        %v3806 = vmax.f32 %v3805, %v1548
        %v3807 = vmax.f32 %v3806, %v1554
        %v3808 = vmax.f32 %v3807, %v1560
        %v3809 = vmax.f32 %v3808, %v1566
        %v3810 = vmax.f32 %v3809, %v1572
        %v3811 = vmax.f32 %v3810, %v1578
        %v3812 = vmax.f32 %v3811, %v1584
        %v3813 = vmax.f32 %v3812, %v1590
        %v3814 = vmax.f32 %v3813, %v1596
        %v3815 = vmax.f32 %v3814, %v1602
        %v3816 = vmax.f32 %v3815, %v1608
        %v3817 = vmax.f32 %v3816, %v1614
        %v3818 = vmax.f32 %v3817, %v1620
        %v3819 = vmax.f32 %v3818, %v1626
        %v3820 = vmax.f32 %v3819, %v1632
        %v3821 = vmax.f32 %v3820, %v1638
        %v3822 = vmax.f32 %v3821, %v1644
        %v3823 = vmax.f32 %v3822, %v1650
        %v3824 = vmax.f32 %v3823, %v1656
        %v3825 = vmax.f32 %v3824, %v1662
        %v3826 = vmax.f32 %v3825, %v1668
        %v3827 = vmax.f32 %v3826, %v1674
        %v3828 = vmax.f32 %v3827, %v1680
        %v3829 = vmax.f32 %v3828, %v1686
        %v3830 = vmax.f32 %v3829, %v1692
        %v3831 = vmax.f32 %v3830, %v1698
        %v3832 = vmax.f32 %v3831, %v1704
        %v3833 = vmax.f32 %v3832, %v1710
        %v3834 = vmax.f32 %v3833, %v1716
        %v3835 = vmax.f32 %v3834, %v1722
        %v3836 = vmax.f32 %v3835, %v1728
        %v3837 = vmax.f32 %v3836, %v1734
        %v3838 = vmax.f32 %v3837, %v1740
        %v3839 = vmax.f32 %v3838, %v1746
        %v3840 = vmax.f32 %v3839, %v1752
        %v3841 = vmax.f32 %v3840, %v1758
        %v3842 = vmax.f32 %v3841, %v1764
        %v3843 = vmax.f32 %v3842, %v1770
        %v3844 = vmax.f32 %v3843, %v1776
        %v3845 = vmax.f32 %v3844, %v1782
        %v3846 = vmax.f32 %v3845, %v1788
        %v3847 = vmax.f32 %v3846, %v1794
        %v3848 = vmax.f32 %v3847, %v1800
        %v3849 = vmax.f32 %v3848, %v1806
        %v3850 = vmax.f32 %v3849, %v1812
        %v3851 = vmax.f32 %v3850, %v1818
        %v3852 = vmax.f32 %v3851, %v1824
        %v3853 = vmax.f32 %v3852, %v1830
        %v3854 = vmax.f32 %v3853, %v1836
        %v3855 = vmax.f32 %v3854, %v1842
        %v3856 = vmax.f32 %v3855, %v1848
        %v3857 = vmax.f32 %v3856, %v1854
        %v3858 = vmax.f32 %v3857, %v1860
        %v3859 = vmax.f32 %v3858, %v1866
        %v3860 = vmax.f32 %v3859, %v1872
        %v3861 = vmax.f32 %v3860, %v1878
        %v3862 = vmax.f32 %v3861, %v1884
        %v3863 = vmax.f32 %v3862, %v1890
        %v3864 = vmax.f32 %v3863, %v1896
        %v3865 = vmax.f32 %v3864, %v1902
        %v3866 = vmax.f32 %v3865, %v1908
        %v3867 = vmax.f32 %v3866, %v1914
        %v3868 = vmax.f32 %v3867, %v1920
        %v3869 = vmax.f32 %v3868, %v1926
        %v3870 = vmax.f32 %v3869, %v1932
        %v3871 = vmax.f32 %v3870, %v1938
        %v3872 = vmax.f32 %v3871, %v1944
        %v3873 = vmax.f32 %v3872, %v1950
        %v3874 = vmax.f32 %v3873, %v1956
        %v3875 = vmax.f32 %v3874, %v1962
        %v3876 = vmax.f32 %v3875, %v1968
        %v3877 = vmax.f32 %v3876, %v1974
        %v3878 = vmax.f32 %v3877, %v1980
        %v3879 = vmax.f32 %v3878, %v1986
        %v3880 = vmax.f32 %v3879, %v1992
        %v3881 = vmax.f32 %v3880, %v1998
        %v3882 = vmax.f32 %v3881, %v2004
        %v3883 = vmax.f32 %v3882, %v2010
        %v3884 = vmax.f32 %v3883, %v2016
        %v3885 = vmax.f32 %v3884, %v2022
        %v3886 = vmax.f32 %v3885, %v2028
        %v3887 = vmax.f32 %v3886, %v2034
        %v3888 = vmax.f32 %v3887, %v2040
        %v3889 = vmax.f32 %v3888, %v2046
        %v3890 = vmax.f32 %v3889, %v2052
        %v3891 = vmax.f32 %v3890, %v2058
        %v3892 = vmax.f32 %v3891, %v2064
        %v3893 = vmax.f32 %v3892, %v2070
        %v3894 = vmax.f32 %v3893, %v2076
        %v3895 = vmax.f32 %v3894, %v2082
        %v3896 = vmax.f32 %v3895, %v2088
        %v3897 = vmax.f32 %v3896, %v2094
        %v3898 = vmax.f32 %v3897, %v2100
        %v3899 = vmax.f32 %v3898, %v2106
        %v3900 = vmax.f32 %v3899, %v2112
        %v3901 = vmax.f32 %v3900, %v2118
        %v3902 = vmax.f32 %v3901, %v2124
        %v3903 = vmax.f32 %v3902, %v2130
        %v3904 = vmax.f32 %v3903, %v2136
        %v3905 = vmax.f32 %v3904, %v2142
        %v3906 = vmax.f32 %v3905, %v2148
        %v3907 = vmax.f32 %v3906, %v2154
        %v3908 = vmax.f32 %v3907, %v2160
        %v3909 = vmax.f32 %v3908, %v2166
        %v3910 = vmax.f32 %v3909, %v2172
        %v3911 = vmax.f32 %v3910, %v2178
        %v3912 = vmax.f32 %v3911, %v2184
        %v3913 = vmax.f32 %v3912, %v2190
        %v3914 = vmax.f32 %v3913, %v2196
        %v3915 = vmax.f32 %v3914, %v2202
        %v3916 = vmax.f32 %v3915, %v2208
        %v3917 = vmax.f32 %v3916, %v2214
        %v3918 = vmax.f32 %v3917, %v2220
        %v3919 = vmax.f32 %v3918, %v2226
        %v3920 = vmax.f32 %v3919, %v2232
        %v3921 = vrot.slane %v3920, 4
        %v3922 = vmax.f32 %v3920, %v3921
        %v3923 = vrot.slane %v3922, 2
        %v3924 = vmax.f32 %v3922, %v3923
        %v3925 = vrot.slane %v3924, 1
        %v3926 = vmax.f32 %v3924, %v3925
        %v3927 = vmin.f32 %v700, %v706
        %v3928 = vmin.f32 %v3927, %v712
        %v3929 = vmin.f32 %v3928, %v718
        %v3930 = vmin.f32 %v3929, %v724
        %v3931 = vmin.f32 %v3930, %v730
        %v3932 = vmin.f32 %v3931, %v736
        %v3933 = vmin.f32 %v3932, %v742
        %v3934 = vmin.f32 %v3933, %v748
        %v3935 = vmin.f32 %v3934, %v754
        %v3936 = vmin.f32 %v3935, %v760
        %v3937 = vmin.f32 %v3936, %v766
        %v3938 = vmin.f32 %v3937, %v772
        %v3939 = vmin.f32 %v3938, %v778
        %v3940 = vmin.f32 %v3939, %v784
        %v3941 = vmin.f32 %v3940, %v790
        %v3942 = vmin.f32 %v3941, %v796
        %v3943 = vmin.f32 %v3942, %v802
        %v3944 = vmin.f32 %v3943, %v808
        %v3945 = vmin.f32 %v3944, %v814
        %v3946 = vmin.f32 %v3945, %v820
        %v3947 = vmin.f32 %v3946, %v826
        %v3948 = vmin.f32 %v3947, %v832
        %v3949 = vmin.f32 %v3948, %v838
        %v3950 = vmin.f32 %v3949, %v844
        %v3951 = vmin.f32 %v3950, %v850
        %v3952 = vmin.f32 %v3951, %v856
        %v3953 = vmin.f32 %v3952, %v862
        %v3954 = vmin.f32 %v3953, %v868
        %v3955 = vmin.f32 %v3954, %v874
        %v3956 = vmin.f32 %v3955, %v880
        %v3957 = vmin.f32 %v3956, %v886
        %v3958 = vmin.f32 %v3957, %v892
        %v3959 = vmin.f32 %v3958, %v898
        %v3960 = vmin.f32 %v3959, %v904
        %v3961 = vmin.f32 %v3960, %v910
        %v3962 = vmin.f32 %v3961, %v916
        %v3963 = vmin.f32 %v3962, %v922
        %v3964 = vmin.f32 %v3963, %v928
        %v3965 = vmin.f32 %v3964, %v934
        %v3966 = vmin.f32 %v3965, %v940
        %v3967 = vmin.f32 %v3966, %v946
        %v3968 = vmin.f32 %v3967, %v952
        %v3969 = vmin.f32 %v3968, %v958
        %v3970 = vmin.f32 %v3969, %v964
        %v3971 = vmin.f32 %v3970, %v970
        %v3972 = vmin.f32 %v3971, %v976
        %v3973 = vmin.f32 %v3972, %v982
        %v3974 = vmin.f32 %v3973, %v988
        %v3975 = vmin.f32 %v3974, %v994
        %v3976 = vmin.f32 %v3975, %v1000
        %v3977 = vmin.f32 %v3976, %v1006
        %v3978 = vmin.f32 %v3977, %v1012
        %v3979 = vmin.f32 %v3978, %v1018
        %v3980 = vmin.f32 %v3979, %v1024
        %v3981 = vmin.f32 %v3980, %v1030
        %v3982 = vmin.f32 %v3981, %v1036
        %v3983 = vmin.f32 %v3982, %v1042
        %v3984 = vmin.f32 %v3983, %v1048
        %v3985 = vmin.f32 %v3984, %v1054
        %v3986 = vmin.f32 %v3985, %v1060
        %v3987 = vmin.f32 %v3986, %v1066
        %v3988 = vmin.f32 %v3987, %v1072
        %v3989 = vmin.f32 %v3988, %v1078
        %v3990 = vmin.f32 %v3989, %v1084
        %v3991 = vmin.f32 %v3990, %v1090
        %v3992 = vmin.f32 %v3991, %v1096
        %v3993 = vmin.f32 %v3992, %v1102
        %v3994 = vmin.f32 %v3993, %v1108
        %v3995 = vmin.f32 %v3994, %v1114
        %v3996 = vmin.f32 %v3995, %v1120
        %v3997 = vmin.f32 %v3996, %v1126
        %v3998 = vmin.f32 %v3997, %v1132
        %v3999 = vmin.f32 %v3998, %v1138
        %v4000 = vmin.f32 %v3999, %v1144
        %v4001 = vmin.f32 %v4000, %v1150
        %v4002 = vmin.f32 %v4001, %v1156
        %v4003 = vmin.f32 %v4002, %v1162
        %v4004 = vmin.f32 %v4003, %v1168
        %v4005 = vmin.f32 %v4004, %v1174
        %v4006 = vmin.f32 %v4005, %v1180
        %v4007 = vmin.f32 %v4006, %v1186
        %v4008 = vmin.f32 %v4007, %v1192
        %v4009 = vmin.f32 %v4008, %v1198
        %v4010 = vmin.f32 %v4009, %v1204
        %v4011 = vmin.f32 %v4010, %v1210
        %v4012 = vmin.f32 %v4011, %v1216
        %v4013 = vmin.f32 %v4012, %v1222
        %v4014 = vmin.f32 %v4013, %v1228
        %v4015 = vmin.f32 %v4014, %v1234
        %v4016 = vmin.f32 %v4015, %v1240
        %v4017 = vmin.f32 %v4016, %v1246
        %v4018 = vmin.f32 %v4017, %v1252
        %v4019 = vmin.f32 %v4018, %v1258
        %v4020 = vmin.f32 %v4019, %v1264
        %v4021 = vmin.f32 %v4020, %v1270
        %v4022 = vmin.f32 %v4021, %v1276
        %v4023 = vmin.f32 %v4022, %v1282
        %v4024 = vmin.f32 %v4023, %v1288
        %v4025 = vmin.f32 %v4024, %v1294
        %v4026 = vmin.f32 %v4025, %v1300
        %v4027 = vmin.f32 %v4026, %v1306
        %v4028 = vmin.f32 %v4027, %v1312
        %v4029 = vmin.f32 %v4028, %v1318
        %v4030 = vmin.f32 %v4029, %v1324
        %v4031 = vmin.f32 %v4030, %v1330
        %v4032 = vmin.f32 %v4031, %v1336
        %v4033 = vmin.f32 %v4032, %v1342
        %v4034 = vmin.f32 %v4033, %v1348
        %v4035 = vmin.f32 %v4034, %v1354
        %v4036 = vmin.f32 %v4035, %v1360
        %v4037 = vmin.f32 %v4036, %v1366
        %v4038 = vmin.f32 %v4037, %v1372
        %v4039 = vmin.f32 %v4038, %v1378
        %v4040 = vmin.f32 %v4039, %v1384
        %v4041 = vmin.f32 %v4040, %v1390
        %v4042 = vmin.f32 %v4041, %v1396
        %v4043 = vmin.f32 %v4042, %v1402
        %v4044 = vmin.f32 %v4043, %v1408
        %v4045 = vmin.f32 %v4044, %v1414
        %v4046 = vmin.f32 %v4045, %v1420
        %v4047 = vmin.f32 %v4046, %v1426
        %v4048 = vmin.f32 %v4047, %v1432
        %v4049 = vmin.f32 %v4048, %v1438
        %v4050 = vmin.f32 %v4049, %v1444
        %v4051 = vmin.f32 %v4050, %v1450
        %v4052 = vmin.f32 %v4051, %v1456
        %v4053 = vmin.f32 %v4052, %v1462
        %v4054 = vrot.slane %v4053, 4
        %v4055 = vmin.f32 %v4053, %v4054
        %v4056 = vrot.slane %v4055, 2
        %v4057 = vmin.f32 %v4055, %v4056
        %v4058 = vrot.slane %v4057, 1
        %v4059 = vmin.f32 %v4057, %v4058
        %v4060 = vmin.f32 %v702, %v708
        %v4061 = vmin.f32 %v4060, %v714
        %v4062 = vmin.f32 %v4061, %v720
        %v4063 = vmin.f32 %v4062, %v726
        %v4064 = vmin.f32 %v4063, %v732
        %v4065 = vmin.f32 %v4064, %v738
        %v4066 = vmin.f32 %v4065, %v744
        %v4067 = vmin.f32 %v4066, %v750
        %v4068 = vmin.f32 %v4067, %v756
        %v4069 = vmin.f32 %v4068, %v762
        %v4070 = vmin.f32 %v4069, %v768
        %v4071 = vmin.f32 %v4070, %v774
        %v4072 = vmin.f32 %v4071, %v780
        %v4073 = vmin.f32 %v4072, %v786
        %v4074 = vmin.f32 %v4073, %v792
        %v4075 = vmin.f32 %v4074, %v798
        %v4076 = vmin.f32 %v4075, %v804
        %v4077 = vmin.f32 %v4076, %v810
        %v4078 = vmin.f32 %v4077, %v816
        %v4079 = vmin.f32 %v4078, %v822
        %v4080 = vmin.f32 %v4079, %v828
        %v4081 = vmin.f32 %v4080, %v834
        %v4082 = vmin.f32 %v4081, %v840
        %v4083 = vmin.f32 %v4082, %v846
        %v4084 = vmin.f32 %v4083, %v852
        %v4085 = vmin.f32 %v4084, %v858
        %v4086 = vmin.f32 %v4085, %v864
        %v4087 = vmin.f32 %v4086, %v870
        %v4088 = vmin.f32 %v4087, %v876
        %v4089 = vmin.f32 %v4088, %v882
        %v4090 = vmin.f32 %v4089, %v888
        %v4091 = vmin.f32 %v4090, %v894
        %v4092 = vmin.f32 %v4091, %v900
        %v4093 = vmin.f32 %v4092, %v906
        %v4094 = vmin.f32 %v4093, %v912
        %v4095 = vmin.f32 %v4094, %v918
        %v4096 = vmin.f32 %v4095, %v924
        %v4097 = vmin.f32 %v4096, %v930
        %v4098 = vmin.f32 %v4097, %v936
        %v4099 = vmin.f32 %v4098, %v942
        %v4100 = vmin.f32 %v4099, %v948
        %v4101 = vmin.f32 %v4100, %v954
        %v4102 = vmin.f32 %v4101, %v960
        %v4103 = vmin.f32 %v4102, %v966
        %v4104 = vmin.f32 %v4103, %v972
        %v4105 = vmin.f32 %v4104, %v978
        %v4106 = vmin.f32 %v4105, %v984
        %v4107 = vmin.f32 %v4106, %v990
        %v4108 = vmin.f32 %v4107, %v996
        %v4109 = vmin.f32 %v4108, %v1002
        %v4110 = vmin.f32 %v4109, %v1008
        %v4111 = vmin.f32 %v4110, %v1014
        %v4112 = vmin.f32 %v4111, %v1020
        %v4113 = vmin.f32 %v4112, %v1026
        %v4114 = vmin.f32 %v4113, %v1032
        %v4115 = vmin.f32 %v4114, %v1038
        %v4116 = vmin.f32 %v4115, %v1044
        %v4117 = vmin.f32 %v4116, %v1050
        %v4118 = vmin.f32 %v4117, %v1056
        %v4119 = vmin.f32 %v4118, %v1062
        %v4120 = vmin.f32 %v4119, %v1068
        %v4121 = vmin.f32 %v4120, %v1074
        %v4122 = vmin.f32 %v4121, %v1080
        %v4123 = vmin.f32 %v4122, %v1086
        %v4124 = vmin.f32 %v4123, %v1092
        %v4125 = vmin.f32 %v4124, %v1098
        %v4126 = vmin.f32 %v4125, %v1104
        %v4127 = vmin.f32 %v4126, %v1110
        %v4128 = vmin.f32 %v4127, %v1116
        %v4129 = vmin.f32 %v4128, %v1122
        %v4130 = vmin.f32 %v4129, %v1128
        %v4131 = vmin.f32 %v4130, %v1134
        %v4132 = vmin.f32 %v4131, %v1140
        %v4133 = vmin.f32 %v4132, %v1146
        %v4134 = vmin.f32 %v4133, %v1152
        %v4135 = vmin.f32 %v4134, %v1158
        %v4136 = vmin.f32 %v4135, %v1164
        %v4137 = vmin.f32 %v4136, %v1170
        %v4138 = vmin.f32 %v4137, %v1176
        %v4139 = vmin.f32 %v4138, %v1182
        %v4140 = vmin.f32 %v4139, %v1188
        %v4141 = vmin.f32 %v4140, %v1194
        %v4142 = vmin.f32 %v4141, %v1200
        %v4143 = vmin.f32 %v4142, %v1206
        %v4144 = vmin.f32 %v4143, %v1212
        %v4145 = vmin.f32 %v4144, %v1218
        %v4146 = vmin.f32 %v4145, %v1224
        %v4147 = vmin.f32 %v4146, %v1230
        %v4148 = vmin.f32 %v4147, %v1236
        %v4149 = vmin.f32 %v4148, %v1242
        %v4150 = vmin.f32 %v4149, %v1248
        %v4151 = vmin.f32 %v4150, %v1254
        %v4152 = vmin.f32 %v4151, %v1260
        %v4153 = vmin.f32 %v4152, %v1266
        %v4154 = vmin.f32 %v4153, %v1272
        %v4155 = vmin.f32 %v4154, %v1278
        %v4156 = vmin.f32 %v4155, %v1284
        %v4157 = vmin.f32 %v4156, %v1290
        %v4158 = vmin.f32 %v4157, %v1296
        %v4159 = vmin.f32 %v4158, %v1302
        %v4160 = vmin.f32 %v4159, %v1308
        %v4161 = vmin.f32 %v4160, %v1314
        %v4162 = vmin.f32 %v4161, %v1320
        %v4163 = vmin.f32 %v4162, %v1326
        %v4164 = vmin.f32 %v4163, %v1332
        %v4165 = vmin.f32 %v4164, %v1338
        %v4166 = vmin.f32 %v4165, %v1344
        %v4167 = vmin.f32 %v4166, %v1350
        %v4168 = vmin.f32 %v4167, %v1356
        %v4169 = vmin.f32 %v4168, %v1362
        %v4170 = vmin.f32 %v4169, %v1368
        %v4171 = vmin.f32 %v4170, %v1374
        %v4172 = vmin.f32 %v4171, %v1380
        %v4173 = vmin.f32 %v4172, %v1386
        %v4174 = vmin.f32 %v4173, %v1392
        %v4175 = vmin.f32 %v4174, %v1398
        %v4176 = vmin.f32 %v4175, %v1404
        %v4177 = vmin.f32 %v4176, %v1410
        %v4178 = vmin.f32 %v4177, %v1416
        %v4179 = vmin.f32 %v4178, %v1422
        %v4180 = vmin.f32 %v4179, %v1428
        %v4181 = vmin.f32 %v4180, %v1434
        %v4182 = vmin.f32 %v4181, %v1440
        %v4183 = vmin.f32 %v4182, %v1446
        %v4184 = vmin.f32 %v4183, %v1452
        %v4185 = vmin.f32 %v4184, %v1458
        %v4186 = vmin.f32 %v4185, %v1464
        %v4187 = vrot.slane %v4186, 4
        %v4188 = vmin.f32 %v4186, %v4187
        %v4189 = vrot.slane %v4188, 2
        %v4190 = vmin.f32 %v4188, %v4189
        %v4191 = vrot.slane %v4190, 1
        %v4192 = vmin.f32 %v4190, %v4191
        %v4193 = vmin.f32 %v1468, %v1474
        %v4194 = vmin.f32 %v4193, %v1480
        %v4195 = vmin.f32 %v4194, %v1486
        %v4196 = vmin.f32 %v4195, %v1492
        %v4197 = vmin.f32 %v4196, %v1498
        %v4198 = vmin.f32 %v4197, %v1504
        %v4199 = vmin.f32 %v4198, %v1510
        %v4200 = vmin.f32 %v4199, %v1516
        %v4201 = vmin.f32 %v4200, %v1522
        %v4202 = vmin.f32 %v4201, %v1528
        %v4203 = vmin.f32 %v4202, %v1534
        %v4204 = vmin.f32 %v4203, %v1540
        %v4205 = vmin.f32 %v4204, %v1546
        %v4206 = vmin.f32 %v4205, %v1552
        %v4207 = vmin.f32 %v4206, %v1558
        %v4208 = vmin.f32 %v4207, %v1564
        %v4209 = vmin.f32 %v4208, %v1570
        %v4210 = vmin.f32 %v4209, %v1576
        %v4211 = vmin.f32 %v4210, %v1582
        %v4212 = vmin.f32 %v4211, %v1588
        %v4213 = vmin.f32 %v4212, %v1594
        %v4214 = vmin.f32 %v4213, %v1600
        %v4215 = vmin.f32 %v4214, %v1606
        %v4216 = vmin.f32 %v4215, %v1612
        %v4217 = vmin.f32 %v4216, %v1618
        %v4218 = vmin.f32 %v4217, %v1624
        %v4219 = vmin.f32 %v4218, %v1630
        %v4220 = vmin.f32 %v4219, %v1636
        %v4221 = vmin.f32 %v4220, %v1642
        %v4222 = vmin.f32 %v4221, %v1648
        %v4223 = vmin.f32 %v4222, %v1654
        %v4224 = vmin.f32 %v4223, %v1660
        %v4225 = vmin.f32 %v4224, %v1666
        %v4226 = vmin.f32 %v4225, %v1672
        %v4227 = vmin.f32 %v4226, %v1678
        %v4228 = vmin.f32 %v4227, %v1684
        %v4229 = vmin.f32 %v4228, %v1690
        %v4230 = vmin.f32 %v4229, %v1696
        %v4231 = vmin.f32 %v4230, %v1702
        %v4232 = vmin.f32 %v4231, %v1708
        %v4233 = vmin.f32 %v4232, %v1714
        %v4234 = vmin.f32 %v4233, %v1720
        %v4235 = vmin.f32 %v4234, %v1726
        %v4236 = vmin.f32 %v4235, %v1732
        %v4237 = vmin.f32 %v4236, %v1738
        %v4238 = vmin.f32 %v4237, %v1744
        %v4239 = vmin.f32 %v4238, %v1750
        %v4240 = vmin.f32 %v4239, %v1756
        %v4241 = vmin.f32 %v4240, %v1762
        %v4242 = vmin.f32 %v4241, %v1768
        %v4243 = vmin.f32 %v4242, %v1774
        %v4244 = vmin.f32 %v4243, %v1780
        %v4245 = vmin.f32 %v4244, %v1786
        %v4246 = vmin.f32 %v4245, %v1792
        %v4247 = vmin.f32 %v4246, %v1798
        %v4248 = vmin.f32 %v4247, %v1804
        %v4249 = vmin.f32 %v4248, %v1810
        %v4250 = vmin.f32 %v4249, %v1816
        %v4251 = vmin.f32 %v4250, %v1822
        %v4252 = vmin.f32 %v4251, %v1828
        %v4253 = vmin.f32 %v4252, %v1834
        %v4254 = vmin.f32 %v4253, %v1840
        %v4255 = vmin.f32 %v4254, %v1846
        %v4256 = vmin.f32 %v4255, %v1852
        %v4257 = vmin.f32 %v4256, %v1858
        %v4258 = vmin.f32 %v4257, %v1864
        %v4259 = vmin.f32 %v4258, %v1870
        %v4260 = vmin.f32 %v4259, %v1876
        %v4261 = vmin.f32 %v4260, %v1882
        %v4262 = vmin.f32 %v4261, %v1888
        %v4263 = vmin.f32 %v4262, %v1894
        %v4264 = vmin.f32 %v4263, %v1900
        %v4265 = vmin.f32 %v4264, %v1906
        %v4266 = vmin.f32 %v4265, %v1912
        %v4267 = vmin.f32 %v4266, %v1918
        %v4268 = vmin.f32 %v4267, %v1924
        %v4269 = vmin.f32 %v4268, %v1930
        %v4270 = vmin.f32 %v4269, %v1936
        %v4271 = vmin.f32 %v4270, %v1942
        %v4272 = vmin.f32 %v4271, %v1948
        %v4273 = vmin.f32 %v4272, %v1954
        %v4274 = vmin.f32 %v4273, %v1960
        %v4275 = vmin.f32 %v4274, %v1966
        %v4276 = vmin.f32 %v4275, %v1972
        %v4277 = vmin.f32 %v4276, %v1978
        %v4278 = vmin.f32 %v4277, %v1984
        %v4279 = vmin.f32 %v4278, %v1990
        %v4280 = vmin.f32 %v4279, %v1996
        %v4281 = vmin.f32 %v4280, %v2002
        %v4282 = vmin.f32 %v4281, %v2008
        %v4283 = vmin.f32 %v4282, %v2014
        %v4284 = vmin.f32 %v4283, %v2020
        %v4285 = vmin.f32 %v4284, %v2026
        %v4286 = vmin.f32 %v4285, %v2032
        %v4287 = vmin.f32 %v4286, %v2038
        %v4288 = vmin.f32 %v4287, %v2044
        %v4289 = vmin.f32 %v4288, %v2050
        %v4290 = vmin.f32 %v4289, %v2056
        %v4291 = vmin.f32 %v4290, %v2062
        %v4292 = vmin.f32 %v4291, %v2068
        %v4293 = vmin.f32 %v4292, %v2074
        %v4294 = vmin.f32 %v4293, %v2080
        %v4295 = vmin.f32 %v4294, %v2086
        %v4296 = vmin.f32 %v4295, %v2092
        %v4297 = vmin.f32 %v4296, %v2098
        %v4298 = vmin.f32 %v4297, %v2104
        %v4299 = vmin.f32 %v4298, %v2110
        %v4300 = vmin.f32 %v4299, %v2116
        %v4301 = vmin.f32 %v4300, %v2122
        %v4302 = vmin.f32 %v4301, %v2128
        %v4303 = vmin.f32 %v4302, %v2134
        %v4304 = vmin.f32 %v4303, %v2140
        %v4305 = vmin.f32 %v4304, %v2146
        %v4306 = vmin.f32 %v4305, %v2152
        %v4307 = vmin.f32 %v4306, %v2158
        %v4308 = vmin.f32 %v4307, %v2164
        %v4309 = vmin.f32 %v4308, %v2170
        %v4310 = vmin.f32 %v4309, %v2176
        %v4311 = vmin.f32 %v4310, %v2182
        %v4312 = vmin.f32 %v4311, %v2188
        %v4313 = vmin.f32 %v4312, %v2194
        %v4314 = vmin.f32 %v4313, %v2200
        %v4315 = vmin.f32 %v4314, %v2206
        %v4316 = vmin.f32 %v4315, %v2212
        %v4317 = vmin.f32 %v4316, %v2218
        %v4318 = vmin.f32 %v4317, %v2224
        %v4319 = vmin.f32 %v4318, %v2230
        %v4320 = vrot.slane %v4319, 4
        %v4321 = vmin.f32 %v4319, %v4320
        %v4322 = vrot.slane %v4321, 2
        %v4323 = vmin.f32 %v4321, %v4322
        %v4324 = vrot.slane %v4323, 1
        %v4325 = vmin.f32 %v4323, %v4324
        %v4326 = vmin.f32 %v1470, %v1476
        %v4327 = vmin.f32 %v4326, %v1482
        %v4328 = vmin.f32 %v4327, %v1488
        %v4329 = vmin.f32 %v4328, %v1494
        %v4330 = vmin.f32 %v4329, %v1500
        %v4331 = vmin.f32 %v4330, %v1506
        %v4332 = vmin.f32 %v4331, %v1512
        %v4333 = vmin.f32 %v4332, %v1518
        %v4334 = vmin.f32 %v4333, %v1524
        %v4335 = vmin.f32 %v4334, %v1530
        %v4336 = vmin.f32 %v4335, %v1536
        %v4337 = vmin.f32 %v4336, %v1542
        %v4338 = vmin.f32 %v4337, %v1548
        %v4339 = vmin.f32 %v4338, %v1554
        %v4340 = vmin.f32 %v4339, %v1560
        %v4341 = vmin.f32 %v4340, %v1566
        %v4342 = vmin.f32 %v4341, %v1572
        %v4343 = vmin.f32 %v4342, %v1578
        %v4344 = vmin.f32 %v4343, %v1584
        %v4345 = vmin.f32 %v4344, %v1590
        %v4346 = vmin.f32 %v4345, %v1596
        %v4347 = vmin.f32 %v4346, %v1602
        %v4348 = vmin.f32 %v4347, %v1608
        %v4349 = vmin.f32 %v4348, %v1614
        %v4350 = vmin.f32 %v4349, %v1620
        %v4351 = vmin.f32 %v4350, %v1626
        %v4352 = vmin.f32 %v4351, %v1632
        %v4353 = vmin.f32 %v4352, %v1638
        %v4354 = vmin.f32 %v4353, %v1644
        %v4355 = vmin.f32 %v4354, %v1650
        %v4356 = vmin.f32 %v4355, %v1656
        %v4357 = vmin.f32 %v4356, %v1662
        %v4358 = vmin.f32 %v4357, %v1668
        %v4359 = vmin.f32 %v4358, %v1674
        %v4360 = vmin.f32 %v4359, %v1680
        %v4361 = vmin.f32 %v4360, %v1686
        %v4362 = vmin.f32 %v4361, %v1692
        %v4363 = vmin.f32 %v4362, %v1698
        %v4364 = vmin.f32 %v4363, %v1704
        %v4365 = vmin.f32 %v4364, %v1710
        %v4366 = vmin.f32 %v4365, %v1716
        %v4367 = vmin.f32 %v4366, %v1722
        %v4368 = vmin.f32 %v4367, %v1728
        %v4369 = vmin.f32 %v4368, %v1734
        %v4370 = vmin.f32 %v4369, %v1740
        %v4371 = vmin.f32 %v4370, %v1746
        %v4372 = vmin.f32 %v4371, %v1752
        %v4373 = vmin.f32 %v4372, %v1758
        %v4374 = vmin.f32 %v4373, %v1764
        %v4375 = vmin.f32 %v4374, %v1770
        %v4376 = vmin.f32 %v4375, %v1776
        %v4377 = vmin.f32 %v4376, %v1782
        %v4378 = vmin.f32 %v4377, %v1788
        %v4379 = vmin.f32 %v4378, %v1794
        %v4380 = vmin.f32 %v4379, %v1800
        %v4381 = vmin.f32 %v4380, %v1806
        %v4382 = vmin.f32 %v4381, %v1812
        %v4383 = vmin.f32 %v4382, %v1818
        %v4384 = vmin.f32 %v4383, %v1824
        %v4385 = vmin.f32 %v4384, %v1830
        %v4386 = vmin.f32 %v4385, %v1836
        %v4387 = vmin.f32 %v4386, %v1842
        %v4388 = vmin.f32 %v4387, %v1848
        %v4389 = vmin.f32 %v4388, %v1854
        %v4390 = vmin.f32 %v4389, %v1860
        %v4391 = vmin.f32 %v4390, %v1866
        %v4392 = vmin.f32 %v4391, %v1872
        %v4393 = vmin.f32 %v4392, %v1878
        %v4394 = vmin.f32 %v4393, %v1884
        %v4395 = vmin.f32 %v4394, %v1890
        %v4396 = vmin.f32 %v4395, %v1896
        %v4397 = vmin.f32 %v4396, %v1902
        %v4398 = vmin.f32 %v4397, %v1908
        %v4399 = vmin.f32 %v4398, %v1914
        %v4400 = vmin.f32 %v4399, %v1920
        %v4401 = vmin.f32 %v4400, %v1926
        %v4402 = vmin.f32 %v4401, %v1932
        %v4403 = vmin.f32 %v4402, %v1938
        %v4404 = vmin.f32 %v4403, %v1944
        %v4405 = vmin.f32 %v4404, %v1950
        %v4406 = vmin.f32 %v4405, %v1956
        %v4407 = vmin.f32 %v4406, %v1962
        %v4408 = vmin.f32 %v4407, %v1968
        %v4409 = vmin.f32 %v4408, %v1974
        %v4410 = vmin.f32 %v4409, %v1980
        %v4411 = vmin.f32 %v4410, %v1986
        %v4412 = vmin.f32 %v4411, %v1992
        %v4413 = vmin.f32 %v4412, %v1998
        %v4414 = vmin.f32 %v4413, %v2004
        %v4415 = vmin.f32 %v4414, %v2010
        %v4416 = vmin.f32 %v4415, %v2016
        %v4417 = vmin.f32 %v4416, %v2022
        %v4418 = vmin.f32 %v4417, %v2028
        %v4419 = vmin.f32 %v4418, %v2034
        %v4420 = vmin.f32 %v4419, %v2040
        %v4421 = vmin.f32 %v4420, %v2046
        %v4422 = vmin.f32 %v4421, %v2052
        %v4423 = vmin.f32 %v4422, %v2058
        %v4424 = vmin.f32 %v4423, %v2064
        %v4425 = vmin.f32 %v4424, %v2070
        %v4426 = vmin.f32 %v4425, %v2076
        %v4427 = vmin.f32 %v4426, %v2082
        %v4428 = vmin.f32 %v4427, %v2088
        %v4429 = vmin.f32 %v4428, %v2094
        %v4430 = vmin.f32 %v4429, %v2100
        %v4431 = vmin.f32 %v4430, %v2106
        %v4432 = vmin.f32 %v4431, %v2112
        %v4433 = vmin.f32 %v4432, %v2118
        %v4434 = vmin.f32 %v4433, %v2124
        %v4435 = vmin.f32 %v4434, %v2130
        %v4436 = vmin.f32 %v4435, %v2136
        %v4437 = vmin.f32 %v4436, %v2142
        %v4438 = vmin.f32 %v4437, %v2148
        %v4439 = vmin.f32 %v4438, %v2154
        %v4440 = vmin.f32 %v4439, %v2160
        %v4441 = vmin.f32 %v4440, %v2166
        %v4442 = vmin.f32 %v4441, %v2172
        %v4443 = vmin.f32 %v4442, %v2178
        %v4444 = vmin.f32 %v4443, %v2184
        %v4445 = vmin.f32 %v4444, %v2190
        %v4446 = vmin.f32 %v4445, %v2196
        %v4447 = vmin.f32 %v4446, %v2202
        %v4448 = vmin.f32 %v4447, %v2208
        %v4449 = vmin.f32 %v4448, %v2214
        %v4450 = vmin.f32 %v4449, %v2220
        %v4451 = vmin.f32 %v4450, %v2226
        %v4452 = vmin.f32 %v4451, %v2232
        %v4453 = vrot.slane %v4452, 4
        %v4454 = vmin.f32 %v4452, %v4453
        %v4455 = vrot.slane %v4454, 2
        %v4456 = vmin.f32 %v4454, %v4455
        %v4457 = vrot.slane %v4456, 1
        %v4458 = vmin.f32 %v4456, %v4457
        %v4460 = vlaneseq
        %v4461 = vshrl.u32 %v4460, 7
        %v4462 = vsub.s32 0, %v4461
        %v4463 = vrot.slane %v3373, %v4462
        %v4464 = vlaneseq
        %v4465 = vshrl.u32 %v4464, 7
        %v4466 = vsub.s32 1, %v4465
        %v4467 = vrot.slane %v3373, %v4466
        %vm4474 = vcmask 1041409
        %v4475 = vsel %vm4474, %v3793, %v3527
        %v4476 = vsel %vm4474, %v3926, %v3660
        %v4479 = vmul.f32 %v4463, %v4475
        %v4480 = vmul.f32 %v4467, %v4476
        %v4482 = vlaneseq
        %v4483 = vshrl.u32 %v4482, 7
        %v4484 = vsub.s32 0, %v4483
        %v4485 = vrot.slane %v3394, %v4484
        %v4486 = vlaneseq
        %v4487 = vshrl.u32 %v4486, 7
        %v4488 = vsub.s32 1, %v4487
        %v4489 = vrot.slane %v3394, %v4488
        %v4492 = vadd.f32 %v4479, %v4485
        %v4493 = vadd.f32 %v4480, %v4489
        %v4498 = vsel %vm4474, %v4325, %v4059
        %v4499 = vsel %vm4474, %v4458, %v4192
        %v4502 = vmul.f32 %v4463, %v4498
        %v4503 = vmul.f32 %v4467, %v4499
        %v4504 = vadd.f32 %v4502, %v4485
        %v4505 = vadd.f32 %v4503, %v4489
        %v4506 = vmax.f32 %v4492, %v4504
        %v4507 = vmax.f32 %v4493, %v4505
        %v4508 = vmax.f32 %v4506, 0.0
        %v4509 = vmax.f32 %v4507, 0.0
        %v4512 = vcombine.low %v4508, %v4509
        %v4514 = vunpack.c.l.s4 1983009808
        %v4515 = vunpack.c.0.s8 %v4514
        %v4516 = vlaneseq
        %v4517 = vshrl.u32 %v4516, 7
        %v4518 = vsub.s32 %v4515, %v4517
        %v4519 = vrot.slane %v4512, %v4518
        %4521 = vst [vmem:[%s332] sm:$0xf] %v4519
        %s4522 = sand.u32 %s147, 1
        %s4523 = scalar_lea.sflag [#allocation4], %s4522
        %s4524 = sand.u32 %s147, 1
        %s4525 = smul.addr %s4524, 4
        %s4526 = scalar_lea.vmem [#allocation3], %s4525
        // Predicated region
        $region64: #{t_net_2_pooled.3} parent=58 // pred_check
          %p4527 = pneg %p157
        $region65: #{t_net_2_pooled.3} parent=58 // pred_check_branch
          %4529 = sbr.rel (%p4527) target = $region67
        $region66: #{t_net_2_pooled.3} parent=58 // pred_region
          %s4530 = smul.u32 2, %s19
          %s4532 = ssub.s32 64, 64
          %4533 = vsyncadd %s4523, %s4532
          %s4534 = smul.addr %s4530, 32
          %s4535 = scalar_lea.hbm %s5, %s4534
          %s4537 = sshll.u32 %s4526, 4
          %s4538 = int_to_ptr.vmem [resolvable:$true] %s4537
          %4540 = dma.vmem_to_hbm [thread:$0]  %s4538, 64, %s4535, %s4523
        $region67: #{t_net_2_pooled.3} parent=58 // pred_fallthru
          _
      $region59: #{t_net_2_pooled.3} parent=5 // pred_fallthru
        _
      %p4541 = scmp.le.s32.totalorder 2, %s14
      // Predicated region
      $region68: #{t_net_2_pooled.3} parent=5 // pred_check
        %p4542 = pneg %p4541
      $region69: #{t_net_2_pooled.3} parent=5 // pred_check_branch
        %4544 = sbr.rel (%p4542) target = $region71
      $region70: #{t_net_2_pooled.3} parent=5 // pred_region
        %s4545 = ssub.s32 %s14, 2
        // Predicated region
        $region72: #{t_net_2_pooled.3} parent=70 // pred_check
          %p4546 = pneg %p163
        $region73: #{t_net_2_pooled.3} parent=70 // pred_check_branch
          %4548 = sbr.rel (%p4546) target = $region75
        $region74: #{t_net_2_pooled.3} parent=70 // pred_region
          %s4549 = sand.u32 %s148, 1
          %s4550 = scalar_lea.sflag [#allocation4], %s4549
          %s4551 = sand.u32 %s148, 1
          %s4552 = smul.addr %s4551, 4
          %s4553 = scalar_lea.vmem [#allocation3], %s4552
          %4554 = dma.done %s4550, 64
        $region75: #{t_net_2_pooled.3} parent=70 // pred_fallthru
          _
      $region71: #{t_net_2_pooled.3} parent=5 // pred_fallthru
        _
    $region6: #{t_net_2_pooled.3} parent=1 // loop_footer
      %s18 = sadd.s32 1, %s14
    $region7: #{t_net_2_pooled.3} parent=1 // loop_footer_branch
      %13 = sbr.rel target = $region3
    $region8: #{t_net_2_pooled.3} parent=1 // loop_exit
      _
    %4555 = vsyncpa [#allocation4], 1
    %s4556 = scalar_lea.sflag [#allocation4], 1
    %4557 = vsyncpa %s4556, 1

// kernel: t_net_2_pooled.2
$region0: #{t_net_2_pooled.2}
  #allocation0 [shape = 'u32[]', space=smem, size = 0x4, offset = 0x4, fixed_abs, tag = 'smem constant byte address 0x4 - core index']
  #allocation1 [shape = 'u32[144,128]{1,0:T(1,128)}', space=vmem, size = 0x12000, scoped, tag = 'internal scratch']
  %s0 = inlined_call_operand.vmem [shape: f32[2,1024,64], index: 0, kind: input, shape index: {}]
  %s1 = inlined_call_operand.vmem [shape: f32[64,128], index: 1, kind: input, shape index: {}]
  %s2 = inlined_call_operand.vmem [shape: f32[1,128], index: 2, kind: input, shape index: {}]
  %s3 = inlined_call_operand.vmem [shape: f32[1,128], index: 3, kind: input, shape index: {}]
  %s4 = inlined_call_operand.vmem [shape: f32[2048,128], index: 4, kind: output, shape index: {0}]
  %s5 = inlined_call_operand.vmem [shape: f32[1,128], index: 5, kind: output, shape index: {1}]
  %6 = xla_tuple %s4, %s5
  %s7 = sld [smem:[#allocation0]]
  $region34: #{t_net_2_pooled.2} parent=0
    _
  %s9 = ssub.s32 1, %s7
  %s10 = scalar_select 0, %s9, %s7
  // Predicated region
  $region2: #{t_net_2_pooled.2} parent=0 // pred_check
    _
  $region3: #{t_net_2_pooled.2} parent=0 // pred_check_branch
    %12 = sbr.rel (0) target = $region5
  $region4: #{t_net_2_pooled.2} parent=0 // pred_region
    _
  $region5: #{t_net_2_pooled.2} parent=0 // pred_fallthru
    _
  // Predicated region
  $region6: #{t_net_2_pooled.2} parent=0 // pred_check
    _
  $region7: #{t_net_2_pooled.2} parent=0 // pred_check_branch
    %14 = sbr.rel (0) target = $region9
  $region8: #{t_net_2_pooled.2} parent=0 // pred_region
    _
  $region9: #{t_net_2_pooled.2} parent=0 // pred_fallthru
    _
  // Predicated region
  $region10: #{t_net_2_pooled.2} parent=0 // pred_check
    _
  $region11: #{t_net_2_pooled.2} parent=0 // pred_check_branch
    %16 = sbr.rel (0) target = $region13
  $region12: #{t_net_2_pooled.2} parent=0 // pred_region
    _
  $region13: #{t_net_2_pooled.2} parent=0 // pred_fallthru
    _
  // Predicated region
  $region14: #{t_net_2_pooled.2} parent=0 // pred_check
    _
  $region15: #{t_net_2_pooled.2} parent=0 // pred_check_branch
    %18 = sbr.rel (0) target = $region17
  $region16: #{t_net_2_pooled.2} parent=0 // pred_region
    _
  $region17: #{t_net_2_pooled.2} parent=0 // pred_fallthru
    _
  %v19 = vld [vmem:[%s0] sm:$0xff]
  %v20 = vld [vmem:[%s0 + $0x8] sm:$0xff]
  %v21 = vld [vmem:[%s0 + $0x10] sm:$0xff]
  %v22 = vld [vmem:[%s0 + $0x18] sm:$0xff]
  %v23 = vld [vmem:[%s0 + $0x20] sm:$0xff]
  %v24 = vld [vmem:[%s0 + $0x28] sm:$0xff]
  %v25 = vld [vmem:[%s0 + $0x30] sm:$0xff]
  %v26 = vld [vmem:[%s0 + $0x38] sm:$0xff]
  %v27 = vld [vmem:[%s0 + $0x40] sm:$0xff]
  %v28 = vld [vmem:[%s0 + $0x48] sm:$0xff]
  %v29 = vld [vmem:[%s0 + $0x50] sm:$0xff]
  %v30 = vld [vmem:[%s0 + $0x58] sm:$0xff]
  %v31 = vld [vmem:[%s0 + $0x60] sm:$0xff]
  %v32 = vld [vmem:[%s0 + $0x68] sm:$0xff]
  %v33 = vld [vmem:[%s0 + $0x70] sm:$0xff]
  %v34 = vld [vmem:[%s0 + $0x78] sm:$0xff]
  %v35 = vld [vmem:[%s0 + $0x80] sm:$0xff]
  %v36 = vld [vmem:[%s0 + $0x88] sm:$0xff]
  %v37 = vld [vmem:[%s0 + $0x90] sm:$0xff]
  %v38 = vld [vmem:[%s0 + $0x98] sm:$0xff]
  %v39 = vld [vmem:[%s0 + $0xa0] sm:$0xff]
  %v40 = vld [vmem:[%s0 + $0xa8] sm:$0xff]
  %v41 = vld [vmem:[%s0 + $0xb0] sm:$0xff]
  %v42 = vld [vmem:[%s0 + $0xb8] sm:$0xff]
  %v43 = vld [vmem:[%s0 + $0xc0] sm:$0xff]
  %v44 = vld [vmem:[%s0 + $0xc8] sm:$0xff]
  %v45 = vld [vmem:[%s0 + $0xd0] sm:$0xff]
  %v46 = vld [vmem:[%s0 + $0xd8] sm:$0xff]
  %v47 = vld [vmem:[%s0 + $0xe0] sm:$0xff]
  %v48 = vld [vmem:[%s0 + $0xe8] sm:$0xff]
  %v49 = vld [vmem:[%s0 + $0xf0] sm:$0xff]
  %v50 = vld [vmem:[%s0 + $0xf8] sm:$0xff]
  %v51 = vld [vmem:[%s0 + $0x100] sm:$0xff]
  %v52 = vld [vmem:[%s0 + $0x108] sm:$0xff]
  %v53 = vld [vmem:[%s0 + $0x110] sm:$0xff]
  %v54 = vld [vmem:[%s0 + $0x118] sm:$0xff]
  %v55 = vld [vmem:[%s0 + $0x120] sm:$0xff]
  %v56 = vld [vmem:[%s0 + $0x128] sm:$0xff]
  %v57 = vld [vmem:[%s0 + $0x130] sm:$0xff]
  %v58 = vld [vmem:[%s0 + $0x138] sm:$0xff]
  %v59 = vld [vmem:[%s0 + $0x140] sm:$0xff]
  %v60 = vld [vmem:[%s0 + $0x148] sm:$0xff]
  %v61 = vld [vmem:[%s0 + $0x150] sm:$0xff]
  %v62 = vld [vmem:[%s0 + $0x158] sm:$0xff]
  %v63 = vld [vmem:[%s0 + $0x160] sm:$0xff]
  %v64 = vld [vmem:[%s0 + $0x168] sm:$0xff]
  %v65 = vld [vmem:[%s0 + $0x170] sm:$0xff]
  %v66 = vld [vmem:[%s0 + $0x178] sm:$0xff]
  %v67 = vld [vmem:[%s0 + $0x180] sm:$0xff]
  %v68 = vld [vmem:[%s0 + $0x188] sm:$0xff]
  %v69 = vld [vmem:[%s0 + $0x190] sm:$0xff]
  %v70 = vld [vmem:[%s0 + $0x198] sm:$0xff]
  %v71 = vld [vmem:[%s0 + $0x1a0] sm:$0xff]
  %v72 = vld [vmem:[%s0 + $0x1a8] sm:$0xff]
  %v73 = vld [vmem:[%s0 + $0x1b0] sm:$0xff]
  %v74 = vld [vmem:[%s0 + $0x1b8] sm:$0xff]
  %v75 = vld [vmem:[%s0 + $0x1c0] sm:$0xff]
  %v76 = vld [vmem:[%s0 + $0x1c8] sm:$0xff]
  %v77 = vld [vmem:[%s0 + $0x1d0] sm:$0xff]
  %v78 = vld [vmem:[%s0 + $0x1d8] sm:$0xff]
  %v79 = vld [vmem:[%s0 + $0x1e0] sm:$0xff]
  %v80 = vld [vmem:[%s0 + $0x1e8] sm:$0xff]
  %v81 = vld [vmem:[%s0 + $0x1f0] sm:$0xff]
  %v82 = vld [vmem:[%s0 + $0x1f8] sm:$0xff]
  %v83 = vld [vmem:[%s0 + $0x200] sm:$0xff]
  %v84 = vld [vmem:[%s0 + $0x208] sm:$0xff]
  %v85 = vld [vmem:[%s0 + $0x210] sm:$0xff]
  %v86 = vld [vmem:[%s0 + $0x218] sm:$0xff]
  %v87 = vld [vmem:[%s0 + $0x220] sm:$0xff]
  %v88 = vld [vmem:[%s0 + $0x228] sm:$0xff]
  %v89 = vld [vmem:[%s0 + $0x230] sm:$0xff]
  %v90 = vld [vmem:[%s0 + $0x238] sm:$0xff]
  %v91 = vld [vmem:[%s0 + $0x240] sm:$0xff]
  %v92 = vld [vmem:[%s0 + $0x248] sm:$0xff]
  %v93 = vld [vmem:[%s0 + $0x250] sm:$0xff]
  %v94 = vld [vmem:[%s0 + $0x258] sm:$0xff]
  %v95 = vld [vmem:[%s0 + $0x260] sm:$0xff]
  %v96 = vld [vmem:[%s0 + $0x268] sm:$0xff]
  %v97 = vld [vmem:[%s0 + $0x270] sm:$0xff]
  %v98 = vld [vmem:[%s0 + $0x278] sm:$0xff]
  %v99 = vld [vmem:[%s0 + $0x280] sm:$0xff]
  %v100 = vld [vmem:[%s0 + $0x288] sm:$0xff]
  %v101 = vld [vmem:[%s0 + $0x290] sm:$0xff]
  %v102 = vld [vmem:[%s0 + $0x298] sm:$0xff]
  %v103 = vld [vmem:[%s0 + $0x2a0] sm:$0xff]
  %v104 = vld [vmem:[%s0 + $0x2a8] sm:$0xff]
  %v105 = vld [vmem:[%s0 + $0x2b0] sm:$0xff]
  %v106 = vld [vmem:[%s0 + $0x2b8] sm:$0xff]
  %v107 = vld [vmem:[%s0 + $0x2c0] sm:$0xff]
  %v108 = vld [vmem:[%s0 + $0x2c8] sm:$0xff]
  %v109 = vld [vmem:[%s0 + $0x2d0] sm:$0xff]
  %v110 = vld [vmem:[%s0 + $0x2d8] sm:$0xff]
  %v111 = vld [vmem:[%s0 + $0x2e0] sm:$0xff]
  %v112 = vld [vmem:[%s0 + $0x2e8] sm:$0xff]
  %v113 = vld [vmem:[%s0 + $0x2f0] sm:$0xff]
  %v114 = vld [vmem:[%s0 + $0x2f8] sm:$0xff]
  %v115 = vld [vmem:[%s0 + $0x300] sm:$0xff]
  %v116 = vld [vmem:[%s0 + $0x308] sm:$0xff]
  %v117 = vld [vmem:[%s0 + $0x310] sm:$0xff]
  %v118 = vld [vmem:[%s0 + $0x318] sm:$0xff]
  %v119 = vld [vmem:[%s0 + $0x320] sm:$0xff]
  %v120 = vld [vmem:[%s0 + $0x328] sm:$0xff]
  %v121 = vld [vmem:[%s0 + $0x330] sm:$0xff]
  %v122 = vld [vmem:[%s0 + $0x338] sm:$0xff]
  %v123 = vld [vmem:[%s0 + $0x340] sm:$0xff]
  %v124 = vld [vmem:[%s0 + $0x348] sm:$0xff]
  %v125 = vld [vmem:[%s0 + $0x350] sm:$0xff]
  %v126 = vld [vmem:[%s0 + $0x358] sm:$0xff]
  %v127 = vld [vmem:[%s0 + $0x360] sm:$0xff]
  %v128 = vld [vmem:[%s0 + $0x368] sm:$0xff]
  %v129 = vld [vmem:[%s0 + $0x370] sm:$0xff]
  %v130 = vld [vmem:[%s0 + $0x378] sm:$0xff]
  %v131 = vld [vmem:[%s0 + $0x380] sm:$0xff]
  %v132 = vld [vmem:[%s0 + $0x388] sm:$0xff]
  %v133 = vld [vmem:[%s0 + $0x390] sm:$0xff]
  %v134 = vld [vmem:[%s0 + $0x398] sm:$0xff]
  %v135 = vld [vmem:[%s0 + $0x3a0] sm:$0xff]
  %v136 = vld [vmem:[%s0 + $0x3a8] sm:$0xff]
  %v137 = vld [vmem:[%s0 + $0x3b0] sm:$0xff]
  %v138 = vld [vmem:[%s0 + $0x3b8] sm:$0xff]
  %v139 = vld [vmem:[%s0 + $0x3c0] sm:$0xff]
  %v140 = vld [vmem:[%s0 + $0x3c8] sm:$0xff]
  %v141 = vld [vmem:[%s0 + $0x3d0] sm:$0xff]
  %v142 = vld [vmem:[%s0 + $0x3d8] sm:$0xff]
  %v143 = vld [vmem:[%s0 + $0x3e0] sm:$0xff]
  %v144 = vld [vmem:[%s0 + $0x3e8] sm:$0xff]
  %v145 = vld [vmem:[%s0 + $0x3f0] sm:$0xff]
  %v146 = vld [vmem:[%s0 + $0x3f8] sm:$0xff]
  %v147 = vld [vmem:[%s0 + $0x400] sm:$0xff]
  %v148 = vld [vmem:[%s0 + $0x408] sm:$0xff]
  %v149 = vld [vmem:[%s0 + $0x410] sm:$0xff]
  %v150 = vld [vmem:[%s0 + $0x418] sm:$0xff]
  %v151 = vld [vmem:[%s0 + $0x420] sm:$0xff]
  %v152 = vld [vmem:[%s0 + $0x428] sm:$0xff]
  %v153 = vld [vmem:[%s0 + $0x430] sm:$0xff]
  %v154 = vld [vmem:[%s0 + $0x438] sm:$0xff]
  %v155 = vld [vmem:[%s0 + $0x440] sm:$0xff]
  %v156 = vld [vmem:[%s0 + $0x448] sm:$0xff]
  %v157 = vld [vmem:[%s0 + $0x450] sm:$0xff]
  %v158 = vld [vmem:[%s0 + $0x458] sm:$0xff]
  %v159 = vld [vmem:[%s0 + $0x460] sm:$0xff]
  %v160 = vld [vmem:[%s0 + $0x468] sm:$0xff]
  %v161 = vld [vmem:[%s0 + $0x470] sm:$0xff]
  %v162 = vld [vmem:[%s0 + $0x478] sm:$0xff]
  %v163 = vld [vmem:[%s0 + $0x480] sm:$0xff]
  %v164 = vld [vmem:[%s0 + $0x488] sm:$0xff]
  %v165 = vld [vmem:[%s0 + $0x490] sm:$0xff]
  %v166 = vld [vmem:[%s0 + $0x498] sm:$0xff]
  %v167 = vld [vmem:[%s0 + $0x4a0] sm:$0xff]
  %v168 = vld [vmem:[%s0 + $0x4a8] sm:$0xff]
  %v169 = vld [vmem:[%s0 + $0x4b0] sm:$0xff]
  %v170 = vld [vmem:[%s0 + $0x4b8] sm:$0xff]
  %v171 = vld [vmem:[%s0 + $0x4c0] sm:$0xff]
  %v172 = vld [vmem:[%s0 + $0x4c8] sm:$0xff]
  %v173 = vld [vmem:[%s0 + $0x4d0] sm:$0xff]
  %v174 = vld [vmem:[%s0 + $0x4d8] sm:$0xff]
  %v175 = vld [vmem:[%s0 + $0x4e0] sm:$0xff]
  %v176 = vld [vmem:[%s0 + $0x4e8] sm:$0xff]
  %v177 = vld [vmem:[%s0 + $0x4f0] sm:$0xff]
  %v178 = vld [vmem:[%s0 + $0x4f8] sm:$0xff]
  %v179 = vld [vmem:[%s0 + $0x500] sm:$0xff]
  %v180 = vld [vmem:[%s0 + $0x508] sm:$0xff]
  %v181 = vld [vmem:[%s0 + $0x510] sm:$0xff]
  %v182 = vld [vmem:[%s0 + $0x518] sm:$0xff]
  %v183 = vld [vmem:[%s0 + $0x520] sm:$0xff]
  %v184 = vld [vmem:[%s0 + $0x528] sm:$0xff]
  %v185 = vld [vmem:[%s0 + $0x530] sm:$0xff]
  %v186 = vld [vmem:[%s0 + $0x538] sm:$0xff]
  %v187 = vld [vmem:[%s0 + $0x540] sm:$0xff]
  %v188 = vld [vmem:[%s0 + $0x548] sm:$0xff]
  %v189 = vld [vmem:[%s0 + $0x550] sm:$0xff]
  %v190 = vld [vmem:[%s0 + $0x558] sm:$0xff]
  %v191 = vld [vmem:[%s0 + $0x560] sm:$0xff]
  %v192 = vld [vmem:[%s0 + $0x568] sm:$0xff]
  %v193 = vld [vmem:[%s0 + $0x570] sm:$0xff]
  %v194 = vld [vmem:[%s0 + $0x578] sm:$0xff]
  %v195 = vld [vmem:[%s0 + $0x580] sm:$0xff]
  %v196 = vld [vmem:[%s0 + $0x588] sm:$0xff]
  %v197 = vld [vmem:[%s0 + $0x590] sm:$0xff]
  %v198 = vld [vmem:[%s0 + $0x598] sm:$0xff]
  %v199 = vld [vmem:[%s0 + $0x5a0] sm:$0xff]
  %v200 = vld [vmem:[%s0 + $0x5a8] sm:$0xff]
  %v201 = vld [vmem:[%s0 + $0x5b0] sm:$0xff]
  %v202 = vld [vmem:[%s0 + $0x5b8] sm:$0xff]
  %v203 = vld [vmem:[%s0 + $0x5c0] sm:$0xff]
  %v204 = vld [vmem:[%s0 + $0x5c8] sm:$0xff]
  %v205 = vld [vmem:[%s0 + $0x5d0] sm:$0xff]
  %v206 = vld [vmem:[%s0 + $0x5d8] sm:$0xff]
  %v207 = vld [vmem:[%s0 + $0x5e0] sm:$0xff]
  %v208 = vld [vmem:[%s0 + $0x5e8] sm:$0xff]
  %v209 = vld [vmem:[%s0 + $0x5f0] sm:$0xff]
  %v210 = vld [vmem:[%s0 + $0x5f8] sm:$0xff]
  %v211 = vld [vmem:[%s0 + $0x600] sm:$0xff]
  %v212 = vld [vmem:[%s0 + $0x608] sm:$0xff]
  %v213 = vld [vmem:[%s0 + $0x610] sm:$0xff]
  %v214 = vld [vmem:[%s0 + $0x618] sm:$0xff]
  %v215 = vld [vmem:[%s0 + $0x620] sm:$0xff]
  %v216 = vld [vmem:[%s0 + $0x628] sm:$0xff]
  %v217 = vld [vmem:[%s0 + $0x630] sm:$0xff]
  %v218 = vld [vmem:[%s0 + $0x638] sm:$0xff]
  %v219 = vld [vmem:[%s0 + $0x640] sm:$0xff]
  %v220 = vld [vmem:[%s0 + $0x648] sm:$0xff]
  %v221 = vld [vmem:[%s0 + $0x650] sm:$0xff]
  %v222 = vld [vmem:[%s0 + $0x658] sm:$0xff]
  %v223 = vld [vmem:[%s0 + $0x660] sm:$0xff]
  %v224 = vld [vmem:[%s0 + $0x668] sm:$0xff]
  %v225 = vld [vmem:[%s0 + $0x670] sm:$0xff]
  %v226 = vld [vmem:[%s0 + $0x678] sm:$0xff]
  %v227 = vld [vmem:[%s0 + $0x680] sm:$0xff]
  %v228 = vld [vmem:[%s0 + $0x688] sm:$0xff]
  %v229 = vld [vmem:[%s0 + $0x690] sm:$0xff]
  %v230 = vld [vmem:[%s0 + $0x698] sm:$0xff]
  %v231 = vld [vmem:[%s0 + $0x6a0] sm:$0xff]
  %v232 = vld [vmem:[%s0 + $0x6a8] sm:$0xff]
  %v233 = vld [vmem:[%s0 + $0x6b0] sm:$0xff]
  %v234 = vld [vmem:[%s0 + $0x6b8] sm:$0xff]
  %v235 = vld [vmem:[%s0 + $0x6c0] sm:$0xff]
  %v236 = vld [vmem:[%s0 + $0x6c8] sm:$0xff]
  %v237 = vld [vmem:[%s0 + $0x6d0] sm:$0xff]
  %v238 = vld [vmem:[%s0 + $0x6d8] sm:$0xff]
  %v239 = vld [vmem:[%s0 + $0x6e0] sm:$0xff]
  %v240 = vld [vmem:[%s0 + $0x6e8] sm:$0xff]
  %v241 = vld [vmem:[%s0 + $0x6f0] sm:$0xff]
  %v242 = vld [vmem:[%s0 + $0x6f8] sm:$0xff]
  %v243 = vld [vmem:[%s0 + $0x700] sm:$0xff]
  %v244 = vld [vmem:[%s0 + $0x708] sm:$0xff]
  %v245 = vld [vmem:[%s0 + $0x710] sm:$0xff]
  %v246 = vld [vmem:[%s0 + $0x718] sm:$0xff]
  %v247 = vld [vmem:[%s0 + $0x720] sm:$0xff]
  %v248 = vld [vmem:[%s0 + $0x728] sm:$0xff]
  %v249 = vld [vmem:[%s0 + $0x730] sm:$0xff]
  %v250 = vld [vmem:[%s0 + $0x738] sm:$0xff]
  %v251 = vld [vmem:[%s0 + $0x740] sm:$0xff]
  %v252 = vld [vmem:[%s0 + $0x748] sm:$0xff]
  %v253 = vld [vmem:[%s0 + $0x750] sm:$0xff]
  %v254 = vld [vmem:[%s0 + $0x758] sm:$0xff]
  %v255 = vld [vmem:[%s0 + $0x760] sm:$0xff]
  %v256 = vld [vmem:[%s0 + $0x768] sm:$0xff]
  %v257 = vld [vmem:[%s0 + $0x770] sm:$0xff]
  %v258 = vld [vmem:[%s0 + $0x778] sm:$0xff]
  %v259 = vld [vmem:[%s0 + $0x780] sm:$0xff]
  %v260 = vld [vmem:[%s0 + $0x788] sm:$0xff]
  %v261 = vld [vmem:[%s0 + $0x790] sm:$0xff]
  %v262 = vld [vmem:[%s0 + $0x798] sm:$0xff]
  %v263 = vld [vmem:[%s0 + $0x7a0] sm:$0xff]
  %v264 = vld [vmem:[%s0 + $0x7a8] sm:$0xff]
  %v265 = vld [vmem:[%s0 + $0x7b0] sm:$0xff]
  %v266 = vld [vmem:[%s0 + $0x7b8] sm:$0xff]
  %v267 = vld [vmem:[%s0 + $0x7c0] sm:$0xff]
  %v268 = vld [vmem:[%s0 + $0x7c8] sm:$0xff]
  %v269 = vld [vmem:[%s0 + $0x7d0] sm:$0xff]
  %v270 = vld [vmem:[%s0 + $0x7d8] sm:$0xff]
  %v271 = vld [vmem:[%s0 + $0x7e0] sm:$0xff]
  %v272 = vld [vmem:[%s0 + $0x7e8] sm:$0xff]
  %v273 = vld [vmem:[%s0 + $0x7f0] sm:$0xff]
  %v274 = vld [vmem:[%s0 + $0x7f8] sm:$0xff]
  %v275 = vld [vmem:[%s1] sm:$0xff]
  %v276 = vld [vmem:[%s1 + $0x8] sm:$0xff]
  %v277 = vld [vmem:[%s1 + $0x10] sm:$0xff]
  %v278 = vld [vmem:[%s1 + $0x18] sm:$0xff]
  %v279 = vld [vmem:[%s1 + $0x20] sm:$0xff]
  %v280 = vld [vmem:[%s1 + $0x28] sm:$0xff]
  %v281 = vld [vmem:[%s1 + $0x30] sm:$0xff]
  %v282 = vld [vmem:[%s1 + $0x38] sm:$0xff]
  %vm283 = vcmask 523264
  %v285 = vsel %vm283, %v19, 0
  %v288 = vsel %vm283, %v20, 0
  %v291 = vsel %vm283, %v21, 0
  %v294 = vsel %vm283, %v22, 0
  %v297 = vsel %vm283, %v23, 0
  %v300 = vsel %vm283, %v24, 0
  %v303 = vsel %vm283, %v25, 0
  %v306 = vsel %vm283, %v26, 0
  %v309 = vsel %vm283, %v27, 0
  %v312 = vsel %vm283, %v28, 0
  %v315 = vsel %vm283, %v29, 0
  %v318 = vsel %vm283, %v30, 0
  %v321 = vsel %vm283, %v31, 0
  %v324 = vsel %vm283, %v32, 0
  %v327 = vsel %vm283, %v33, 0
  %v330 = vsel %vm283, %v34, 0
  %v333 = vsel %vm283, %v35, 0
  %v336 = vsel %vm283, %v36, 0
  %v339 = vsel %vm283, %v37, 0
  %v342 = vsel %vm283, %v38, 0
  %v345 = vsel %vm283, %v39, 0
  %v348 = vsel %vm283, %v40, 0
  %v351 = vsel %vm283, %v41, 0
  %v354 = vsel %vm283, %v42, 0
  %v357 = vsel %vm283, %v43, 0
  %v360 = vsel %vm283, %v44, 0
  %v363 = vsel %vm283, %v45, 0
  %v366 = vsel %vm283, %v46, 0
  %v369 = vsel %vm283, %v47, 0
  %v372 = vsel %vm283, %v48, 0
  %v375 = vsel %vm283, %v49, 0
  %v378 = vsel %vm283, %v50, 0
  %v381 = vsel %vm283, %v51, 0
  %v384 = vsel %vm283, %v52, 0
  %v387 = vsel %vm283, %v53, 0
  %v390 = vsel %vm283, %v54, 0
  %v393 = vsel %vm283, %v55, 0
  %v396 = vsel %vm283, %v56, 0
  %v399 = vsel %vm283, %v57, 0
  %v402 = vsel %vm283, %v58, 0
  %v405 = vsel %vm283, %v59, 0
  %v408 = vsel %vm283, %v60, 0
  %v411 = vsel %vm283, %v61, 0
  %v414 = vsel %vm283, %v62, 0
  %v417 = vsel %vm283, %v63, 0
  %v420 = vsel %vm283, %v64, 0
  %v423 = vsel %vm283, %v65, 0
  %v426 = vsel %vm283, %v66, 0
  %v429 = vsel %vm283, %v67, 0
  %v432 = vsel %vm283, %v68, 0
  %v435 = vsel %vm283, %v69, 0
  %v438 = vsel %vm283, %v70, 0
  %v441 = vsel %vm283, %v71, 0
  %v444 = vsel %vm283, %v72, 0
  %v447 = vsel %vm283, %v73, 0
  %v450 = vsel %vm283, %v74, 0
  %v453 = vsel %vm283, %v75, 0
  %v456 = vsel %vm283, %v76, 0
  %v459 = vsel %vm283, %v77, 0
  %v462 = vsel %vm283, %v78, 0
  %v465 = vsel %vm283, %v79, 0
  %v468 = vsel %vm283, %v80, 0
  %v471 = vsel %vm283, %v81, 0
  %v474 = vsel %vm283, %v82, 0
  %v477 = vsel %vm283, %v83, 0
  %v480 = vsel %vm283, %v84, 0
  %v483 = vsel %vm283, %v85, 0
  %v486 = vsel %vm283, %v86, 0
  %v489 = vsel %vm283, %v87, 0
  %v492 = vsel %vm283, %v88, 0
  %v495 = vsel %vm283, %v89, 0
  %v498 = vsel %vm283, %v90, 0
  %v501 = vsel %vm283, %v91, 0
  %v504 = vsel %vm283, %v92, 0
  %v507 = vsel %vm283, %v93, 0
  %v510 = vsel %vm283, %v94, 0
  %v513 = vsel %vm283, %v95, 0
  %v516 = vsel %vm283, %v96, 0
  %v519 = vsel %vm283, %v97, 0
  %v522 = vsel %vm283, %v98, 0
  %v525 = vsel %vm283, %v99, 0
  %v528 = vsel %vm283, %v100, 0
  %v531 = vsel %vm283, %v101, 0
  %v534 = vsel %vm283, %v102, 0
  %v537 = vsel %vm283, %v103, 0
  %v540 = vsel %vm283, %v104, 0
  %v543 = vsel %vm283, %v105, 0
  %v546 = vsel %vm283, %v106, 0
  %v549 = vsel %vm283, %v107, 0
  %v552 = vsel %vm283, %v108, 0
  %v555 = vsel %vm283, %v109, 0
  %v558 = vsel %vm283, %v110, 0
  %v561 = vsel %vm283, %v111, 0
  %v564 = vsel %vm283, %v112, 0
  %v567 = vsel %vm283, %v113, 0
  %v570 = vsel %vm283, %v114, 0
  %v573 = vsel %vm283, %v115, 0
  %v576 = vsel %vm283, %v116, 0
  %v579 = vsel %vm283, %v117, 0
  %v582 = vsel %vm283, %v118, 0
  %v585 = vsel %vm283, %v119, 0
  %v588 = vsel %vm283, %v120, 0
  %v591 = vsel %vm283, %v121, 0
  %v594 = vsel %vm283, %v122, 0
  %v597 = vsel %vm283, %v123, 0
  %v600 = vsel %vm283, %v124, 0
  %v603 = vsel %vm283, %v125, 0
  %v606 = vsel %vm283, %v126, 0
  %v609 = vsel %vm283, %v127, 0
  %v612 = vsel %vm283, %v128, 0
  %v615 = vsel %vm283, %v129, 0
  %v618 = vsel %vm283, %v130, 0
  %v621 = vsel %vm283, %v131, 0
  %v624 = vsel %vm283, %v132, 0
  %v627 = vsel %vm283, %v133, 0
  %v630 = vsel %vm283, %v134, 0
  %v633 = vsel %vm283, %v135, 0
  %v636 = vsel %vm283, %v136, 0
  %v639 = vsel %vm283, %v137, 0
  %v642 = vsel %vm283, %v138, 0
  %v645 = vsel %vm283, %v139, 0
  %v648 = vsel %vm283, %v140, 0
  %v651 = vsel %vm283, %v141, 0
  %v654 = vsel %vm283, %v142, 0
  %v657 = vsel %vm283, %v143, 0
  %v660 = vsel %vm283, %v144, 0
  %v663 = vsel %vm283, %v145, 0
  %v666 = vsel %vm283, %v146, 0
  %v669 = vsel %vm283, %v147, 0
  %v672 = vsel %vm283, %v148, 0
  %v675 = vsel %vm283, %v149, 0
  %v678 = vsel %vm283, %v150, 0
  %v681 = vsel %vm283, %v151, 0
  %v684 = vsel %vm283, %v152, 0
  %v687 = vsel %vm283, %v153, 0
  %v690 = vsel %vm283, %v154, 0
  %v693 = vsel %vm283, %v155, 0
  %v696 = vsel %vm283, %v156, 0
  %v699 = vsel %vm283, %v157, 0
  %v702 = vsel %vm283, %v158, 0
  %v705 = vsel %vm283, %v159, 0
  %v708 = vsel %vm283, %v160, 0
  %v711 = vsel %vm283, %v161, 0
  %v714 = vsel %vm283, %v162, 0
  %v717 = vsel %vm283, %v163, 0
  %v720 = vsel %vm283, %v164, 0
  %v723 = vsel %vm283, %v165, 0
  %v726 = vsel %vm283, %v166, 0
  %v729 = vsel %vm283, %v167, 0
  %v732 = vsel %vm283, %v168, 0
  %v735 = vsel %vm283, %v169, 0
  %v738 = vsel %vm283, %v170, 0
  %v741 = vsel %vm283, %v171, 0
  %v744 = vsel %vm283, %v172, 0
  %v747 = vsel %vm283, %v173, 0
  %v750 = vsel %vm283, %v174, 0
  %v753 = vsel %vm283, %v175, 0
  %v756 = vsel %vm283, %v176, 0
  %v759 = vsel %vm283, %v177, 0
  %v762 = vsel %vm283, %v178, 0
  %v765 = vsel %vm283, %v179, 0
  %v768 = vsel %vm283, %v180, 0
  %v771 = vsel %vm283, %v181, 0
  %v774 = vsel %vm283, %v182, 0
  %v777 = vsel %vm283, %v183, 0
  %v780 = vsel %vm283, %v184, 0
  %v783 = vsel %vm283, %v185, 0
  %v786 = vsel %vm283, %v186, 0
  %v789 = vsel %vm283, %v187, 0
  %v792 = vsel %vm283, %v188, 0
  %v795 = vsel %vm283, %v189, 0
  %v798 = vsel %vm283, %v190, 0
  %v801 = vsel %vm283, %v191, 0
  %v804 = vsel %vm283, %v192, 0
  %v807 = vsel %vm283, %v193, 0
  %v810 = vsel %vm283, %v194, 0
  %v813 = vsel %vm283, %v195, 0
  %v816 = vsel %vm283, %v196, 0
  %v819 = vsel %vm283, %v197, 0
  %v822 = vsel %vm283, %v198, 0
  %v825 = vsel %vm283, %v199, 0
  %v828 = vsel %vm283, %v200, 0
  %v831 = vsel %vm283, %v201, 0
  %v834 = vsel %vm283, %v202, 0
  %v837 = vsel %vm283, %v203, 0
  %v840 = vsel %vm283, %v204, 0
  %v843 = vsel %vm283, %v205, 0
  %v846 = vsel %vm283, %v206, 0
  %v849 = vsel %vm283, %v207, 0
  %v852 = vsel %vm283, %v208, 0
  %v855 = vsel %vm283, %v209, 0
  %v858 = vsel %vm283, %v210, 0
  %v861 = vsel %vm283, %v211, 0
  %v864 = vsel %vm283, %v212, 0
  %v867 = vsel %vm283, %v213, 0
  %v870 = vsel %vm283, %v214, 0
  %v873 = vsel %vm283, %v215, 0
  %v876 = vsel %vm283, %v216, 0
  %v879 = vsel %vm283, %v217, 0
  %v882 = vsel %vm283, %v218, 0
  %v885 = vsel %vm283, %v219, 0
  %v888 = vsel %vm283, %v220, 0
  %v891 = vsel %vm283, %v221, 0
  %v894 = vsel %vm283, %v222, 0
  %v897 = vsel %vm283, %v223, 0
  %v900 = vsel %vm283, %v224, 0
  %v903 = vsel %vm283, %v225, 0
  %v906 = vsel %vm283, %v226, 0
  %v909 = vsel %vm283, %v227, 0
  %v912 = vsel %vm283, %v228, 0
  %v915 = vsel %vm283, %v229, 0
  %v918 = vsel %vm283, %v230, 0
  %v921 = vsel %vm283, %v231, 0
  %v924 = vsel %vm283, %v232, 0
  %v927 = vsel %vm283, %v233, 0
  %v930 = vsel %vm283, %v234, 0
  %v933 = vsel %vm283, %v235, 0
  %v936 = vsel %vm283, %v236, 0
  %v939 = vsel %vm283, %v237, 0
  %v942 = vsel %vm283, %v238, 0
  %v945 = vsel %vm283, %v239, 0
  %v948 = vsel %vm283, %v240, 0
  %v951 = vsel %vm283, %v241, 0
  %v954 = vsel %vm283, %v242, 0
  %v957 = vsel %vm283, %v243, 0
  %v960 = vsel %vm283, %v244, 0
  %v963 = vsel %vm283, %v245, 0
  %v966 = vsel %vm283, %v246, 0
  %v969 = vsel %vm283, %v247, 0
  %v972 = vsel %vm283, %v248, 0
  %v975 = vsel %vm283, %v249, 0
  %v978 = vsel %vm283, %v250, 0
  %v981 = vsel %vm283, %v251, 0
  %v984 = vsel %vm283, %v252, 0
  %v987 = vsel %vm283, %v253, 0
  %v990 = vsel %vm283, %v254, 0
  %v993 = vsel %vm283, %v255, 0
  %v996 = vsel %vm283, %v256, 0
  %v999 = vsel %vm283, %v257, 0
  %v1002 = vsel %vm283, %v258, 0
  %v1005 = vsel %vm283, %v259, 0
  %v1008 = vsel %vm283, %v260, 0
  %v1011 = vsel %vm283, %v261, 0
  %v1014 = vsel %vm283, %v262, 0
  %v1017 = vsel %vm283, %v263, 0
  %v1020 = vsel %vm283, %v264, 0
  %v1023 = vsel %vm283, %v265, 0
  %v1026 = vsel %vm283, %v266, 0
  %v1029 = vsel %vm283, %v267, 0
  %v1032 = vsel %vm283, %v268, 0
  %v1035 = vsel %vm283, %v269, 0
  %v1038 = vsel %vm283, %v270, 0
  %v1041 = vsel %vm283, %v271, 0
  %v1044 = vsel %vm283, %v272, 0
  %v1047 = vsel %vm283, %v273, 0
  %v1050 = vsel %vm283, %v274, 0
  %1052 = vmatprep.subr.mxu0 0.0
  %1053 = vmatpush1.msra.mxu0 %v275
  %1054 = vmatprep.subr.mxu0 0.0
  %1055 = vmatpush1.msra.mxu0 %v276
  %1056 = vmatprep.subr.mxu0 0.0
  %1057 = vmatpush1.msra.mxu0 %v277
  %1058 = vmatprep.subr.mxu0 0.0
  %1059 = vmatpush1.msra.mxu0 %v278
  %1060 = vmatprep.subr.mxu0 0.0
  %1061 = vmatpush1.msra.mxu0 %v279
  %1062 = vmatprep.subr.mxu0 0.0
  %1063 = vmatpush1.msra.mxu0 %v280
  %1064 = vmatprep.subr.mxu0 0.0
  %1065 = vmatpush1.msra.mxu0 %v281
  %1066 = vmatprep.subr.mxu0 0.0
  %1067 = vmatpush1.msra.mxu0 %v282
  %1068 = vmatprep.subr.mxu0 0.0
  %1069 = vmatpush1.msra.mxu0 0.0
  %1070 = vmatprep.subr.mxu0 0.0
  %1071 = vmatpush1.msra.mxu0 0.0
  %1072 = vmatprep.subr.mxu0 0.0
  %1073 = vmatpush1.msra.mxu0 0.0
  %1074 = vmatprep.subr.mxu0 0.0
  %1075 = vmatpush1.msra.mxu0 0.0
  %1076 = vmatprep.subr.mxu0 0.0
  %1077 = vmatpush1.msra.mxu0 0.0
  %1078 = vmatprep.subr.mxu0 0.0
  %1079 = vmatpush1.msra.mxu0 0.0
  %1080 = vmatprep.subr.mxu0 0.0
  %1081 = vmatpush1.msra.mxu0 0.0
  %1082 = vmatprep.subr.mxu0 0.0
  %1083 = vmatpush1.msra.mxu0 0.0
  %1084 = vmatprep.subr.mxu0 0.0
  %1085 = vmatpush1.msra.mxu0 0.0
  %1086 = vmatprep.subr.mxu0 0.0
  %1087 = vmatpush1.msra.mxu0 0.0
  %1088 = vmatprep.subr.mxu0 0.0
  %1089 = vmatpush1.msra.mxu0 0.0
  %1090 = vmatprep.subr.mxu0 0.0
  %1091 = vmatpush1.msra.mxu0 0.0
  %1092 = vmatprep.subr.mxu0 0.0
  %1093 = vmatpush1.msra.mxu0 0.0
  %1094 = vmatprep.subr.mxu0 0.0
  %1095 = vmatpush1.msra.mxu0 0.0
  %1096 = vmatprep.subr.mxu0 0.0
  %1097 = vmatpush1.msra.mxu0 0.0
  %1098 = vmatprep.subr.mxu0 0.0
  %1099 = vmatpush1.msra.mxu0 0.0
  %1100 = vmatprep.subr.mxu0 0.0
  %1101 = vmatpush1.msra.mxu0 0.0
  %1102 = vmatprep.subr.mxu0 0.0
  %1103 = vmatpush1.msra.mxu0 0.0
  %1104 = vmatprep.subr.mxu0 0.0
  %1105 = vmatpush1.msra.mxu0 0.0
  %1106 = vmatprep.subr.mxu0 0.0
  %1107 = vmatpush1.msra.mxu0 0.0
  %1108 = vmatprep.subr.mxu0 0.0
  %1109 = vmatpush1.msra.mxu0 0.0
  %1110 = vmatprep.subr.mxu0 0.0
  %1111 = vmatpush1.msra.mxu0 0.0
  %1112 = vmatprep.subr.mxu0 0.0
  %1113 = vmatpush1.msra.mxu0 0.0
  %1114 = vmatprep.subr.mxu0 0.0
  %1115 = vmatpush1.msra.mxu0 0.0
  %1116 = vmatprep.mubr.f32.mxu0 0.0
  %1117 = vmatmul.mubr.f32.gmra.mrb[0].mxu0 %v285
  %v1118 = vpop.f32.mrb[0].mxu0
  %v1119 = vadd.f32 0.0, %v1118
  %v1120 = vpop.f32.mrb[0].mxu0
  %1121 = vmatprep.mubr.f32.mxu0 0.0
  %1122 = vmatmul.mubr.f32.gmra.mrb[0].mxu0 %v288
  %v1123 = vpop.f32.mrb[0].mxu0
  %v1124 = vadd.f32 0.0, %v1123
  %v1125 = vpop.f32.mrb[0].mxu0
  %1126 = vmatprep.mubr.f32.mxu0 0.0
  %1127 = vmatmul.mubr.f32.gmra.mrb[0].mxu0 %v291
  %v1128 = vpop.f32.mrb[0].mxu0
  %v1129 = vadd.f32 0.0, %v1128
  %v1130 = vpop.f32.mrb[0].mxu0
  %1131 = vmatprep.mubr.f32.mxu0 0.0
  %1132 = vmatmul.mubr.f32.gmra.mrb[0].mxu0 %v294
  %v1133 = vpop.f32.mrb[0].mxu0
  %v1134 = vadd.f32 0.0, %v1133
  %v1135 = vpop.f32.mrb[0].mxu0
  %1136 = vmatprep.mubr.f32.mxu0 0.0
  %1137 = vmatmul.mubr.f32.gmra.mrb[0].mxu0 %v297
  %v1138 = vpop.f32.mrb[0].mxu0
  %v1139 = vadd.f32 0.0, %v1138
  %v1140 = vpop.f32.mrb[0].mxu0
  %1141 = vmatprep.mubr.f32.mxu0 0.0
  %1142 = vmatmul.mubr.f32.gmra.mrb[0].mxu0 %v300
  %v1143 = vpop.f32.mrb[0].mxu0
  %v1144 = vadd.f32 0.0, %v1143
  %v1145 = vpop.f32.mrb[0].mxu0
  %1146 = vmatprep.mubr.f32.mxu0 0.0
  %1147 = vmatmul.mubr.f32.gmra.mrb[0].mxu0 %v303
  %v1148 = vpop.f32.mrb[0].mxu0
  %v1149 = vadd.f32 0.0, %v1148
  %v1150 = vpop.f32.mrb[0].mxu0
  %1151 = vmatprep.mubr.f32.mxu0 0.0
  %1152 = vmatmul.mubr.f32.gmra.mrb[0].mxu0 %v306
  %v1153 = vpop.f32.mrb[0].mxu0
  %v1154 = vadd.f32 0.0, %v1153
  %v1155 = vpop.f32.mrb[0].mxu0
  %1156 = vmatprep.mubr.f32.mxu0 0.0
  %1157 = vmatmul.mubr.f32.gmra.mrb[0].mxu0 %v309
  %v1158 = vpop.f32.mrb[0].mxu0
  %v1159 = vadd.f32 0.0, %v1158
  %v1160 = vpop.f32.mrb[0].mxu0
  %1161 = vmatprep.mubr.f32.mxu0 0.0
  %1162 = vmatmul.mubr.f32.gmra.mrb[0].mxu0 %v312
  %v1163 = vpop.f32.mrb[0].mxu0
  %v1164 = vadd.f32 0.0, %v1163
  %v1165 = vpop.f32.mrb[0].mxu0
  %1166 = vmatprep.mubr.f32.mxu0 0.0
  %1167 = vmatmul.mubr.f32.gmra.mrb[0].mxu0 %v315
  %v1168 = vpop.f32.mrb[0].mxu0
  %v1169 = vadd.f32 0.0, %v1168
  %v1170 = vpop.f32.mrb[0].mxu0
  %1171 = vmatprep.mubr.f32.mxu0 0.0
  %1172 = vmatmul.mubr.f32.gmra.mrb[0].mxu0 %v318
  %v1173 = vpop.f32.mrb[0].mxu0
  %v1174 = vadd.f32 0.0, %v1173
  %v1175 = vpop.f32.mrb[0].mxu0
  %1176 = vmatprep.mubr.f32.mxu0 0.0
  %1177 = vmatmul.mubr.f32.gmra.mrb[0].mxu0 %v321
  %v1178 = vpop.f32.mrb[0].mxu0
  %v1179 = vadd.f32 0.0, %v1178
  %v1180 = vpop.f32.mrb[0].mxu0
  %1181 = vmatprep.mubr.f32.mxu0 0.0
  %1182 = vmatmul.mubr.f32.gmra.mrb[0].mxu0 %v324
  %v1183 = vpop.f32.mrb[0].mxu0
  %v1184 = vadd.f32 0.0, %v1183
  %v1185 = vpop.f32.mrb[0].mxu0
  %1186 = vmatprep.mubr.f32.mxu0 0.0
  %1187 = vmatmul.mubr.f32.gmra.mrb[0].mxu0 %v327
  %v1188 = vpop.f32.mrb[0].mxu0
  %v1189 = vadd.f32 0.0, %v1188
  %v1190 = vpop.f32.mrb[0].mxu0
  %1191 = vmatprep.mubr.f32.mxu0 0.0
  %1192 = vmatmul.mubr.f32.gmra.mrb[0].mxu0 %v330
  %v1193 = vpop.f32.mrb[0].mxu0
  %v1194 = vadd.f32 0.0, %v1193
  %v1195 = vpop.f32.mrb[0].mxu0
  %1196 = vmatprep.mubr.f32.mxu0 0.0
  %1197 = vmatmul.mubr.f32.gmra.mrb[0].mxu0 %v333
  %v1198 = vpop.f32.mrb[0].mxu0
  %v1199 = vadd.f32 0.0, %v1198
  %v1200 = vpop.f32.mrb[0].mxu0
  %1201 = vmatprep.mubr.f32.mxu0 0.0
  %1202 = vmatmul.mubr.f32.gmra.mrb[0].mxu0 %v336
  %v1203 = vpop.f32.mrb[0].mxu0
  %v1204 = vadd.f32 0.0, %v1203
  %v1205 = vpop.f32.mrb[0].mxu0
  %1206 = vmatprep.mubr.f32.mxu0 0.0
  %1207 = vmatmul.mubr.f32.gmra.mrb[0].mxu0 %v339
  %v1208 = vpop.f32.mrb[0].mxu0
  %v1209 = vadd.f32 0.0, %v1208
  %v1210 = vpop.f32.mrb[0].mxu0
  %1211 = vmatprep.mubr.f32.mxu0 0.0
  %1212 = vmatmul.mubr.f32.gmra.mrb[0].mxu0 %v342
  %v1213 = vpop.f32.mrb[0].mxu0
  %v1214 = vadd.f32 0.0, %v1213
  %v1215 = vpop.f32.mrb[0].mxu0
  %1216 = vmatprep.mubr.f32.mxu0 0.0
  %1217 = vmatmul.mubr.f32.gmra.mrb[0].mxu0 %v345
  %v1218 = vpop.f32.mrb[0].mxu0
  %v1219 = vadd.f32 0.0, %v1218
  %v1220 = vpop.f32.mrb[0].mxu0
  %1221 = vmatprep.mubr.f32.mxu0 0.0
  %1222 = vmatmul.mubr.f32.gmra.mrb[0].mxu0 %v348
  %v1223 = vpop.f32.mrb[0].mxu0
  %v1224 = vadd.f32 0.0, %v1223
  %v1225 = vpop.f32.mrb[0].mxu0
  %1226 = vmatprep.mubr.f32.mxu0 0.0
  %1227 = vmatmul.mubr.f32.gmra.mrb[0].mxu0 %v351
  %v1228 = vpop.f32.mrb[0].mxu0
  %v1229 = vadd.f32 0.0, %v1228
  %v1230 = vpop.f32.mrb[0].mxu0
  %1231 = vmatprep.mubr.f32.mxu0 0.0
  %1232 = vmatmul.mubr.f32.gmra.mrb[0].mxu0 %v354
  %v1233 = vpop.f32.mrb[0].mxu0
  %v1234 = vadd.f32 0.0, %v1233
  %v1235 = vpop.f32.mrb[0].mxu0
  %1236 = vmatprep.mubr.f32.mxu0 0.0
  %1237 = vmatmul.mubr.f32.gmra.mrb[0].mxu0 %v357
  %v1238 = vpop.f32.mrb[0].mxu0
  %v1239 = vadd.f32 0.0, %v1238
  %v1240 = vpop.f32.mrb[0].mxu0
  %1241 = vmatprep.mubr.f32.mxu0 0.0
  %1242 = vmatmul.mubr.f32.gmra.mrb[0].mxu0 %v360
  %v1243 = vpop.f32.mrb[0].mxu0
  %v1244 = vadd.f32 0.0, %v1243
  %v1245 = vpop.f32.mrb[0].mxu0
  %1246 = vmatprep.mubr.f32.mxu0 0.0
  %1247 = vmatmul.mubr.f32.gmra.mrb[0].mxu0 %v363
  %v1248 = vpop.f32.mrb[0].mxu0
  %v1249 = vadd.f32 0.0, %v1248
  %v1250 = vpop.f32.mrb[0].mxu0
  %1251 = vmatprep.mubr.f32.mxu0 0.0
  %1252 = vmatmul.mubr.f32.gmra.mrb[0].mxu0 %v366
  %v1253 = vpop.f32.mrb[0].mxu0
  %v1254 = vadd.f32 0.0, %v1253
  %v1255 = vpop.f32.mrb[0].mxu0
  %1256 = vmatprep.mubr.f32.mxu0 0.0
  %1257 = vmatmul.mubr.f32.gmra.mrb[0].mxu0 %v369
  %v1258 = vpop.f32.mrb[0].mxu0
  %v1259 = vadd.f32 0.0, %v1258
  %v1260 = vpop.f32.mrb[0].mxu0
  %1261 = vmatprep.mubr.f32.mxu0 0.0
  %1262 = vmatmul.mubr.f32.gmra.mrb[0].mxu0 %v372
  %v1263 = vpop.f32.mrb[0].mxu0
  %v1264 = vadd.f32 0.0, %v1263
  %v1265 = vpop.f32.mrb[0].mxu0
  %1266 = vmatprep.mubr.f32.mxu0 0.0
  %1267 = vmatmul.mubr.f32.gmra.mrb[0].mxu0 %v375
  %v1268 = vpop.f32.mrb[0].mxu0
  %v1269 = vadd.f32 0.0, %v1268
  %v1270 = vpop.f32.mrb[0].mxu0
  %1271 = vmatprep.mubr.f32.mxu0 0.0
  %1272 = vmatmul.mubr.f32.gmra.mrb[0].mxu0 %v378
  %v1273 = vpop.f32.mrb[0].mxu0
  %v1274 = vadd.f32 0.0, %v1273
  %v1275 = vpop.f32.mrb[0].mxu0
  %1276 = vmatprep.mubr.f32.mxu0 0.0
  %1277 = vmatmul.mubr.f32.gmra.mrb[0].mxu0 %v381
  %v1278 = vpop.f32.mrb[0].mxu0
  %v1279 = vadd.f32 0.0, %v1278
  %v1280 = vpop.f32.mrb[0].mxu0
  %1281 = vmatprep.mubr.f32.mxu0 0.0
  %1282 = vmatmul.mubr.f32.gmra.mrb[0].mxu0 %v384
  %v1283 = vpop.f32.mrb[0].mxu0
  %v1284 = vadd.f32 0.0, %v1283
  %v1285 = vpop.f32.mrb[0].mxu0
  %1286 = vmatprep.mubr.f32.mxu0 0.0
  %1287 = vmatmul.mubr.f32.gmra.mrb[0].mxu0 %v387
  %v1288 = vpop.f32.mrb[0].mxu0
  %v1289 = vadd.f32 0.0, %v1288
  %v1290 = vpop.f32.mrb[0].mxu0
  %1291 = vmatprep.mubr.f32.mxu0 0.0
  %1292 = vmatmul.mubr.f32.gmra.mrb[0].mxu0 %v390
  %v1293 = vpop.f32.mrb[0].mxu0
  %v1294 = vadd.f32 0.0, %v1293
  %v1295 = vpop.f32.mrb[0].mxu0
  %1296 = vmatprep.mubr.f32.mxu0 0.0
  %1297 = vmatmul.mubr.f32.gmra.mrb[0].mxu0 %v393
  %v1298 = vpop.f32.mrb[0].mxu0
  %v1299 = vadd.f32 0.0, %v1298
  %v1300 = vpop.f32.mrb[0].mxu0
  %1301 = vmatprep.mubr.f32.mxu0 0.0
  %1302 = vmatmul.mubr.f32.gmra.mrb[0].mxu0 %v396
  %v1303 = vpop.f32.mrb[0].mxu0
  %v1304 = vadd.f32 0.0, %v1303
  %v1305 = vpop.f32.mrb[0].mxu0
  %1306 = vmatprep.mubr.f32.mxu0 0.0
  %1307 = vmatmul.mubr.f32.gmra.mrb[0].mxu0 %v399
  %v1308 = vpop.f32.mrb[0].mxu0
  %v1309 = vadd.f32 0.0, %v1308
  %v1310 = vpop.f32.mrb[0].mxu0
  %1311 = vmatprep.mubr.f32.mxu0 0.0
  %1312 = vmatmul.mubr.f32.gmra.mrb[0].mxu0 %v402
  %v1313 = vpop.f32.mrb[0].mxu0
  %v1314 = vadd.f32 0.0, %v1313
  %v1315 = vpop.f32.mrb[0].mxu0
  %1316 = vmatprep.mubr.f32.mxu0 0.0
  %1317 = vmatmul.mubr.f32.gmra.mrb[0].mxu0 %v405
  %v1318 = vpop.f32.mrb[0].mxu0
  %v1319 = vadd.f32 0.0, %v1318
  %v1320 = vpop.f32.mrb[0].mxu0
  %1321 = vmatprep.mubr.f32.mxu0 0.0
  %1322 = vmatmul.mubr.f32.gmra.mrb[0].mxu0 %v408
  %v1323 = vpop.f32.mrb[0].mxu0
  %v1324 = vadd.f32 0.0, %v1323
  %v1325 = vpop.f32.mrb[0].mxu0
  %1326 = vmatprep.mubr.f32.mxu0 0.0
  %1327 = vmatmul.mubr.f32.gmra.mrb[0].mxu0 %v411
  %v1328 = vpop.f32.mrb[0].mxu0
  %v1329 = vadd.f32 0.0, %v1328
  %v1330 = vpop.f32.mrb[0].mxu0
  %1331 = vmatprep.mubr.f32.mxu0 0.0
  %1332 = vmatmul.mubr.f32.gmra.mrb[0].mxu0 %v414
  %v1333 = vpop.f32.mrb[0].mxu0
  %v1334 = vadd.f32 0.0, %v1333
  %v1335 = vpop.f32.mrb[0].mxu0
  %1336 = vmatprep.mubr.f32.mxu0 0.0
  %1337 = vmatmul.mubr.f32.gmra.mrb[0].mxu0 %v417
  %v1338 = vpop.f32.mrb[0].mxu0
  %v1339 = vadd.f32 0.0, %v1338
  %v1340 = vpop.f32.mrb[0].mxu0
  %1341 = vmatprep.mubr.f32.mxu0 0.0
  %1342 = vmatmul.mubr.f32.gmra.mrb[0].mxu0 %v420
  %v1343 = vpop.f32.mrb[0].mxu0
  %v1344 = vadd.f32 0.0, %v1343
  %v1345 = vpop.f32.mrb[0].mxu0
  %1346 = vmatprep.mubr.f32.mxu0 0.0
  %1347 = vmatmul.mubr.f32.gmra.mrb[0].mxu0 %v423
  %v1348 = vpop.f32.mrb[0].mxu0
  %v1349 = vadd.f32 0.0, %v1348
  %v1350 = vpop.f32.mrb[0].mxu0
  %1351 = vmatprep.mubr.f32.mxu0 0.0
  %1352 = vmatmul.mubr.f32.gmra.mrb[0].mxu0 %v426
  %v1353 = vpop.f32.mrb[0].mxu0
  %v1354 = vadd.f32 0.0, %v1353
  %v1355 = vpop.f32.mrb[0].mxu0
  %1356 = vmatprep.mubr.f32.mxu0 0.0
  %1357 = vmatmul.mubr.f32.gmra.mrb[0].mxu0 %v429
  %v1358 = vpop.f32.mrb[0].mxu0
  %v1359 = vadd.f32 0.0, %v1358
  %v1360 = vpop.f32.mrb[0].mxu0
  %1361 = vmatprep.mubr.f32.mxu0 0.0
  %1362 = vmatmul.mubr.f32.gmra.mrb[0].mxu0 %v432
  %v1363 = vpop.f32.mrb[0].mxu0
  %v1364 = vadd.f32 0.0, %v1363
  %v1365 = vpop.f32.mrb[0].mxu0
  %1366 = vmatprep.mubr.f32.mxu0 0.0
  %1367 = vmatmul.mubr.f32.gmra.mrb[0].mxu0 %v435
  %v1368 = vpop.f32.mrb[0].mxu0
  %v1369 = vadd.f32 0.0, %v1368
  %v1370 = vpop.f32.mrb[0].mxu0
  %1371 = vmatprep.mubr.f32.mxu0 0.0
  %1372 = vmatmul.mubr.f32.gmra.mrb[0].mxu0 %v438
  %v1373 = vpop.f32.mrb[0].mxu0
  %v1374 = vadd.f32 0.0, %v1373
  %v1375 = vpop.f32.mrb[0].mxu0
  %1376 = vmatprep.mubr.f32.mxu0 0.0
  %1377 = vmatmul.mubr.f32.gmra.mrb[0].mxu0 %v441
  %v1378 = vpop.f32.mrb[0].mxu0
  %v1379 = vadd.f32 0.0, %v1378
  %v1380 = vpop.f32.mrb[0].mxu0
  %1381 = vmatprep.mubr.f32.mxu0 0.0
  %1382 = vmatmul.mubr.f32.gmra.mrb[0].mxu0 %v444
  %v1383 = vpop.f32.mrb[0].mxu0
  %v1384 = vadd.f32 0.0, %v1383
  %v1385 = vpop.f32.mrb[0].mxu0
  %1386 = vmatprep.mubr.f32.mxu0 0.0
  %1387 = vmatmul.mubr.f32.gmra.mrb[0].mxu0 %v447
  %v1388 = vpop.f32.mrb[0].mxu0
  %v1389 = vadd.f32 0.0, %v1388
  %v1390 = vpop.f32.mrb[0].mxu0
  %1391 = vmatprep.mubr.f32.mxu0 0.0
  %1392 = vmatmul.mubr.f32.gmra.mrb[0].mxu0 %v450
  %v1393 = vpop.f32.mrb[0].mxu0
  %v1394 = vadd.f32 0.0, %v1393
  %v1395 = vpop.f32.mrb[0].mxu0
  %1396 = vmatprep.mubr.f32.mxu0 0.0
  %1397 = vmatmul.mubr.f32.gmra.mrb[0].mxu0 %v453
  %v1398 = vpop.f32.mrb[0].mxu0
  %v1399 = vadd.f32 0.0, %v1398
  %v1400 = vpop.f32.mrb[0].mxu0
  %1401 = vmatprep.mubr.f32.mxu0 0.0
  %1402 = vmatmul.mubr.f32.gmra.mrb[0].mxu0 %v456
  %v1403 = vpop.f32.mrb[0].mxu0
  %v1404 = vadd.f32 0.0, %v1403
  %v1405 = vpop.f32.mrb[0].mxu0
  %1406 = vmatprep.mubr.f32.mxu0 0.0
  %1407 = vmatmul.mubr.f32.gmra.mrb[0].mxu0 %v459
  %v1408 = vpop.f32.mrb[0].mxu0
  %v1409 = vadd.f32 0.0, %v1408
  %v1410 = vpop.f32.mrb[0].mxu0
  %1411 = vmatprep.mubr.f32.mxu0 0.0
  %1412 = vmatmul.mubr.f32.gmra.mrb[0].mxu0 %v462
  %v1413 = vpop.f32.mrb[0].mxu0
  %v1414 = vadd.f32 0.0, %v1413
  %v1415 = vpop.f32.mrb[0].mxu0
  %1416 = vmatprep.mubr.f32.mxu0 0.0
  %1417 = vmatmul.mubr.f32.gmra.mrb[0].mxu0 %v465
  %v1418 = vpop.f32.mrb[0].mxu0
  %v1419 = vadd.f32 0.0, %v1418
  %v1420 = vpop.f32.mrb[0].mxu0
  %1421 = vmatprep.mubr.f32.mxu0 0.0
  %1422 = vmatmul.mubr.f32.gmra.mrb[0].mxu0 %v468
  %v1423 = vpop.f32.mrb[0].mxu0
  %v1424 = vadd.f32 0.0, %v1423
  %v1425 = vpop.f32.mrb[0].mxu0
  %1426 = vmatprep.mubr.f32.mxu0 0.0
  %1427 = vmatmul.mubr.f32.gmra.mrb[0].mxu0 %v471
  %v1428 = vpop.f32.mrb[0].mxu0
  %v1429 = vadd.f32 0.0, %v1428
  %v1430 = vpop.f32.mrb[0].mxu0
  %1431 = vmatprep.mubr.f32.mxu0 0.0
  %1432 = vmatmul.mubr.f32.gmra.mrb[0].mxu0 %v474
  %v1433 = vpop.f32.mrb[0].mxu0
  %v1434 = vadd.f32 0.0, %v1433
  %v1435 = vpop.f32.mrb[0].mxu0
  %1436 = vmatprep.mubr.f32.mxu0 0.0
  %1437 = vmatmul.mubr.f32.gmra.mrb[0].mxu0 %v477
  %v1438 = vpop.f32.mrb[0].mxu0
  %v1439 = vadd.f32 0.0, %v1438
  %v1440 = vpop.f32.mrb[0].mxu0
  %1441 = vmatprep.mubr.f32.mxu0 0.0
  %1442 = vmatmul.mubr.f32.gmra.mrb[0].mxu0 %v480
  %v1443 = vpop.f32.mrb[0].mxu0
  %v1444 = vadd.f32 0.0, %v1443
  %v1445 = vpop.f32.mrb[0].mxu0
  %1446 = vmatprep.mubr.f32.mxu0 0.0
  %1447 = vmatmul.mubr.f32.gmra.mrb[0].mxu0 %v483
  %v1448 = vpop.f32.mrb[0].mxu0
  %v1449 = vadd.f32 0.0, %v1448
  %v1450 = vpop.f32.mrb[0].mxu0
  %1451 = vmatprep.mubr.f32.mxu0 0.0
  %1452 = vmatmul.mubr.f32.gmra.mrb[0].mxu0 %v486
  %v1453 = vpop.f32.mrb[0].mxu0
  %v1454 = vadd.f32 0.0, %v1453
  %v1455 = vpop.f32.mrb[0].mxu0
  %1456 = vmatprep.mubr.f32.mxu0 0.0
  %1457 = vmatmul.mubr.f32.gmra.mrb[0].mxu0 %v489
  %v1458 = vpop.f32.mrb[0].mxu0
  %v1459 = vadd.f32 0.0, %v1458
  %v1460 = vpop.f32.mrb[0].mxu0
  %1461 = vmatprep.mubr.f32.mxu0 0.0
  %1462 = vmatmul.mubr.f32.gmra.mrb[0].mxu0 %v492
  %v1463 = vpop.f32.mrb[0].mxu0
  %v1464 = vadd.f32 0.0, %v1463
  %v1465 = vpop.f32.mrb[0].mxu0
  %1466 = vmatprep.mubr.f32.mxu0 0.0
  %1467 = vmatmul.mubr.f32.gmra.mrb[0].mxu0 %v495
  %v1468 = vpop.f32.mrb[0].mxu0
  %v1469 = vadd.f32 0.0, %v1468
  %v1470 = vpop.f32.mrb[0].mxu0
  %1471 = vmatprep.mubr.f32.mxu0 0.0
  %1472 = vmatmul.mubr.f32.gmra.mrb[0].mxu0 %v498
  %v1473 = vpop.f32.mrb[0].mxu0
  %v1474 = vadd.f32 0.0, %v1473
  %v1475 = vpop.f32.mrb[0].mxu0
  %1476 = vmatprep.mubr.f32.mxu0 0.0
  %1477 = vmatmul.mubr.f32.gmra.mrb[0].mxu0 %v501
  %v1478 = vpop.f32.mrb[0].mxu0
  %v1479 = vadd.f32 0.0, %v1478
  %v1480 = vpop.f32.mrb[0].mxu0
  %1481 = vmatprep.mubr.f32.mxu0 0.0
  %1482 = vmatmul.mubr.f32.gmra.mrb[0].mxu0 %v504
  %v1483 = vpop.f32.mrb[0].mxu0
  %v1484 = vadd.f32 0.0, %v1483
  %v1485 = vpop.f32.mrb[0].mxu0
  %1486 = vmatprep.mubr.f32.mxu0 0.0
  %1487 = vmatmul.mubr.f32.gmra.mrb[0].mxu0 %v507
  %v1488 = vpop.f32.mrb[0].mxu0
  %v1489 = vadd.f32 0.0, %v1488
  %v1490 = vpop.f32.mrb[0].mxu0
  %1491 = vmatprep.mubr.f32.mxu0 0.0
  %1492 = vmatmul.mubr.f32.gmra.mrb[0].mxu0 %v510
  %v1493 = vpop.f32.mrb[0].mxu0
  %v1494 = vadd.f32 0.0, %v1493
  %v1495 = vpop.f32.mrb[0].mxu0
  %1496 = vmatprep.mubr.f32.mxu0 0.0
  %1497 = vmatmul.mubr.f32.gmra.mrb[0].mxu0 %v513
  %v1498 = vpop.f32.mrb[0].mxu0
  %v1499 = vadd.f32 0.0, %v1498
  %v1500 = vpop.f32.mrb[0].mxu0
  %1501 = vmatprep.mubr.f32.mxu0 0.0
  %1502 = vmatmul.mubr.f32.gmra.mrb[0].mxu0 %v516
  %v1503 = vpop.f32.mrb[0].mxu0
  %v1504 = vadd.f32 0.0, %v1503
  %v1505 = vpop.f32.mrb[0].mxu0
  %1506 = vmatprep.mubr.f32.mxu0 0.0
  %1507 = vmatmul.mubr.f32.gmra.mrb[0].mxu0 %v519
  %v1508 = vpop.f32.mrb[0].mxu0
  %v1509 = vadd.f32 0.0, %v1508
  %v1510 = vpop.f32.mrb[0].mxu0
  %1511 = vmatprep.mubr.f32.mxu0 0.0
  %1512 = vmatmul.mubr.f32.gmra.mrb[0].mxu0 %v522
  %v1513 = vpop.f32.mrb[0].mxu0
  %v1514 = vadd.f32 0.0, %v1513
  %v1515 = vpop.f32.mrb[0].mxu0
  %1516 = vmatprep.mubr.f32.mxu0 0.0
  %1517 = vmatmul.mubr.f32.gmra.mrb[0].mxu0 %v525
  %v1518 = vpop.f32.mrb[0].mxu0
  %v1519 = vadd.f32 0.0, %v1518
  %v1520 = vpop.f32.mrb[0].mxu0
  %1521 = vmatprep.mubr.f32.mxu0 0.0
  %1522 = vmatmul.mubr.f32.gmra.mrb[0].mxu0 %v528
  %v1523 = vpop.f32.mrb[0].mxu0
  %v1524 = vadd.f32 0.0, %v1523
  %v1525 = vpop.f32.mrb[0].mxu0
  %1526 = vmatprep.mubr.f32.mxu0 0.0
  %1527 = vmatmul.mubr.f32.gmra.mrb[0].mxu0 %v531
  %v1528 = vpop.f32.mrb[0].mxu0
  %v1529 = vadd.f32 0.0, %v1528
  %v1530 = vpop.f32.mrb[0].mxu0
  %1531 = vmatprep.mubr.f32.mxu0 0.0
  %1532 = vmatmul.mubr.f32.gmra.mrb[0].mxu0 %v534
  %v1533 = vpop.f32.mrb[0].mxu0
  %v1534 = vadd.f32 0.0, %v1533
  %v1535 = vpop.f32.mrb[0].mxu0
  %1536 = vmatprep.mubr.f32.mxu0 0.0
  %1537 = vmatmul.mubr.f32.gmra.mrb[0].mxu0 %v537
  %v1538 = vpop.f32.mrb[0].mxu0
  %v1539 = vadd.f32 0.0, %v1538
  %v1540 = vpop.f32.mrb[0].mxu0
  %1541 = vmatprep.mubr.f32.mxu0 0.0
  %1542 = vmatmul.mubr.f32.gmra.mrb[0].mxu0 %v540
  %v1543 = vpop.f32.mrb[0].mxu0
  %v1544 = vadd.f32 0.0, %v1543
  %v1545 = vpop.f32.mrb[0].mxu0
  %1546 = vmatprep.mubr.f32.mxu0 0.0
  %1547 = vmatmul.mubr.f32.gmra.mrb[0].mxu0 %v543
  %v1548 = vpop.f32.mrb[0].mxu0
  %v1549 = vadd.f32 0.0, %v1548
  %v1550 = vpop.f32.mrb[0].mxu0
  %1551 = vmatprep.mubr.f32.mxu0 0.0
  %1552 = vmatmul.mubr.f32.gmra.mrb[0].mxu0 %v546
  %v1553 = vpop.f32.mrb[0].mxu0
  %v1554 = vadd.f32 0.0, %v1553
  %v1555 = vpop.f32.mrb[0].mxu0
  %1556 = vmatprep.mubr.f32.mxu0 0.0
  %1557 = vmatmul.mubr.f32.gmra.mrb[0].mxu0 %v549
  %v1558 = vpop.f32.mrb[0].mxu0
  %v1559 = vadd.f32 0.0, %v1558
  %v1560 = vpop.f32.mrb[0].mxu0
  %1561 = vmatprep.mubr.f32.mxu0 0.0
  %1562 = vmatmul.mubr.f32.gmra.mrb[0].mxu0 %v552
  %v1563 = vpop.f32.mrb[0].mxu0
  %v1564 = vadd.f32 0.0, %v1563
  %v1565 = vpop.f32.mrb[0].mxu0
  %1566 = vmatprep.mubr.f32.mxu0 0.0
  %1567 = vmatmul.mubr.f32.gmra.mrb[0].mxu0 %v555
  %v1568 = vpop.f32.mrb[0].mxu0
  %v1569 = vadd.f32 0.0, %v1568
  %v1570 = vpop.f32.mrb[0].mxu0
  %1571 = vmatprep.mubr.f32.mxu0 0.0
  %1572 = vmatmul.mubr.f32.gmra.mrb[0].mxu0 %v558
  %v1573 = vpop.f32.mrb[0].mxu0
  %v1574 = vadd.f32 0.0, %v1573
  %v1575 = vpop.f32.mrb[0].mxu0
  %1576 = vmatprep.mubr.f32.mxu0 0.0
  %1577 = vmatmul.mubr.f32.gmra.mrb[0].mxu0 %v561
  %v1578 = vpop.f32.mrb[0].mxu0
  %v1579 = vadd.f32 0.0, %v1578
  %v1580 = vpop.f32.mrb[0].mxu0
  %1581 = vmatprep.mubr.f32.mxu0 0.0
  %1582 = vmatmul.mubr.f32.gmra.mrb[0].mxu0 %v564
  %v1583 = vpop.f32.mrb[0].mxu0
  %v1584 = vadd.f32 0.0, %v1583
  %v1585 = vpop.f32.mrb[0].mxu0
  %1586 = vmatprep.mubr.f32.mxu0 0.0
  %1587 = vmatmul.mubr.f32.gmra.mrb[0].mxu0 %v567
  %v1588 = vpop.f32.mrb[0].mxu0
  %v1589 = vadd.f32 0.0, %v1588
  %v1590 = vpop.f32.mrb[0].mxu0
  %1591 = vmatprep.mubr.f32.mxu0 0.0
  %1592 = vmatmul.mubr.f32.gmra.mrb[0].mxu0 %v570
  %v1593 = vpop.f32.mrb[0].mxu0
  %v1594 = vadd.f32 0.0, %v1593
  %v1595 = vpop.f32.mrb[0].mxu0
  %1596 = vmatprep.mubr.f32.mxu0 0.0
  %1597 = vmatmul.mubr.f32.gmra.mrb[0].mxu0 %v573
  %v1598 = vpop.f32.mrb[0].mxu0
  %v1599 = vadd.f32 0.0, %v1598
  %v1600 = vpop.f32.mrb[0].mxu0
  %1601 = vmatprep.mubr.f32.mxu0 0.0
  %1602 = vmatmul.mubr.f32.gmra.mrb[0].mxu0 %v576
  %v1603 = vpop.f32.mrb[0].mxu0
  %v1604 = vadd.f32 0.0, %v1603
  %v1605 = vpop.f32.mrb[0].mxu0
  %1606 = vmatprep.mubr.f32.mxu0 0.0
  %1607 = vmatmul.mubr.f32.gmra.mrb[0].mxu0 %v579
  %v1608 = vpop.f32.mrb[0].mxu0
  %v1609 = vadd.f32 0.0, %v1608
  %v1610 = vpop.f32.mrb[0].mxu0
  %1611 = vmatprep.mubr.f32.mxu0 0.0
  %1612 = vmatmul.mubr.f32.gmra.mrb[0].mxu0 %v582
  %v1613 = vpop.f32.mrb[0].mxu0
  %v1614 = vadd.f32 0.0, %v1613
  %v1615 = vpop.f32.mrb[0].mxu0
  %1616 = vmatprep.mubr.f32.mxu0 0.0
  %1617 = vmatmul.mubr.f32.gmra.mrb[0].mxu0 %v585
  %v1618 = vpop.f32.mrb[0].mxu0
  %v1619 = vadd.f32 0.0, %v1618
  %v1620 = vpop.f32.mrb[0].mxu0
  %1621 = vmatprep.mubr.f32.mxu0 0.0
  %1622 = vmatmul.mubr.f32.gmra.mrb[0].mxu0 %v588
  %v1623 = vpop.f32.mrb[0].mxu0
  %v1624 = vadd.f32 0.0, %v1623
  %v1625 = vpop.f32.mrb[0].mxu0
  %1626 = vmatprep.mubr.f32.mxu0 0.0
  %1627 = vmatmul.mubr.f32.gmra.mrb[0].mxu0 %v591
  %v1628 = vpop.f32.mrb[0].mxu0
  %v1629 = vadd.f32 0.0, %v1628
  %v1630 = vpop.f32.mrb[0].mxu0
  %1631 = vmatprep.mubr.f32.mxu0 0.0
  %1632 = vmatmul.mubr.f32.gmra.mrb[0].mxu0 %v594
  %v1633 = vpop.f32.mrb[0].mxu0
  %v1634 = vadd.f32 0.0, %v1633
  %v1635 = vpop.f32.mrb[0].mxu0
  %1636 = vmatprep.mubr.f32.mxu0 0.0
  %1637 = vmatmul.mubr.f32.gmra.mrb[0].mxu0 %v597
  %v1638 = vpop.f32.mrb[0].mxu0
  %v1639 = vadd.f32 0.0, %v1638
  %v1640 = vpop.f32.mrb[0].mxu0
  %1641 = vmatprep.mubr.f32.mxu0 0.0
  %1642 = vmatmul.mubr.f32.gmra.mrb[0].mxu0 %v600
  %v1643 = vpop.f32.mrb[0].mxu0
  %v1644 = vadd.f32 0.0, %v1643
  %v1645 = vpop.f32.mrb[0].mxu0
  %1646 = vmatprep.mubr.f32.mxu0 0.0
  %1647 = vmatmul.mubr.f32.gmra.mrb[0].mxu0 %v603
  %v1648 = vpop.f32.mrb[0].mxu0
  %v1649 = vadd.f32 0.0, %v1648
  %v1650 = vpop.f32.mrb[0].mxu0
  %1651 = vmatprep.mubr.f32.mxu0 0.0
  %1652 = vmatmul.mubr.f32.gmra.mrb[0].mxu0 %v606
  %v1653 = vpop.f32.mrb[0].mxu0
  %v1654 = vadd.f32 0.0, %v1653
  %v1655 = vpop.f32.mrb[0].mxu0
  %1656 = vmatprep.mubr.f32.mxu0 0.0
  %1657 = vmatmul.mubr.f32.gmra.mrb[0].mxu0 %v609
  %v1658 = vpop.f32.mrb[0].mxu0
  %v1659 = vadd.f32 0.0, %v1658
  %v1660 = vpop.f32.mrb[0].mxu0
  %1661 = vmatprep.mubr.f32.mxu0 0.0
  %1662 = vmatmul.mubr.f32.gmra.mrb[0].mxu0 %v612
  %v1663 = vpop.f32.mrb[0].mxu0
  %v1664 = vadd.f32 0.0, %v1663
  %v1665 = vpop.f32.mrb[0].mxu0
  %1666 = vmatprep.mubr.f32.mxu0 0.0
  %1667 = vmatmul.mubr.f32.gmra.mrb[0].mxu0 %v615
  %v1668 = vpop.f32.mrb[0].mxu0
  %v1669 = vadd.f32 0.0, %v1668
  %v1670 = vpop.f32.mrb[0].mxu0
  %1671 = vmatprep.mubr.f32.mxu0 0.0
  %1672 = vmatmul.mubr.f32.gmra.mrb[0].mxu0 %v618
  %v1673 = vpop.f32.mrb[0].mxu0
  %v1674 = vadd.f32 0.0, %v1673
  %v1675 = vpop.f32.mrb[0].mxu0
  %1676 = vmatprep.mubr.f32.mxu0 0.0
  %1677 = vmatmul.mubr.f32.gmra.mrb[0].mxu0 %v621
  %v1678 = vpop.f32.mrb[0].mxu0
  %v1679 = vadd.f32 0.0, %v1678
  %v1680 = vpop.f32.mrb[0].mxu0
  %1681 = vmatprep.mubr.f32.mxu0 0.0
  %1682 = vmatmul.mubr.f32.gmra.mrb[0].mxu0 %v624
  %v1683 = vpop.f32.mrb[0].mxu0
  %v1684 = vadd.f32 0.0, %v1683
  %v1685 = vpop.f32.mrb[0].mxu0
  %1686 = vmatprep.mubr.f32.mxu0 0.0
  %1687 = vmatmul.mubr.f32.gmra.mrb[0].mxu0 %v627
  %v1688 = vpop.f32.mrb[0].mxu0
  %v1689 = vadd.f32 0.0, %v1688
  %v1690 = vpop.f32.mrb[0].mxu0
  %1691 = vmatprep.mubr.f32.mxu0 0.0
  %1692 = vmatmul.mubr.f32.gmra.mrb[0].mxu0 %v630
  %v1693 = vpop.f32.mrb[0].mxu0
  %v1694 = vadd.f32 0.0, %v1693
  %v1695 = vpop.f32.mrb[0].mxu0
  %1696 = vmatprep.mubr.f32.mxu0 0.0
  %1697 = vmatmul.mubr.f32.gmra.mrb[0].mxu0 %v633
  %v1698 = vpop.f32.mrb[0].mxu0
  %v1699 = vadd.f32 0.0, %v1698
  %v1700 = vpop.f32.mrb[0].mxu0
  %1701 = vmatprep.mubr.f32.mxu0 0.0
  %1702 = vmatmul.mubr.f32.gmra.mrb[0].mxu0 %v636
  %v1703 = vpop.f32.mrb[0].mxu0
  %v1704 = vadd.f32 0.0, %v1703
  %v1705 = vpop.f32.mrb[0].mxu0
  %1706 = vmatprep.mubr.f32.mxu0 0.0
  %1707 = vmatmul.mubr.f32.gmra.mrb[0].mxu0 %v639
  %v1708 = vpop.f32.mrb[0].mxu0
  %v1709 = vadd.f32 0.0, %v1708
  %v1710 = vpop.f32.mrb[0].mxu0
  %1711 = vmatprep.mubr.f32.mxu0 0.0
  %1712 = vmatmul.mubr.f32.gmra.mrb[0].mxu0 %v642
  %v1713 = vpop.f32.mrb[0].mxu0
  %v1714 = vadd.f32 0.0, %v1713
  %v1715 = vpop.f32.mrb[0].mxu0
  %1716 = vmatprep.mubr.f32.mxu0 0.0
  %1717 = vmatmul.mubr.f32.gmra.mrb[0].mxu0 %v645
  %v1718 = vpop.f32.mrb[0].mxu0
  %v1719 = vadd.f32 0.0, %v1718
  %v1720 = vpop.f32.mrb[0].mxu0
  %1721 = vmatprep.mubr.f32.mxu0 0.0
  %1722 = vmatmul.mubr.f32.gmra.mrb[0].mxu0 %v648
  %v1723 = vpop.f32.mrb[0].mxu0
  %v1724 = vadd.f32 0.0, %v1723
  %v1725 = vpop.f32.mrb[0].mxu0
  %1726 = vmatprep.mubr.f32.mxu0 0.0
  %1727 = vmatmul.mubr.f32.gmra.mrb[0].mxu0 %v651
  %v1728 = vpop.f32.mrb[0].mxu0
  %v1729 = vadd.f32 0.0, %v1728
  %v1730 = vpop.f32.mrb[0].mxu0
  %1731 = vmatprep.mubr.f32.mxu0 0.0
  %1732 = vmatmul.mubr.f32.gmra.mrb[0].mxu0 %v654
  %v1733 = vpop.f32.mrb[0].mxu0
  %v1734 = vadd.f32 0.0, %v1733
  %v1735 = vpop.f32.mrb[0].mxu0
  %1736 = vmatprep.mubr.f32.mxu0 0.0
  %1737 = vmatmul.mubr.f32.gmra.mrb[0].mxu0 %v657
  %v1738 = vpop.f32.mrb[0].mxu0
  %v1739 = vadd.f32 0.0, %v1738
  %v1740 = vpop.f32.mrb[0].mxu0
  %1741 = vmatprep.mubr.f32.mxu0 0.0
  %1742 = vmatmul.mubr.f32.gmra.mrb[0].mxu0 %v660
  %v1743 = vpop.f32.mrb[0].mxu0
  %v1744 = vadd.f32 0.0, %v1743
  %v1745 = vpop.f32.mrb[0].mxu0
  %1746 = vmatprep.mubr.f32.mxu0 0.0
  %1747 = vmatmul.mubr.f32.gmra.mrb[0].mxu0 %v663
  %v1748 = vpop.f32.mrb[0].mxu0
  %v1749 = vadd.f32 0.0, %v1748
  %v1750 = vpop.f32.mrb[0].mxu0
  %1751 = vmatprep.mubr.f32.mxu0 0.0
  %1752 = vmatmul.mubr.f32.gmra.mrb[0].mxu0 %v666
  %v1753 = vpop.f32.mrb[0].mxu0
  %v1754 = vadd.f32 0.0, %v1753
  %v1755 = vpop.f32.mrb[0].mxu0
  %1756 = vmatprep.mubr.f32.mxu0 0.0
  %1757 = vmatmul.mubr.f32.gmra.mrb[0].mxu0 %v669
  %v1758 = vpop.f32.mrb[0].mxu0
  %v1759 = vadd.f32 0.0, %v1758
  %v1760 = vpop.f32.mrb[0].mxu0
  %1761 = vmatprep.mubr.f32.mxu0 0.0
  %1762 = vmatmul.mubr.f32.gmra.mrb[0].mxu0 %v672
  %v1763 = vpop.f32.mrb[0].mxu0
  %v1764 = vadd.f32 0.0, %v1763
  %v1765 = vpop.f32.mrb[0].mxu0
  %1766 = vmatprep.mubr.f32.mxu0 0.0
  %1767 = vmatmul.mubr.f32.gmra.mrb[0].mxu0 %v675
  %v1768 = vpop.f32.mrb[0].mxu0
  %v1769 = vadd.f32 0.0, %v1768
  %v1770 = vpop.f32.mrb[0].mxu0
  %1771 = vmatprep.mubr.f32.mxu0 0.0
  %1772 = vmatmul.mubr.f32.gmra.mrb[0].mxu0 %v678
  %v1773 = vpop.f32.mrb[0].mxu0
  %v1774 = vadd.f32 0.0, %v1773
  %v1775 = vpop.f32.mrb[0].mxu0
  %1776 = vmatprep.mubr.f32.mxu0 0.0
  %1777 = vmatmul.mubr.f32.gmra.mrb[0].mxu0 %v681
  %v1778 = vpop.f32.mrb[0].mxu0
  %v1779 = vadd.f32 0.0, %v1778
  %v1780 = vpop.f32.mrb[0].mxu0
  %1781 = vmatprep.mubr.f32.mxu0 0.0
  %1782 = vmatmul.mubr.f32.gmra.mrb[0].mxu0 %v684
  %v1783 = vpop.f32.mrb[0].mxu0
  %v1784 = vadd.f32 0.0, %v1783
  %v1785 = vpop.f32.mrb[0].mxu0
  %1786 = vmatprep.mubr.f32.mxu0 0.0
  %1787 = vmatmul.mubr.f32.gmra.mrb[0].mxu0 %v687
  %v1788 = vpop.f32.mrb[0].mxu0
  %v1789 = vadd.f32 0.0, %v1788
  %v1790 = vpop.f32.mrb[0].mxu0
  %1791 = vmatprep.mubr.f32.mxu0 0.0
  %1792 = vmatmul.mubr.f32.gmra.mrb[0].mxu0 %v690
  %v1793 = vpop.f32.mrb[0].mxu0
  %v1794 = vadd.f32 0.0, %v1793
  %v1795 = vpop.f32.mrb[0].mxu0
  %1796 = vmatprep.mubr.f32.mxu0 0.0
  %1797 = vmatmul.mubr.f32.gmra.mrb[0].mxu0 %v693
  %v1798 = vpop.f32.mrb[0].mxu0
  %v1799 = vadd.f32 0.0, %v1798
  %v1800 = vpop.f32.mrb[0].mxu0
  %1801 = vmatprep.mubr.f32.mxu0 0.0
  %1802 = vmatmul.mubr.f32.gmra.mrb[0].mxu0 %v696
  %v1803 = vpop.f32.mrb[0].mxu0
  %v1804 = vadd.f32 0.0, %v1803
  %v1805 = vpop.f32.mrb[0].mxu0
  %1806 = vmatprep.mubr.f32.mxu0 0.0
  %1807 = vmatmul.mubr.f32.gmra.mrb[0].mxu0 %v699
  %v1808 = vpop.f32.mrb[0].mxu0
  %v1809 = vadd.f32 0.0, %v1808
  %v1810 = vpop.f32.mrb[0].mxu0
  %1811 = vmatprep.mubr.f32.mxu0 0.0
  %1812 = vmatmul.mubr.f32.gmra.mrb[0].mxu0 %v702
  %v1813 = vpop.f32.mrb[0].mxu0
  %v1814 = vadd.f32 0.0, %v1813
  %v1815 = vpop.f32.mrb[0].mxu0
  %1816 = vmatprep.mubr.f32.mxu0 0.0
  %1817 = vmatmul.mubr.f32.gmra.mrb[0].mxu0 %v705
  %v1818 = vpop.f32.mrb[0].mxu0
  %v1819 = vadd.f32 0.0, %v1818
  %v1820 = vpop.f32.mrb[0].mxu0
  %1821 = vmatprep.mubr.f32.mxu0 0.0
  %1822 = vmatmul.mubr.f32.gmra.mrb[0].mxu0 %v708
  %v1823 = vpop.f32.mrb[0].mxu0
  %v1824 = vadd.f32 0.0, %v1823
  %v1825 = vpop.f32.mrb[0].mxu0
  %1826 = vmatprep.mubr.f32.mxu0 0.0
  %1827 = vmatmul.mubr.f32.gmra.mrb[0].mxu0 %v711
  %v1828 = vpop.f32.mrb[0].mxu0
  %v1829 = vadd.f32 0.0, %v1828
  %v1830 = vpop.f32.mrb[0].mxu0
  %1831 = vmatprep.mubr.f32.mxu0 0.0
  %1832 = vmatmul.mubr.f32.gmra.mrb[0].mxu0 %v714
  %v1833 = vpop.f32.mrb[0].mxu0
  %v1834 = vadd.f32 0.0, %v1833
  %v1835 = vpop.f32.mrb[0].mxu0
  %1836 = vmatprep.mubr.f32.mxu0 0.0
  %1837 = vmatmul.mubr.f32.gmra.mrb[0].mxu0 %v717
  %v1838 = vpop.f32.mrb[0].mxu0
  %v1839 = vadd.f32 0.0, %v1838
  %v1840 = vpop.f32.mrb[0].mxu0
  %1841 = vmatprep.mubr.f32.mxu0 0.0
  %1842 = vmatmul.mubr.f32.gmra.mrb[0].mxu0 %v720
  %v1843 = vpop.f32.mrb[0].mxu0
  %v1844 = vadd.f32 0.0, %v1843
  %v1845 = vpop.f32.mrb[0].mxu0
  %1846 = vmatprep.mubr.f32.mxu0 0.0
  %1847 = vmatmul.mubr.f32.gmra.mrb[0].mxu0 %v723
  %v1848 = vpop.f32.mrb[0].mxu0
  %v1849 = vadd.f32 0.0, %v1848
  %v1850 = vpop.f32.mrb[0].mxu0
  %1851 = vmatprep.mubr.f32.mxu0 0.0
  %1852 = vmatmul.mubr.f32.gmra.mrb[0].mxu0 %v726
  %v1853 = vpop.f32.mrb[0].mxu0
  %v1854 = vadd.f32 0.0, %v1853
  %v1855 = vpop.f32.mrb[0].mxu0
  %1856 = vmatprep.mubr.f32.mxu0 0.0
  %1857 = vmatmul.mubr.f32.gmra.mrb[0].mxu0 %v729
  %v1858 = vpop.f32.mrb[0].mxu0
  %v1859 = vadd.f32 0.0, %v1858
  %v1860 = vpop.f32.mrb[0].mxu0
  %1861 = vmatprep.mubr.f32.mxu0 0.0
  %1862 = vmatmul.mubr.f32.gmra.mrb[0].mxu0 %v732
  %v1863 = vpop.f32.mrb[0].mxu0
  %v1864 = vadd.f32 0.0, %v1863
  %v1865 = vpop.f32.mrb[0].mxu0
  %1866 = vmatprep.mubr.f32.mxu0 0.0
  %1867 = vmatmul.mubr.f32.gmra.mrb[0].mxu0 %v735
  %v1868 = vpop.f32.mrb[0].mxu0
  %v1869 = vadd.f32 0.0, %v1868
  %v1870 = vpop.f32.mrb[0].mxu0
  %1871 = vmatprep.mubr.f32.mxu0 0.0
  %1872 = vmatmul.mubr.f32.gmra.mrb[0].mxu0 %v738
  %v1873 = vpop.f32.mrb[0].mxu0
  %v1874 = vadd.f32 0.0, %v1873
  %v1875 = vpop.f32.mrb[0].mxu0
  %1876 = vmatprep.mubr.f32.mxu0 0.0
  %1877 = vmatmul.mubr.f32.gmra.mrb[0].mxu0 %v741
  %v1878 = vpop.f32.mrb[0].mxu0
  %v1879 = vadd.f32 0.0, %v1878
  %v1880 = vpop.f32.mrb[0].mxu0
  %1881 = vmatprep.mubr.f32.mxu0 0.0
  %1882 = vmatmul.mubr.f32.gmra.mrb[0].mxu0 %v744
  %v1883 = vpop.f32.mrb[0].mxu0
  %v1884 = vadd.f32 0.0, %v1883
  %v1885 = vpop.f32.mrb[0].mxu0
  %1886 = vmatprep.mubr.f32.mxu0 0.0
  %1887 = vmatmul.mubr.f32.gmra.mrb[0].mxu0 %v747
  %v1888 = vpop.f32.mrb[0].mxu0
  %v1889 = vadd.f32 0.0, %v1888
  %v1890 = vpop.f32.mrb[0].mxu0
  %1891 = vmatprep.mubr.f32.mxu0 0.0
  %1892 = vmatmul.mubr.f32.gmra.mrb[0].mxu0 %v750
  %v1893 = vpop.f32.mrb[0].mxu0
  %v1894 = vadd.f32 0.0, %v1893
  %v1895 = vpop.f32.mrb[0].mxu0
  %1896 = vmatprep.mubr.f32.mxu0 0.0
  %1897 = vmatmul.mubr.f32.gmra.mrb[0].mxu0 %v753
  %v1898 = vpop.f32.mrb[0].mxu0
  %v1899 = vadd.f32 0.0, %v1898
  %v1900 = vpop.f32.mrb[0].mxu0
  %1901 = vmatprep.mubr.f32.mxu0 0.0
  %1902 = vmatmul.mubr.f32.gmra.mrb[0].mxu0 %v756
  %v1903 = vpop.f32.mrb[0].mxu0
  %v1904 = vadd.f32 0.0, %v1903
  %v1905 = vpop.f32.mrb[0].mxu0
  %1906 = vmatprep.mubr.f32.mxu0 0.0
  %1907 = vmatmul.mubr.f32.gmra.mrb[0].mxu0 %v759
  %v1908 = vpop.f32.mrb[0].mxu0
  %v1909 = vadd.f32 0.0, %v1908
  %v1910 = vpop.f32.mrb[0].mxu0
  %1911 = vmatprep.mubr.f32.mxu0 0.0
  %1912 = vmatmul.mubr.f32.gmra.mrb[0].mxu0 %v762
  %v1913 = vpop.f32.mrb[0].mxu0
  %v1914 = vadd.f32 0.0, %v1913
  %v1915 = vpop.f32.mrb[0].mxu0
  %1916 = vmatprep.mubr.f32.mxu0 0.0
  %1917 = vmatmul.mubr.f32.gmra.mrb[0].mxu0 %v765
  %v1918 = vpop.f32.mrb[0].mxu0
  %v1919 = vadd.f32 0.0, %v1918
  %v1920 = vpop.f32.mrb[0].mxu0
  %1921 = vmatprep.mubr.f32.mxu0 0.0
  %1922 = vmatmul.mubr.f32.gmra.mrb[0].mxu0 %v768
  %v1923 = vpop.f32.mrb[0].mxu0
  %v1924 = vadd.f32 0.0, %v1923
  %v1925 = vpop.f32.mrb[0].mxu0
  %1926 = vmatprep.mubr.f32.mxu0 0.0
  %1927 = vmatmul.mubr.f32.gmra.mrb[0].mxu0 %v771
  %v1928 = vpop.f32.mrb[0].mxu0
  %v1929 = vadd.f32 0.0, %v1928
  %v1930 = vpop.f32.mrb[0].mxu0
  %1931 = vmatprep.mubr.f32.mxu0 0.0
  %1932 = vmatmul.mubr.f32.gmra.mrb[0].mxu0 %v774
  %v1933 = vpop.f32.mrb[0].mxu0
  %v1934 = vadd.f32 0.0, %v1933
  %v1935 = vpop.f32.mrb[0].mxu0
  %1936 = vmatprep.mubr.f32.mxu0 0.0
  %1937 = vmatmul.mubr.f32.gmra.mrb[0].mxu0 %v777
  %v1938 = vpop.f32.mrb[0].mxu0
  %v1939 = vadd.f32 0.0, %v1938
  %v1940 = vpop.f32.mrb[0].mxu0
  %1941 = vmatprep.mubr.f32.mxu0 0.0
  %1942 = vmatmul.mubr.f32.gmra.mrb[0].mxu0 %v780
  %v1943 = vpop.f32.mrb[0].mxu0
  %v1944 = vadd.f32 0.0, %v1943
  %v1945 = vpop.f32.mrb[0].mxu0
  %1946 = vmatprep.mubr.f32.mxu0 0.0
  %1947 = vmatmul.mubr.f32.gmra.mrb[0].mxu0 %v783
  %v1948 = vpop.f32.mrb[0].mxu0
  %v1949 = vadd.f32 0.0, %v1948
  %v1950 = vpop.f32.mrb[0].mxu0
  %1951 = vmatprep.mubr.f32.mxu0 0.0
  %1952 = vmatmul.mubr.f32.gmra.mrb[0].mxu0 %v786
  %v1953 = vpop.f32.mrb[0].mxu0
  %v1954 = vadd.f32 0.0, %v1953
  %v1955 = vpop.f32.mrb[0].mxu0
  %1956 = vmatprep.mubr.f32.mxu0 0.0
  %1957 = vmatmul.mubr.f32.gmra.mrb[0].mxu0 %v789
  %v1958 = vpop.f32.mrb[0].mxu0
  %v1959 = vadd.f32 0.0, %v1958
  %v1960 = vpop.f32.mrb[0].mxu0
  %1961 = vmatprep.mubr.f32.mxu0 0.0
  %1962 = vmatmul.mubr.f32.gmra.mrb[0].mxu0 %v792
  %v1963 = vpop.f32.mrb[0].mxu0
  %v1964 = vadd.f32 0.0, %v1963
  %v1965 = vpop.f32.mrb[0].mxu0
  %1966 = vmatprep.mubr.f32.mxu0 0.0
  %1967 = vmatmul.mubr.f32.gmra.mrb[0].mxu0 %v795
  %v1968 = vpop.f32.mrb[0].mxu0
  %v1969 = vadd.f32 0.0, %v1968
  %v1970 = vpop.f32.mrb[0].mxu0
  %1971 = vmatprep.mubr.f32.mxu0 0.0
  %1972 = vmatmul.mubr.f32.gmra.mrb[0].mxu0 %v798
  %v1973 = vpop.f32.mrb[0].mxu0
  %v1974 = vadd.f32 0.0, %v1973
  %v1975 = vpop.f32.mrb[0].mxu0
  %1976 = vmatprep.mubr.f32.mxu0 0.0
  %1977 = vmatmul.mubr.f32.gmra.mrb[0].mxu0 %v801
  %v1978 = vpop.f32.mrb[0].mxu0
  %v1979 = vadd.f32 0.0, %v1978
  %v1980 = vpop.f32.mrb[0].mxu0
  %1981 = vmatprep.mubr.f32.mxu0 0.0
  %1982 = vmatmul.mubr.f32.gmra.mrb[0].mxu0 %v804
  %v1983 = vpop.f32.mrb[0].mxu0
  %v1984 = vadd.f32 0.0, %v1983
  %v1985 = vpop.f32.mrb[0].mxu0
  %1986 = vmatprep.mubr.f32.mxu0 0.0
  %1987 = vmatmul.mubr.f32.gmra.mrb[0].mxu0 %v807
  %v1988 = vpop.f32.mrb[0].mxu0
  %v1989 = vadd.f32 0.0, %v1988
  %v1990 = vpop.f32.mrb[0].mxu0
  %1991 = vmatprep.mubr.f32.mxu0 0.0
  %1992 = vmatmul.mubr.f32.gmra.mrb[0].mxu0 %v810
  %v1993 = vpop.f32.mrb[0].mxu0
  %v1994 = vadd.f32 0.0, %v1993
  %v1995 = vpop.f32.mrb[0].mxu0
  %1996 = vmatprep.mubr.f32.mxu0 0.0
  %1997 = vmatmul.mubr.f32.gmra.mrb[0].mxu0 %v813
  %v1998 = vpop.f32.mrb[0].mxu0
  %v1999 = vadd.f32 0.0, %v1998
  %v2000 = vpop.f32.mrb[0].mxu0
  %2001 = vmatprep.mubr.f32.mxu0 0.0
  %2002 = vmatmul.mubr.f32.gmra.mrb[0].mxu0 %v816
  %v2003 = vpop.f32.mrb[0].mxu0
  %v2004 = vadd.f32 0.0, %v2003
  %v2005 = vpop.f32.mrb[0].mxu0
  %2006 = vmatprep.mubr.f32.mxu0 0.0
  %2007 = vmatmul.mubr.f32.gmra.mrb[0].mxu0 %v819
  %v2008 = vpop.f32.mrb[0].mxu0
  %v2009 = vadd.f32 0.0, %v2008
  %v2010 = vpop.f32.mrb[0].mxu0
  %2011 = vmatprep.mubr.f32.mxu0 0.0
  %2012 = vmatmul.mubr.f32.gmra.mrb[0].mxu0 %v822
  %v2013 = vpop.f32.mrb[0].mxu0
  %v2014 = vadd.f32 0.0, %v2013
  %v2015 = vpop.f32.mrb[0].mxu0
  %2016 = vmatprep.mubr.f32.mxu0 0.0
  %2017 = vmatmul.mubr.f32.gmra.mrb[0].mxu0 %v825
  %v2018 = vpop.f32.mrb[0].mxu0
  %v2019 = vadd.f32 0.0, %v2018
  %v2020 = vpop.f32.mrb[0].mxu0
  %2021 = vmatprep.mubr.f32.mxu0 0.0
  %2022 = vmatmul.mubr.f32.gmra.mrb[0].mxu0 %v828
  %v2023 = vpop.f32.mrb[0].mxu0
  %v2024 = vadd.f32 0.0, %v2023
  %v2025 = vpop.f32.mrb[0].mxu0
  %2026 = vmatprep.mubr.f32.mxu0 0.0
  %2027 = vmatmul.mubr.f32.gmra.mrb[0].mxu0 %v831
  %v2028 = vpop.f32.mrb[0].mxu0
  %v2029 = vadd.f32 0.0, %v2028
  %v2030 = vpop.f32.mrb[0].mxu0
  %2031 = vmatprep.mubr.f32.mxu0 0.0
  %2032 = vmatmul.mubr.f32.gmra.mrb[0].mxu0 %v834
  %v2033 = vpop.f32.mrb[0].mxu0
  %v2034 = vadd.f32 0.0, %v2033
  %v2035 = vpop.f32.mrb[0].mxu0
  %2036 = vmatprep.mubr.f32.mxu0 0.0
  %2037 = vmatmul.mubr.f32.gmra.mrb[0].mxu0 %v837
  %v2038 = vpop.f32.mrb[0].mxu0
  %v2039 = vadd.f32 0.0, %v2038
  %v2040 = vpop.f32.mrb[0].mxu0
  %2041 = vmatprep.mubr.f32.mxu0 0.0
  %2042 = vmatmul.mubr.f32.gmra.mrb[0].mxu0 %v840
  %v2043 = vpop.f32.mrb[0].mxu0
  %v2044 = vadd.f32 0.0, %v2043
  %v2045 = vpop.f32.mrb[0].mxu0
  %2046 = vmatprep.mubr.f32.mxu0 0.0
  %2047 = vmatmul.mubr.f32.gmra.mrb[0].mxu0 %v843
  %v2048 = vpop.f32.mrb[0].mxu0
  %v2049 = vadd.f32 0.0, %v2048
  %v2050 = vpop.f32.mrb[0].mxu0
  %2051 = vmatprep.mubr.f32.mxu0 0.0
  %2052 = vmatmul.mubr.f32.gmra.mrb[0].mxu0 %v846
  %v2053 = vpop.f32.mrb[0].mxu0
  %v2054 = vadd.f32 0.0, %v2053
  %v2055 = vpop.f32.mrb[0].mxu0
  %2056 = vmatprep.mubr.f32.mxu0 0.0
  %2057 = vmatmul.mubr.f32.gmra.mrb[0].mxu0 %v849
  %v2058 = vpop.f32.mrb[0].mxu0
  %v2059 = vadd.f32 0.0, %v2058
  %v2060 = vpop.f32.mrb[0].mxu0
  %2061 = vmatprep.mubr.f32.mxu0 0.0
  %2062 = vmatmul.mubr.f32.gmra.mrb[0].mxu0 %v852
  %v2063 = vpop.f32.mrb[0].mxu0
  %v2064 = vadd.f32 0.0, %v2063
  %v2065 = vpop.f32.mrb[0].mxu0
  %2066 = vmatprep.mubr.f32.mxu0 0.0
  %2067 = vmatmul.mubr.f32.gmra.mrb[0].mxu0 %v855
  %v2068 = vpop.f32.mrb[0].mxu0
  %v2069 = vadd.f32 0.0, %v2068
  %v2070 = vpop.f32.mrb[0].mxu0
  %2071 = vmatprep.mubr.f32.mxu0 0.0
  %2072 = vmatmul.mubr.f32.gmra.mrb[0].mxu0 %v858
  %v2073 = vpop.f32.mrb[0].mxu0
  %v2074 = vadd.f32 0.0, %v2073
  %v2075 = vpop.f32.mrb[0].mxu0
  %2076 = vmatprep.mubr.f32.mxu0 0.0
  %2077 = vmatmul.mubr.f32.gmra.mrb[0].mxu0 %v861
  %v2078 = vpop.f32.mrb[0].mxu0
  %v2079 = vadd.f32 0.0, %v2078
  %v2080 = vpop.f32.mrb[0].mxu0
  %2081 = vmatprep.mubr.f32.mxu0 0.0
  %2082 = vmatmul.mubr.f32.gmra.mrb[0].mxu0 %v864
  %v2083 = vpop.f32.mrb[0].mxu0
  %v2084 = vadd.f32 0.0, %v2083
  %v2085 = vpop.f32.mrb[0].mxu0
  %2086 = vmatprep.mubr.f32.mxu0 0.0
  %2087 = vmatmul.mubr.f32.gmra.mrb[0].mxu0 %v867
  %v2088 = vpop.f32.mrb[0].mxu0
  %v2089 = vadd.f32 0.0, %v2088
  %v2090 = vpop.f32.mrb[0].mxu0
  %2091 = vmatprep.mubr.f32.mxu0 0.0
  %2092 = vmatmul.mubr.f32.gmra.mrb[0].mxu0 %v870
  %v2093 = vpop.f32.mrb[0].mxu0
  %v2094 = vadd.f32 0.0, %v2093
  %v2095 = vpop.f32.mrb[0].mxu0
  %2096 = vmatprep.mubr.f32.mxu0 0.0
  %2097 = vmatmul.mubr.f32.gmra.mrb[0].mxu0 %v873
  %v2098 = vpop.f32.mrb[0].mxu0
  %v2099 = vadd.f32 0.0, %v2098
  %v2100 = vpop.f32.mrb[0].mxu0
  %2101 = vmatprep.mubr.f32.mxu0 0.0
  %2102 = vmatmul.mubr.f32.gmra.mrb[0].mxu0 %v876
  %v2103 = vpop.f32.mrb[0].mxu0
  %v2104 = vadd.f32 0.0, %v2103
  %v2105 = vpop.f32.mrb[0].mxu0
  %2106 = vmatprep.mubr.f32.mxu0 0.0
  %2107 = vmatmul.mubr.f32.gmra.mrb[0].mxu0 %v879
  %v2108 = vpop.f32.mrb[0].mxu0
  %v2109 = vadd.f32 0.0, %v2108
  %v2110 = vpop.f32.mrb[0].mxu0
  %2111 = vmatprep.mubr.f32.mxu0 0.0
  %2112 = vmatmul.mubr.f32.gmra.mrb[0].mxu0 %v882
  %v2113 = vpop.f32.mrb[0].mxu0
  %v2114 = vadd.f32 0.0, %v2113
  %v2115 = vpop.f32.mrb[0].mxu0
  %2116 = vmatprep.mubr.f32.mxu0 0.0
  %2117 = vmatmul.mubr.f32.gmra.mrb[0].mxu0 %v885
  %v2118 = vpop.f32.mrb[0].mxu0
  %v2119 = vadd.f32 0.0, %v2118
  %v2120 = vpop.f32.mrb[0].mxu0
  %2121 = vmatprep.mubr.f32.mxu0 0.0
  %2122 = vmatmul.mubr.f32.gmra.mrb[0].mxu0 %v888
  %v2123 = vpop.f32.mrb[0].mxu0
  %v2124 = vadd.f32 0.0, %v2123
  %v2125 = vpop.f32.mrb[0].mxu0
  %2126 = vmatprep.mubr.f32.mxu0 0.0
  %2127 = vmatmul.mubr.f32.gmra.mrb[0].mxu0 %v891
  %v2128 = vpop.f32.mrb[0].mxu0
  %v2129 = vadd.f32 0.0, %v2128
  %v2130 = vpop.f32.mrb[0].mxu0
  %2131 = vmatprep.mubr.f32.mxu0 0.0
  %2132 = vmatmul.mubr.f32.gmra.mrb[0].mxu0 %v894
  %v2133 = vpop.f32.mrb[0].mxu0
  %v2134 = vadd.f32 0.0, %v2133
  %v2135 = vpop.f32.mrb[0].mxu0
  %2136 = vmatprep.mubr.f32.mxu0 0.0
  %2137 = vmatmul.mubr.f32.gmra.mrb[0].mxu0 %v897
  %v2138 = vpop.f32.mrb[0].mxu0
  %v2139 = vadd.f32 0.0, %v2138
  %v2140 = vpop.f32.mrb[0].mxu0
  %2141 = vmatprep.mubr.f32.mxu0 0.0
  %2142 = vmatmul.mubr.f32.gmra.mrb[0].mxu0 %v900
  %v2143 = vpop.f32.mrb[0].mxu0
  %v2144 = vadd.f32 0.0, %v2143
  %v2145 = vpop.f32.mrb[0].mxu0
  %2146 = vmatprep.mubr.f32.mxu0 0.0
  %2147 = vmatmul.mubr.f32.gmra.mrb[0].mxu0 %v903
  %v2148 = vpop.f32.mrb[0].mxu0
  %v2149 = vadd.f32 0.0, %v2148
  %v2150 = vpop.f32.mrb[0].mxu0
  %2151 = vmatprep.mubr.f32.mxu0 0.0
  %2152 = vmatmul.mubr.f32.gmra.mrb[0].mxu0 %v906
  %v2153 = vpop.f32.mrb[0].mxu0
  %v2154 = vadd.f32 0.0, %v2153
  %v2155 = vpop.f32.mrb[0].mxu0
  %2156 = vmatprep.mubr.f32.mxu0 0.0
  %2157 = vmatmul.mubr.f32.gmra.mrb[0].mxu0 %v909
  %v2158 = vpop.f32.mrb[0].mxu0
  %v2159 = vadd.f32 0.0, %v2158
  %v2160 = vpop.f32.mrb[0].mxu0
  %2161 = vmatprep.mubr.f32.mxu0 0.0
  %2162 = vmatmul.mubr.f32.gmra.mrb[0].mxu0 %v912
  %v2163 = vpop.f32.mrb[0].mxu0
  %v2164 = vadd.f32 0.0, %v2163
  %v2165 = vpop.f32.mrb[0].mxu0
  %2166 = vmatprep.mubr.f32.mxu0 0.0
  %2167 = vmatmul.mubr.f32.gmra.mrb[0].mxu0 %v915
  %v2168 = vpop.f32.mrb[0].mxu0
  %v2169 = vadd.f32 0.0, %v2168
  %v2170 = vpop.f32.mrb[0].mxu0
  %2171 = vmatprep.mubr.f32.mxu0 0.0
  %2172 = vmatmul.mubr.f32.gmra.mrb[0].mxu0 %v918
  %v2173 = vpop.f32.mrb[0].mxu0
  %v2174 = vadd.f32 0.0, %v2173
  %v2175 = vpop.f32.mrb[0].mxu0
  %2176 = vmatprep.mubr.f32.mxu0 0.0
  %2177 = vmatmul.mubr.f32.gmra.mrb[0].mxu0 %v921
  %v2178 = vpop.f32.mrb[0].mxu0
  %v2179 = vadd.f32 0.0, %v2178
  %v2180 = vpop.f32.mrb[0].mxu0
  %2181 = vmatprep.mubr.f32.mxu0 0.0
  %2182 = vmatmul.mubr.f32.gmra.mrb[0].mxu0 %v924
  %v2183 = vpop.f32.mrb[0].mxu0
  %v2184 = vadd.f32 0.0, %v2183
  %v2185 = vpop.f32.mrb[0].mxu0
  %2186 = vmatprep.mubr.f32.mxu0 0.0
  %2187 = vmatmul.mubr.f32.gmra.mrb[0].mxu0 %v927
  %v2188 = vpop.f32.mrb[0].mxu0
  %v2189 = vadd.f32 0.0, %v2188
  %v2190 = vpop.f32.mrb[0].mxu0
  %2191 = vmatprep.mubr.f32.mxu0 0.0
  %2192 = vmatmul.mubr.f32.gmra.mrb[0].mxu0 %v930
  %v2193 = vpop.f32.mrb[0].mxu0
  %v2194 = vadd.f32 0.0, %v2193
  %v2195 = vpop.f32.mrb[0].mxu0
  %2196 = vmatprep.mubr.f32.mxu0 0.0
  %2197 = vmatmul.mubr.f32.gmra.mrb[0].mxu0 %v933
  %v2198 = vpop.f32.mrb[0].mxu0
  %v2199 = vadd.f32 0.0, %v2198
  %v2200 = vpop.f32.mrb[0].mxu0
  %2201 = vmatprep.mubr.f32.mxu0 0.0
  %2202 = vmatmul.mubr.f32.gmra.mrb[0].mxu0 %v936
  %v2203 = vpop.f32.mrb[0].mxu0
  %v2204 = vadd.f32 0.0, %v2203
  %v2205 = vpop.f32.mrb[0].mxu0
  %2206 = vmatprep.mubr.f32.mxu0 0.0
  %2207 = vmatmul.mubr.f32.gmra.mrb[0].mxu0 %v939
  %v2208 = vpop.f32.mrb[0].mxu0
  %v2209 = vadd.f32 0.0, %v2208
  %v2210 = vpop.f32.mrb[0].mxu0
  %2211 = vmatprep.mubr.f32.mxu0 0.0
  %2212 = vmatmul.mubr.f32.gmra.mrb[0].mxu0 %v942
  %v2213 = vpop.f32.mrb[0].mxu0
  %v2214 = vadd.f32 0.0, %v2213
  %v2215 = vpop.f32.mrb[0].mxu0
  %2216 = vmatprep.mubr.f32.mxu0 0.0
  %2217 = vmatmul.mubr.f32.gmra.mrb[0].mxu0 %v945
  %v2218 = vpop.f32.mrb[0].mxu0
  %v2219 = vadd.f32 0.0, %v2218
  %v2220 = vpop.f32.mrb[0].mxu0
  %2221 = vmatprep.mubr.f32.mxu0 0.0
  %2222 = vmatmul.mubr.f32.gmra.mrb[0].mxu0 %v948
  %v2223 = vpop.f32.mrb[0].mxu0
  %v2224 = vadd.f32 0.0, %v2223
  %v2225 = vpop.f32.mrb[0].mxu0
  %2226 = vmatprep.mubr.f32.mxu0 0.0
  %2227 = vmatmul.mubr.f32.gmra.mrb[0].mxu0 %v951
  %v2228 = vpop.f32.mrb[0].mxu0
  %v2229 = vadd.f32 0.0, %v2228
  %v2230 = vpop.f32.mrb[0].mxu0
  %2231 = vmatprep.mubr.f32.mxu0 0.0
  %2232 = vmatmul.mubr.f32.gmra.mrb[0].mxu0 %v954
  %v2233 = vpop.f32.mrb[0].mxu0
  %v2234 = vadd.f32 0.0, %v2233
  %v2235 = vpop.f32.mrb[0].mxu0
  %2236 = vmatprep.mubr.f32.mxu0 0.0
  %2237 = vmatmul.mubr.f32.gmra.mrb[0].mxu0 %v957
  %v2238 = vpop.f32.mrb[0].mxu0
  %v2239 = vadd.f32 0.0, %v2238
  %v2240 = vpop.f32.mrb[0].mxu0
  %2241 = vmatprep.mubr.f32.mxu0 0.0
  %2242 = vmatmul.mubr.f32.gmra.mrb[0].mxu0 %v960
  %v2243 = vpop.f32.mrb[0].mxu0
  %v2244 = vadd.f32 0.0, %v2243
  %v2245 = vpop.f32.mrb[0].mxu0
  %2246 = vmatprep.mubr.f32.mxu0 0.0
  %2247 = vmatmul.mubr.f32.gmra.mrb[0].mxu0 %v963
  %v2248 = vpop.f32.mrb[0].mxu0
  %v2249 = vadd.f32 0.0, %v2248
  %v2250 = vpop.f32.mrb[0].mxu0
  %2251 = vmatprep.mubr.f32.mxu0 0.0
  %2252 = vmatmul.mubr.f32.gmra.mrb[0].mxu0 %v966
  %v2253 = vpop.f32.mrb[0].mxu0
  %v2254 = vadd.f32 0.0, %v2253
  %v2255 = vpop.f32.mrb[0].mxu0
  %2256 = vmatprep.mubr.f32.mxu0 0.0
  %2257 = vmatmul.mubr.f32.gmra.mrb[0].mxu0 %v969
  %v2258 = vpop.f32.mrb[0].mxu0
  %v2259 = vadd.f32 0.0, %v2258
  %v2260 = vpop.f32.mrb[0].mxu0
  %2261 = vmatprep.mubr.f32.mxu0 0.0
  %2262 = vmatmul.mubr.f32.gmra.mrb[0].mxu0 %v972
  %v2263 = vpop.f32.mrb[0].mxu0
  %v2264 = vadd.f32 0.0, %v2263
  %v2265 = vpop.f32.mrb[0].mxu0
  %2266 = vmatprep.mubr.f32.mxu0 0.0
  %2267 = vmatmul.mubr.f32.gmra.mrb[0].mxu0 %v975
  %v2268 = vpop.f32.mrb[0].mxu0
  %v2269 = vadd.f32 0.0, %v2268
  %v2270 = vpop.f32.mrb[0].mxu0
  %2271 = vmatprep.mubr.f32.mxu0 0.0
  %2272 = vmatmul.mubr.f32.gmra.mrb[0].mxu0 %v978
  %v2273 = vpop.f32.mrb[0].mxu0
  %v2274 = vadd.f32 0.0, %v2273
  %v2275 = vpop.f32.mrb[0].mxu0
  %2276 = vmatprep.mubr.f32.mxu0 0.0
  %2277 = vmatmul.mubr.f32.gmra.mrb[0].mxu0 %v981
  %v2278 = vpop.f32.mrb[0].mxu0
  %v2279 = vadd.f32 0.0, %v2278
  %v2280 = vpop.f32.mrb[0].mxu0
  %2281 = vmatprep.mubr.f32.mxu0 0.0
  %2282 = vmatmul.mubr.f32.gmra.mrb[0].mxu0 %v984
  %v2283 = vpop.f32.mrb[0].mxu0
  %v2284 = vadd.f32 0.0, %v2283
  %v2285 = vpop.f32.mrb[0].mxu0
  %2286 = vmatprep.mubr.f32.mxu0 0.0
  %2287 = vmatmul.mubr.f32.gmra.mrb[0].mxu0 %v987
  %v2288 = vpop.f32.mrb[0].mxu0
  %v2289 = vadd.f32 0.0, %v2288
  %v2290 = vpop.f32.mrb[0].mxu0
  %2291 = vmatprep.mubr.f32.mxu0 0.0
  %2292 = vmatmul.mubr.f32.gmra.mrb[0].mxu0 %v990
  %v2293 = vpop.f32.mrb[0].mxu0
  %v2294 = vadd.f32 0.0, %v2293
  %v2295 = vpop.f32.mrb[0].mxu0
  %2296 = vmatprep.mubr.f32.mxu0 0.0
  %2297 = vmatmul.mubr.f32.gmra.mrb[0].mxu0 %v993
  %v2298 = vpop.f32.mrb[0].mxu0
  %v2299 = vadd.f32 0.0, %v2298
  %v2300 = vpop.f32.mrb[0].mxu0
  %2301 = vmatprep.mubr.f32.mxu0 0.0
  %2302 = vmatmul.mubr.f32.gmra.mrb[0].mxu0 %v996
  %v2303 = vpop.f32.mrb[0].mxu0
  %v2304 = vadd.f32 0.0, %v2303
  %v2305 = vpop.f32.mrb[0].mxu0
  %2306 = vmatprep.mubr.f32.mxu0 0.0
  %2307 = vmatmul.mubr.f32.gmra.mrb[0].mxu0 %v999
  %v2308 = vpop.f32.mrb[0].mxu0
  %v2309 = vadd.f32 0.0, %v2308
  %v2310 = vpop.f32.mrb[0].mxu0
  %2311 = vmatprep.mubr.f32.mxu0 0.0
  %2312 = vmatmul.mubr.f32.gmra.mrb[0].mxu0 %v1002
  %v2313 = vpop.f32.mrb[0].mxu0
  %v2314 = vadd.f32 0.0, %v2313
  %v2315 = vpop.f32.mrb[0].mxu0
  %2316 = vmatprep.mubr.f32.mxu0 0.0
  %2317 = vmatmul.mubr.f32.gmra.mrb[0].mxu0 %v1005
  %v2318 = vpop.f32.mrb[0].mxu0
  %v2319 = vadd.f32 0.0, %v2318
  %v2320 = vpop.f32.mrb[0].mxu0
  %2321 = vmatprep.mubr.f32.mxu0 0.0
  %2322 = vmatmul.mubr.f32.gmra.mrb[0].mxu0 %v1008
  %v2323 = vpop.f32.mrb[0].mxu0
  %v2324 = vadd.f32 0.0, %v2323
  %v2325 = vpop.f32.mrb[0].mxu0
  %2326 = vmatprep.mubr.f32.mxu0 0.0
  %2327 = vmatmul.mubr.f32.gmra.mrb[0].mxu0 %v1011
  %v2328 = vpop.f32.mrb[0].mxu0
  %v2329 = vadd.f32 0.0, %v2328
  %v2330 = vpop.f32.mrb[0].mxu0
  %2331 = vmatprep.mubr.f32.mxu0 0.0
  %2332 = vmatmul.mubr.f32.gmra.mrb[0].mxu0 %v1014
  %v2333 = vpop.f32.mrb[0].mxu0
  %v2334 = vadd.f32 0.0, %v2333
  %v2335 = vpop.f32.mrb[0].mxu0
  %2336 = vmatprep.mubr.f32.mxu0 0.0
  %2337 = vmatmul.mubr.f32.gmra.mrb[0].mxu0 %v1017
  %v2338 = vpop.f32.mrb[0].mxu0
  %v2339 = vadd.f32 0.0, %v2338
  %v2340 = vpop.f32.mrb[0].mxu0
  %2341 = vmatprep.mubr.f32.mxu0 0.0
  %2342 = vmatmul.mubr.f32.gmra.mrb[0].mxu0 %v1020
  %v2343 = vpop.f32.mrb[0].mxu0
  %v2344 = vadd.f32 0.0, %v2343
  %v2345 = vpop.f32.mrb[0].mxu0
  %2346 = vmatprep.mubr.f32.mxu0 0.0
  %2347 = vmatmul.mubr.f32.gmra.mrb[0].mxu0 %v1023
  %v2348 = vpop.f32.mrb[0].mxu0
  %v2349 = vadd.f32 0.0, %v2348
  %v2350 = vpop.f32.mrb[0].mxu0
  %2351 = vmatprep.mubr.f32.mxu0 0.0
  %2352 = vmatmul.mubr.f32.gmra.mrb[0].mxu0 %v1026
  %v2353 = vpop.f32.mrb[0].mxu0
  %v2354 = vadd.f32 0.0, %v2353
  %v2355 = vpop.f32.mrb[0].mxu0
  %2356 = vmatprep.mubr.f32.mxu0 0.0
  %2357 = vmatmul.mubr.f32.gmra.mrb[0].mxu0 %v1029
  %v2358 = vpop.f32.mrb[0].mxu0
  %v2359 = vadd.f32 0.0, %v2358
  %v2360 = vpop.f32.mrb[0].mxu0
  %2361 = vmatprep.mubr.f32.mxu0 0.0
  %2362 = vmatmul.mubr.f32.gmra.mrb[0].mxu0 %v1032
  %v2363 = vpop.f32.mrb[0].mxu0
  %v2364 = vadd.f32 0.0, %v2363
  %v2365 = vpop.f32.mrb[0].mxu0
  %2366 = vmatprep.mubr.f32.mxu0 0.0
  %2367 = vmatmul.mubr.f32.gmra.mrb[0].mxu0 %v1035
  %v2368 = vpop.f32.mrb[0].mxu0
  %v2369 = vadd.f32 0.0, %v2368
  %v2370 = vpop.f32.mrb[0].mxu0
  %2371 = vmatprep.mubr.f32.mxu0 0.0
  %2372 = vmatmul.mubr.f32.gmra.mrb[0].mxu0 %v1038
  %v2373 = vpop.f32.mrb[0].mxu0
  %v2374 = vadd.f32 0.0, %v2373
  %v2375 = vpop.f32.mrb[0].mxu0
  %2376 = vmatprep.mubr.f32.mxu0 0.0
  %2377 = vmatmul.mubr.f32.gmra.mrb[0].mxu0 %v1041
  %v2378 = vpop.f32.mrb[0].mxu0
  %v2379 = vadd.f32 0.0, %v2378
  %v2380 = vpop.f32.mrb[0].mxu0
  %2381 = vmatprep.mubr.f32.mxu0 0.0
  %2382 = vmatmul.mubr.f32.gmra.mrb[0].mxu0 %v1044
  %v2383 = vpop.f32.mrb[0].mxu0
  %v2384 = vadd.f32 0.0, %v2383
  %v2385 = vpop.f32.mrb[0].mxu0
  %2386 = vmatprep.mubr.f32.mxu0 0.0
  %2387 = vmatmul.mubr.f32.gmra.mrb[0].mxu0 %v1047
  %v2388 = vpop.f32.mrb[0].mxu0
  %v2389 = vadd.f32 0.0, %v2388
  %v2390 = vpop.f32.mrb[0].mxu0
  %2391 = vmatprep.mubr.f32.mxu0 0.0
  %2392 = vmatmul.mubr.f32.gmra.mrb[0].mxu0 %v1050
  %v2393 = vpop.f32.mrb[0].mxu0
  %v2394 = vadd.f32 0.0, %v2393
  %v2395 = vpop.f32.mrb[0].mxu0
  %2396 = vdwg.mxu0
  %v2397 = vld [vmem:[%s2] sm:$0x1]
  %v2398 = vld [vmem:[%s3] sm:$0x1]
  %v2399 = vadd.f32 %v1119, %v1124
  %v2400 = vadd.f32 %v2399, %v1129
  %v2401 = vadd.f32 %v2400, %v1134
  %v2402 = vadd.f32 %v2401, %v1139
  %v2403 = vadd.f32 %v2402, %v1144
  %v2404 = vadd.f32 %v2403, %v1149
  %v2405 = vadd.f32 %v2404, %v1154
  %v2406 = vadd.f32 %v2405, %v1159
  %v2407 = vadd.f32 %v2406, %v1164
  %v2408 = vadd.f32 %v2407, %v1169
  %v2409 = vadd.f32 %v2408, %v1174
  %v2410 = vadd.f32 %v2409, %v1179
  %v2411 = vadd.f32 %v2410, %v1184
  %v2412 = vadd.f32 %v2411, %v1189
  %v2413 = vadd.f32 %v2412, %v1194
  %v2414 = vadd.f32 %v2413, %v1199
  %v2415 = vadd.f32 %v2414, %v1204
  %v2416 = vadd.f32 %v2415, %v1209
  %v2417 = vadd.f32 %v2416, %v1214
  %v2418 = vadd.f32 %v2417, %v1219
  %v2419 = vadd.f32 %v2418, %v1224
  %v2420 = vadd.f32 %v2419, %v1229
  %v2421 = vadd.f32 %v2420, %v1234
  %v2422 = vadd.f32 %v2421, %v1239
  %v2423 = vadd.f32 %v2422, %v1244
  %v2424 = vadd.f32 %v2423, %v1249
  %v2425 = vadd.f32 %v2424, %v1254
  %v2426 = vadd.f32 %v2425, %v1259
  %v2427 = vadd.f32 %v2426, %v1264
  %v2428 = vadd.f32 %v2427, %v1269
  %v2429 = vadd.f32 %v2428, %v1274
  %v2430 = vadd.f32 %v2429, %v1279
  %v2431 = vadd.f32 %v2430, %v1284
  %v2432 = vadd.f32 %v2431, %v1289
  %v2433 = vadd.f32 %v2432, %v1294
  %v2434 = vadd.f32 %v2433, %v1299
  %v2435 = vadd.f32 %v2434, %v1304
  %v2436 = vadd.f32 %v2435, %v1309
  %v2437 = vadd.f32 %v2436, %v1314
  %v2438 = vadd.f32 %v2437, %v1319
  %v2439 = vadd.f32 %v2438, %v1324
  %v2440 = vadd.f32 %v2439, %v1329
  %v2441 = vadd.f32 %v2440, %v1334
  %v2442 = vadd.f32 %v2441, %v1339
  %v2443 = vadd.f32 %v2442, %v1344
  %v2444 = vadd.f32 %v2443, %v1349
  %v2445 = vadd.f32 %v2444, %v1354
  %v2446 = vadd.f32 %v2445, %v1359
  %v2447 = vadd.f32 %v2446, %v1364
  %v2448 = vadd.f32 %v2447, %v1369
  %v2449 = vadd.f32 %v2448, %v1374
  %v2450 = vadd.f32 %v2449, %v1379
  %v2451 = vadd.f32 %v2450, %v1384
  %v2452 = vadd.f32 %v2451, %v1389
  %v2453 = vadd.f32 %v2452, %v1394
  %v2454 = vadd.f32 %v2453, %v1399
  %v2455 = vadd.f32 %v2454, %v1404
  %v2456 = vadd.f32 %v2455, %v1409
  %v2457 = vadd.f32 %v2456, %v1414
  %v2458 = vadd.f32 %v2457, %v1419
  %v2459 = vadd.f32 %v2458, %v1424
  %v2460 = vadd.f32 %v2459, %v1429
  %v2461 = vadd.f32 %v2460, %v1434
  %v2462 = vadd.f32 %v2461, %v1439
  %v2463 = vadd.f32 %v2462, %v1444
  %v2464 = vadd.f32 %v2463, %v1449
  %v2465 = vadd.f32 %v2464, %v1454
  %v2466 = vadd.f32 %v2465, %v1459
  %v2467 = vadd.f32 %v2466, %v1464
  %v2468 = vadd.f32 %v2467, %v1469
  %v2469 = vadd.f32 %v2468, %v1474
  %v2470 = vadd.f32 %v2469, %v1479
  %v2471 = vadd.f32 %v2470, %v1484
  %v2472 = vadd.f32 %v2471, %v1489
  %v2473 = vadd.f32 %v2472, %v1494
  %v2474 = vadd.f32 %v2473, %v1499
  %v2475 = vadd.f32 %v2474, %v1504
  %v2476 = vadd.f32 %v2475, %v1509
  %v2477 = vadd.f32 %v2476, %v1514
  %v2478 = vadd.f32 %v2477, %v1519
  %v2479 = vadd.f32 %v2478, %v1524
  %v2480 = vadd.f32 %v2479, %v1529
  %v2481 = vadd.f32 %v2480, %v1534
  %v2482 = vadd.f32 %v2481, %v1539
  %v2483 = vadd.f32 %v2482, %v1544
  %v2484 = vadd.f32 %v2483, %v1549
  %v2485 = vadd.f32 %v2484, %v1554
  %v2486 = vadd.f32 %v2485, %v1559
  %v2487 = vadd.f32 %v2486, %v1564
  %v2488 = vadd.f32 %v2487, %v1569
  %v2489 = vadd.f32 %v2488, %v1574
  %v2490 = vadd.f32 %v2489, %v1579
  %v2491 = vadd.f32 %v2490, %v1584
  %v2492 = vadd.f32 %v2491, %v1589
  %v2493 = vadd.f32 %v2492, %v1594
  %v2494 = vadd.f32 %v2493, %v1599
  %v2495 = vadd.f32 %v2494, %v1604
  %v2496 = vadd.f32 %v2495, %v1609
  %v2497 = vadd.f32 %v2496, %v1614
  %v2498 = vadd.f32 %v2497, %v1619
  %v2499 = vadd.f32 %v2498, %v1624
  %v2500 = vadd.f32 %v2499, %v1629
  %v2501 = vadd.f32 %v2500, %v1634
  %v2502 = vadd.f32 %v2501, %v1639
  %v2503 = vadd.f32 %v2502, %v1644
  %v2504 = vadd.f32 %v2503, %v1649
  %v2505 = vadd.f32 %v2504, %v1654
  %v2506 = vadd.f32 %v2505, %v1659
  %v2507 = vadd.f32 %v2506, %v1664
  %v2508 = vadd.f32 %v2507, %v1669
  %v2509 = vadd.f32 %v2508, %v1674
  %v2510 = vadd.f32 %v2509, %v1679
  %v2511 = vadd.f32 %v2510, %v1684
  %v2512 = vadd.f32 %v2511, %v1689
  %v2513 = vadd.f32 %v2512, %v1694
  %v2514 = vadd.f32 %v2513, %v1699
  %v2515 = vadd.f32 %v2514, %v1704
  %v2516 = vadd.f32 %v2515, %v1709
  %v2517 = vadd.f32 %v2516, %v1714
  %v2518 = vadd.f32 %v2517, %v1719
  %v2519 = vadd.f32 %v2518, %v1724
  %v2520 = vadd.f32 %v2519, %v1729
  %v2521 = vadd.f32 %v2520, %v1734
  %v2522 = vadd.f32 %v2521, %v1739
  %v2523 = vadd.f32 %v2522, %v1744
  %v2524 = vadd.f32 %v2523, %v1749
  %v2525 = vadd.f32 %v2524, %v1754
  %v2526 = vadd.f32 %v2525, %v1759
  %v2527 = vadd.f32 %v2526, %v1764
  %v2528 = vadd.f32 %v2527, %v1769
  %v2529 = vadd.f32 %v2528, %v1774
  %v2530 = vadd.f32 %v2529, %v1779
  %v2531 = vadd.f32 %v2530, %v1784
  %v2532 = vadd.f32 %v2531, %v1789
  %v2533 = vadd.f32 %v2532, %v1794
  %v2534 = vadd.f32 %v2533, %v1799
  %v2535 = vadd.f32 %v2534, %v1804
  %v2536 = vadd.f32 %v2535, %v1809
  %v2537 = vadd.f32 %v2536, %v1814
  %v2538 = vadd.f32 %v2537, %v1819
  %v2539 = vadd.f32 %v2538, %v1824
  %v2540 = vadd.f32 %v2539, %v1829
  %v2541 = vadd.f32 %v2540, %v1834
  %v2542 = vadd.f32 %v2541, %v1839
  %v2543 = vadd.f32 %v2542, %v1844
  %v2544 = vadd.f32 %v2543, %v1849
  %v2545 = vadd.f32 %v2544, %v1854
  %v2546 = vadd.f32 %v2545, %v1859
  %v2547 = vadd.f32 %v2546, %v1864
  %v2548 = vadd.f32 %v2547, %v1869
  %v2549 = vadd.f32 %v2548, %v1874
  %v2550 = vadd.f32 %v2549, %v1879
  %v2551 = vadd.f32 %v2550, %v1884
  %v2552 = vadd.f32 %v2551, %v1889
  %v2553 = vadd.f32 %v2552, %v1894
  %v2554 = vadd.f32 %v2553, %v1899
  %v2555 = vadd.f32 %v2554, %v1904
  %v2556 = vadd.f32 %v2555, %v1909
  %v2557 = vadd.f32 %v2556, %v1914
  %v2558 = vadd.f32 %v2557, %v1919
  %v2559 = vadd.f32 %v2558, %v1924
  %v2560 = vadd.f32 %v2559, %v1929
  %v2561 = vadd.f32 %v2560, %v1934
  %v2562 = vadd.f32 %v2561, %v1939
  %v2563 = vadd.f32 %v2562, %v1944
  %v2564 = vadd.f32 %v2563, %v1949
  %v2565 = vadd.f32 %v2564, %v1954
  %v2566 = vadd.f32 %v2565, %v1959
  %v2567 = vadd.f32 %v2566, %v1964
  %v2568 = vadd.f32 %v2567, %v1969
  %v2569 = vadd.f32 %v2568, %v1974
  %v2570 = vadd.f32 %v2569, %v1979
  %v2571 = vadd.f32 %v2570, %v1984
  %v2572 = vadd.f32 %v2571, %v1989
  %v2573 = vadd.f32 %v2572, %v1994
  %v2574 = vadd.f32 %v2573, %v1999
  %v2575 = vadd.f32 %v2574, %v2004
  %v2576 = vadd.f32 %v2575, %v2009
  %v2577 = vadd.f32 %v2576, %v2014
  %v2578 = vadd.f32 %v2577, %v2019
  %v2579 = vadd.f32 %v2578, %v2024
  %v2580 = vadd.f32 %v2579, %v2029
  %v2581 = vadd.f32 %v2580, %v2034
  %v2582 = vadd.f32 %v2581, %v2039
  %v2583 = vadd.f32 %v2582, %v2044
  %v2584 = vadd.f32 %v2583, %v2049
  %v2585 = vadd.f32 %v2584, %v2054
  %v2586 = vadd.f32 %v2585, %v2059
  %v2587 = vadd.f32 %v2586, %v2064
  %v2588 = vadd.f32 %v2587, %v2069
  %v2589 = vadd.f32 %v2588, %v2074
  %v2590 = vadd.f32 %v2589, %v2079
  %v2591 = vadd.f32 %v2590, %v2084
  %v2592 = vadd.f32 %v2591, %v2089
  %v2593 = vadd.f32 %v2592, %v2094
  %v2594 = vadd.f32 %v2593, %v2099
  %v2595 = vadd.f32 %v2594, %v2104
  %v2596 = vadd.f32 %v2595, %v2109
  %v2597 = vadd.f32 %v2596, %v2114
  %v2598 = vadd.f32 %v2597, %v2119
  %v2599 = vadd.f32 %v2598, %v2124
  %v2600 = vadd.f32 %v2599, %v2129
  %v2601 = vadd.f32 %v2600, %v2134
  %v2602 = vadd.f32 %v2601, %v2139
  %v2603 = vadd.f32 %v2602, %v2144
  %v2604 = vadd.f32 %v2603, %v2149
  %v2605 = vadd.f32 %v2604, %v2154
  %v2606 = vadd.f32 %v2605, %v2159
  %v2607 = vadd.f32 %v2606, %v2164
  %v2608 = vadd.f32 %v2607, %v2169
  %v2609 = vadd.f32 %v2608, %v2174
  %v2610 = vadd.f32 %v2609, %v2179
  %v2611 = vadd.f32 %v2610, %v2184
  %v2612 = vadd.f32 %v2611, %v2189
  %v2613 = vadd.f32 %v2612, %v2194
  %v2614 = vadd.f32 %v2613, %v2199
  %v2615 = vadd.f32 %v2614, %v2204
  %v2616 = vadd.f32 %v2615, %v2209
  %v2617 = vadd.f32 %v2616, %v2214
  %v2618 = vadd.f32 %v2617, %v2219
  %v2619 = vadd.f32 %v2618, %v2224
  %v2620 = vadd.f32 %v2619, %v2229
  %v2621 = vadd.f32 %v2620, %v2234
  %v2622 = vadd.f32 %v2621, %v2239
  %v2623 = vadd.f32 %v2622, %v2244
  %v2624 = vadd.f32 %v2623, %v2249
  %v2625 = vadd.f32 %v2624, %v2254
  %v2626 = vadd.f32 %v2625, %v2259
  %v2627 = vadd.f32 %v2626, %v2264
  %v2628 = vadd.f32 %v2627, %v2269
  %v2629 = vadd.f32 %v2628, %v2274
  %v2630 = vadd.f32 %v2629, %v2279
  %v2631 = vadd.f32 %v2630, %v2284
  %v2632 = vadd.f32 %v2631, %v2289
  %v2633 = vadd.f32 %v2632, %v2294
  %v2634 = vadd.f32 %v2633, %v2299
  %v2635 = vadd.f32 %v2634, %v2304
  %v2636 = vadd.f32 %v2635, %v2309
  %v2637 = vadd.f32 %v2636, %v2314
  %v2638 = vadd.f32 %v2637, %v2319
  %v2639 = vadd.f32 %v2638, %v2324
  %v2640 = vadd.f32 %v2639, %v2329
  %v2641 = vadd.f32 %v2640, %v2334
  %v2642 = vadd.f32 %v2641, %v2339
  %v2643 = vadd.f32 %v2642, %v2344
  %v2644 = vadd.f32 %v2643, %v2349
  %v2645 = vadd.f32 %v2644, %v2354
  %v2646 = vadd.f32 %v2645, %v2359
  %v2647 = vadd.f32 %v2646, %v2364
  %v2648 = vadd.f32 %v2647, %v2369
  %v2649 = vadd.f32 %v2648, %v2374
  %v2650 = vadd.f32 %v2649, %v2379
  %v2651 = vadd.f32 %v2650, %v2384
  %v2652 = vadd.f32 %v2651, %v2389
  %v2653 = vadd.f32 %v2652, %v2394
  %v2654 = vrot.slane %v2653, 4
  %v2655 = vadd.f32 %v2653, %v2654
  %v2656 = vrot.slane %v2655, 2
  %v2657 = vadd.f32 %v2655, %v2656
  %v2658 = vrot.slane %v2657, 1
  %v2659 = vadd.f32 %v2657, %v2658
  %v2660 = vmul.f32 %v1119, %v1119
  %v2661 = vmul.f32 %v1124, %v1124
  %v2662 = vmul.f32 %v1129, %v1129
  %v2663 = vmul.f32 %v1134, %v1134
  %v2664 = vmul.f32 %v1139, %v1139
  %v2665 = vmul.f32 %v1144, %v1144
  %v2666 = vmul.f32 %v1149, %v1149
  %v2667 = vmul.f32 %v1154, %v1154
  %v2668 = vmul.f32 %v1159, %v1159
  %v2669 = vmul.f32 %v1164, %v1164
  %v2670 = vmul.f32 %v1169, %v1169
  %v2671 = vmul.f32 %v1174, %v1174
  %v2672 = vmul.f32 %v1179, %v1179
  %v2673 = vmul.f32 %v1184, %v1184
  %v2674 = vmul.f32 %v1189, %v1189
  %v2675 = vmul.f32 %v1194, %v1194
  %v2676 = vmul.f32 %v1199, %v1199
  %v2677 = vmul.f32 %v1204, %v1204
  %v2678 = vmul.f32 %v1209, %v1209
  %v2679 = vmul.f32 %v1214, %v1214
  %v2680 = vmul.f32 %v1219, %v1219
  %v2681 = vmul.f32 %v1224, %v1224
  %v2682 = vmul.f32 %v1229, %v1229
  %v2683 = vmul.f32 %v1234, %v1234
  %v2684 = vmul.f32 %v1239, %v1239
  %v2685 = vmul.f32 %v1244, %v1244
  %v2686 = vmul.f32 %v1249, %v1249
  %v2687 = vmul.f32 %v1254, %v1254
  %v2688 = vmul.f32 %v1259, %v1259
  %v2689 = vmul.f32 %v1264, %v1264
  %v2690 = vmul.f32 %v1269, %v1269
  %v2691 = vmul.f32 %v1274, %v1274
  %v2692 = vmul.f32 %v1279, %v1279
  %v2693 = vmul.f32 %v1284, %v1284
  %v2694 = vmul.f32 %v1289, %v1289
  %v2695 = vmul.f32 %v1294, %v1294
  %v2696 = vmul.f32 %v1299, %v1299
  %v2697 = vmul.f32 %v1304, %v1304
  %v2698 = vmul.f32 %v1309, %v1309
  %v2699 = vmul.f32 %v1314, %v1314
  %v2700 = vmul.f32 %v1319, %v1319
  %v2701 = vmul.f32 %v1324, %v1324
  %v2702 = vmul.f32 %v1329, %v1329
  %v2703 = vmul.f32 %v1334, %v1334
  %v2704 = vmul.f32 %v1339, %v1339
  %v2705 = vmul.f32 %v1344, %v1344
  %v2706 = vmul.f32 %v1349, %v1349
  %v2707 = vmul.f32 %v1354, %v1354
  %v2708 = vmul.f32 %v1359, %v1359
  %v2709 = vmul.f32 %v1364, %v1364
  %v2710 = vmul.f32 %v1369, %v1369
  %v2711 = vmul.f32 %v1374, %v1374
  %v2712 = vmul.f32 %v1379, %v1379
  %v2713 = vmul.f32 %v1384, %v1384
  %v2714 = vmul.f32 %v1389, %v1389
  %v2715 = vmul.f32 %v1394, %v1394
  %v2716 = vmul.f32 %v1399, %v1399
  %v2717 = vmul.f32 %v1404, %v1404
  %v2718 = vmul.f32 %v1409, %v1409
  %v2719 = vmul.f32 %v1414, %v1414
  %v2720 = vmul.f32 %v1419, %v1419
  %v2721 = vmul.f32 %v1424, %v1424
  %v2722 = vmul.f32 %v1429, %v1429
  %v2723 = vmul.f32 %v1434, %v1434
  %v2724 = vmul.f32 %v1439, %v1439
  %v2725 = vmul.f32 %v1444, %v1444
  %v2726 = vmul.f32 %v1449, %v1449
  %v2727 = vmul.f32 %v1454, %v1454
  %v2728 = vmul.f32 %v1459, %v1459
  %v2729 = vmul.f32 %v1464, %v1464
  %v2730 = vmul.f32 %v1469, %v1469
  %v2731 = vmul.f32 %v1474, %v1474
  %v2732 = vmul.f32 %v1479, %v1479
  %v2733 = vmul.f32 %v1484, %v1484
  %v2734 = vmul.f32 %v1489, %v1489
  %v2735 = vmul.f32 %v1494, %v1494
  %v2736 = vmul.f32 %v1499, %v1499
  %v2737 = vmul.f32 %v1504, %v1504
  %v2738 = vmul.f32 %v1509, %v1509
  %v2739 = vmul.f32 %v1514, %v1514
  %v2740 = vmul.f32 %v1519, %v1519
  %v2741 = vmul.f32 %v1524, %v1524
  %v2742 = vmul.f32 %v1529, %v1529
  %v2743 = vmul.f32 %v1534, %v1534
  %v2744 = vmul.f32 %v1539, %v1539
  %v2745 = vmul.f32 %v1544, %v1544
  %v2746 = vmul.f32 %v1549, %v1549
  %v2747 = vmul.f32 %v1554, %v1554
  %v2748 = vmul.f32 %v1559, %v1559
  %v2749 = vmul.f32 %v1564, %v1564
  %v2750 = vmul.f32 %v1569, %v1569
  %v2751 = vmul.f32 %v1574, %v1574
  %v2752 = vmul.f32 %v1579, %v1579
  %v2753 = vmul.f32 %v1584, %v1584
  %v2754 = vmul.f32 %v1589, %v1589
  %v2755 = vmul.f32 %v1594, %v1594
  %v2756 = vmul.f32 %v1599, %v1599
  %v2757 = vmul.f32 %v1604, %v1604
  %v2758 = vmul.f32 %v1609, %v1609
  %v2759 = vmul.f32 %v1614, %v1614
  %v2760 = vmul.f32 %v1619, %v1619
  %v2761 = vmul.f32 %v1624, %v1624
  %v2762 = vmul.f32 %v1629, %v1629
  %v2763 = vmul.f32 %v1634, %v1634
  %v2764 = vmul.f32 %v1639, %v1639
  %v2765 = vmul.f32 %v1644, %v1644
  %v2766 = vmul.f32 %v1649, %v1649
  %v2767 = vmul.f32 %v1654, %v1654
  %v2768 = vmul.f32 %v1659, %v1659
  %v2769 = vmul.f32 %v1664, %v1664
  %v2770 = vmul.f32 %v1669, %v1669
  %v2771 = vmul.f32 %v1674, %v1674
  %v2772 = vmul.f32 %v1679, %v1679
  %v2773 = vmul.f32 %v1684, %v1684
  %v2774 = vmul.f32 %v1689, %v1689
  %v2775 = vmul.f32 %v1694, %v1694
  %v2776 = vmul.f32 %v1699, %v1699
  %v2777 = vmul.f32 %v1704, %v1704
  %v2778 = vmul.f32 %v1709, %v1709
  %v2779 = vmul.f32 %v1714, %v1714
  %v2780 = vmul.f32 %v1719, %v1719
  %v2781 = vmul.f32 %v1724, %v1724
  %v2782 = vmul.f32 %v1729, %v1729
  %v2783 = vmul.f32 %v1734, %v1734
  %v2784 = vmul.f32 %v1739, %v1739
  %v2785 = vmul.f32 %v1744, %v1744
  %v2786 = vmul.f32 %v1749, %v1749
  %v2787 = vmul.f32 %v1754, %v1754
  %v2788 = vmul.f32 %v1759, %v1759
  %v2789 = vmul.f32 %v1764, %v1764
  %v2790 = vmul.f32 %v1769, %v1769
  %v2791 = vmul.f32 %v1774, %v1774
  %v2792 = vmul.f32 %v1779, %v1779
  %v2793 = vmul.f32 %v1784, %v1784
  %v2794 = vmul.f32 %v1789, %v1789
  %v2795 = vmul.f32 %v1794, %v1794
  %v2796 = vmul.f32 %v1799, %v1799
  %v2797 = vmul.f32 %v1804, %v1804
  %v2798 = vmul.f32 %v1809, %v1809
  %v2799 = vmul.f32 %v1814, %v1814
  %v2800 = vmul.f32 %v1819, %v1819
  %v2801 = vmul.f32 %v1824, %v1824
  %v2802 = vmul.f32 %v1829, %v1829
  %v2803 = vmul.f32 %v1834, %v1834
  %v2804 = vmul.f32 %v1839, %v1839
  %v2805 = vmul.f32 %v1844, %v1844
  %v2806 = vmul.f32 %v1849, %v1849
  %v2807 = vmul.f32 %v1854, %v1854
  %v2808 = vmul.f32 %v1859, %v1859
  %v2809 = vmul.f32 %v1864, %v1864
  %v2810 = vmul.f32 %v1869, %v1869
  %v2811 = vmul.f32 %v1874, %v1874
  %v2812 = vmul.f32 %v1879, %v1879
  %v2813 = vmul.f32 %v1884, %v1884
  %v2814 = vmul.f32 %v1889, %v1889
  %v2815 = vmul.f32 %v1894, %v1894
  %v2816 = vmul.f32 %v1899, %v1899
  %v2817 = vmul.f32 %v1904, %v1904
  %v2818 = vmul.f32 %v1909, %v1909
  %v2819 = vmul.f32 %v1914, %v1914
  %v2820 = vmul.f32 %v1919, %v1919
  %v2821 = vmul.f32 %v1924, %v1924
  %v2822 = vmul.f32 %v1929, %v1929
  %v2823 = vmul.f32 %v1934, %v1934
  %v2824 = vmul.f32 %v1939, %v1939
  %v2825 = vmul.f32 %v1944, %v1944
  %v2826 = vmul.f32 %v1949, %v1949
  %v2827 = vmul.f32 %v1954, %v1954
  %v2828 = vmul.f32 %v1959, %v1959
  %v2829 = vmul.f32 %v1964, %v1964
  %v2830 = vmul.f32 %v1969, %v1969
  %v2831 = vmul.f32 %v1974, %v1974
  %v2832 = vmul.f32 %v1979, %v1979
  %v2833 = vmul.f32 %v1984, %v1984
  %v2834 = vmul.f32 %v1989, %v1989
  %v2835 = vmul.f32 %v1994, %v1994
  %v2836 = vmul.f32 %v1999, %v1999
  %v2837 = vmul.f32 %v2004, %v2004
  %v2838 = vmul.f32 %v2009, %v2009
  %v2839 = vmul.f32 %v2014, %v2014
  %v2840 = vmul.f32 %v2019, %v2019
  %v2841 = vmul.f32 %v2024, %v2024
  %v2842 = vmul.f32 %v2029, %v2029
  %v2843 = vmul.f32 %v2034, %v2034
  %v2844 = vmul.f32 %v2039, %v2039
  %v2845 = vmul.f32 %v2044, %v2044
  %v2846 = vmul.f32 %v2049, %v2049
  %v2847 = vmul.f32 %v2054, %v2054
  %v2848 = vmul.f32 %v2059, %v2059
  %v2849 = vmul.f32 %v2064, %v2064
  %v2850 = vmul.f32 %v2069, %v2069
  %v2851 = vmul.f32 %v2074, %v2074
  %v2852 = vmul.f32 %v2079, %v2079
  %v2853 = vmul.f32 %v2084, %v2084
  %v2854 = vmul.f32 %v2089, %v2089
  %v2855 = vmul.f32 %v2094, %v2094
  %v2856 = vmul.f32 %v2099, %v2099
  %v2857 = vmul.f32 %v2104, %v2104
  %v2858 = vmul.f32 %v2109, %v2109
  %v2859 = vmul.f32 %v2114, %v2114
  %v2860 = vmul.f32 %v2119, %v2119
  %v2861 = vmul.f32 %v2124, %v2124
  %v2862 = vmul.f32 %v2129, %v2129
  %v2863 = vmul.f32 %v2134, %v2134
  %v2864 = vmul.f32 %v2139, %v2139
  %v2865 = vmul.f32 %v2144, %v2144
  %v2866 = vmul.f32 %v2149, %v2149
  %v2867 = vmul.f32 %v2154, %v2154
  %v2868 = vmul.f32 %v2159, %v2159
  %v2869 = vmul.f32 %v2164, %v2164
  %v2870 = vmul.f32 %v2169, %v2169
  %v2871 = vmul.f32 %v2174, %v2174
  %v2872 = vmul.f32 %v2179, %v2179
  %v2873 = vmul.f32 %v2184, %v2184
  %v2874 = vmul.f32 %v2189, %v2189
  %v2875 = vmul.f32 %v2194, %v2194
  %v2876 = vmul.f32 %v2199, %v2199
  %v2877 = vmul.f32 %v2204, %v2204
  %v2878 = vmul.f32 %v2209, %v2209
  %v2879 = vmul.f32 %v2214, %v2214
  %v2880 = vmul.f32 %v2219, %v2219
  %v2881 = vmul.f32 %v2224, %v2224
  %v2882 = vmul.f32 %v2229, %v2229
  %v2883 = vmul.f32 %v2234, %v2234
  %v2884 = vmul.f32 %v2239, %v2239
  %v2885 = vmul.f32 %v2244, %v2244
  %v2886 = vmul.f32 %v2249, %v2249
  %v2887 = vmul.f32 %v2254, %v2254
  %v2888 = vmul.f32 %v2259, %v2259
  %v2889 = vmul.f32 %v2264, %v2264
  %v2890 = vmul.f32 %v2269, %v2269
  %v2891 = vmul.f32 %v2274, %v2274
  %v2892 = vmul.f32 %v2279, %v2279
  %v2893 = vmul.f32 %v2284, %v2284
  %v2894 = vmul.f32 %v2289, %v2289
  %v2895 = vmul.f32 %v2294, %v2294
  %v2896 = vmul.f32 %v2299, %v2299
  %v2897 = vmul.f32 %v2304, %v2304
  %v2898 = vmul.f32 %v2309, %v2309
  %v2899 = vmul.f32 %v2314, %v2314
  %v2900 = vmul.f32 %v2319, %v2319
  %v2901 = vmul.f32 %v2324, %v2324
  %v2902 = vmul.f32 %v2329, %v2329
  %v2903 = vmul.f32 %v2334, %v2334
  %v2904 = vmul.f32 %v2339, %v2339
  %v2905 = vmul.f32 %v2344, %v2344
  %v2906 = vmul.f32 %v2349, %v2349
  %v2907 = vmul.f32 %v2354, %v2354
  %v2908 = vmul.f32 %v2359, %v2359
  %v2909 = vmul.f32 %v2364, %v2364
  %v2910 = vmul.f32 %v2369, %v2369
  %v2911 = vmul.f32 %v2374, %v2374
  %v2912 = vmul.f32 %v2379, %v2379
  %v2913 = vmul.f32 %v2384, %v2384
  %v2914 = vmul.f32 %v2389, %v2389
  %v2915 = vmul.f32 %v2394, %v2394
  %v2916 = vadd.f32 %v2660, %v2661
  %v2917 = vadd.f32 %v2916, %v2662
  %v2918 = vadd.f32 %v2917, %v2663
  %v2919 = vadd.f32 %v2918, %v2664
  %v2920 = vadd.f32 %v2919, %v2665
  %v2921 = vadd.f32 %v2920, %v2666
  %v2922 = vadd.f32 %v2921, %v2667
  %v2923 = vadd.f32 %v2922, %v2668
  %v2924 = vadd.f32 %v2923, %v2669
  %v2925 = vadd.f32 %v2924, %v2670
  %v2926 = vadd.f32 %v2925, %v2671
  %v2927 = vadd.f32 %v2926, %v2672
  %v2928 = vadd.f32 %v2927, %v2673
  %v2929 = vadd.f32 %v2928, %v2674
  %v2930 = vadd.f32 %v2929, %v2675
  %v2931 = vadd.f32 %v2930, %v2676
  %v2932 = vadd.f32 %v2931, %v2677
  %v2933 = vadd.f32 %v2932, %v2678
  %v2934 = vadd.f32 %v2933, %v2679
  %v2935 = vadd.f32 %v2934, %v2680
  %v2936 = vadd.f32 %v2935, %v2681
  %v2937 = vadd.f32 %v2936, %v2682
  %v2938 = vadd.f32 %v2937, %v2683
  %v2939 = vadd.f32 %v2938, %v2684
  %v2940 = vadd.f32 %v2939, %v2685
  %v2941 = vadd.f32 %v2940, %v2686
  %v2942 = vadd.f32 %v2941, %v2687
  %v2943 = vadd.f32 %v2942, %v2688
  %v2944 = vadd.f32 %v2943, %v2689
  %v2945 = vadd.f32 %v2944, %v2690
  %v2946 = vadd.f32 %v2945, %v2691
  %v2947 = vadd.f32 %v2946, %v2692
  %v2948 = vadd.f32 %v2947, %v2693
  %v2949 = vadd.f32 %v2948, %v2694
  %v2950 = vadd.f32 %v2949, %v2695
  %v2951 = vadd.f32 %v2950, %v2696
  %v2952 = vadd.f32 %v2951, %v2697
  %v2953 = vadd.f32 %v2952, %v2698
  %v2954 = vadd.f32 %v2953, %v2699
  %v2955 = vadd.f32 %v2954, %v2700
  %v2956 = vadd.f32 %v2955, %v2701
  %v2957 = vadd.f32 %v2956, %v2702
  %v2958 = vadd.f32 %v2957, %v2703
  %v2959 = vadd.f32 %v2958, %v2704
  %v2960 = vadd.f32 %v2959, %v2705
  %v2961 = vadd.f32 %v2960, %v2706
  %v2962 = vadd.f32 %v2961, %v2707
  %v2963 = vadd.f32 %v2962, %v2708
  %v2964 = vadd.f32 %v2963, %v2709
  %v2965 = vadd.f32 %v2964, %v2710
  %v2966 = vadd.f32 %v2965, %v2711
  %v2967 = vadd.f32 %v2966, %v2712
  %v2968 = vadd.f32 %v2967, %v2713
  %v2969 = vadd.f32 %v2968, %v2714
  %v2970 = vadd.f32 %v2969, %v2715
  %v2971 = vadd.f32 %v2970, %v2716
  %v2972 = vadd.f32 %v2971, %v2717
  %v2973 = vadd.f32 %v2972, %v2718
  %v2974 = vadd.f32 %v2973, %v2719
  %v2975 = vadd.f32 %v2974, %v2720
  %v2976 = vadd.f32 %v2975, %v2721
  %v2977 = vadd.f32 %v2976, %v2722
  %v2978 = vadd.f32 %v2977, %v2723
  %v2979 = vadd.f32 %v2978, %v2724
  %v2980 = vadd.f32 %v2979, %v2725
  %v2981 = vadd.f32 %v2980, %v2726
  %v2982 = vadd.f32 %v2981, %v2727
  %v2983 = vadd.f32 %v2982, %v2728
  %v2984 = vadd.f32 %v2983, %v2729
  %v2985 = vadd.f32 %v2984, %v2730
  %v2986 = vadd.f32 %v2985, %v2731
  %v2987 = vadd.f32 %v2986, %v2732
  %v2988 = vadd.f32 %v2987, %v2733
  %v2989 = vadd.f32 %v2988, %v2734
  %v2990 = vadd.f32 %v2989, %v2735
  %v2991 = vadd.f32 %v2990, %v2736
  %v2992 = vadd.f32 %v2991, %v2737
  %v2993 = vadd.f32 %v2992, %v2738
  %v2994 = vadd.f32 %v2993, %v2739
  %v2995 = vadd.f32 %v2994, %v2740
  %v2996 = vadd.f32 %v2995, %v2741
  %v2997 = vadd.f32 %v2996, %v2742
  %v2998 = vadd.f32 %v2997, %v2743
  %v2999 = vadd.f32 %v2998, %v2744
  %v3000 = vadd.f32 %v2999, %v2745
  %v3001 = vadd.f32 %v3000, %v2746
  %v3002 = vadd.f32 %v3001, %v2747
  %v3003 = vadd.f32 %v3002, %v2748
  %v3004 = vadd.f32 %v3003, %v2749
  %v3005 = vadd.f32 %v3004, %v2750
  %v3006 = vadd.f32 %v3005, %v2751
  %v3007 = vadd.f32 %v3006, %v2752
  %v3008 = vadd.f32 %v3007, %v2753
  %v3009 = vadd.f32 %v3008, %v2754
  %v3010 = vadd.f32 %v3009, %v2755
  %v3011 = vadd.f32 %v3010, %v2756
  %v3012 = vadd.f32 %v3011, %v2757
  %v3013 = vadd.f32 %v3012, %v2758
  %v3014 = vadd.f32 %v3013, %v2759
  %v3015 = vadd.f32 %v3014, %v2760
  %v3016 = vadd.f32 %v3015, %v2761
  %v3017 = vadd.f32 %v3016, %v2762
  %v3018 = vadd.f32 %v3017, %v2763
  %v3019 = vadd.f32 %v3018, %v2764
  %v3020 = vadd.f32 %v3019, %v2765
  %v3021 = vadd.f32 %v3020, %v2766
  %v3022 = vadd.f32 %v3021, %v2767
  %v3023 = vadd.f32 %v3022, %v2768
  %v3024 = vadd.f32 %v3023, %v2769
  %v3025 = vadd.f32 %v3024, %v2770
  %v3026 = vadd.f32 %v3025, %v2771
  %v3027 = vadd.f32 %v3026, %v2772
  %v3028 = vadd.f32 %v3027, %v2773
  %v3029 = vadd.f32 %v3028, %v2774
  %v3030 = vadd.f32 %v3029, %v2775
  %v3031 = vadd.f32 %v3030, %v2776
  %v3032 = vadd.f32 %v3031, %v2777
  %v3033 = vadd.f32 %v3032, %v2778
  %v3034 = vadd.f32 %v3033, %v2779
  %v3035 = vadd.f32 %v3034, %v2780
  %v3036 = vadd.f32 %v3035, %v2781
  %v3037 = vadd.f32 %v3036, %v2782
  %v3038 = vadd.f32 %v3037, %v2783
  %v3039 = vadd.f32 %v3038, %v2784
  %v3040 = vadd.f32 %v3039, %v2785
  %v3041 = vadd.f32 %v3040, %v2786
  %v3042 = vadd.f32 %v3041, %v2787
  %v3043 = vadd.f32 %v3042, %v2788
  %v3044 = vadd.f32 %v3043, %v2789
  %v3045 = vadd.f32 %v3044, %v2790
  %v3046 = vadd.f32 %v3045, %v2791
  %v3047 = vadd.f32 %v3046, %v2792
  %v3048 = vadd.f32 %v3047, %v2793
  %v3049 = vadd.f32 %v3048, %v2794
  %v3050 = vadd.f32 %v3049, %v2795
  %v3051 = vadd.f32 %v3050, %v2796
  %v3052 = vadd.f32 %v3051, %v2797
  %v3053 = vadd.f32 %v3052, %v2798
  %v3054 = vadd.f32 %v3053, %v2799
  %v3055 = vadd.f32 %v3054, %v2800
  %v3056 = vadd.f32 %v3055, %v2801
  %v3057 = vadd.f32 %v3056, %v2802
  %v3058 = vadd.f32 %v3057, %v2803
  %v3059 = vadd.f32 %v3058, %v2804
  %v3060 = vadd.f32 %v3059, %v2805
  %v3061 = vadd.f32 %v3060, %v2806
  %v3062 = vadd.f32 %v3061, %v2807
  %v3063 = vadd.f32 %v3062, %v2808
  %v3064 = vadd.f32 %v3063, %v2809
  %v3065 = vadd.f32 %v3064, %v2810
  %v3066 = vadd.f32 %v3065, %v2811
  %v3067 = vadd.f32 %v3066, %v2812
  %v3068 = vadd.f32 %v3067, %v2813
  %v3069 = vadd.f32 %v3068, %v2814
  %v3070 = vadd.f32 %v3069, %v2815
  %v3071 = vadd.f32 %v3070, %v2816
  %v3072 = vadd.f32 %v3071, %v2817
  %v3073 = vadd.f32 %v3072, %v2818
  %v3074 = vadd.f32 %v3073, %v2819
  %v3075 = vadd.f32 %v3074, %v2820
  %v3076 = vadd.f32 %v3075, %v2821
  %v3077 = vadd.f32 %v3076, %v2822
  %v3078 = vadd.f32 %v3077, %v2823
  %v3079 = vadd.f32 %v3078, %v2824
  %v3080 = vadd.f32 %v3079, %v2825
  %v3081 = vadd.f32 %v3080, %v2826
  %v3082 = vadd.f32 %v3081, %v2827
  %v3083 = vadd.f32 %v3082, %v2828
  %v3084 = vadd.f32 %v3083, %v2829
  %v3085 = vadd.f32 %v3084, %v2830
  %v3086 = vadd.f32 %v3085, %v2831
  %v3087 = vadd.f32 %v3086, %v2832
  %v3088 = vadd.f32 %v3087, %v2833
  %v3089 = vadd.f32 %v3088, %v2834
  %v3090 = vadd.f32 %v3089, %v2835
  %v3091 = vadd.f32 %v3090, %v2836
  %v3092 = vadd.f32 %v3091, %v2837
  %v3093 = vadd.f32 %v3092, %v2838
  %v3094 = vadd.f32 %v3093, %v2839
  %v3095 = vadd.f32 %v3094, %v2840
  %v3096 = vadd.f32 %v3095, %v2841
  %v3097 = vadd.f32 %v3096, %v2842
  %v3098 = vadd.f32 %v3097, %v2843
  %v3099 = vadd.f32 %v3098, %v2844
  %v3100 = vadd.f32 %v3099, %v2845
  %v3101 = vadd.f32 %v3100, %v2846
  %v3102 = vadd.f32 %v3101, %v2847
  %v3103 = vadd.f32 %v3102, %v2848
  %v3104 = vadd.f32 %v3103, %v2849
  %v3105 = vadd.f32 %v3104, %v2850
  %v3106 = vadd.f32 %v3105, %v2851
  %v3107 = vadd.f32 %v3106, %v2852
  %v3108 = vadd.f32 %v3107, %v2853
  %v3109 = vadd.f32 %v3108, %v2854
  %v3110 = vadd.f32 %v3109, %v2855
  %v3111 = vadd.f32 %v3110, %v2856
  %v3112 = vadd.f32 %v3111, %v2857
  %v3113 = vadd.f32 %v3112, %v2858
  %v3114 = vadd.f32 %v3113, %v2859
  %v3115 = vadd.f32 %v3114, %v2860
  %v3116 = vadd.f32 %v3115, %v2861
  %v3117 = vadd.f32 %v3116, %v2862
  %v3118 = vadd.f32 %v3117, %v2863
  %v3119 = vadd.f32 %v3118, %v2864
  %v3120 = vadd.f32 %v3119, %v2865
  %v3121 = vadd.f32 %v3120, %v2866
  %v3122 = vadd.f32 %v3121, %v2867
  %v3123 = vadd.f32 %v3122, %v2868
  %v3124 = vadd.f32 %v3123, %v2869
  %v3125 = vadd.f32 %v3124, %v2870
  %v3126 = vadd.f32 %v3125, %v2871
  %v3127 = vadd.f32 %v3126, %v2872
  %v3128 = vadd.f32 %v3127, %v2873
  %v3129 = vadd.f32 %v3128, %v2874
  %v3130 = vadd.f32 %v3129, %v2875
  %v3131 = vadd.f32 %v3130, %v2876
  %v3132 = vadd.f32 %v3131, %v2877
  %v3133 = vadd.f32 %v3132, %v2878
  %v3134 = vadd.f32 %v3133, %v2879
  %v3135 = vadd.f32 %v3134, %v2880
  %v3136 = vadd.f32 %v3135, %v2881
  %v3137 = vadd.f32 %v3136, %v2882
  %v3138 = vadd.f32 %v3137, %v2883
  %v3139 = vadd.f32 %v3138, %v2884
  %v3140 = vadd.f32 %v3139, %v2885
  %v3141 = vadd.f32 %v3140, %v2886
  %v3142 = vadd.f32 %v3141, %v2887
  %v3143 = vadd.f32 %v3142, %v2888
  %v3144 = vadd.f32 %v3143, %v2889
  %v3145 = vadd.f32 %v3144, %v2890
  %v3146 = vadd.f32 %v3145, %v2891
  %v3147 = vadd.f32 %v3146, %v2892
  %v3148 = vadd.f32 %v3147, %v2893
  %v3149 = vadd.f32 %v3148, %v2894
  %v3150 = vadd.f32 %v3149, %v2895
  %v3151 = vadd.f32 %v3150, %v2896
  %v3152 = vadd.f32 %v3151, %v2897
  %v3153 = vadd.f32 %v3152, %v2898
  %v3154 = vadd.f32 %v3153, %v2899
  %v3155 = vadd.f32 %v3154, %v2900
  %v3156 = vadd.f32 %v3155, %v2901
  %v3157 = vadd.f32 %v3156, %v2902
  %v3158 = vadd.f32 %v3157, %v2903
  %v3159 = vadd.f32 %v3158, %v2904
  %v3160 = vadd.f32 %v3159, %v2905
  %v3161 = vadd.f32 %v3160, %v2906
  %v3162 = vadd.f32 %v3161, %v2907
  %v3163 = vadd.f32 %v3162, %v2908
  %v3164 = vadd.f32 %v3163, %v2909
  %v3165 = vadd.f32 %v3164, %v2910
  %v3166 = vadd.f32 %v3165, %v2911
  %v3167 = vadd.f32 %v3166, %v2912
  %v3168 = vadd.f32 %v3167, %v2913
  %v3169 = vadd.f32 %v3168, %v2914
  %v3170 = vadd.f32 %v3169, %v2915
  %v3171 = vrot.slane %v3170, 4
  %v3172 = vadd.f32 %v3170, %v3171
  %v3173 = vrot.slane %v3172, 2
  %v3174 = vadd.f32 %v3172, %v3173
  %v3175 = vrot.slane %v3174, 1
  %v3176 = vadd.f32 %v3174, %v3175
  %v3177 = vmul.f32 %v2659, 0.00048828125
  %v3178 = vmul.f32 %v3176, 0.00048828125
  %v3179 = vmul.f32 %v3177, %v3177
  %v3180 = vsub.f32 %v3178, %v3179
  %v3181 = vmax.f32 %v3180, 0.0
  %v3182 = vadd.f32 %v3181, 1e-05
  %v3183 = vrsqrt.pop %v3182
  %v3184 = vmul.f32 %v2397, %v3183
  %v3185 = vmul.f32 %v3184, %v3177
  %v3186 = vsub.f32 %v2398, %v3185
  %v3188 = vlaneseq
  %v3189 = vshrl.u32 %v3188, 7
  %v3190 = vsub.s32 0, %v3189
  %v3191 = vrot.slane %v3184, %v3190
  %v3193 = vmul.f32 %v3191, %v1119
  %v3194 = vmul.f32 %v3191, %v1124
  %v3195 = vmul.f32 %v3191, %v1129
  %v3196 = vmul.f32 %v3191, %v1134
  %v3197 = vmul.f32 %v3191, %v1139
  %v3198 = vmul.f32 %v3191, %v1144
  %v3199 = vmul.f32 %v3191, %v1149
  %v3200 = vmul.f32 %v3191, %v1154
  %v3201 = vmul.f32 %v3191, %v1159
  %v3202 = vmul.f32 %v3191, %v1164
  %v3203 = vmul.f32 %v3191, %v1169
  %v3204 = vmul.f32 %v3191, %v1174
  %v3205 = vmul.f32 %v3191, %v1179
  %v3206 = vmul.f32 %v3191, %v1184
  %v3207 = vmul.f32 %v3191, %v1189
  %v3208 = vmul.f32 %v3191, %v1194
  %v3209 = vmul.f32 %v3191, %v1199
  %v3210 = vmul.f32 %v3191, %v1204
  %v3211 = vmul.f32 %v3191, %v1209
  %v3212 = vmul.f32 %v3191, %v1214
  %v3213 = vmul.f32 %v3191, %v1219
  %v3214 = vmul.f32 %v3191, %v1224
  %v3215 = vmul.f32 %v3191, %v1229
  %v3216 = vmul.f32 %v3191, %v1234
  %v3217 = vmul.f32 %v3191, %v1239
  %v3218 = vmul.f32 %v3191, %v1244
  %v3219 = vmul.f32 %v3191, %v1249
  %v3220 = vmul.f32 %v3191, %v1254
  %v3221 = vmul.f32 %v3191, %v1259
  %v3222 = vmul.f32 %v3191, %v1264
  %v3223 = vmul.f32 %v3191, %v1269
  %v3224 = vmul.f32 %v3191, %v1274
  %v3225 = vmul.f32 %v3191, %v1279
  %v3226 = vmul.f32 %v3191, %v1284
  %v3227 = vmul.f32 %v3191, %v1289
  %v3228 = vmul.f32 %v3191, %v1294
  %v3229 = vmul.f32 %v3191, %v1299
  %v3230 = vmul.f32 %v3191, %v1304
  %v3231 = vmul.f32 %v3191, %v1309
  %v3232 = vmul.f32 %v3191, %v1314
  %v3233 = vmul.f32 %v3191, %v1319
  %v3234 = vmul.f32 %v3191, %v1324
  %v3235 = vmul.f32 %v3191, %v1329
  %v3236 = vmul.f32 %v3191, %v1334
  %v3237 = vmul.f32 %v3191, %v1339
  %v3238 = vmul.f32 %v3191, %v1344
  %v3239 = vmul.f32 %v3191, %v1349
  %v3240 = vmul.f32 %v3191, %v1354
  %v3241 = vmul.f32 %v3191, %v1359
  %v3242 = vmul.f32 %v3191, %v1364
  %v3243 = vmul.f32 %v3191, %v1369
  %v3244 = vmul.f32 %v3191, %v1374
  %v3245 = vmul.f32 %v3191, %v1379
  %v3246 = vmul.f32 %v3191, %v1384
  %v3247 = vmul.f32 %v3191, %v1389
  %v3248 = vmul.f32 %v3191, %v1394
  %v3249 = vmul.f32 %v3191, %v1399
  %v3250 = vmul.f32 %v3191, %v1404
  %v3251 = vmul.f32 %v3191, %v1409
  %v3252 = vmul.f32 %v3191, %v1414
  %v3253 = vmul.f32 %v3191, %v1419
  %v3254 = vmul.f32 %v3191, %v1424
  %v3255 = vmul.f32 %v3191, %v1429
  %v3256 = vmul.f32 %v3191, %v1434
  %v3257 = vmul.f32 %v3191, %v1439
  %v3258 = vmul.f32 %v3191, %v1444
  %v3259 = vmul.f32 %v3191, %v1449
  %v3260 = vmul.f32 %v3191, %v1454
  %v3261 = vmul.f32 %v3191, %v1459
  %v3262 = vmul.f32 %v3191, %v1464
  %v3263 = vmul.f32 %v3191, %v1469
  %v3264 = vmul.f32 %v3191, %v1474
  %v3265 = vmul.f32 %v3191, %v1479
  %v3266 = vmul.f32 %v3191, %v1484
  %v3267 = vmul.f32 %v3191, %v1489
  %v3268 = vmul.f32 %v3191, %v1494
  %v3269 = vmul.f32 %v3191, %v1499
  %v3270 = vmul.f32 %v3191, %v1504
  %v3271 = vmul.f32 %v3191, %v1509
  %v3272 = vmul.f32 %v3191, %v1514
  %v3273 = vmul.f32 %v3191, %v1519
  %v3274 = vmul.f32 %v3191, %v1524
  %v3275 = vmul.f32 %v3191, %v1529
  %v3276 = vmul.f32 %v3191, %v1534
  %v3277 = vmul.f32 %v3191, %v1539
  %v3278 = vmul.f32 %v3191, %v1544
  %v3279 = vmul.f32 %v3191, %v1549
  %v3280 = vmul.f32 %v3191, %v1554
  %v3281 = vmul.f32 %v3191, %v1559
  %v3282 = vmul.f32 %v3191, %v1564
  %v3283 = vmul.f32 %v3191, %v1569
  %v3284 = vmul.f32 %v3191, %v1574
  %v3285 = vmul.f32 %v3191, %v1579
  %v3286 = vmul.f32 %v3191, %v1584
  %v3287 = vmul.f32 %v3191, %v1589
  %v3288 = vmul.f32 %v3191, %v1594
  %v3289 = vmul.f32 %v3191, %v1599
  %v3290 = vmul.f32 %v3191, %v1604
  %v3291 = vmul.f32 %v3191, %v1609
  %v3292 = vmul.f32 %v3191, %v1614
  %v3293 = vmul.f32 %v3191, %v1619
  %v3294 = vmul.f32 %v3191, %v1624
  %v3295 = vmul.f32 %v3191, %v1629
  %v3296 = vmul.f32 %v3191, %v1634
  %v3297 = vmul.f32 %v3191, %v1639
  %v3298 = vmul.f32 %v3191, %v1644
  %v3299 = vmul.f32 %v3191, %v1649
  %v3300 = vmul.f32 %v3191, %v1654
  %v3301 = vmul.f32 %v3191, %v1659
  %v3302 = vmul.f32 %v3191, %v1664
  %v3303 = vmul.f32 %v3191, %v1669
  %v3304 = vmul.f32 %v3191, %v1674
  %v3305 = vmul.f32 %v3191, %v1679
  %v3306 = vmul.f32 %v3191, %v1684
  %v3307 = vmul.f32 %v3191, %v1689
  %v3308 = vmul.f32 %v3191, %v1694
  %v3309 = vmul.f32 %v3191, %v1699
  %v3310 = vmul.f32 %v3191, %v1704
  %v3311 = vmul.f32 %v3191, %v1709
  %v3312 = vmul.f32 %v3191, %v1714
  %v3313 = vmul.f32 %v3191, %v1719
  %v3314 = vmul.f32 %v3191, %v1724
  %v3315 = vmul.f32 %v3191, %v1729
  %v3316 = vmul.f32 %v3191, %v1734
  %v3317 = vmul.f32 %v3191, %v1739
  %v3318 = vmul.f32 %v3191, %v1744
  %v3319 = vmul.f32 %v3191, %v1749
  %v3320 = vmul.f32 %v3191, %v1754
  %v3321 = vmul.f32 %v3191, %v1759
  %v3322 = vmul.f32 %v3191, %v1764
  %v3323 = vmul.f32 %v3191, %v1769
  %v3324 = vmul.f32 %v3191, %v1774
  %v3325 = vmul.f32 %v3191, %v1779
  %v3326 = vmul.f32 %v3191, %v1784
  %v3327 = vmul.f32 %v3191, %v1789
  %v3328 = vmul.f32 %v3191, %v1794
  %v3329 = vmul.f32 %v3191, %v1799
  %v3330 = vmul.f32 %v3191, %v1804
  %v3331 = vmul.f32 %v3191, %v1809
  %v3332 = vmul.f32 %v3191, %v1814
  %v3333 = vmul.f32 %v3191, %v1819
  %v3334 = vmul.f32 %v3191, %v1824
  %v3335 = vmul.f32 %v3191, %v1829
  %v3336 = vmul.f32 %v3191, %v1834
  %v3337 = vmul.f32 %v3191, %v1839
  %v3338 = vmul.f32 %v3191, %v1844
  %v3339 = vmul.f32 %v3191, %v1849
  %v3340 = vmul.f32 %v3191, %v1854
  %v3341 = vmul.f32 %v3191, %v1859
  %v3342 = vmul.f32 %v3191, %v1864
  %v3343 = vmul.f32 %v3191, %v1869
  %v3344 = vmul.f32 %v3191, %v1874
  %v3345 = vmul.f32 %v3191, %v1879
  %v3346 = vmul.f32 %v3191, %v1884
  %v3347 = vmul.f32 %v3191, %v1889
  %v3348 = vmul.f32 %v3191, %v1894
  %v3349 = vmul.f32 %v3191, %v1899
  %v3350 = vmul.f32 %v3191, %v1904
  %v3351 = vmul.f32 %v3191, %v1909
  %v3352 = vmul.f32 %v3191, %v1914
  %v3353 = vmul.f32 %v3191, %v1919
  %v3354 = vmul.f32 %v3191, %v1924
  %v3355 = vmul.f32 %v3191, %v1929
  %v3356 = vmul.f32 %v3191, %v1934
  %v3357 = vmul.f32 %v3191, %v1939
  %v3358 = vmul.f32 %v3191, %v1944
  %v3359 = vmul.f32 %v3191, %v1949
  %v3360 = vmul.f32 %v3191, %v1954
  %v3361 = vmul.f32 %v3191, %v1959
  %v3362 = vmul.f32 %v3191, %v1964
  %v3363 = vmul.f32 %v3191, %v1969
  %v3364 = vmul.f32 %v3191, %v1974
  %v3365 = vmul.f32 %v3191, %v1979
  %v3366 = vmul.f32 %v3191, %v1984
  %v3367 = vmul.f32 %v3191, %v1989
  %v3368 = vmul.f32 %v3191, %v1994
  %v3369 = vmul.f32 %v3191, %v1999
  %v3370 = vmul.f32 %v3191, %v2004
  %v3371 = vmul.f32 %v3191, %v2009
  %v3372 = vmul.f32 %v3191, %v2014
  %v3373 = vmul.f32 %v3191, %v2019
  %v3374 = vmul.f32 %v3191, %v2024
  %v3375 = vmul.f32 %v3191, %v2029
  %v3376 = vmul.f32 %v3191, %v2034
  %v3377 = vmul.f32 %v3191, %v2039
  %v3378 = vmul.f32 %v3191, %v2044
  %v3379 = vmul.f32 %v3191, %v2049
  %v3380 = vmul.f32 %v3191, %v2054
  %v3381 = vmul.f32 %v3191, %v2059
  %v3382 = vmul.f32 %v3191, %v2064
  %v3383 = vmul.f32 %v3191, %v2069
  %v3384 = vmul.f32 %v3191, %v2074
  %v3385 = vmul.f32 %v3191, %v2079
  %v3386 = vmul.f32 %v3191, %v2084
  %v3387 = vmul.f32 %v3191, %v2089
  %v3388 = vmul.f32 %v3191, %v2094
  %v3389 = vmul.f32 %v3191, %v2099
  %v3390 = vmul.f32 %v3191, %v2104
  %v3391 = vmul.f32 %v3191, %v2109
  %v3392 = vmul.f32 %v3191, %v2114
  %v3393 = vmul.f32 %v3191, %v2119
  %v3394 = vmul.f32 %v3191, %v2124
  %v3395 = vmul.f32 %v3191, %v2129
  %v3396 = vmul.f32 %v3191, %v2134
  %v3397 = vmul.f32 %v3191, %v2139
  %v3398 = vmul.f32 %v3191, %v2144
  %v3399 = vmul.f32 %v3191, %v2149
  %v3400 = vmul.f32 %v3191, %v2154
  %v3401 = vmul.f32 %v3191, %v2159
  %v3402 = vmul.f32 %v3191, %v2164
  %v3403 = vmul.f32 %v3191, %v2169
  %v3404 = vmul.f32 %v3191, %v2174
  %v3405 = vmul.f32 %v3191, %v2179
  %v3406 = vmul.f32 %v3191, %v2184
  %v3407 = vmul.f32 %v3191, %v2189
  %v3408 = vmul.f32 %v3191, %v2194
  %v3409 = vmul.f32 %v3191, %v2199
  %v3410 = vmul.f32 %v3191, %v2204
  %v3411 = vmul.f32 %v3191, %v2209
  %v3412 = vmul.f32 %v3191, %v2214
  %v3413 = vmul.f32 %v3191, %v2219
  %v3414 = vmul.f32 %v3191, %v2224
  %v3415 = vmul.f32 %v3191, %v2229
  %v3416 = vmul.f32 %v3191, %v2234
  %v3417 = vmul.f32 %v3191, %v2239
  %v3418 = vmul.f32 %v3191, %v2244
  %v3419 = vmul.f32 %v3191, %v2249
  %v3420 = vmul.f32 %v3191, %v2254
  %v3421 = vmul.f32 %v3191, %v2259
  %v3422 = vmul.f32 %v3191, %v2264
  %v3423 = vmul.f32 %v3191, %v2269
  %v3424 = vmul.f32 %v3191, %v2274
  %v3425 = vmul.f32 %v3191, %v2279
  %v3426 = vmul.f32 %v3191, %v2284
  %v3427 = vmul.f32 %v3191, %v2289
  %v3428 = vmul.f32 %v3191, %v2294
  %v3429 = vmul.f32 %v3191, %v2299
  %v3430 = vmul.f32 %v3191, %v2304
  %v3431 = vmul.f32 %v3191, %v2309
  %v3432 = vmul.f32 %v3191, %v2314
  %v3433 = vmul.f32 %v3191, %v2319
  %v3434 = vmul.f32 %v3191, %v2324
  %v3435 = vmul.f32 %v3191, %v2329
  %v3436 = vmul.f32 %v3191, %v2334
  %v3437 = vmul.f32 %v3191, %v2339
  %v3438 = vmul.f32 %v3191, %v2344
  %v3439 = vmul.f32 %v3191, %v2349
  %v3440 = vmul.f32 %v3191, %v2354
  %v3441 = vmul.f32 %v3191, %v2359
  %v3442 = vmul.f32 %v3191, %v2364
  %v3443 = vmul.f32 %v3191, %v2369
  %v3444 = vmul.f32 %v3191, %v2374
  %v3445 = vmul.f32 %v3191, %v2379
  %v3446 = vmul.f32 %v3191, %v2384
  %v3447 = vmul.f32 %v3191, %v2389
  %v3448 = vmul.f32 %v3191, %v2394
  %v3450 = vlaneseq
  %v3451 = vshrl.u32 %v3450, 7
  %v3452 = vsub.s32 0, %v3451
  %v3453 = vrot.slane %v3186, %v3452
  %v3455 = vadd.f32 %v3193, %v3453
  %v3456 = vadd.f32 %v3194, %v3453
  %v3457 = vadd.f32 %v3195, %v3453
  %v3458 = vadd.f32 %v3196, %v3453
  %v3459 = vadd.f32 %v3197, %v3453
  %v3460 = vadd.f32 %v3198, %v3453
  %v3461 = vadd.f32 %v3199, %v3453
  %v3462 = vadd.f32 %v3200, %v3453
  %v3463 = vadd.f32 %v3201, %v3453
  %v3464 = vadd.f32 %v3202, %v3453
  %v3465 = vadd.f32 %v3203, %v3453
  %v3466 = vadd.f32 %v3204, %v3453
  %v3467 = vadd.f32 %v3205, %v3453
  %v3468 = vadd.f32 %v3206, %v3453
  %v3469 = vadd.f32 %v3207, %v3453
  %v3470 = vadd.f32 %v3208, %v3453
  %v3471 = vadd.f32 %v3209, %v3453
  %v3472 = vadd.f32 %v3210, %v3453
  %v3473 = vadd.f32 %v3211, %v3453
  %v3474 = vadd.f32 %v3212, %v3453
  %v3475 = vadd.f32 %v3213, %v3453
  %v3476 = vadd.f32 %v3214, %v3453
  %v3477 = vadd.f32 %v3215, %v3453
  %v3478 = vadd.f32 %v3216, %v3453
  %v3479 = vadd.f32 %v3217, %v3453
  %v3480 = vadd.f32 %v3218, %v3453
  %v3481 = vadd.f32 %v3219, %v3453
  %v3482 = vadd.f32 %v3220, %v3453
  %v3483 = vadd.f32 %v3221, %v3453
  %v3484 = vadd.f32 %v3222, %v3453
  %v3485 = vadd.f32 %v3223, %v3453
  %v3486 = vadd.f32 %v3224, %v3453
  %v3487 = vadd.f32 %v3225, %v3453
  %v3488 = vadd.f32 %v3226, %v3453
  %v3489 = vadd.f32 %v3227, %v3453
  %v3490 = vadd.f32 %v3228, %v3453
  %v3491 = vadd.f32 %v3229, %v3453
  %v3492 = vadd.f32 %v3230, %v3453
  %v3493 = vadd.f32 %v3231, %v3453
  %v3494 = vadd.f32 %v3232, %v3453
  %v3495 = vadd.f32 %v3233, %v3453
  %v3496 = vadd.f32 %v3234, %v3453
  %v3497 = vadd.f32 %v3235, %v3453
  %v3498 = vadd.f32 %v3236, %v3453
  %v3499 = vadd.f32 %v3237, %v3453
  %v3500 = vadd.f32 %v3238, %v3453
  %v3501 = vadd.f32 %v3239, %v3453
  %v3502 = vadd.f32 %v3240, %v3453
  %v3503 = vadd.f32 %v3241, %v3453
  %v3504 = vadd.f32 %v3242, %v3453
  %v3505 = vadd.f32 %v3243, %v3453
  %v3506 = vadd.f32 %v3244, %v3453
  %v3507 = vadd.f32 %v3245, %v3453
  %v3508 = vadd.f32 %v3246, %v3453
  %v3509 = vadd.f32 %v3247, %v3453
  %v3510 = vadd.f32 %v3248, %v3453
  %v3511 = vadd.f32 %v3249, %v3453
  %v3512 = vadd.f32 %v3250, %v3453
  %v3513 = vadd.f32 %v3251, %v3453
  %v3514 = vadd.f32 %v3252, %v3453
  %v3515 = vadd.f32 %v3253, %v3453
  %v3516 = vadd.f32 %v3254, %v3453
  %v3517 = vadd.f32 %v3255, %v3453
  %v3518 = vadd.f32 %v3256, %v3453
  %v3519 = vadd.f32 %v3257, %v3453
  %v3520 = vadd.f32 %v3258, %v3453
  %v3521 = vadd.f32 %v3259, %v3453
  %v3522 = vadd.f32 %v3260, %v3453
  %v3523 = vadd.f32 %v3261, %v3453
  %v3524 = vadd.f32 %v3262, %v3453
  %v3525 = vadd.f32 %v3263, %v3453
  %v3526 = vadd.f32 %v3264, %v3453
  %v3527 = vadd.f32 %v3265, %v3453
  %v3528 = vadd.f32 %v3266, %v3453
  %v3529 = vadd.f32 %v3267, %v3453
  %v3530 = vadd.f32 %v3268, %v3453
  %v3531 = vadd.f32 %v3269, %v3453
  %v3532 = vadd.f32 %v3270, %v3453
  %v3533 = vadd.f32 %v3271, %v3453
  %v3534 = vadd.f32 %v3272, %v3453
  %v3535 = vadd.f32 %v3273, %v3453
  %v3536 = vadd.f32 %v3274, %v3453
  %v3537 = vadd.f32 %v3275, %v3453
  %v3538 = vadd.f32 %v3276, %v3453
  %v3539 = vadd.f32 %v3277, %v3453
  %v3540 = vadd.f32 %v3278, %v3453
  %v3541 = vadd.f32 %v3279, %v3453
  %v3542 = vadd.f32 %v3280, %v3453
  %v3543 = vadd.f32 %v3281, %v3453
  %v3544 = vadd.f32 %v3282, %v3453
  %v3545 = vadd.f32 %v3283, %v3453
  %v3546 = vadd.f32 %v3284, %v3453
  %v3547 = vadd.f32 %v3285, %v3453
  %v3548 = vadd.f32 %v3286, %v3453
  %v3549 = vadd.f32 %v3287, %v3453
  %v3550 = vadd.f32 %v3288, %v3453
  %v3551 = vadd.f32 %v3289, %v3453
  %v3552 = vadd.f32 %v3290, %v3453
  %v3553 = vadd.f32 %v3291, %v3453
  %v3554 = vadd.f32 %v3292, %v3453
  %v3555 = vadd.f32 %v3293, %v3453
  %v3556 = vadd.f32 %v3294, %v3453
  %v3557 = vadd.f32 %v3295, %v3453
  %v3558 = vadd.f32 %v3296, %v3453
  %v3559 = vadd.f32 %v3297, %v3453
  %v3560 = vadd.f32 %v3298, %v3453
  %v3561 = vadd.f32 %v3299, %v3453
  %v3562 = vadd.f32 %v3300, %v3453
  %v3563 = vadd.f32 %v3301, %v3453
  %v3564 = vadd.f32 %v3302, %v3453
  %v3565 = vadd.f32 %v3303, %v3453
  %v3566 = vadd.f32 %v3304, %v3453
  %v3567 = vadd.f32 %v3305, %v3453
  %v3568 = vadd.f32 %v3306, %v3453
  %v3569 = vadd.f32 %v3307, %v3453
  %v3570 = vadd.f32 %v3308, %v3453
  %v3571 = vadd.f32 %v3309, %v3453
  %v3572 = vadd.f32 %v3310, %v3453
  %v3573 = vadd.f32 %v3311, %v3453
  %v3574 = vadd.f32 %v3312, %v3453
  %v3575 = vadd.f32 %v3313, %v3453
  %v3576 = vadd.f32 %v3314, %v3453
  %v3577 = vadd.f32 %v3315, %v3453
  %v3578 = vadd.f32 %v3316, %v3453
  %v3579 = vadd.f32 %v3317, %v3453
  %v3580 = vadd.f32 %v3318, %v3453
  %v3581 = vadd.f32 %v3319, %v3453
  %v3582 = vadd.f32 %v3320, %v3453
  %v3583 = vadd.f32 %v3321, %v3453
  %v3584 = vadd.f32 %v3322, %v3453
  %v3585 = vadd.f32 %v3323, %v3453
  %v3586 = vadd.f32 %v3324, %v3453
  %v3587 = vadd.f32 %v3325, %v3453
  %v3588 = vadd.f32 %v3326, %v3453
  %v3589 = vadd.f32 %v3327, %v3453
  %v3590 = vadd.f32 %v3328, %v3453
  %v3591 = vadd.f32 %v3329, %v3453
  %v3592 = vadd.f32 %v3330, %v3453
  %v3593 = vadd.f32 %v3331, %v3453
  %v3594 = vadd.f32 %v3332, %v3453
  %v3595 = vadd.f32 %v3333, %v3453
  %v3596 = vadd.f32 %v3334, %v3453
  %v3597 = vadd.f32 %v3335, %v3453
  %v3598 = vadd.f32 %v3336, %v3453
  %v3599 = vadd.f32 %v3337, %v3453
  %v3600 = vadd.f32 %v3338, %v3453
  %v3601 = vadd.f32 %v3339, %v3453
  %v3602 = vadd.f32 %v3340, %v3453
  %v3603 = vadd.f32 %v3341, %v3453
  %v3604 = vadd.f32 %v3342, %v3453
  %v3605 = vadd.f32 %v3343, %v3453
  %v3606 = vadd.f32 %v3344, %v3453
  %v3607 = vadd.f32 %v3345, %v3453
  %v3608 = vadd.f32 %v3346, %v3453
  %v3609 = vadd.f32 %v3347, %v3453
  %v3610 = vadd.f32 %v3348, %v3453
  %v3611 = vadd.f32 %v3349, %v3453
  %v3612 = vadd.f32 %v3350, %v3453
  %v3613 = vadd.f32 %v3351, %v3453
  %v3614 = vadd.f32 %v3352, %v3453
  %v3615 = vadd.f32 %v3353, %v3453
  %v3616 = vadd.f32 %v3354, %v3453
  %v3617 = vadd.f32 %v3355, %v3453
  %v3618 = vadd.f32 %v3356, %v3453
  %v3619 = vadd.f32 %v3357, %v3453
  %v3620 = vadd.f32 %v3358, %v3453
  %v3621 = vadd.f32 %v3359, %v3453
  %v3622 = vadd.f32 %v3360, %v3453
  %v3623 = vadd.f32 %v3361, %v3453
  %v3624 = vadd.f32 %v3362, %v3453
  %v3625 = vadd.f32 %v3363, %v3453
  %v3626 = vadd.f32 %v3364, %v3453
  %v3627 = vadd.f32 %v3365, %v3453
  %v3628 = vadd.f32 %v3366, %v3453
  %v3629 = vadd.f32 %v3367, %v3453
  %v3630 = vadd.f32 %v3368, %v3453
  %v3631 = vadd.f32 %v3369, %v3453
  %v3632 = vadd.f32 %v3370, %v3453
  %v3633 = vadd.f32 %v3371, %v3453
  %v3634 = vadd.f32 %v3372, %v3453
  %v3635 = vadd.f32 %v3373, %v3453
  %v3636 = vadd.f32 %v3374, %v3453
  %v3637 = vadd.f32 %v3375, %v3453
  %v3638 = vadd.f32 %v3376, %v3453
  %v3639 = vadd.f32 %v3377, %v3453
  %v3640 = vadd.f32 %v3378, %v3453
  %v3641 = vadd.f32 %v3379, %v3453
  %v3642 = vadd.f32 %v3380, %v3453
  %v3643 = vadd.f32 %v3381, %v3453
  %v3644 = vadd.f32 %v3382, %v3453
  %v3645 = vadd.f32 %v3383, %v3453
  %v3646 = vadd.f32 %v3384, %v3453
  %v3647 = vadd.f32 %v3385, %v3453
  %v3648 = vadd.f32 %v3386, %v3453
  %v3649 = vadd.f32 %v3387, %v3453
  %v3650 = vadd.f32 %v3388, %v3453
  %v3651 = vadd.f32 %v3389, %v3453
  %v3652 = vadd.f32 %v3390, %v3453
  %v3653 = vadd.f32 %v3391, %v3453
  %v3654 = vadd.f32 %v3392, %v3453
  %v3655 = vadd.f32 %v3393, %v3453
  %v3656 = vadd.f32 %v3394, %v3453
  %v3657 = vadd.f32 %v3395, %v3453
  %v3658 = vadd.f32 %v3396, %v3453
  %v3659 = vadd.f32 %v3397, %v3453
  %v3660 = vadd.f32 %v3398, %v3453
  %v3661 = vadd.f32 %v3399, %v3453
  %v3662 = vadd.f32 %v3400, %v3453
  %v3663 = vadd.f32 %v3401, %v3453
  %v3664 = vadd.f32 %v3402, %v3453
  %v3665 = vadd.f32 %v3403, %v3453
  %v3666 = vadd.f32 %v3404, %v3453
  %v3667 = vadd.f32 %v3405, %v3453
  %v3668 = vadd.f32 %v3406, %v3453
  %v3669 = vadd.f32 %v3407, %v3453
  %v3670 = vadd.f32 %v3408, %v3453
  %v3671 = vadd.f32 %v3409, %v3453
  %v3672 = vadd.f32 %v3410, %v3453
  %v3673 = vadd.f32 %v3411, %v3453
  %v3674 = vadd.f32 %v3412, %v3453
  %v3675 = vadd.f32 %v3413, %v3453
  %v3676 = vadd.f32 %v3414, %v3453
  %v3677 = vadd.f32 %v3415, %v3453
  %v3678 = vadd.f32 %v3416, %v3453
  %v3679 = vadd.f32 %v3417, %v3453
  %v3680 = vadd.f32 %v3418, %v3453
  %v3681 = vadd.f32 %v3419, %v3453
  %v3682 = vadd.f32 %v3420, %v3453
  %v3683 = vadd.f32 %v3421, %v3453
  %v3684 = vadd.f32 %v3422, %v3453
  %v3685 = vadd.f32 %v3423, %v3453
  %v3686 = vadd.f32 %v3424, %v3453
  %v3687 = vadd.f32 %v3425, %v3453
  %v3688 = vadd.f32 %v3426, %v3453
  %v3689 = vadd.f32 %v3427, %v3453
  %v3690 = vadd.f32 %v3428, %v3453
  %v3691 = vadd.f32 %v3429, %v3453
  %v3692 = vadd.f32 %v3430, %v3453
  %v3693 = vadd.f32 %v3431, %v3453
  %v3694 = vadd.f32 %v3432, %v3453
  %v3695 = vadd.f32 %v3433, %v3453
  %v3696 = vadd.f32 %v3434, %v3453
  %v3697 = vadd.f32 %v3435, %v3453
  %v3698 = vadd.f32 %v3436, %v3453
  %v3699 = vadd.f32 %v3437, %v3453
  %v3700 = vadd.f32 %v3438, %v3453
  %v3701 = vadd.f32 %v3439, %v3453
  %v3702 = vadd.f32 %v3440, %v3453
  %v3703 = vadd.f32 %v3441, %v3453
  %v3704 = vadd.f32 %v3442, %v3453
  %v3705 = vadd.f32 %v3443, %v3453
  %v3706 = vadd.f32 %v3444, %v3453
  %v3707 = vadd.f32 %v3445, %v3453
  %v3708 = vadd.f32 %v3446, %v3453
  %v3709 = vadd.f32 %v3447, %v3453
  %v3710 = vadd.f32 %v3448, %v3453
  %v3711 = vmax.f32 %v3455, 0.0
  %v3712 = vmax.f32 %v3456, 0.0
  %v3713 = vmax.f32 %v3457, 0.0
  %v3714 = vmax.f32 %v3458, 0.0
  %v3715 = vmax.f32 %v3459, 0.0
  %v3716 = vmax.f32 %v3460, 0.0
  %v3717 = vmax.f32 %v3461, 0.0
  %v3718 = vmax.f32 %v3462, 0.0
  %v3719 = vmax.f32 %v3463, 0.0
  %v3720 = vmax.f32 %v3464, 0.0
  %v3721 = vmax.f32 %v3465, 0.0
  %v3722 = vmax.f32 %v3466, 0.0
  %v3723 = vmax.f32 %v3467, 0.0
  %v3724 = vmax.f32 %v3468, 0.0
  %v3725 = vmax.f32 %v3469, 0.0
  %v3726 = vmax.f32 %v3470, 0.0
  %v3727 = vmax.f32 %v3471, 0.0
  %v3728 = vmax.f32 %v3472, 0.0
  %v3729 = vmax.f32 %v3473, 0.0
  %v3730 = vmax.f32 %v3474, 0.0
  %v3731 = vmax.f32 %v3475, 0.0
  %v3732 = vmax.f32 %v3476, 0.0
  %v3733 = vmax.f32 %v3477, 0.0
  %v3734 = vmax.f32 %v3478, 0.0
  %v3735 = vmax.f32 %v3479, 0.0
  %v3736 = vmax.f32 %v3480, 0.0
  %v3737 = vmax.f32 %v3481, 0.0
  %v3738 = vmax.f32 %v3482, 0.0
  %v3739 = vmax.f32 %v3483, 0.0
  %v3740 = vmax.f32 %v3484, 0.0
  %v3741 = vmax.f32 %v3485, 0.0
  %v3742 = vmax.f32 %v3486, 0.0
  %v3743 = vmax.f32 %v3487, 0.0
  %v3744 = vmax.f32 %v3488, 0.0
  %v3745 = vmax.f32 %v3489, 0.0
  %v3746 = vmax.f32 %v3490, 0.0
  %v3747 = vmax.f32 %v3491, 0.0
  %v3748 = vmax.f32 %v3492, 0.0
  %v3749 = vmax.f32 %v3493, 0.0
  %v3750 = vmax.f32 %v3494, 0.0
  %v3751 = vmax.f32 %v3495, 0.0
  %v3752 = vmax.f32 %v3496, 0.0
  %v3753 = vmax.f32 %v3497, 0.0
  %v3754 = vmax.f32 %v3498, 0.0
  %v3755 = vmax.f32 %v3499, 0.0
  %v3756 = vmax.f32 %v3500, 0.0
  %v3757 = vmax.f32 %v3501, 0.0
  %v3758 = vmax.f32 %v3502, 0.0
  %v3759 = vmax.f32 %v3503, 0.0
  %v3760 = vmax.f32 %v3504, 0.0
  %v3761 = vmax.f32 %v3505, 0.0
  %v3762 = vmax.f32 %v3506, 0.0
  %v3763 = vmax.f32 %v3507, 0.0
  %v3764 = vmax.f32 %v3508, 0.0
  %v3765 = vmax.f32 %v3509, 0.0
  %v3766 = vmax.f32 %v3510, 0.0
  %v3767 = vmax.f32 %v3511, 0.0
  %v3768 = vmax.f32 %v3512, 0.0
  %v3769 = vmax.f32 %v3513, 0.0
  %v3770 = vmax.f32 %v3514, 0.0
  %v3771 = vmax.f32 %v3515, 0.0
  %v3772 = vmax.f32 %v3516, 0.0
  %v3773 = vmax.f32 %v3517, 0.0
  %v3774 = vmax.f32 %v3518, 0.0
  %v3775 = vmax.f32 %v3519, 0.0
  %v3776 = vmax.f32 %v3520, 0.0
  %v3777 = vmax.f32 %v3521, 0.0
  %v3778 = vmax.f32 %v3522, 0.0
  %v3779 = vmax.f32 %v3523, 0.0
  %v3780 = vmax.f32 %v3524, 0.0
  %v3781 = vmax.f32 %v3525, 0.0
  %v3782 = vmax.f32 %v3526, 0.0
  %v3783 = vmax.f32 %v3527, 0.0
  %v3784 = vmax.f32 %v3528, 0.0
  %v3785 = vmax.f32 %v3529, 0.0
  %v3786 = vmax.f32 %v3530, 0.0
  %v3787 = vmax.f32 %v3531, 0.0
  %v3788 = vmax.f32 %v3532, 0.0
  %v3789 = vmax.f32 %v3533, 0.0
  %v3790 = vmax.f32 %v3534, 0.0
  %v3791 = vmax.f32 %v3535, 0.0
  %v3792 = vmax.f32 %v3536, 0.0
  %v3793 = vmax.f32 %v3537, 0.0
  %v3794 = vmax.f32 %v3538, 0.0
  %v3795 = vmax.f32 %v3539, 0.0
  %v3796 = vmax.f32 %v3540, 0.0
  %v3797 = vmax.f32 %v3541, 0.0
  %v3798 = vmax.f32 %v3542, 0.0
  %v3799 = vmax.f32 %v3543, 0.0
  %v3800 = vmax.f32 %v3544, 0.0
  %v3801 = vmax.f32 %v3545, 0.0
  %v3802 = vmax.f32 %v3546, 0.0
  %v3803 = vmax.f32 %v3547, 0.0
  %v3804 = vmax.f32 %v3548, 0.0
  %v3805 = vmax.f32 %v3549, 0.0
  %v3806 = vmax.f32 %v3550, 0.0
  %v3807 = vmax.f32 %v3551, 0.0
  %v3808 = vmax.f32 %v3552, 0.0
  %v3809 = vmax.f32 %v3553, 0.0
  %v3810 = vmax.f32 %v3554, 0.0
  %v3811 = vmax.f32 %v3555, 0.0
  %v3812 = vmax.f32 %v3556, 0.0
  %v3813 = vmax.f32 %v3557, 0.0
  %v3814 = vmax.f32 %v3558, 0.0
  %v3815 = vmax.f32 %v3559, 0.0
  %v3816 = vmax.f32 %v3560, 0.0
  %v3817 = vmax.f32 %v3561, 0.0
  %v3818 = vmax.f32 %v3562, 0.0
  %v3819 = vmax.f32 %v3563, 0.0
  %v3820 = vmax.f32 %v3564, 0.0
  %v3821 = vmax.f32 %v3565, 0.0
  %v3822 = vmax.f32 %v3566, 0.0
  %v3823 = vmax.f32 %v3567, 0.0
  %v3824 = vmax.f32 %v3568, 0.0
  %v3825 = vmax.f32 %v3569, 0.0
  %v3826 = vmax.f32 %v3570, 0.0
  %v3827 = vmax.f32 %v3571, 0.0
  %v3828 = vmax.f32 %v3572, 0.0
  %v3829 = vmax.f32 %v3573, 0.0
  %v3830 = vmax.f32 %v3574, 0.0
  %v3831 = vmax.f32 %v3575, 0.0
  %v3832 = vmax.f32 %v3576, 0.0
  %v3833 = vmax.f32 %v3577, 0.0
  %v3834 = vmax.f32 %v3578, 0.0
  %v3835 = vmax.f32 %v3579, 0.0
  %v3836 = vmax.f32 %v3580, 0.0
  %v3837 = vmax.f32 %v3581, 0.0
  %v3838 = vmax.f32 %v3582, 0.0
  %v3839 = vmax.f32 %v3583, 0.0
  %v3840 = vmax.f32 %v3584, 0.0
  %v3841 = vmax.f32 %v3585, 0.0
  %v3842 = vmax.f32 %v3586, 0.0
  %v3843 = vmax.f32 %v3587, 0.0
  %v3844 = vmax.f32 %v3588, 0.0
  %v3845 = vmax.f32 %v3589, 0.0
  %v3846 = vmax.f32 %v3590, 0.0
  %v3847 = vmax.f32 %v3591, 0.0
  %v3848 = vmax.f32 %v3592, 0.0
  %v3849 = vmax.f32 %v3593, 0.0
  %v3850 = vmax.f32 %v3594, 0.0
  %v3851 = vmax.f32 %v3595, 0.0
  %v3852 = vmax.f32 %v3596, 0.0
  %v3853 = vmax.f32 %v3597, 0.0
  %v3854 = vmax.f32 %v3598, 0.0
  %v3855 = vmax.f32 %v3599, 0.0
  %v3856 = vmax.f32 %v3600, 0.0
  %v3857 = vmax.f32 %v3601, 0.0
  %v3858 = vmax.f32 %v3602, 0.0
  %v3859 = vmax.f32 %v3603, 0.0
  %v3860 = vmax.f32 %v3604, 0.0
  %v3861 = vmax.f32 %v3605, 0.0
  %v3862 = vmax.f32 %v3606, 0.0
  %v3863 = vmax.f32 %v3607, 0.0
  %v3864 = vmax.f32 %v3608, 0.0
  %v3865 = vmax.f32 %v3609, 0.0
  %v3866 = vmax.f32 %v3610, 0.0
  %v3867 = vmax.f32 %v3611, 0.0
  %v3868 = vmax.f32 %v3612, 0.0
  %v3869 = vmax.f32 %v3613, 0.0
  %v3870 = vmax.f32 %v3614, 0.0
  %v3871 = vmax.f32 %v3615, 0.0
  %v3872 = vmax.f32 %v3616, 0.0
  %v3873 = vmax.f32 %v3617, 0.0
  %v3874 = vmax.f32 %v3618, 0.0
  %v3875 = vmax.f32 %v3619, 0.0
  %v3876 = vmax.f32 %v3620, 0.0
  %v3877 = vmax.f32 %v3621, 0.0
  %v3878 = vmax.f32 %v3622, 0.0
  %v3879 = vmax.f32 %v3623, 0.0
  %v3880 = vmax.f32 %v3624, 0.0
  %v3881 = vmax.f32 %v3625, 0.0
  %v3882 = vmax.f32 %v3626, 0.0
  %v3883 = vmax.f32 %v3627, 0.0
  %v3884 = vmax.f32 %v3628, 0.0
  %v3885 = vmax.f32 %v3629, 0.0
  %v3886 = vmax.f32 %v3630, 0.0
  %v3887 = vmax.f32 %v3631, 0.0
  %v3888 = vmax.f32 %v3632, 0.0
  %v3889 = vmax.f32 %v3633, 0.0
  %v3890 = vmax.f32 %v3634, 0.0
  %v3891 = vmax.f32 %v3635, 0.0
  %v3892 = vmax.f32 %v3636, 0.0
  %v3893 = vmax.f32 %v3637, 0.0
  %v3894 = vmax.f32 %v3638, 0.0
  %v3895 = vmax.f32 %v3639, 0.0
  %v3896 = vmax.f32 %v3640, 0.0
  %v3897 = vmax.f32 %v3641, 0.0
  %v3898 = vmax.f32 %v3642, 0.0
  %v3899 = vmax.f32 %v3643, 0.0
  %v3900 = vmax.f32 %v3644, 0.0
  %v3901 = vmax.f32 %v3645, 0.0
  %v3902 = vmax.f32 %v3646, 0.0
  %v3903 = vmax.f32 %v3647, 0.0
  %v3904 = vmax.f32 %v3648, 0.0
  %v3905 = vmax.f32 %v3649, 0.0
  %v3906 = vmax.f32 %v3650, 0.0
  %v3907 = vmax.f32 %v3651, 0.0
  %v3908 = vmax.f32 %v3652, 0.0
  %v3909 = vmax.f32 %v3653, 0.0
  %v3910 = vmax.f32 %v3654, 0.0
  %v3911 = vmax.f32 %v3655, 0.0
  %v3912 = vmax.f32 %v3656, 0.0
  %v3913 = vmax.f32 %v3657, 0.0
  %v3914 = vmax.f32 %v3658, 0.0
  %v3915 = vmax.f32 %v3659, 0.0
  %v3916 = vmax.f32 %v3660, 0.0
  %v3917 = vmax.f32 %v3661, 0.0
  %v3918 = vmax.f32 %v3662, 0.0
  %v3919 = vmax.f32 %v3663, 0.0
  %v3920 = vmax.f32 %v3664, 0.0
  %v3921 = vmax.f32 %v3665, 0.0
  %v3922 = vmax.f32 %v3666, 0.0
  %v3923 = vmax.f32 %v3667, 0.0
  %v3924 = vmax.f32 %v3668, 0.0
  %v3925 = vmax.f32 %v3669, 0.0
  %v3926 = vmax.f32 %v3670, 0.0
  %v3927 = vmax.f32 %v3671, 0.0
  %v3928 = vmax.f32 %v3672, 0.0
  %v3929 = vmax.f32 %v3673, 0.0
  %v3930 = vmax.f32 %v3674, 0.0
  %v3931 = vmax.f32 %v3675, 0.0
  %v3932 = vmax.f32 %v3676, 0.0
  %v3933 = vmax.f32 %v3677, 0.0
  %v3934 = vmax.f32 %v3678, 0.0
  %v3935 = vmax.f32 %v3679, 0.0
  %v3936 = vmax.f32 %v3680, 0.0
  %v3937 = vmax.f32 %v3681, 0.0
  %v3938 = vmax.f32 %v3682, 0.0
  %v3939 = vmax.f32 %v3683, 0.0
  %v3940 = vmax.f32 %v3684, 0.0
  %v3941 = vmax.f32 %v3685, 0.0
  %v3942 = vmax.f32 %v3686, 0.0
  %v3943 = vmax.f32 %v3687, 0.0
  %v3944 = vmax.f32 %v3688, 0.0
  %v3945 = vmax.f32 %v3689, 0.0
  %v3946 = vmax.f32 %v3690, 0.0
  %v3947 = vmax.f32 %v3691, 0.0
  %v3948 = vmax.f32 %v3692, 0.0
  %v3949 = vmax.f32 %v3693, 0.0
  %v3950 = vmax.f32 %v3694, 0.0
  %v3951 = vmax.f32 %v3695, 0.0
  %v3952 = vmax.f32 %v3696, 0.0
  %v3953 = vmax.f32 %v3697, 0.0
  %v3954 = vmax.f32 %v3698, 0.0
  %v3955 = vmax.f32 %v3699, 0.0
  %v3956 = vmax.f32 %v3700, 0.0
  %v3957 = vmax.f32 %v3701, 0.0
  %v3958 = vmax.f32 %v3702, 0.0
  %v3959 = vmax.f32 %v3703, 0.0
  %v3960 = vmax.f32 %v3704, 0.0
  %v3961 = vmax.f32 %v3705, 0.0
  %v3962 = vmax.f32 %v3706, 0.0
  %v3963 = vmax.f32 %v3707, 0.0
  %v3964 = vmax.f32 %v3708, 0.0
  %v3965 = vmax.f32 %v3709, 0.0
  %v3966 = vmax.f32 %v3710, 0.0
  %3967 = vst [vmem:[%s4] sm:$0xff] %v3711
  %3968 = vst [vmem:[%s4 + $0x8] sm:$0xff] %v3712
  %3969 = vst [vmem:[%s4 + $0x10] sm:$0xff] %v3713
  %3970 = vst [vmem:[%s4 + $0x18] sm:$0xff] %v3714
  %3971 = vst [vmem:[%s4 + $0x20] sm:$0xff] %v3715
  %3972 = vst [vmem:[%s4 + $0x28] sm:$0xff] %v3716
  %3973 = vst [vmem:[%s4 + $0x30] sm:$0xff] %v3717
  %3974 = vst [vmem:[%s4 + $0x38] sm:$0xff] %v3718
  %3975 = vst [vmem:[%s4 + $0x40] sm:$0xff] %v3719
  %3976 = vst [vmem:[%s4 + $0x48] sm:$0xff] %v3720
  %3977 = vst [vmem:[%s4 + $0x50] sm:$0xff] %v3721
  %3978 = vst [vmem:[%s4 + $0x58] sm:$0xff] %v3722
  %3979 = vst [vmem:[%s4 + $0x60] sm:$0xff] %v3723
  %3980 = vst [vmem:[%s4 + $0x68] sm:$0xff] %v3724
  %3981 = vst [vmem:[%s4 + $0x70] sm:$0xff] %v3725
  %3982 = vst [vmem:[%s4 + $0x78] sm:$0xff] %v3726
  %3983 = vst [vmem:[%s4 + $0x80] sm:$0xff] %v3727
  %3984 = vst [vmem:[%s4 + $0x88] sm:$0xff] %v3728
  %3985 = vst [vmem:[%s4 + $0x90] sm:$0xff] %v3729
  %3986 = vst [vmem:[%s4 + $0x98] sm:$0xff] %v3730
  %3987 = vst [vmem:[%s4 + $0xa0] sm:$0xff] %v3731
  %3988 = vst [vmem:[%s4 + $0xa8] sm:$0xff] %v3732
  %3989 = vst [vmem:[%s4 + $0xb0] sm:$0xff] %v3733
  %3990 = vst [vmem:[%s4 + $0xb8] sm:$0xff] %v3734
  %3991 = vst [vmem:[%s4 + $0xc0] sm:$0xff] %v3735
  %3992 = vst [vmem:[%s4 + $0xc8] sm:$0xff] %v3736
  %3993 = vst [vmem:[%s4 + $0xd0] sm:$0xff] %v3737
  %3994 = vst [vmem:[%s4 + $0xd8] sm:$0xff] %v3738
  %3995 = vst [vmem:[%s4 + $0xe0] sm:$0xff] %v3739
  %3996 = vst [vmem:[%s4 + $0xe8] sm:$0xff] %v3740
  %3997 = vst [vmem:[%s4 + $0xf0] sm:$0xff] %v3741
  %3998 = vst [vmem:[%s4 + $0xf8] sm:$0xff] %v3742
  %3999 = vst [vmem:[%s4 + $0x100] sm:$0xff] %v3743
  %4000 = vst [vmem:[%s4 + $0x108] sm:$0xff] %v3744
  %4001 = vst [vmem:[%s4 + $0x110] sm:$0xff] %v3745
  %4002 = vst [vmem:[%s4 + $0x118] sm:$0xff] %v3746
  %4003 = vst [vmem:[%s4 + $0x120] sm:$0xff] %v3747
  %4004 = vst [vmem:[%s4 + $0x128] sm:$0xff] %v3748
  %4005 = vst [vmem:[%s4 + $0x130] sm:$0xff] %v3749
  %4006 = vst [vmem:[%s4 + $0x138] sm:$0xff] %v3750
  %4007 = vst [vmem:[%s4 + $0x140] sm:$0xff] %v3751
  %4008 = vst [vmem:[%s4 + $0x148] sm:$0xff] %v3752
  %4009 = vst [vmem:[%s4 + $0x150] sm:$0xff] %v3753
  %4010 = vst [vmem:[%s4 + $0x158] sm:$0xff] %v3754
  %4011 = vst [vmem:[%s4 + $0x160] sm:$0xff] %v3755
  %4012 = vst [vmem:[%s4 + $0x168] sm:$0xff] %v3756
  %4013 = vst [vmem:[%s4 + $0x170] sm:$0xff] %v3757
  %4014 = vst [vmem:[%s4 + $0x178] sm:$0xff] %v3758
  %4015 = vst [vmem:[%s4 + $0x180] sm:$0xff] %v3759
  %4016 = vst [vmem:[%s4 + $0x188] sm:$0xff] %v3760
  %4017 = vst [vmem:[%s4 + $0x190] sm:$0xff] %v3761
  %4018 = vst [vmem:[%s4 + $0x198] sm:$0xff] %v3762
  %4019 = vst [vmem:[%s4 + $0x1a0] sm:$0xff] %v3763
  %4020 = vst [vmem:[%s4 + $0x1a8] sm:$0xff] %v3764
  %4021 = vst [vmem:[%s4 + $0x1b0] sm:$0xff] %v3765
  %4022 = vst [vmem:[%s4 + $0x1b8] sm:$0xff] %v3766
  %4023 = vst [vmem:[%s4 + $0x1c0] sm:$0xff] %v3767
  %4024 = vst [vmem:[%s4 + $0x1c8] sm:$0xff] %v3768
  %4025 = vst [vmem:[%s4 + $0x1d0] sm:$0xff] %v3769
  %4026 = vst [vmem:[%s4 + $0x1d8] sm:$0xff] %v3770
  %4027 = vst [vmem:[%s4 + $0x1e0] sm:$0xff] %v3771
  %4028 = vst [vmem:[%s4 + $0x1e8] sm:$0xff] %v3772
  %4029 = vst [vmem:[%s4 + $0x1f0] sm:$0xff] %v3773
  %4030 = vst [vmem:[%s4 + $0x1f8] sm:$0xff] %v3774
  %4031 = vst [vmem:[%s4 + $0x200] sm:$0xff] %v3775
  %4032 = vst [vmem:[%s4 + $0x208] sm:$0xff] %v3776
  %4033 = vst [vmem:[%s4 + $0x210] sm:$0xff] %v3777
  %4034 = vst [vmem:[%s4 + $0x218] sm:$0xff] %v3778
  %4035 = vst [vmem:[%s4 + $0x220] sm:$0xff] %v3779
  %4036 = vst [vmem:[%s4 + $0x228] sm:$0xff] %v3780
  %4037 = vst [vmem:[%s4 + $0x230] sm:$0xff] %v3781
  %4038 = vst [vmem:[%s4 + $0x238] sm:$0xff] %v3782
  %4039 = vst [vmem:[%s4 + $0x240] sm:$0xff] %v3783
  %4040 = vst [vmem:[%s4 + $0x248] sm:$0xff] %v3784
  %4041 = vst [vmem:[%s4 + $0x250] sm:$0xff] %v3785
  %4042 = vst [vmem:[%s4 + $0x258] sm:$0xff] %v3786
  %4043 = vst [vmem:[%s4 + $0x260] sm:$0xff] %v3787
  %4044 = vst [vmem:[%s4 + $0x268] sm:$0xff] %v3788
  %4045 = vst [vmem:[%s4 + $0x270] sm:$0xff] %v3789
  %4046 = vst [vmem:[%s4 + $0x278] sm:$0xff] %v3790
  %4047 = vst [vmem:[%s4 + $0x280] sm:$0xff] %v3791
  %4048 = vst [vmem:[%s4 + $0x288] sm:$0xff] %v3792
  %4049 = vst [vmem:[%s4 + $0x290] sm:$0xff] %v3793
  %4050 = vst [vmem:[%s4 + $0x298] sm:$0xff] %v3794
  %4051 = vst [vmem:[%s4 + $0x2a0] sm:$0xff] %v3795
  %4052 = vst [vmem:[%s4 + $0x2a8] sm:$0xff] %v3796
  %4053 = vst [vmem:[%s4 + $0x2b0] sm:$0xff] %v3797
  %4054 = vst [vmem:[%s4 + $0x2b8] sm:$0xff] %v3798
  %4055 = vst [vmem:[%s4 + $0x2c0] sm:$0xff] %v3799
  %4056 = vst [vmem:[%s4 + $0x2c8] sm:$0xff] %v3800
  %4057 = vst [vmem:[%s4 + $0x2d0] sm:$0xff] %v3801
  %4058 = vst [vmem:[%s4 + $0x2d8] sm:$0xff] %v3802
  %4059 = vst [vmem:[%s4 + $0x2e0] sm:$0xff] %v3803
  %4060 = vst [vmem:[%s4 + $0x2e8] sm:$0xff] %v3804
  %4061 = vst [vmem:[%s4 + $0x2f0] sm:$0xff] %v3805
  %4062 = vst [vmem:[%s4 + $0x2f8] sm:$0xff] %v3806
  %4063 = vst [vmem:[%s4 + $0x300] sm:$0xff] %v3807
  %4064 = vst [vmem:[%s4 + $0x308] sm:$0xff] %v3808
  %4065 = vst [vmem:[%s4 + $0x310] sm:$0xff] %v3809
  %4066 = vst [vmem:[%s4 + $0x318] sm:$0xff] %v3810
  %4067 = vst [vmem:[%s4 + $0x320] sm:$0xff] %v3811
  %4068 = vst [vmem:[%s4 + $0x328] sm:$0xff] %v3812
  %4069 = vst [vmem:[%s4 + $0x330] sm:$0xff] %v3813
  %4070 = vst [vmem:[%s4 + $0x338] sm:$0xff] %v3814
  %4071 = vst [vmem:[%s4 + $0x340] sm:$0xff] %v3815
  %4072 = vst [vmem:[%s4 + $0x348] sm:$0xff] %v3816
  %4073 = vst [vmem:[%s4 + $0x350] sm:$0xff] %v3817
  %4074 = vst [vmem:[%s4 + $0x358] sm:$0xff] %v3818
  %4075 = vst [vmem:[%s4 + $0x360] sm:$0xff] %v3819
  %4076 = vst [vmem:[%s4 + $0x368] sm:$0xff] %v3820
  %4077 = vst [vmem:[%s4 + $0x370] sm:$0xff] %v3821
  %4078 = vst [vmem:[%s4 + $0x378] sm:$0xff] %v3822
  %4079 = vst [vmem:[%s4 + $0x380] sm:$0xff] %v3823
  %4080 = vst [vmem:[%s4 + $0x388] sm:$0xff] %v3824
  %4081 = vst [vmem:[%s4 + $0x390] sm:$0xff] %v3825
  %4082 = vst [vmem:[%s4 + $0x398] sm:$0xff] %v3826
  %4083 = vst [vmem:[%s4 + $0x3a0] sm:$0xff] %v3827
  %4084 = vst [vmem:[%s4 + $0x3a8] sm:$0xff] %v3828
  %4085 = vst [vmem:[%s4 + $0x3b0] sm:$0xff] %v3829
  %4086 = vst [vmem:[%s4 + $0x3b8] sm:$0xff] %v3830
  %4087 = vst [vmem:[%s4 + $0x3c0] sm:$0xff] %v3831
  %4088 = vst [vmem:[%s4 + $0x3c8] sm:$0xff] %v3832
  %4089 = vst [vmem:[%s4 + $0x3d0] sm:$0xff] %v3833
  %4090 = vst [vmem:[%s4 + $0x3d8] sm:$0xff] %v3834
  %4091 = vst [vmem:[%s4 + $0x3e0] sm:$0xff] %v3835
  %4092 = vst [vmem:[%s4 + $0x3e8] sm:$0xff] %v3836
  %4093 = vst [vmem:[%s4 + $0x3f0] sm:$0xff] %v3837
  %4094 = vst [vmem:[%s4 + $0x3f8] sm:$0xff] %v3838
  %4095 = vst [vmem:[%s4 + $0x400] sm:$0xff] %v3839
  %4096 = vst [vmem:[%s4 + $0x408] sm:$0xff] %v3840
  %4097 = vst [vmem:[%s4 + $0x410] sm:$0xff] %v3841
  %4098 = vst [vmem:[%s4 + $0x418] sm:$0xff] %v3842
  %4099 = vst [vmem:[%s4 + $0x420] sm:$0xff] %v3843
  %4100 = vst [vmem:[%s4 + $0x428] sm:$0xff] %v3844
  %4101 = vst [vmem:[%s4 + $0x430] sm:$0xff] %v3845
  %4102 = vst [vmem:[%s4 + $0x438] sm:$0xff] %v3846
  %4103 = vst [vmem:[%s4 + $0x440] sm:$0xff] %v3847
  %4104 = vst [vmem:[%s4 + $0x448] sm:$0xff] %v3848
  %4105 = vst [vmem:[%s4 + $0x450] sm:$0xff] %v3849
  %4106 = vst [vmem:[%s4 + $0x458] sm:$0xff] %v3850
  %4107 = vst [vmem:[%s4 + $0x460] sm:$0xff] %v3851
  %4108 = vst [vmem:[%s4 + $0x468] sm:$0xff] %v3852
  %4109 = vst [vmem:[%s4 + $0x470] sm:$0xff] %v3853
  %4110 = vst [vmem:[%s4 + $0x478] sm:$0xff] %v3854
  %4111 = vst [vmem:[%s4 + $0x480] sm:$0xff] %v3855
  %4112 = vst [vmem:[%s4 + $0x488] sm:$0xff] %v3856
  %4113 = vst [vmem:[%s4 + $0x490] sm:$0xff] %v3857
  %4114 = vst [vmem:[%s4 + $0x498] sm:$0xff] %v3858
  %4115 = vst [vmem:[%s4 + $0x4a0] sm:$0xff] %v3859
  %4116 = vst [vmem:[%s4 + $0x4a8] sm:$0xff] %v3860
  %4117 = vst [vmem:[%s4 + $0x4b0] sm:$0xff] %v3861
  %4118 = vst [vmem:[%s4 + $0x4b8] sm:$0xff] %v3862
  %4119 = vst [vmem:[%s4 + $0x4c0] sm:$0xff] %v3863
  %4120 = vst [vmem:[%s4 + $0x4c8] sm:$0xff] %v3864
  %4121 = vst [vmem:[%s4 + $0x4d0] sm:$0xff] %v3865
  %4122 = vst [vmem:[%s4 + $0x4d8] sm:$0xff] %v3866
  %4123 = vst [vmem:[%s4 + $0x4e0] sm:$0xff] %v3867
  %4124 = vst [vmem:[%s4 + $0x4e8] sm:$0xff] %v3868
  %4125 = vst [vmem:[%s4 + $0x4f0] sm:$0xff] %v3869
  %4126 = vst [vmem:[%s4 + $0x4f8] sm:$0xff] %v3870
  %4127 = vst [vmem:[%s4 + $0x500] sm:$0xff] %v3871
  %4128 = vst [vmem:[%s4 + $0x508] sm:$0xff] %v3872
  %4129 = vst [vmem:[%s4 + $0x510] sm:$0xff] %v3873
  %4130 = vst [vmem:[%s4 + $0x518] sm:$0xff] %v3874
  %4131 = vst [vmem:[%s4 + $0x520] sm:$0xff] %v3875
  %4132 = vst [vmem:[%s4 + $0x528] sm:$0xff] %v3876
  %4133 = vst [vmem:[%s4 + $0x530] sm:$0xff] %v3877
  %4134 = vst [vmem:[%s4 + $0x538] sm:$0xff] %v3878
  %4135 = vst [vmem:[%s4 + $0x540] sm:$0xff] %v3879
  %4136 = vst [vmem:[%s4 + $0x548] sm:$0xff] %v3880
  %4137 = vst [vmem:[%s4 + $0x550] sm:$0xff] %v3881
  %4138 = vst [vmem:[%s4 + $0x558] sm:$0xff] %v3882
  %4139 = vst [vmem:[%s4 + $0x560] sm:$0xff] %v3883
  %4140 = vst [vmem:[%s4 + $0x568] sm:$0xff] %v3884
  %4141 = vst [vmem:[%s4 + $0x570] sm:$0xff] %v3885
  %4142 = vst [vmem:[%s4 + $0x578] sm:$0xff] %v3886
  %4143 = vst [vmem:[%s4 + $0x580] sm:$0xff] %v3887
  %4144 = vst [vmem:[%s4 + $0x588] sm:$0xff] %v3888
  %4145 = vst [vmem:[%s4 + $0x590] sm:$0xff] %v3889
  %4146 = vst [vmem:[%s4 + $0x598] sm:$0xff] %v3890
  %4147 = vst [vmem:[%s4 + $0x5a0] sm:$0xff] %v3891
  %4148 = vst [vmem:[%s4 + $0x5a8] sm:$0xff] %v3892
  %4149 = vst [vmem:[%s4 + $0x5b0] sm:$0xff] %v3893
  %4150 = vst [vmem:[%s4 + $0x5b8] sm:$0xff] %v3894
  %4151 = vst [vmem:[%s4 + $0x5c0] sm:$0xff] %v3895
  %4152 = vst [vmem:[%s4 + $0x5c8] sm:$0xff] %v3896
  %4153 = vst [vmem:[%s4 + $0x5d0] sm:$0xff] %v3897
  %4154 = vst [vmem:[%s4 + $0x5d8] sm:$0xff] %v3898
  %4155 = vst [vmem:[%s4 + $0x5e0] sm:$0xff] %v3899
  %4156 = vst [vmem:[%s4 + $0x5e8] sm:$0xff] %v3900
  %4157 = vst [vmem:[%s4 + $0x5f0] sm:$0xff] %v3901
  %4158 = vst [vmem:[%s4 + $0x5f8] sm:$0xff] %v3902
  %4159 = vst [vmem:[%s4 + $0x600] sm:$0xff] %v3903
  %4160 = vst [vmem:[%s4 + $0x608] sm:$0xff] %v3904
  %4161 = vst [vmem:[%s4 + $0x610] sm:$0xff] %v3905
  %4162 = vst [vmem:[%s4 + $0x618] sm:$0xff] %v3906
  %4163 = vst [vmem:[%s4 + $0x620] sm:$0xff] %v3907
  %4164 = vst [vmem:[%s4 + $0x628] sm:$0xff] %v3908
  %4165 = vst [vmem:[%s4 + $0x630] sm:$0xff] %v3909
  %4166 = vst [vmem:[%s4 + $0x638] sm:$0xff] %v3910
  %4167 = vst [vmem:[%s4 + $0x640] sm:$0xff] %v3911
  %4168 = vst [vmem:[%s4 + $0x648] sm:$0xff] %v3912
  %4169 = vst [vmem:[%s4 + $0x650] sm:$0xff] %v3913
  %4170 = vst [vmem:[%s4 + $0x658] sm:$0xff] %v3914
  %4171 = vst [vmem:[%s4 + $0x660] sm:$0xff] %v3915
  %4172 = vst [vmem:[%s4 + $0x668] sm:$0xff] %v3916
  %4173 = vst [vmem:[%s4 + $0x670] sm:$0xff] %v3917
  %4174 = vst [vmem:[%s4 + $0x678] sm:$0xff] %v3918
  %4175 = vst [vmem:[%s4 + $0x680] sm:$0xff] %v3919
  %4176 = vst [vmem:[%s4 + $0x688] sm:$0xff] %v3920
  %4177 = vst [vmem:[%s4 + $0x690] sm:$0xff] %v3921
  %4178 = vst [vmem:[%s4 + $0x698] sm:$0xff] %v3922
  %4179 = vst [vmem:[%s4 + $0x6a0] sm:$0xff] %v3923
  %4180 = vst [vmem:[%s4 + $0x6a8] sm:$0xff] %v3924
  %4181 = vst [vmem:[%s4 + $0x6b0] sm:$0xff] %v3925
  %4182 = vst [vmem:[%s4 + $0x6b8] sm:$0xff] %v3926
  %4183 = vst [vmem:[%s4 + $0x6c0] sm:$0xff] %v3927
  %4184 = vst [vmem:[%s4 + $0x6c8] sm:$0xff] %v3928
  %4185 = vst [vmem:[%s4 + $0x6d0] sm:$0xff] %v3929
  %4186 = vst [vmem:[%s4 + $0x6d8] sm:$0xff] %v3930
  %4187 = vst [vmem:[%s4 + $0x6e0] sm:$0xff] %v3931
  %4188 = vst [vmem:[%s4 + $0x6e8] sm:$0xff] %v3932
  %4189 = vst [vmem:[%s4 + $0x6f0] sm:$0xff] %v3933
  %4190 = vst [vmem:[%s4 + $0x6f8] sm:$0xff] %v3934
  %4191 = vst [vmem:[%s4 + $0x700] sm:$0xff] %v3935
  %4192 = vst [vmem:[%s4 + $0x708] sm:$0xff] %v3936
  %4193 = vst [vmem:[%s4 + $0x710] sm:$0xff] %v3937
  %4194 = vst [vmem:[%s4 + $0x718] sm:$0xff] %v3938
  %4195 = vst [vmem:[%s4 + $0x720] sm:$0xff] %v3939
  %4196 = vst [vmem:[%s4 + $0x728] sm:$0xff] %v3940
  %4197 = vst [vmem:[%s4 + $0x730] sm:$0xff] %v3941
  %4198 = vst [vmem:[%s4 + $0x738] sm:$0xff] %v3942
  %4199 = vst [vmem:[%s4 + $0x740] sm:$0xff] %v3943
  %4200 = vst [vmem:[%s4 + $0x748] sm:$0xff] %v3944
  %4201 = vst [vmem:[%s4 + $0x750] sm:$0xff] %v3945
  %4202 = vst [vmem:[%s4 + $0x758] sm:$0xff] %v3946
  %4203 = vst [vmem:[%s4 + $0x760] sm:$0xff] %v3947
  %4204 = vst [vmem:[%s4 + $0x768] sm:$0xff] %v3948
  %4205 = vst [vmem:[%s4 + $0x770] sm:$0xff] %v3949
  %4206 = vst [vmem:[%s4 + $0x778] sm:$0xff] %v3950
  %4207 = vst [vmem:[%s4 + $0x780] sm:$0xff] %v3951
  %4208 = vst [vmem:[%s4 + $0x788] sm:$0xff] %v3952
  %4209 = vst [vmem:[%s4 + $0x790] sm:$0xff] %v3953
  %4210 = vst [vmem:[%s4 + $0x798] sm:$0xff] %v3954
  %4211 = vst [vmem:[%s4 + $0x7a0] sm:$0xff] %v3955
  %4212 = vst [vmem:[%s4 + $0x7a8] sm:$0xff] %v3956
  %4213 = vst [vmem:[%s4 + $0x7b0] sm:$0xff] %v3957
  %4214 = vst [vmem:[%s4 + $0x7b8] sm:$0xff] %v3958
  %4215 = vst [vmem:[%s4 + $0x7c0] sm:$0xff] %v3959
  %4216 = vst [vmem:[%s4 + $0x7c8] sm:$0xff] %v3960
  %4217 = vst [vmem:[%s4 + $0x7d0] sm:$0xff] %v3961
  %4218 = vst [vmem:[%s4 + $0x7d8] sm:$0xff] %v3962
  %4219 = vst [vmem:[%s4 + $0x7e0] sm:$0xff] %v3963
  %4220 = vst [vmem:[%s4 + $0x7e8] sm:$0xff] %v3964
  %4221 = vst [vmem:[%s4 + $0x7f0] sm:$0xff] %v3965
  %4222 = vst [vmem:[%s4 + $0x7f8] sm:$0xff] %v3966
  %v4223 = vadd.f32 %v3711, %v3712
  %v4224 = vadd.f32 %v4223, %v3713
  %v4225 = vadd.f32 %v4224, %v3714
  %v4226 = vadd.f32 %v4225, %v3715
  %v4227 = vadd.f32 %v4226, %v3716
  %v4228 = vadd.f32 %v4227, %v3717
  %v4229 = vadd.f32 %v4228, %v3718
  %v4230 = vadd.f32 %v4229, %v3719
  %v4231 = vadd.f32 %v4230, %v3720
  %v4232 = vadd.f32 %v4231, %v3721
  %v4233 = vadd.f32 %v4232, %v3722
  %v4234 = vadd.f32 %v4233, %v3723
  %v4235 = vadd.f32 %v4234, %v3724
  %v4236 = vadd.f32 %v4235, %v3725
  %v4237 = vadd.f32 %v4236, %v3726
  %v4238 = vadd.f32 %v4237, %v3727
  %v4239 = vadd.f32 %v4238, %v3728
  %v4240 = vadd.f32 %v4239, %v3729
  %v4241 = vadd.f32 %v4240, %v3730
  %v4242 = vadd.f32 %v4241, %v3731
  %v4243 = vadd.f32 %v4242, %v3732
  %v4244 = vadd.f32 %v4243, %v3733
  %v4245 = vadd.f32 %v4244, %v3734
  %v4246 = vadd.f32 %v4245, %v3735
  %v4247 = vadd.f32 %v4246, %v3736
  %v4248 = vadd.f32 %v4247, %v3737
  %v4249 = vadd.f32 %v4248, %v3738
  %v4250 = vadd.f32 %v4249, %v3739
  %v4251 = vadd.f32 %v4250, %v3740
  %v4252 = vadd.f32 %v4251, %v3741
  %v4253 = vadd.f32 %v4252, %v3742
  %v4254 = vadd.f32 %v4253, %v3743
  %v4255 = vadd.f32 %v4254, %v3744
  %v4256 = vadd.f32 %v4255, %v3745
  %v4257 = vadd.f32 %v4256, %v3746
  %v4258 = vadd.f32 %v4257, %v3747
  %v4259 = vadd.f32 %v4258, %v3748
  %v4260 = vadd.f32 %v4259, %v3749
  %v4261 = vadd.f32 %v4260, %v3750
  %v4262 = vadd.f32 %v4261, %v3751
  %v4263 = vadd.f32 %v4262, %v3752
  %v4264 = vadd.f32 %v4263, %v3753
  %v4265 = vadd.f32 %v4264, %v3754
  %v4266 = vadd.f32 %v4265, %v3755
  %v4267 = vadd.f32 %v4266, %v3756
  %v4268 = vadd.f32 %v4267, %v3757
  %v4269 = vadd.f32 %v4268, %v3758
  %v4270 = vadd.f32 %v4269, %v3759
  %v4271 = vadd.f32 %v4270, %v3760
  %v4272 = vadd.f32 %v4271, %v3761
  %v4273 = vadd.f32 %v4272, %v3762
  %v4274 = vadd.f32 %v4273, %v3763
  %v4275 = vadd.f32 %v4274, %v3764
  %v4276 = vadd.f32 %v4275, %v3765
  %v4277 = vadd.f32 %v4276, %v3766
  %v4278 = vadd.f32 %v4277, %v3767
  %v4279 = vadd.f32 %v4278, %v3768
  %v4280 = vadd.f32 %v4279, %v3769
  %v4281 = vadd.f32 %v4280, %v3770
  %v4282 = vadd.f32 %v4281, %v3771
  %v4283 = vadd.f32 %v4282, %v3772
  %v4284 = vadd.f32 %v4283, %v3773
  %v4285 = vadd.f32 %v4284, %v3774
  %v4286 = vadd.f32 %v4285, %v3775
  %v4287 = vadd.f32 %v4286, %v3776
  %v4288 = vadd.f32 %v4287, %v3777
  %v4289 = vadd.f32 %v4288, %v3778
  %v4290 = vadd.f32 %v4289, %v3779
  %v4291 = vadd.f32 %v4290, %v3780
  %v4292 = vadd.f32 %v4291, %v3781
  %v4293 = vadd.f32 %v4292, %v3782
  %v4294 = vadd.f32 %v4293, %v3783
  %v4295 = vadd.f32 %v4294, %v3784
  %v4296 = vadd.f32 %v4295, %v3785
  %v4297 = vadd.f32 %v4296, %v3786
  %v4298 = vadd.f32 %v4297, %v3787
  %v4299 = vadd.f32 %v4298, %v3788
  %v4300 = vadd.f32 %v4299, %v3789
  %v4301 = vadd.f32 %v4300, %v3790
  %v4302 = vadd.f32 %v4301, %v3791
  %v4303 = vadd.f32 %v4302, %v3792
  %v4304 = vadd.f32 %v4303, %v3793
  %v4305 = vadd.f32 %v4304, %v3794
  %v4306 = vadd.f32 %v4305, %v3795
  %v4307 = vadd.f32 %v4306, %v3796
  %v4308 = vadd.f32 %v4307, %v3797
  %v4309 = vadd.f32 %v4308, %v3798
  %v4310 = vadd.f32 %v4309, %v3799
  %v4311 = vadd.f32 %v4310, %v3800
  %v4312 = vadd.f32 %v4311, %v3801
  %v4313 = vadd.f32 %v4312, %v3802
  %v4314 = vadd.f32 %v4313, %v3803
  %v4315 = vadd.f32 %v4314, %v3804
  %v4316 = vadd.f32 %v4315, %v3805
  %v4317 = vadd.f32 %v4316, %v3806
  %v4318 = vadd.f32 %v4317, %v3807
  %v4319 = vadd.f32 %v4318, %v3808
  %v4320 = vadd.f32 %v4319, %v3809
  %v4321 = vadd.f32 %v4320, %v3810
  %v4322 = vadd.f32 %v4321, %v3811
  %v4323 = vadd.f32 %v4322, %v3812
  %v4324 = vadd.f32 %v4323, %v3813
  %v4325 = vadd.f32 %v4324, %v3814
  %v4326 = vadd.f32 %v4325, %v3815
  %v4327 = vadd.f32 %v4326, %v3816
  %v4328 = vadd.f32 %v4327, %v3817
  %v4329 = vadd.f32 %v4328, %v3818
  %v4330 = vadd.f32 %v4329, %v3819
  %v4331 = vadd.f32 %v4330, %v3820
  %v4332 = vadd.f32 %v4331, %v3821
  %v4333 = vadd.f32 %v4332, %v3822
  %v4334 = vadd.f32 %v4333, %v3823
  %v4335 = vadd.f32 %v4334, %v3824
  %v4336 = vadd.f32 %v4335, %v3825
  %v4337 = vadd.f32 %v4336, %v3826
  %v4338 = vadd.f32 %v4337, %v3827
  %v4339 = vadd.f32 %v4338, %v3828
  %v4340 = vadd.f32 %v4339, %v3829
  %v4341 = vadd.f32 %v4340, %v3830
  %v4342 = vadd.f32 %v4341, %v3831
  %v4343 = vadd.f32 %v4342, %v3832
  %v4344 = vadd.f32 %v4343, %v3833
  %v4345 = vadd.f32 %v4344, %v3834
  %v4346 = vadd.f32 %v4345, %v3835
  %v4347 = vadd.f32 %v4346, %v3836
  %v4348 = vadd.f32 %v4347, %v3837
  %v4349 = vadd.f32 %v4348, %v3838
  %v4350 = vadd.f32 %v4349, %v3839
  %v4351 = vadd.f32 %v4350, %v3840
  %v4352 = vadd.f32 %v4351, %v3841
  %v4353 = vadd.f32 %v4352, %v3842
  %v4354 = vadd.f32 %v4353, %v3843
  %v4355 = vadd.f32 %v4354, %v3844
  %v4356 = vadd.f32 %v4355, %v3845
  %v4357 = vadd.f32 %v4356, %v3846
  %v4358 = vadd.f32 %v4357, %v3847
  %v4359 = vadd.f32 %v4358, %v3848
  %v4360 = vadd.f32 %v4359, %v3849
  %v4361 = vadd.f32 %v4360, %v3850
  %v4362 = vadd.f32 %v4361, %v3851
  %v4363 = vadd.f32 %v4362, %v3852
  %v4364 = vadd.f32 %v4363, %v3853
  %v4365 = vadd.f32 %v4364, %v3854
  %v4366 = vadd.f32 %v4365, %v3855
  %v4367 = vadd.f32 %v4366, %v3856
  %v4368 = vadd.f32 %v4367, %v3857
  %v4369 = vadd.f32 %v4368, %v3858
  %v4370 = vadd.f32 %v4369, %v3859
  %v4371 = vadd.f32 %v4370, %v3860
  %v4372 = vadd.f32 %v4371, %v3861
  %v4373 = vadd.f32 %v4372, %v3862
  %v4374 = vadd.f32 %v4373, %v3863
  %v4375 = vadd.f32 %v4374, %v3864
  %v4376 = vadd.f32 %v4375, %v3865
  %v4377 = vadd.f32 %v4376, %v3866
  %v4378 = vadd.f32 %v4377, %v3867
  %v4379 = vadd.f32 %v4378, %v3868
  %v4380 = vadd.f32 %v4379, %v3869
  %v4381 = vadd.f32 %v4380, %v3870
  %v4382 = vadd.f32 %v4381, %v3871
  %v4383 = vadd.f32 %v4382, %v3872
  %v4384 = vadd.f32 %v4383, %v3873
  %v4385 = vadd.f32 %v4384, %v3874
  %v4386 = vadd.f32 %v4385, %v3875
  %v4387 = vadd.f32 %v4386, %v3876
  %v4388 = vadd.f32 %v4387, %v3877
  %v4389 = vadd.f32 %v4388, %v3878
  %v4390 = vadd.f32 %v4389, %v3879
  %v4391 = vadd.f32 %v4390, %v3880
  %v4392 = vadd.f32 %v4391, %v3881
  %v4393 = vadd.f32 %v4392, %v3882
  %v4394 = vadd.f32 %v4393, %v3883
  %v4395 = vadd.f32 %v4394, %v3884
  %v4396 = vadd.f32 %v4395, %v3885
  %v4397 = vadd.f32 %v4396, %v3886
  %v4398 = vadd.f32 %v4397, %v3887
  %v4399 = vadd.f32 %v4398, %v3888
  %v4400 = vadd.f32 %v4399, %v3889
  %v4401 = vadd.f32 %v4400, %v3890
  %v4402 = vadd.f32 %v4401, %v3891
  %v4403 = vadd.f32 %v4402, %v3892
  %v4404 = vadd.f32 %v4403, %v3893
  %v4405 = vadd.f32 %v4404, %v3894
  %v4406 = vadd.f32 %v4405, %v3895
  %v4407 = vadd.f32 %v4406, %v3896
  %v4408 = vadd.f32 %v4407, %v3897
  %v4409 = vadd.f32 %v4408, %v3898
  %v4410 = vadd.f32 %v4409, %v3899
  %v4411 = vadd.f32 %v4410, %v3900
  %v4412 = vadd.f32 %v4411, %v3901
  %v4413 = vadd.f32 %v4412, %v3902
  %v4414 = vadd.f32 %v4413, %v3903
  %v4415 = vadd.f32 %v4414, %v3904
  %v4416 = vadd.f32 %v4415, %v3905
  %v4417 = vadd.f32 %v4416, %v3906
  %v4418 = vadd.f32 %v4417, %v3907
  %v4419 = vadd.f32 %v4418, %v3908
  %v4420 = vadd.f32 %v4419, %v3909
  %v4421 = vadd.f32 %v4420, %v3910
  %v4422 = vadd.f32 %v4421, %v3911
  %v4423 = vadd.f32 %v4422, %v3912
  %v4424 = vadd.f32 %v4423, %v3913
  %v4425 = vadd.f32 %v4424, %v3914
  %v4426 = vadd.f32 %v4425, %v3915
  %v4427 = vadd.f32 %v4426, %v3916
  %v4428 = vadd.f32 %v4427, %v3917
  %v4429 = vadd.f32 %v4428, %v3918
  %v4430 = vadd.f32 %v4429, %v3919
  %v4431 = vadd.f32 %v4430, %v3920
  %v4432 = vadd.f32 %v4431, %v3921
  %v4433 = vadd.f32 %v4432, %v3922
  %v4434 = vadd.f32 %v4433, %v3923
  %v4435 = vadd.f32 %v4434, %v3924
  %v4436 = vadd.f32 %v4435, %v3925
  %v4437 = vadd.f32 %v4436, %v3926
  %v4438 = vadd.f32 %v4437, %v3927
  %v4439 = vadd.f32 %v4438, %v3928
  %v4440 = vadd.f32 %v4439, %v3929
  %v4441 = vadd.f32 %v4440, %v3930
  %v4442 = vadd.f32 %v4441, %v3931
  %v4443 = vadd.f32 %v4442, %v3932
  %v4444 = vadd.f32 %v4443, %v3933
  %v4445 = vadd.f32 %v4444, %v3934
  %v4446 = vadd.f32 %v4445, %v3935
  %v4447 = vadd.f32 %v4446, %v3936
  %v4448 = vadd.f32 %v4447, %v3937
  %v4449 = vadd.f32 %v4448, %v3938
  %v4450 = vadd.f32 %v4449, %v3939
  %v4451 = vadd.f32 %v4450, %v3940
  %v4452 = vadd.f32 %v4451, %v3941
  %v4453 = vadd.f32 %v4452, %v3942
  %v4454 = vadd.f32 %v4453, %v3943
  %v4455 = vadd.f32 %v4454, %v3944
  %v4456 = vadd.f32 %v4455, %v3945
  %v4457 = vadd.f32 %v4456, %v3946
  %v4458 = vadd.f32 %v4457, %v3947
  %v4459 = vadd.f32 %v4458, %v3948
  %v4460 = vadd.f32 %v4459, %v3949
  %v4461 = vadd.f32 %v4460, %v3950
  %v4462 = vadd.f32 %v4461, %v3951
  %v4463 = vadd.f32 %v4462, %v3952
  %v4464 = vadd.f32 %v4463, %v3953
  %v4465 = vadd.f32 %v4464, %v3954
  %v4466 = vadd.f32 %v4465, %v3955
  %v4467 = vadd.f32 %v4466, %v3956
  %v4468 = vadd.f32 %v4467, %v3957
  %v4469 = vadd.f32 %v4468, %v3958
  %v4470 = vadd.f32 %v4469, %v3959
  %v4471 = vadd.f32 %v4470, %v3960
  %v4472 = vadd.f32 %v4471, %v3961
  %v4473 = vadd.f32 %v4472, %v3962
  %v4474 = vadd.f32 %v4473, %v3963
  %v4475 = vadd.f32 %v4474, %v3964
  %v4476 = vadd.f32 %v4475, %v3965
  %v4477 = vadd.f32 %v4476, %v3966
  %v4478 = vrot.slane %v4477, 4
  %v4479 = vadd.f32 %v4477, %v4478
  %v4480 = vrot.slane %v4479, 2
  %v4481 = vadd.f32 %v4479, %v4480
  %v4482 = vrot.slane %v4481, 1
  %v4483 = vadd.f32 %v4481, %v4482
  %4484 = vst [vmem:[%s5] sm:$0x1] %v4483
  // Predicated region
  $region18: #{t_net_2_pooled.2} parent=0 // pred_check
    _
  $region19: #{t_net_2_pooled.2} parent=0 // pred_check_branch
    %4486 = sbr.rel (0) target = $region21
  $region20: #{t_net_2_pooled.2} parent=0 // pred_region
    _
  $region21: #{t_net_2_pooled.2} parent=0 // pred_fallthru
    _
  // Predicated region
  $region22: #{t_net_2_pooled.2} parent=0 // pred_check
    _
  $region23: #{t_net_2_pooled.2} parent=0 // pred_check_branch
    %4488 = sbr.rel (0) target = $region25
  $region24: #{t_net_2_pooled.2} parent=0 // pred_region
    _
  $region25: #{t_net_2_pooled.2} parent=0 // pred_fallthru
    _
  // Predicated region
  $region26: #{t_net_2_pooled.2} parent=0 // pred_check
    _
  $region27: #{t_net_2_pooled.2} parent=0 // pred_check_branch
    %4490 = sbr.rel (0) target = $region29
  $region28: #{t_net_2_pooled.2} parent=0 // pred_region
    _
  $region29: #{t_net_2_pooled.2} parent=0 // pred_fallthru
    _
  // Predicated region
  $region30: #{t_net_2_pooled.2} parent=0 // pred_check
    _
  $region31: #{t_net_2_pooled.2} parent=0 // pred_check_branch
    %4492 = sbr.rel (0) target = $region33
  $region32: #{t_net_2_pooled.2} parent=0 // pred_region
    _
  $region33: #{t_net_2_pooled.2} parent=0 // pred_fallthru
    _

</llo_original>
